<compile_context>
chip_gen: v6e
topology: v6e:2x2x1
jax: 0.10.0
libtpu: 0.0.40
codegen_flags: <defaults>
</compile_context>

<pallas_src>
import jax
import jax.numpy as jnp
from jax.experimental import pallas as pl
from jax.experimental.pallas import tpu as pltpu

IMG_SIZE = 28
PATCH = 7
EMBED = 32          # embed_dim (reduced from 128)
DEPTH = 2           # depth (reduced from 6)
HEADS = 4           # n_heads (reduced from 8)
MLP = 64            # mlp_dim (reduced from 256)
N_PATCHES = (IMG_SIZE // PATCH) ** 2      # 16
HEAD_DIM = EMBED // HEADS                 # 8
LN_EPS = 1e-5
ATTN_SCALE = 1.0 / float(HEAD_DIM) ** 0.5

_VMEM = pl.BlockSpec(memory_space=pltpu.MemorySpace.VMEM)

LAYER_KEYS = ("in_proj_w", "in_proj_b", "out_proj_w", "out_proj_b",
              "ln1_g", "ln1_b", "ff1_w", "ff1_b", "ff2_w", "ff2_b",
              "ln2_g", "ln2_b")
_N_LAYER_PARAMS = len(LAYER_KEYS)         # 12


# ----------------------------- kernel helpers ------------------------------

def _layernorm(x, g, b):
    mu = jnp.mean(x, axis=-1, keepdims=True)
    var = jnp.mean(jnp.square(x - mu), axis=-1, keepdims=True)
    return (x - mu) * jax.lax.rsqrt(var + LN_EPS) * g + b


def _gelu(x):
    # exact (erf-based) GELU, matching torch activation='gelu'
    return 0.5 * x * (1.0 + jax.lax.erf(x * jnp.float32(0.7071067811865476)))


# ----------------------------- fused kernel --------------------------------

def _vit_decoder_kernel(*refs):
    """Entire ViTDecoder forward, single launch, everything VMEM-resident.

    refs = (z, z2patch_w, z2patch_b, pos_embed, unproj_w, unproj_b,
            12 params per layer * DEPTH, out_ref, x_scratch)
    """
    n_in = 6 + _N_LAYER_PARAMS * DEPTH
    z_ref, z2p_w, z2p_b, pos_b, unp_w, unp_b = refs[:6]
    layer_refs = refs[6:n_in]
    out_ref = refs[n_in]
    x_ref = refs[n_in + 1]            # (B*S, E) residual-stream scratch (VMEM)

    B = z_ref.shape[0]
    S = N_PATCHES

    # ---- z2patch + pos embed: one (B, E) @ (E, S*E) matmul ----------------
    xb = (jnp.dot(z_ref[...], z2p_w[...], preferred_element_type=jnp.float32)
          + z2p_b[...] + pos_b[...])                       # (B, S*E)

    # Re-pack to the (B*S, E) token matrix (batch-major rows) with static
    # row stores into the VMEM scratch (avoids lane->sublane reshapes).
    for b in range(B):
        for s in range(S):
            r = b * S + s
            x_ref[r:r + 1, :] = xb[b:b + 1, s * EMBED:(s + 1) * EMBED]

    # ---- transformer encoder layers (post-norm, GELU, dropout=identity) ---
    for li in range(DEPTH):
        (inp_w, inp_b, out_w, out_b, ln1_g, ln1_b,
         ff1_w, ff1_b, ff2_w, ff2_b, ln2_g, ln2_b) = \
            layer_refs[_N_LAYER_PARAMS * li:_N_LAYER_PARAMS * (li + 1)]

        # -- multi-head self-attention: all (batch, head) pairs unrolled
        #    in-body (no grid steps); head-concat folded into out-proj. --
        x = x_ref[...]                                     # (B*S, E)
        qkv = (jnp.dot(x, inp_w[...], preferred_element_type=jnp.float32)
               + inp_b[...])                               # (B*S, 3E)
        wo = out_w[...]                                    # (E, E)
        for b in range(B):
            r0 = b * S
            acc = jnp.zeros((S, EMBED), jnp.float32)
            for h in range(HEADS):
                c = h * HEAD_DIM
                q = qkv[r0:r0 + S, c:c + HEAD_DIM]                     # (S, D)
                k = qkv[r0:r0 + S, EMBED + c:EMBED + c + HEAD_DIM]
                v = qkv[r0:r0 + S, 2 * EMBED + c:2 * EMBED + c + HEAD_DIM]
                s_ = jnp.dot(q, k.T,
                             preferred_element_type=jnp.float32) * ATTN_SCALE
                m = jnp.max(s_, axis=-1, keepdims=True)
                e = jnp.exp(s_ - m)
                # softmax denominator on the EUP (approx reciprocal is free)
                p = e * pl.reciprocal(jnp.sum(e, axis=-1, keepdims=True),
                                      approx=True)
                o = jnp.dot(p, v, preferred_element_type=jnp.float32)  # (S, D)
                # concat(heads) @ Wo  ==  sum_h  o_h @ Wo[h*D:(h+1)*D, :]
                acc = acc + jnp.dot(o, wo[c:c + HEAD_DIM, :],
                                    preferred_element_type=jnp.float32)
            # residual + norm1 (post-norm), written back per-batch block
            x_ref[r0:r0 + S, :] = _layernorm(
                x[r0:r0 + S, :] + acc + out_b[...], ln1_g[...], ln1_b[...])

        # -- feed forward + residual + norm2 --
        x = x_ref[...]
        h1 = _gelu(jnp.dot(x, ff1_w[...], preferred_element_type=jnp.float32)
                   + ff1_b[...])                           # (B*S, MLP)
        h2 = (jnp.dot(h1, ff2_w[...], preferred_element_type=jnp.float32)
              + ff2_b[...])                                # (B*S, E)
        x_ref[...] = _layernorm(x + h2, ln2_g[...], ln2_b[...])

    # ---- unproj + sigmoid (exact, keeps [0,1] guarantee) -------------------
    y = (jnp.dot(x_ref[...], unp_w[...], preferred_element_type=jnp.float32)
         + unp_b[...])                                     # (B*S, 49)
    out_ref[...] = 1.0 / (1.0 + jnp.exp(-y))


# ----------------------------- wrapper --------------------------------------

def vit_decoder_forward(z, params):
    B = z.shape[0]
    flat = [z, params["z2patch_w"], params["z2patch_b"], params["pos_embed"],
            params["unproj_w"], params["unproj_b"]]
    for lp in params["layers"]:
        flat.extend(lp[k] for k in LAYER_KEYS)

    y = pl.pallas_call(
        _vit_decoder_kernel,
        out_shape=jax.ShapeDtypeStruct((B * N_PATCHES, PATCH * PATCH),
                                       jnp.float32),
        in_specs=[_VMEM] * len(flat),
        out_specs=_VMEM,
        scratch_shapes=[pltpu.VMEM((B * N_PATCHES, EMBED), jnp.float32)],
    )(*flat)
    # torch: view(B, n_patches, 7, 7) -> permute(0,1,2,3) (identity)
    #        -> reshape(B, 1, 28, 28).  Row-major flatten order of y
    #        (b-major token rows, 49 pixels per row) matches exactly.
    return y.reshape(B, 1, IMG_SIZE, IMG_SIZE)


# ----------------------------- pure-JAX reference ---------------------------

def reference_forward(z, params):
    B = z.shape[0]
    S = N_PATCHES
    x = z @ params["z2patch_w"] + params["z2patch_b"] + params["pos_embed"]
    x = x.reshape(B * S, EMBED)                            # batch-major tokens
    for lp in params["layers"]:
        qkv = x @ lp["in_proj_w"] + lp["in_proj_b"]
        qkv = qkv.reshape(B, S, 3, HEADS, HEAD_DIM)
        q = qkv[:, :, 0].transpose(0, 2, 1, 3)             # (B, H, S, D)
        k = qkv[:, :, 1].transpose(0, 2, 1, 3)
        v = qkv[:, :, 2].transpose(0, 2, 1, 3)
        s = jnp.einsum("bhqd,bhkd->bhqk", q, k) * ATTN_SCALE
        p = jax.nn.softmax(s, axis=-1)
        o = jnp.einsum("bhqk,bhkd->bhqd", p, v)
        o = o.transpose(0, 2, 1, 3).reshape(B * S, EMBED)
        attn = o @ lp["out_proj_w"] + lp["out_proj_b"]
        x = _layernorm(x + attn, lp["ln1_g"], lp["ln1_b"])
        h = jax.nn.gelu(x @ lp["ff1_w"] + lp["ff1_b"], approximate=False)
        h = h @ lp["ff2_w"] + lp["ff2_b"]
        x = _layernorm(x + h, lp["ln2_g"], lp["ln2_b"])
    y = jax.nn.sigmoid(x @ params["unproj_w"] + params["unproj_b"])
    return y.reshape(B, 1, IMG_SIZE, IMG_SIZE)


# ----------------------------- params ---------------------------------------

def init_params(key):
    keys = iter(jax.random.split(key, 8 + 12 * DEPTH))

    def nrm(shape, scale=0.02):
        return (scale * jax.random.normal(next(keys), shape)).astype(jnp.float32)

    params = {
        # weights stored pre-transposed as (in_features, out_features)
        "z2patch_w": nrm((EMBED, N_PATCHES * EMBED)),
        "z2patch_b": nrm((1, N_PATCHES * EMBED)),
        # stored pre-flattened (1, n_patches*E); same values as torch (1, n_patches, E)
        "pos_embed": nrm((1, N_PATCHES * EMBED), scale=1.0),
        "unproj_w": nrm((EMBED, PATCH * PATCH)),
        "unproj_b": nrm((1, PATCH * PATCH)),
        "layers": [],
    }
    for _ in range(DEPTH):
        params["layers"].append({
            "in_proj_w": nrm((EMBED, 3 * EMBED)),
            "in_proj_b": nrm((1, 3 * EMBED)),
            "out_proj_w": nrm((EMBED, EMBED)),
            "out_proj_b": nrm((1, EMBED)),
            "ln1_g": jnp.ones((1, EMBED), jnp.float32),
            "ln1_b": jnp.zeros((1, EMBED), jnp.float32),
            "ff1_w": nrm((EMBED, MLP)),
            "ff1_b": nrm((1, MLP)),
            "ff2_w": nrm((MLP, EMBED)),
            "ff2_b": nrm((1, EMBED)),
            "ln2_g": jnp.ones((1, EMBED), jnp.float32),
            "ln2_b": jnp.zeros((1, EMBED), jnp.float32),
        })
    return params


if __name__ == "__main__":
    key = jax.random.PRNGKey(0)
    pkey, zkey = jax.random.split(key)
    params = init_params(pkey)
    z = jax.random.normal(zkey, (2, EMBED), dtype=jnp.float32)   # batch=2

    out = jax.jit(vit_decoder_forward)(z, params)
    out = jax.block_until_ready(out)
    assert out.shape == (2, 1, 28, 28), out.shape
    assert bool(jnp.all(jnp.isfinite(out)))
    assert bool(jnp.all((out >= 0.0) & (out <= 1.0)))   # sigmoid range

    # correctness vs. a pure-JAX reference (full-precision matmuls)
    with jax.default_matmul_precision("float32"):
        ref = reference_forward(z, params)
    err = float(jnp.max(jnp.abs(out - ref)))
    assert err < 1e-2, f"max abs err vs reference: {err}"

    print("KERNEL_OK")
</pallas_src>

<mosaic_0001>
module attributes {stable_mosaic.version = 11 : i64} {
  func.func @_vit_decoder_kernel(%arg0: memref<2x32xf32, #tpu.memory_space<vmem>>, %arg1: memref<32x512xf32, #tpu.memory_space<vmem>>, %arg2: memref<1x512xf32, #tpu.memory_space<vmem>>, %arg3: memref<1x512xf32, #tpu.memory_space<vmem>>, %arg4: memref<32x49xf32, #tpu.memory_space<vmem>>, %arg5: memref<1x49xf32, #tpu.memory_space<vmem>>, %arg6: memref<32x96xf32, #tpu.memory_space<vmem>>, %arg7: memref<1x96xf32, #tpu.memory_space<vmem>>, %arg8: memref<32x32xf32, #tpu.memory_space<vmem>>, %arg9: memref<1x32xf32, #tpu.memory_space<vmem>>, %arg10: memref<1x32xf32, #tpu.memory_space<vmem>>, %arg11: memref<1x32xf32, #tpu.memory_space<vmem>>, %arg12: memref<32x64xf32, #tpu.memory_space<vmem>>, %arg13: memref<1x64xf32, #tpu.memory_space<vmem>>, %arg14: memref<64x32xf32, #tpu.memory_space<vmem>>, %arg15: memref<1x32xf32, #tpu.memory_space<vmem>>, %arg16: memref<1x32xf32, #tpu.memory_space<vmem>>, %arg17: memref<1x32xf32, #tpu.memory_space<vmem>>, %arg18: memref<32x96xf32, #tpu.memory_space<vmem>>, %arg19: memref<1x96xf32, #tpu.memory_space<vmem>>, %arg20: memref<32x32xf32, #tpu.memory_space<vmem>>, %arg21: memref<1x32xf32, #tpu.memory_space<vmem>>, %arg22: memref<1x32xf32, #tpu.memory_space<vmem>>, %arg23: memref<1x32xf32, #tpu.memory_space<vmem>>, %arg24: memref<32x64xf32, #tpu.memory_space<vmem>>, %arg25: memref<1x64xf32, #tpu.memory_space<vmem>>, %arg26: memref<64x32xf32, #tpu.memory_space<vmem>>, %arg27: memref<1x32xf32, #tpu.memory_space<vmem>>, %arg28: memref<1x32xf32, #tpu.memory_space<vmem>>, %arg29: memref<1x32xf32, #tpu.memory_space<vmem>>, %arg30: memref<32x49xf32, #tpu.memory_space<vmem>>, %arg31: memref<32x32xf32, #tpu.memory_space<vmem>>) attributes {dimension_semantics = [], scalar_prefetch = 0 : i64, scratch_operands = 1 : i64, tpu.core_type = #tpu.core_type<tc>} {
    %c0 = arith.constant 0 : index
    %c0_0 = arith.constant 0 : index
    %0 = vector.load %arg0[%c0, %c0_0] : memref<2x32xf32, #tpu.memory_space<vmem>>, vector<2x32xf32>
    %c0_1 = arith.constant 0 : index
    %c0_2 = arith.constant 0 : index
    %1 = vector.load %arg1[%c0_1, %c0_2] : memref<32x512xf32, #tpu.memory_space<vmem>>, vector<32x512xf32>
    %cst = arith.constant dense<0.000000e+00> : vector<2x512xf32>
    %2 = tpu.matmul %0, %1, %cst {dimension_numbers = #tpu.dot_dimension_numbers<[1], [0], [0], [1], [0, 0, 1, 1], [], []>} : vector<2x32xf32>, vector<32x512xf32>, vector<2x512xf32> -> vector<2x512xf32>
    %c0_3 = arith.constant 0 : index
    %c0_4 = arith.constant 0 : index
    %3 = vector.load %arg2[%c0_3, %c0_4] : memref<1x512xf32, #tpu.memory_space<vmem>>, vector<1x512xf32>
    %4 = vector.broadcast %3 : vector<1x512xf32> to vector<2x512xf32>
    %5 = arith.addf %2, %4 : vector<2x512xf32>
    %c0_5 = arith.constant 0 : index
    %c0_6 = arith.constant 0 : index
    %6 = vector.load %arg3[%c0_5, %c0_6] : memref<1x512xf32, #tpu.memory_space<vmem>>, vector<1x512xf32>
    %7 = vector.broadcast %6 : vector<1x512xf32> to vector<2x512xf32>
    %8 = arith.addf %5, %7 : vector<2x512xf32>
    %9 = vector.extract_strided_slice %8 {offsets = [0, 0], sizes = [1, 32], strides = [1, 1]} : vector<2x512xf32> to vector<1x32xf32>
    %c0_7 = arith.constant 0 : index
    %c0_8 = arith.constant 0 : index
    %10 = vector.load %arg31[%c0_7, %c0_8] : memref<32x32xf32, #tpu.memory_space<vmem>>, vector<1x32xf32>
    tpu.vector_store %arg31[%c0_7, %c0_8], %9 {strides = array<i32>} : memref<32x32xf32, #tpu.memory_space<vmem>>, vector<1x32xf32>,
    %11 = vector.extract_strided_slice %8 {offsets = [0, 32], sizes = [1, 32], strides = [1, 1]} : vector<2x512xf32> to vector<1x32xf32>
    %c1 = arith.constant 1 : index
    %c0_9 = arith.constant 0 : index
    %12 = vector.load %arg31[%c1, %c0_9] : memref<32x32xf32, #tpu.memory_space<vmem>>, vector<1x32xf32>
    tpu.vector_store %arg31[%c1, %c0_9], %11 {strides = array<i32>} : memref<32x32xf32, #tpu.memory_space<vmem>>, vector<1x32xf32>,
    %13 = vector.extract_strided_slice %8 {offsets = [0, 64], sizes = [1, 32], strides = [1, 1]} : vector<2x512xf32> to vector<1x32xf32>
    %c2 = arith.constant 2 : index
    %c0_10 = arith.constant 0 : index
    %14 = vector.load %arg31[%c2, %c0_10] : memref<32x32xf32, #tpu.memory_space<vmem>>, vector<1x32xf32>
    tpu.vector_store %arg31[%c2, %c0_10], %13 {strides = array<i32>} : memref<32x32xf32, #tpu.memory_space<vmem>>, vector<1x32xf32>,
    %15 = vector.extract_strided_slice %8 {offsets = [0, 96], sizes = [1, 32], strides = [1, 1]} : vector<2x512xf32> to vector<1x32xf32>
    %c3 = arith.constant 3 : index
    %c0_11 = arith.constant 0 : index
    %16 = vector.load %arg31[%c3, %c0_11] : memref<32x32xf32, #tpu.memory_space<vmem>>, vector<1x32xf32>
    tpu.vector_store %arg31[%c3, %c0_11], %15 {strides = array<i32>} : memref<32x32xf32, #tpu.memory_space<vmem>>, vector<1x32xf32>,
    %17 = vector.extract_strided_slice %8 {offsets = [0, 128], sizes = [1, 32], strides = [1, 1]} : vector<2x512xf32> to vector<1x32xf32>
    %c4 = arith.constant 4 : index
    %c0_12 = arith.constant 0 : index
    %18 = vector.load %arg31[%c4, %c0_12] : memref<32x32xf32, #tpu.memory_space<vmem>>, vector<1x32xf32>
    tpu.vector_store %arg31[%c4, %c0_12], %17 {strides = array<i32>} : memref<32x32xf32, #tpu.memory_space<vmem>>, vector<1x32xf32>,
    %19 = vector.extract_strided_slice %8 {offsets = [0, 160], sizes = [1, 32], strides = [1, 1]} : vector<2x512xf32> to vector<1x32xf32>
    %c5 = arith.constant 5 : index
    %c0_13 = arith.constant 0 : index
    %20 = vector.load %arg31[%c5, %c0_13] : memref<32x32xf32, #tpu.memory_space<vmem>>, vector<1x32xf32>
    tpu.vector_store %arg31[%c5, %c0_13], %19 {strides = array<i32>} : memref<32x32xf32, #tpu.memory_space<vmem>>, vector<1x32xf32>,
    %21 = vector.extract_strided_slice %8 {offsets = [0, 192], sizes = [1, 32], strides = [1, 1]} : vector<2x512xf32> to vector<1x32xf32>
    %c6 = arith.constant 6 : index
    %c0_14 = arith.constant 0 : index
    %22 = vector.load %arg31[%c6, %c0_14] : memref<32x32xf32, #tpu.memory_space<vmem>>, vector<1x32xf32>
    tpu.vector_store %arg31[%c6, %c0_14], %21 {strides = array<i32>} : memref<32x32xf32, #tpu.memory_space<vmem>>, vector<1x32xf32>,
    %23 = vector.extract_strided_slice %8 {offsets = [0, 224], sizes = [1, 32], strides = [1, 1]} : vector<2x512xf32> to vector<1x32xf32>
    %c7 = arith.constant 7 : index
    %c0_15 = arith.constant 0 : index
    %24 = vector.load %arg31[%c7, %c0_15] : memref<32x32xf32, #tpu.memory_space<vmem>>, vector<1x32xf32>
    tpu.vector_store %arg31[%c7, %c0_15], %23 {strides = array<i32>} : memref<32x32xf32, #tpu.memory_space<vmem>>, vector<1x32xf32>,
    %25 = vector.extract_strided_slice %8 {offsets = [0, 256], sizes = [1, 32], strides = [1, 1]} : vector<2x512xf32> to vector<1x32xf32>
    %c8 = arith.constant 8 : index
    %c0_16 = arith.constant 0 : index
    %26 = vector.load %arg31[%c8, %c0_16] : memref<32x32xf32, #tpu.memory_space<vmem>>, vector<1x32xf32>
    tpu.vector_store %arg31[%c8, %c0_16], %25 {strides = array<i32>} : memref<32x32xf32, #tpu.memory_space<vmem>>, vector<1x32xf32>,
    %27 = vector.extract_strided_slice %8 {offsets = [0, 288], sizes = [1, 32], strides = [1, 1]} : vector<2x512xf32> to vector<1x32xf32>
    %c9 = arith.constant 9 : index
    %c0_17 = arith.constant 0 : index
    %28 = vector.load %arg31[%c9, %c0_17] : memref<32x32xf32, #tpu.memory_space<vmem>>, vector<1x32xf32>
    tpu.vector_store %arg31[%c9, %c0_17], %27 {strides = array<i32>} : memref<32x32xf32, #tpu.memory_space<vmem>>, vector<1x32xf32>,
    %29 = vector.extract_strided_slice %8 {offsets = [0, 320], sizes = [1, 32], strides = [1, 1]} : vector<2x512xf32> to vector<1x32xf32>
    %c10 = arith.constant 10 : index
    %c0_18 = arith.constant 0 : index
    %30 = vector.load %arg31[%c10, %c0_18] : memref<32x32xf32, #tpu.memory_space<vmem>>, vector<1x32xf32>
    tpu.vector_store %arg31[%c10, %c0_18], %29 {strides = array<i32>} : memref<32x32xf32, #tpu.memory_space<vmem>>, vector<1x32xf32>,
    %31 = vector.extract_strided_slice %8 {offsets = [0, 352], sizes = [1, 32], strides = [1, 1]} : vector<2x512xf32> to vector<1x32xf32>
    %c11 = arith.constant 11 : index
    %c0_19 = arith.constant 0 : index
    %32 = vector.load %arg31[%c11, %c0_19] : memref<32x32xf32, #tpu.memory_space<vmem>>, vector<1x32xf32>
    tpu.vector_store %arg31[%c11, %c0_19], %31 {strides = array<i32>} : memref<32x32xf32, #tpu.memory_space<vmem>>, vector<1x32xf32>,
    %33 = vector.extract_strided_slice %8 {offsets = [0, 384], sizes = [1, 32], strides = [1, 1]} : vector<2x512xf32> to vector<1x32xf32>
    %c12 = arith.constant 12 : index
    %c0_20 = arith.constant 0 : index
    %34 = vector.load %arg31[%c12, %c0_20] : memref<32x32xf32, #tpu.memory_space<vmem>>, vector<1x32xf32>
    tpu.vector_store %arg31[%c12, %c0_20], %33 {strides = array<i32>} : memref<32x32xf32, #tpu.memory_space<vmem>>, vector<1x32xf32>,
    %35 = vector.extract_strided_slice %8 {offsets = [0, 416], sizes = [1, 32], strides = [1, 1]} : vector<2x512xf32> to vector<1x32xf32>
    %c13 = arith.constant 13 : index
    %c0_21 = arith.constant 0 : index
    %36 = vector.load %arg31[%c13, %c0_21] : memref<32x32xf32, #tpu.memory_space<vmem>>, vector<1x32xf32>
    tpu.vector_store %arg31[%c13, %c0_21], %35 {strides = array<i32>} : memref<32x32xf32, #tpu.memory_space<vmem>>, vector<1x32xf32>,
    %37 = vector.extract_strided_slice %8 {offsets = [0, 448], sizes = [1, 32], strides = [1, 1]} : vector<2x512xf32> to vector<1x32xf32>
    %c14 = arith.constant 14 : index
    %c0_22 = arith.constant 0 : index
    %38 = vector.load %arg31[%c14, %c0_22] : memref<32x32xf32, #tpu.memory_space<vmem>>, vector<1x32xf32>
    tpu.vector_store %arg31[%c14, %c0_22], %37 {strides = array<i32>} : memref<32x32xf32, #tpu.memory_space<vmem>>, vector<1x32xf32>,
    %39 = vector.extract_strided_slice %8 {offsets = [0, 480], sizes = [1, 32], strides = [1, 1]} : vector<2x512xf32> to vector<1x32xf32>
    %c15 = arith.constant 15 : index
    %c0_23 = arith.constant 0 : index
    %40 = vector.load %arg31[%c15, %c0_23] : memref<32x32xf32, #tpu.memory_space<vmem>>, vector<1x32xf32>
    tpu.vector_store %arg31[%c15, %c0_23], %39 {strides = array<i32>} : memref<32x32xf32, #tpu.memory_space<vmem>>, vector<1x32xf32>,
    %41 = vector.extract_strided_slice %8 {offsets = [1, 0], sizes = [1, 32], strides = [1, 1]} : vector<2x512xf32> to vector<1x32xf32>
    %c16 = arith.constant 16 : index
    %c0_24 = arith.constant 0 : index
    %42 = vector.load %arg31[%c16, %c0_24] : memref<32x32xf32, #tpu.memory_space<vmem>>, vector<1x32xf32>
    tpu.vector_store %arg31[%c16, %c0_24], %41 {strides = array<i32>} : memref<32x32xf32, #tpu.memory_space<vmem>>, vector<1x32xf32>,
    %43 = vector.extract_strided_slice %8 {offsets = [1, 32], sizes = [1, 32], strides = [1, 1]} : vector<2x512xf32> to vector<1x32xf32>
    %c17 = arith.constant 17 : index
    %c0_25 = arith.constant 0 : index
    %44 = vector.load %arg31[%c17, %c0_25] : memref<32x32xf32, #tpu.memory_space<vmem>>, vector<1x32xf32>
    tpu.vector_store %arg31[%c17, %c0_25], %43 {strides = array<i32>} : memref<32x32xf32, #tpu.memory_space<vmem>>, vector<1x32xf32>,
    %45 = vector.extract_strided_slice %8 {offsets = [1, 64], sizes = [1, 32], strides = [1, 1]} : vector<2x512xf32> to vector<1x32xf32>
    %c18 = arith.constant 18 : index
    %c0_26 = arith.constant 0 : index
    %46 = vector.load %arg31[%c18, %c0_26] : memref<32x32xf32, #tpu.memory_space<vmem>>, vector<1x32xf32>
    tpu.vector_store %arg31[%c18, %c0_26], %45 {strides = array<i32>} : memref<32x32xf32, #tpu.memory_space<vmem>>, vector<1x32xf32>,
    %47 = vector.extract_strided_slice %8 {offsets = [1, 96], sizes = [1, 32], strides = [1, 1]} : vector<2x512xf32> to vector<1x32xf32>
    %c19 = arith.constant 19 : index
    %c0_27 = arith.constant 0 : index
    %48 = vector.load %arg31[%c19, %c0_27] : memref<32x32xf32, #tpu.memory_space<vmem>>, vector<1x32xf32>
    tpu.vector_store %arg31[%c19, %c0_27], %47 {strides = array<i32>} : memref<32x32xf32, #tpu.memory_space<vmem>>, vector<1x32xf32>,
    %49 = vector.extract_strided_slice %8 {offsets = [1, 128], sizes = [1, 32], strides = [1, 1]} : vector<2x512xf32> to vector<1x32xf32>
    %c20 = arith.constant 20 : index
    %c0_28 = arith.constant 0 : index
    %50 = vector.load %arg31[%c20, %c0_28] : memref<32x32xf32, #tpu.memory_space<vmem>>, vector<1x32xf32>
    tpu.vector_store %arg31[%c20, %c0_28], %49 {strides = array<i32>} : memref<32x32xf32, #tpu.memory_space<vmem>>, vector<1x32xf32>,
    %51 = vector.extract_strided_slice %8 {offsets = [1, 160], sizes = [1, 32], strides = [1, 1]} : vector<2x512xf32> to vector<1x32xf32>
    %c21 = arith.constant 21 : index
    %c0_29 = arith.constant 0 : index
    %52 = vector.load %arg31[%c21, %c0_29] : memref<32x32xf32, #tpu.memory_space<vmem>>, vector<1x32xf32>
    tpu.vector_store %arg31[%c21, %c0_29], %51 {strides = array<i32>} : memref<32x32xf32, #tpu.memory_space<vmem>>, vector<1x32xf32>,
    %53 = vector.extract_strided_slice %8 {offsets = [1, 192], sizes = [1, 32], strides = [1, 1]} : vector<2x512xf32> to vector<1x32xf32>
    %c22 = arith.constant 22 : index
    %c0_30 = arith.constant 0 : index
    %54 = vector.load %arg31[%c22, %c0_30] : memref<32x32xf32, #tpu.memory_space<vmem>>, vector<1x32xf32>
    tpu.vector_store %arg31[%c22, %c0_30], %53 {strides = array<i32>} : memref<32x32xf32, #tpu.memory_space<vmem>>, vector<1x32xf32>,
    %55 = vector.extract_strided_slice %8 {offsets = [1, 224], sizes = [1, 32], strides = [1, 1]} : vector<2x512xf32> to vector<1x32xf32>
    %c23 = arith.constant 23 : index
    %c0_31 = arith.constant 0 : index
    %56 = vector.load %arg31[%c23, %c0_31] : memref<32x32xf32, #tpu.memory_space<vmem>>, vector<1x32xf32>
    tpu.vector_store %arg31[%c23, %c0_31], %55 {strides = array<i32>} : memref<32x32xf32, #tpu.memory_space<vmem>>, vector<1x32xf32>,
    %57 = vector.extract_strided_slice %8 {offsets = [1, 256], sizes = [1, 32], strides = [1, 1]} : vector<2x512xf32> to vector<1x32xf32>
    %c24 = arith.constant 24 : index
    %c0_32 = arith.constant 0 : index
    %58 = vector.load %arg31[%c24, %c0_32] : memref<32x32xf32, #tpu.memory_space<vmem>>, vector<1x32xf32>
    tpu.vector_store %arg31[%c24, %c0_32], %57 {strides = array<i32>} : memref<32x32xf32, #tpu.memory_space<vmem>>, vector<1x32xf32>,
    %59 = vector.extract_strided_slice %8 {offsets = [1, 288], sizes = [1, 32], strides = [1, 1]} : vector<2x512xf32> to vector<1x32xf32>
    %c25 = arith.constant 25 : index
    %c0_33 = arith.constant 0 : index
    %60 = vector.load %arg31[%c25, %c0_33] : memref<32x32xf32, #tpu.memory_space<vmem>>, vector<1x32xf32>
    tpu.vector_store %arg31[%c25, %c0_33], %59 {strides = array<i32>} : memref<32x32xf32, #tpu.memory_space<vmem>>, vector<1x32xf32>,
    %61 = vector.extract_strided_slice %8 {offsets = [1, 320], sizes = [1, 32], strides = [1, 1]} : vector<2x512xf32> to vector<1x32xf32>
    %c26 = arith.constant 26 : index
    %c0_34 = arith.constant 0 : index
    %62 = vector.load %arg31[%c26, %c0_34] : memref<32x32xf32, #tpu.memory_space<vmem>>, vector<1x32xf32>
    tpu.vector_store %arg31[%c26, %c0_34], %61 {strides = array<i32>} : memref<32x32xf32, #tpu.memory_space<vmem>>, vector<1x32xf32>,
    %63 = vector.extract_strided_slice %8 {offsets = [1, 352], sizes = [1, 32], strides = [1, 1]} : vector<2x512xf32> to vector<1x32xf32>
    %c27 = arith.constant 27 : index
    %c0_35 = arith.constant 0 : index
    %64 = vector.load %arg31[%c27, %c0_35] : memref<32x32xf32, #tpu.memory_space<vmem>>, vector<1x32xf32>
    tpu.vector_store %arg31[%c27, %c0_35], %63 {strides = array<i32>} : memref<32x32xf32, #tpu.memory_space<vmem>>, vector<1x32xf32>,
    %65 = vector.extract_strided_slice %8 {offsets = [1, 384], sizes = [1, 32], strides = [1, 1]} : vector<2x512xf32> to vector<1x32xf32>
    %c28 = arith.constant 28 : index
    %c0_36 = arith.constant 0 : index
    %66 = vector.load %arg31[%c28, %c0_36] : memref<32x32xf32, #tpu.memory_space<vmem>>, vector<1x32xf32>
    tpu.vector_store %arg31[%c28, %c0_36], %65 {strides = array<i32>} : memref<32x32xf32, #tpu.memory_space<vmem>>, vector<1x32xf32>,
    %67 = vector.extract_strided_slice %8 {offsets = [1, 416], sizes = [1, 32], strides = [1, 1]} : vector<2x512xf32> to vector<1x32xf32>
    %c29 = arith.constant 29 : index
    %c0_37 = arith.constant 0 : index
    %68 = vector.load %arg31[%c29, %c0_37] : memref<32x32xf32, #tpu.memory_space<vmem>>, vector<1x32xf32>
    tpu.vector_store %arg31[%c29, %c0_37], %67 {strides = array<i32>} : memref<32x32xf32, #tpu.memory_space<vmem>>, vector<1x32xf32>,
    %69 = vector.extract_strided_slice %8 {offsets = [1, 448], sizes = [1, 32], strides = [1, 1]} : vector<2x512xf32> to vector<1x32xf32>
    %c30 = arith.constant 30 : index
    %c0_38 = arith.constant 0 : index
    %70 = vector.load %arg31[%c30, %c0_38] : memref<32x32xf32, #tpu.memory_space<vmem>>, vector<1x32xf32>
    tpu.vector_store %arg31[%c30, %c0_38], %69 {strides = array<i32>} : memref<32x32xf32, #tpu.memory_space<vmem>>, vector<1x32xf32>,
    %71 = vector.extract_strided_slice %8 {offsets = [1, 480], sizes = [1, 32], strides = [1, 1]} : vector<2x512xf32> to vector<1x32xf32>
    %c31 = arith.constant 31 : index
    %c0_39 = arith.constant 0 : index
    %72 = vector.load %arg31[%c31, %c0_39] : memref<32x32xf32, #tpu.memory_space<vmem>>, vector<1x32xf32>
    tpu.vector_store %arg31[%c31, %c0_39], %71 {strides = array<i32>} : memref<32x32xf32, #tpu.memory_space<vmem>>, vector<1x32xf32>,
    %c0_40 = arith.constant 0 : index
    %c0_41 = arith.constant 0 : index
    %73 = vector.load %arg31[%c0_40, %c0_41] : memref<32x32xf32, #tpu.memory_space<vmem>>, vector<32x32xf32>
    %c0_42 = arith.constant 0 : index
    %c0_43 = arith.constant 0 : index
    %74 = vector.load %arg6[%c0_42, %c0_43] : memref<32x96xf32, #tpu.memory_space<vmem>>, vector<32x96xf32>
    %cst_44 = arith.constant dense<0.000000e+00> : vector<32x96xf32>
    %75 = tpu.matmul %73, %74, %cst_44 {dimension_numbers = #tpu.dot_dimension_numbers<[1], [0], [0], [1], [0, 0, 1, 1], [], []>} : vector<32x32xf32>, vector<32x96xf32>, vector<32x96xf32> -> vector<32x96xf32>
    %c0_45 = arith.constant 0 : index
    %c0_46 = arith.constant 0 : index
    %76 = vector.load %arg7[%c0_45, %c0_46] : memref<1x96xf32, #tpu.memory_space<vmem>>, vector<1x96xf32>
    %77 = vector.broadcast %76 : vector<1x96xf32> to vector<32x96xf32>
    %78 = arith.addf %75, %77 : vector<32x96xf32>
    %c0_47 = arith.constant 0 : index
    %c0_48 = arith.constant 0 : index
    %79 = vector.load %arg8[%c0_47, %c0_48] : memref<32x32xf32, #tpu.memory_space<vmem>>, vector<32x32xf32>
    %cst_49 = arith.constant 0.000000e+00 : f32
    %80 = vector.broadcast %cst_49 : f32 to vector<16x32xf32>
    %81 = vector.extract_strided_slice %78 {offsets = [0, 0], sizes = [16, 8], strides = [1, 1]} : vector<32x96xf32> to vector<16x8xf32>
    %82 = vector.extract_strided_slice %78 {offsets = [0, 32], sizes = [16, 8], strides = [1, 1]} : vector<32x96xf32> to vector<16x8xf32>
    %83 = vector.extract_strided_slice %78 {offsets = [0, 64], sizes = [16, 8], strides = [1, 1]} : vector<32x96xf32> to vector<16x8xf32>
    %84 = tpu.transpose %82, [1, 0] : vector<16x8xf32> -> vector<8x16xf32>
    %cst_50 = arith.constant dense<0.000000e+00> : vector<16x16xf32>
    %85 = tpu.matmul %81, %84, %cst_50 {dimension_numbers = #tpu.dot_dimension_numbers<[1], [0], [0], [1], [0, 0, 1, 1], [], []>} : vector<16x8xf32>, vector<8x16xf32>, vector<16x16xf32> -> vector<16x16xf32>
    %cst_51 = arith.constant 0.353553385 : f32
    %86 = vector.broadcast %cst_51 : f32 to vector<16x16xf32>
    %87 = arith.mulf %85, %86 : vector<16x16xf32>
    %cst_52 = arith.constant dense<0xFF800000> : vector<16xf32>
    %88 = vector.multi_reduction <maximumf>, %87, %cst_52 [1] : vector<16x16xf32> to vector<16xf32>
    %89 = vector.shape_cast %88 : vector<16xf32> to vector<16x1xf32>
    %90 = vector.broadcast %89 : vector<16x1xf32> to vector<16x16xf32>
    %91 = arith.subf %87, %90 : vector<16x16xf32>
    %92 = math.exp %91 : vector<16x16xf32>
    %cst_53 = arith.constant dense<0.000000e+00> : vector<16xf32>
    %93 = vector.multi_reduction <add>, %92, %cst_53 [1] : vector<16x16xf32> to vector<16xf32>
    %94 = vector.shape_cast %93 : vector<16xf32> to vector<16x1xf32>
    %95 = tpu.reciprocal %94 {approx = true} : vector<16x1xf32> -> vector<16x1xf32>
    %96 = vector.broadcast %95 : vector<16x1xf32> to vector<16x16xf32>
    %97 = arith.mulf %92, %96 : vector<16x16xf32>
    %cst_54 = arith.constant dense<0.000000e+00> : vector<16x8xf32>
    %98 = tpu.matmul %97, %83, %cst_54 {dimension_numbers = #tpu.dot_dimension_numbers<[1], [0], [0], [1], [0, 0, 1, 1], [], []>} : vector<16x16xf32>, vector<16x8xf32>, vector<16x8xf32> -> vector<16x8xf32>
    %99 = vector.extract_strided_slice %79 {offsets = [0, 0], sizes = [8, 32], strides = [1, 1]} : vector<32x32xf32> to vector<8x32xf32>
    %cst_55 = arith.constant dense<0.000000e+00> : vector<16x32xf32>
    %100 = tpu.matmul %98, %99, %cst_55 {dimension_numbers = #tpu.dot_dimension_numbers<[1], [0], [0], [1], [0, 0, 1, 1], [], []>} : vector<16x8xf32>, vector<8x32xf32>, vector<16x32xf32> -> vector<16x32xf32>
    %101 = arith.addf %80, %100 : vector<16x32xf32>
    %102 = vector.extract_strided_slice %78 {offsets = [0, 8], sizes = [16, 8], strides = [1, 1]} : vector<32x96xf32> to vector<16x8xf32>
    %103 = vector.extract_strided_slice %78 {offsets = [0, 40], sizes = [16, 8], strides = [1, 1]} : vector<32x96xf32> to vector<16x8xf32>
    %104 = vector.extract_strided_slice %78 {offsets = [0, 72], sizes = [16, 8], strides = [1, 1]} : vector<32x96xf32> to vector<16x8xf32>
    %105 = tpu.transpose %103, [1, 0] : vector<16x8xf32> -> vector<8x16xf32>
    %cst_56 = arith.constant dense<0.000000e+00> : vector<16x16xf32>
    %106 = tpu.matmul %102, %105, %cst_56 {dimension_numbers = #tpu.dot_dimension_numbers<[1], [0], [0], [1], [0, 0, 1, 1], [], []>} : vector<16x8xf32>, vector<8x16xf32>, vector<16x16xf32> -> vector<16x16xf32>
    %cst_57 = arith.constant 0.353553385 : f32
    %107 = vector.broadcast %cst_57 : f32 to vector<16x16xf32>
    %108 = arith.mulf %106, %107 : vector<16x16xf32>
    %cst_58 = arith.constant dense<0xFF800000> : vector<16xf32>
    %109 = vector.multi_reduction <maximumf>, %108, %cst_58 [1] : vector<16x16xf32> to vector<16xf32>
    %110 = vector.shape_cast %109 : vector<16xf32> to vector<16x1xf32>
    %111 = vector.broadcast %110 : vector<16x1xf32> to vector<16x16xf32>
    %112 = arith.subf %108, %111 : vector<16x16xf32>
    %113 = math.exp %112 : vector<16x16xf32>
    %cst_59 = arith.constant dense<0.000000e+00> : vector<16xf32>
    %114 = vector.multi_reduction <add>, %113, %cst_59 [1] : vector<16x16xf32> to vector<16xf32>
    %115 = vector.shape_cast %114 : vector<16xf32> to vector<16x1xf32>
    %116 = tpu.reciprocal %115 {approx = true} : vector<16x1xf32> -> vector<16x1xf32>
    %117 = vector.broadcast %116 : vector<16x1xf32> to vector<16x16xf32>
    %118 = arith.mulf %113, %117 : vector<16x16xf32>
    %cst_60 = arith.constant dense<0.000000e+00> : vector<16x8xf32>
    %119 = tpu.matmul %118, %104, %cst_60 {dimension_numbers = #tpu.dot_dimension_numbers<[1], [0], [0], [1], [0, 0, 1, 1], [], []>} : vector<16x16xf32>, vector<16x8xf32>, vector<16x8xf32> -> vector<16x8xf32>
    %120 = vector.extract_strided_slice %79 {offsets = [8, 0], sizes = [8, 32], strides = [1, 1]} : vector<32x32xf32> to vector<8x32xf32>
    %cst_61 = arith.constant dense<0.000000e+00> : vector<16x32xf32>
    %121 = tpu.matmul %119, %120, %cst_61 {dimension_numbers = #tpu.dot_dimension_numbers<[1], [0], [0], [1], [0, 0, 1, 1], [], []>} : vector<16x8xf32>, vector<8x32xf32>, vector<16x32xf32> -> vector<16x32xf32>
    %122 = arith.addf %101, %121 : vector<16x32xf32>
    %123 = vector.extract_strided_slice %78 {offsets = [0, 16], sizes = [16, 8], strides = [1, 1]} : vector<32x96xf32> to vector<16x8xf32>
    %124 = vector.extract_strided_slice %78 {offsets = [0, 48], sizes = [16, 8], strides = [1, 1]} : vector<32x96xf32> to vector<16x8xf32>
    %125 = vector.extract_strided_slice %78 {offsets = [0, 80], sizes = [16, 8], strides = [1, 1]} : vector<32x96xf32> to vector<16x8xf32>
    %126 = tpu.transpose %124, [1, 0] : vector<16x8xf32> -> vector<8x16xf32>
    %cst_62 = arith.constant dense<0.000000e+00> : vector<16x16xf32>
    %127 = tpu.matmul %123, %126, %cst_62 {dimension_numbers = #tpu.dot_dimension_numbers<[1], [0], [0], [1], [0, 0, 1, 1], [], []>} : vector<16x8xf32>, vector<8x16xf32>, vector<16x16xf32> -> vector<16x16xf32>
    %cst_63 = arith.constant 0.353553385 : f32
    %128 = vector.broadcast %cst_63 : f32 to vector<16x16xf32>
    %129 = arith.mulf %127, %128 : vector<16x16xf32>
    %cst_64 = arith.constant dense<0xFF800000> : vector<16xf32>
    %130 = vector.multi_reduction <maximumf>, %129, %cst_64 [1] : vector<16x16xf32> to vector<16xf32>
    %131 = vector.shape_cast %130 : vector<16xf32> to vector<16x1xf32>
    %132 = vector.broadcast %131 : vector<16x1xf32> to vector<16x16xf32>
    %133 = arith.subf %129, %132 : vector<16x16xf32>
    %134 = math.exp %133 : vector<16x16xf32>
    %cst_65 = arith.constant dense<0.000000e+00> : vector<16xf32>
    %135 = vector.multi_reduction <add>, %134, %cst_65 [1] : vector<16x16xf32> to vector<16xf32>
    %136 = vector.shape_cast %135 : vector<16xf32> to vector<16x1xf32>
    %137 = tpu.reciprocal %136 {approx = true} : vector<16x1xf32> -> vector<16x1xf32>
    %138 = vector.broadcast %137 : vector<16x1xf32> to vector<16x16xf32>
    %139 = arith.mulf %134, %138 : vector<16x16xf32>
    %cst_66 = arith.constant dense<0.000000e+00> : vector<16x8xf32>
    %140 = tpu.matmul %139, %125, %cst_66 {dimension_numbers = #tpu.dot_dimension_numbers<[1], [0], [0], [1], [0, 0, 1, 1], [], []>} : vector<16x16xf32>, vector<16x8xf32>, vector<16x8xf32> -> vector<16x8xf32>
    %141 = vector.extract_strided_slice %79 {offsets = [16, 0], sizes = [8, 32], strides = [1, 1]} : vector<32x32xf32> to vector<8x32xf32>
    %cst_67 = arith.constant dense<0.000000e+00> : vector<16x32xf32>
    %142 = tpu.matmul %140, %141, %cst_67 {dimension_numbers = #tpu.dot_dimension_numbers<[1], [0], [0], [1], [0, 0, 1, 1], [], []>} : vector<16x8xf32>, vector<8x32xf32>, vector<16x32xf32> -> vector<16x32xf32>
    %143 = arith.addf %122, %142 : vector<16x32xf32>
    %144 = vector.extract_strided_slice %78 {offsets = [0, 24], sizes = [16, 8], strides = [1, 1]} : vector<32x96xf32> to vector<16x8xf32>
    %145 = vector.extract_strided_slice %78 {offsets = [0, 56], sizes = [16, 8], strides = [1, 1]} : vector<32x96xf32> to vector<16x8xf32>
    %146 = vector.extract_strided_slice %78 {offsets = [0, 88], sizes = [16, 8], strides = [1, 1]} : vector<32x96xf32> to vector<16x8xf32>
    %147 = tpu.transpose %145, [1, 0] : vector<16x8xf32> -> vector<8x16xf32>
    %cst_68 = arith.constant dense<0.000000e+00> : vector<16x16xf32>
    %148 = tpu.matmul %144, %147, %cst_68 {dimension_numbers = #tpu.dot_dimension_numbers<[1], [0], [0], [1], [0, 0, 1, 1], [], []>} : vector<16x8xf32>, vector<8x16xf32>, vector<16x16xf32> -> vector<16x16xf32>
    %cst_69 = arith.constant 0.353553385 : f32
    %149 = vector.broadcast %cst_69 : f32 to vector<16x16xf32>
    %150 = arith.mulf %148, %149 : vector<16x16xf32>
    %cst_70 = arith.constant dense<0xFF800000> : vector<16xf32>
    %151 = vector.multi_reduction <maximumf>, %150, %cst_70 [1] : vector<16x16xf32> to vector<16xf32>
    %152 = vector.shape_cast %151 : vector<16xf32> to vector<16x1xf32>
    %153 = vector.broadcast %152 : vector<16x1xf32> to vector<16x16xf32>
    %154 = arith.subf %150, %153 : vector<16x16xf32>
    %155 = math.exp %154 : vector<16x16xf32>
    %cst_71 = arith.constant dense<0.000000e+00> : vector<16xf32>
    %156 = vector.multi_reduction <add>, %155, %cst_71 [1] : vector<16x16xf32> to vector<16xf32>
    %157 = vector.shape_cast %156 : vector<16xf32> to vector<16x1xf32>
    %158 = tpu.reciprocal %157 {approx = true} : vector<16x1xf32> -> vector<16x1xf32>
    %159 = vector.broadcast %158 : vector<16x1xf32> to vector<16x16xf32>
    %160 = arith.mulf %155, %159 : vector<16x16xf32>
    %cst_72 = arith.constant dense<0.000000e+00> : vector<16x8xf32>
    %161 = tpu.matmul %160, %146, %cst_72 {dimension_numbers = #tpu.dot_dimension_numbers<[1], [0], [0], [1], [0, 0, 1, 1], [], []>} : vector<16x16xf32>, vector<16x8xf32>, vector<16x8xf32> -> vector<16x8xf32>
    %162 = vector.extract_strided_slice %79 {offsets = [24, 0], sizes = [8, 32], strides = [1, 1]} : vector<32x32xf32> to vector<8x32xf32>
    %cst_73 = arith.constant dense<0.000000e+00> : vector<16x32xf32>
    %163 = tpu.matmul %161, %162, %cst_73 {dimension_numbers = #tpu.dot_dimension_numbers<[1], [0], [0], [1], [0, 0, 1, 1], [], []>} : vector<16x8xf32>, vector<8x32xf32>, vector<16x32xf32> -> vector<16x32xf32>
    %164 = arith.addf %143, %163 : vector<16x32xf32>
    %165 = vector.extract_strided_slice %73 {offsets = [0, 0], sizes = [16, 32], strides = [1, 1]} : vector<32x32xf32> to vector<16x32xf32>
    %166 = arith.addf %165, %164 : vector<16x32xf32>
    %c0_74 = arith.constant 0 : index
    %c0_75 = arith.constant 0 : index
    %167 = vector.load %arg9[%c0_74, %c0_75] : memref<1x32xf32, #tpu.memory_space<vmem>>, vector<1x32xf32>
    %168 = vector.broadcast %167 : vector<1x32xf32> to vector<16x32xf32>
    %169 = arith.addf %166, %168 : vector<16x32xf32>
    %c0_76 = arith.constant 0 : index
    %c0_77 = arith.constant 0 : index
    %170 = vector.load %arg10[%c0_76, %c0_77] : memref<1x32xf32, #tpu.memory_space<vmem>>, vector<1x32xf32>
    %c0_78 = arith.constant 0 : index
    %c0_79 = arith.constant 0 : index
    %171 = vector.load %arg11[%c0_78, %c0_79] : memref<1x32xf32, #tpu.memory_space<vmem>>, vector<1x32xf32>
    %cst_80 = arith.constant dense<0.000000e+00> : vector<16xf32>
    %172 = vector.multi_reduction <add>, %169, %cst_80 [1] : vector<16x32xf32> to vector<16xf32>
    %173 = vector.shape_cast %172 : vector<16xf32> to vector<16x1xf32>
    %cst_81 = arith.constant 3.200000e+01 : f32
    %174 = vector.broadcast %cst_81 : f32 to vector<16x1xf32>
    %175 = arith.divf %173, %174 : vector<16x1xf32>
    %176 = vector.broadcast %175 : vector<16x1xf32> to vector<16x32xf32>
    %177 = arith.subf %169, %176 : vector<16x32xf32>
    %178 = arith.mulf %177, %177 : vector<16x32xf32>
    %cst_82 = arith.constant dense<0.000000e+00> : vector<16xf32>
    %179 = vector.multi_reduction <add>, %178, %cst_82 [1] : vector<16x32xf32> to vector<16xf32>
    %180 = vector.shape_cast %179 : vector<16xf32> to vector<16x1xf32>
    %cst_83 = arith.constant 3.200000e+01 : f32
    %181 = vector.broadcast %cst_83 : f32 to vector<16x1xf32>
    %182 = arith.divf %180, %181 : vector<16x1xf32>
    %183 = vector.broadcast %175 : vector<16x1xf32> to vector<16x32xf32>
    %184 = arith.subf %169, %183 : vector<16x32xf32>
    %cst_84 = arith.constant 9.99999974E-6 : f32
    %185 = vector.broadcast %cst_84 : f32 to vector<16x1xf32>
    %186 = arith.addf %182, %185 : vector<16x1xf32>
    %187 = math.rsqrt %186 : vector<16x1xf32>
    %188 = vector.broadcast %187 : vector<16x1xf32> to vector<16x32xf32>
    %189 = arith.mulf %184, %188 : vector<16x32xf32>
    %190 = vector.broadcast %170 : vector<1x32xf32> to vector<16x32xf32>
    %191 = arith.mulf %189, %190 : vector<16x32xf32>
    %192 = vector.broadcast %171 : vector<1x32xf32> to vector<16x32xf32>
    %193 = arith.addf %191, %192 : vector<16x32xf32>
    %c0_85 = arith.constant 0 : index
    %c0_86 = arith.constant 0 : index
    %194 = vector.load %arg31[%c0_85, %c0_86] : memref<32x32xf32, #tpu.memory_space<vmem>>, vector<16x32xf32>
    tpu.vector_store %arg31[%c0_85, %c0_86], %193 {strides = array<i32>} : memref<32x32xf32, #tpu.memory_space<vmem>>, vector<16x32xf32>,
    %cst_87 = arith.constant 0.000000e+00 : f32
    %195 = vector.broadcast %cst_87 : f32 to vector<16x32xf32>
    %196 = vector.extract_strided_slice %78 {offsets = [16, 0], sizes = [16, 8], strides = [1, 1]} : vector<32x96xf32> to vector<16x8xf32>
    %197 = vector.extract_strided_slice %78 {offsets = [16, 32], sizes = [16, 8], strides = [1, 1]} : vector<32x96xf32> to vector<16x8xf32>
    %198 = vector.extract_strided_slice %78 {offsets = [16, 64], sizes = [16, 8], strides = [1, 1]} : vector<32x96xf32> to vector<16x8xf32>
    %199 = tpu.transpose %197, [1, 0] : vector<16x8xf32> -> vector<8x16xf32>
    %cst_88 = arith.constant dense<0.000000e+00> : vector<16x16xf32>
    %200 = tpu.matmul %196, %199, %cst_88 {dimension_numbers = #tpu.dot_dimension_numbers<[1], [0], [0], [1], [0, 0, 1, 1], [], []>} : vector<16x8xf32>, vector<8x16xf32>, vector<16x16xf32> -> vector<16x16xf32>
    %cst_89 = arith.constant 0.353553385 : f32
    %201 = vector.broadcast %cst_89 : f32 to vector<16x16xf32>
    %202 = arith.mulf %200, %201 : vector<16x16xf32>
    %cst_90 = arith.constant dense<0xFF800000> : vector<16xf32>
    %203 = vector.multi_reduction <maximumf>, %202, %cst_90 [1] : vector<16x16xf32> to vector<16xf32>
    %204 = vector.shape_cast %203 : vector<16xf32> to vector<16x1xf32>
    %205 = vector.broadcast %204 : vector<16x1xf32> to vector<16x16xf32>
    %206 = arith.subf %202, %205 : vector<16x16xf32>
    %207 = math.exp %206 : vector<16x16xf32>
    %cst_91 = arith.constant dense<0.000000e+00> : vector<16xf32>
    %208 = vector.multi_reduction <add>, %207, %cst_91 [1] : vector<16x16xf32> to vector<16xf32>
    %209 = vector.shape_cast %208 : vector<16xf32> to vector<16x1xf32>
    %210 = tpu.reciprocal %209 {approx = true} : vector<16x1xf32> -> vector<16x1xf32>
    %211 = vector.broadcast %210 : vector<16x1xf32> to vector<16x16xf32>
    %212 = arith.mulf %207, %211 : vector<16x16xf32>
    %cst_92 = arith.constant dense<0.000000e+00> : vector<16x8xf32>
    %213 = tpu.matmul %212, %198, %cst_92 {dimension_numbers = #tpu.dot_dimension_numbers<[1], [0], [0], [1], [0, 0, 1, 1], [], []>} : vector<16x16xf32>, vector<16x8xf32>, vector<16x8xf32> -> vector<16x8xf32>
    %214 = vector.extract_strided_slice %79 {offsets = [0, 0], sizes = [8, 32], strides = [1, 1]} : vector<32x32xf32> to vector<8x32xf32>
    %cst_93 = arith.constant dense<0.000000e+00> : vector<16x32xf32>
    %215 = tpu.matmul %213, %214, %cst_93 {dimension_numbers = #tpu.dot_dimension_numbers<[1], [0], [0], [1], [0, 0, 1, 1], [], []>} : vector<16x8xf32>, vector<8x32xf32>, vector<16x32xf32> -> vector<16x32xf32>
    %216 = arith.addf %195, %215 : vector<16x32xf32>
    %217 = vector.extract_strided_slice %78 {offsets = [16, 8], sizes = [16, 8], strides = [1, 1]} : vector<32x96xf32> to vector<16x8xf32>
    %218 = vector.extract_strided_slice %78 {offsets = [16, 40], sizes = [16, 8], strides = [1, 1]} : vector<32x96xf32> to vector<16x8xf32>
    %219 = vector.extract_strided_slice %78 {offsets = [16, 72], sizes = [16, 8], strides = [1, 1]} : vector<32x96xf32> to vector<16x8xf32>
    %220 = tpu.transpose %218, [1, 0] : vector<16x8xf32> -> vector<8x16xf32>
    %cst_94 = arith.constant dense<0.000000e+00> : vector<16x16xf32>
    %221 = tpu.matmul %217, %220, %cst_94 {dimension_numbers = #tpu.dot_dimension_numbers<[1], [0], [0], [1], [0, 0, 1, 1], [], []>} : vector<16x8xf32>, vector<8x16xf32>, vector<16x16xf32> -> vector<16x16xf32>
    %cst_95 = arith.constant 0.353553385 : f32
    %222 = vector.broadcast %cst_95 : f32 to vector<16x16xf32>
    %223 = arith.mulf %221, %222 : vector<16x16xf32>
    %cst_96 = arith.constant dense<0xFF800000> : vector<16xf32>
    %224 = vector.multi_reduction <maximumf>, %223, %cst_96 [1] : vector<16x16xf32> to vector<16xf32>
    %225 = vector.shape_cast %224 : vector<16xf32> to vector<16x1xf32>
    %226 = vector.broadcast %225 : vector<16x1xf32> to vector<16x16xf32>
    %227 = arith.subf %223, %226 : vector<16x16xf32>
    %228 = math.exp %227 : vector<16x16xf32>
    %cst_97 = arith.constant dense<0.000000e+00> : vector<16xf32>
    %229 = vector.multi_reduction <add>, %228, %cst_97 [1] : vector<16x16xf32> to vector<16xf32>
    %230 = vector.shape_cast %229 : vector<16xf32> to vector<16x1xf32>
    %231 = tpu.reciprocal %230 {approx = true} : vector<16x1xf32> -> vector<16x1xf32>
    %232 = vector.broadcast %231 : vector<16x1xf32> to vector<16x16xf32>
    %233 = arith.mulf %228, %232 : vector<16x16xf32>
    %cst_98 = arith.constant dense<0.000000e+00> : vector<16x8xf32>
    %234 = tpu.matmul %233, %219, %cst_98 {dimension_numbers = #tpu.dot_dimension_numbers<[1], [0], [0], [1], [0, 0, 1, 1], [], []>} : vector<16x16xf32>, vector<16x8xf32>, vector<16x8xf32> -> vector<16x8xf32>
    %235 = vector.extract_strided_slice %79 {offsets = [8, 0], sizes = [8, 32], strides = [1, 1]} : vector<32x32xf32> to vector<8x32xf32>
    %cst_99 = arith.constant dense<0.000000e+00> : vector<16x32xf32>
    %236 = tpu.matmul %234, %235, %cst_99 {dimension_numbers = #tpu.dot_dimension_numbers<[1], [0], [0], [1], [0, 0, 1, 1], [], []>} : vector<16x8xf32>, vector<8x32xf32>, vector<16x32xf32> -> vector<16x32xf32>
    %237 = arith.addf %216, %236 : vector<16x32xf32>
    %238 = vector.extract_strided_slice %78 {offsets = [16, 16], sizes = [16, 8], strides = [1, 1]} : vector<32x96xf32> to vector<16x8xf32>
    %239 = vector.extract_strided_slice %78 {offsets = [16, 48], sizes = [16, 8], strides = [1, 1]} : vector<32x96xf32> to vector<16x8xf32>
    %240 = vector.extract_strided_slice %78 {offsets = [16, 80], sizes = [16, 8], strides = [1, 1]} : vector<32x96xf32> to vector<16x8xf32>
    %241 = tpu.transpose %239, [1, 0] : vector<16x8xf32> -> vector<8x16xf32>
    %cst_100 = arith.constant dense<0.000000e+00> : vector<16x16xf32>
    %242 = tpu.matmul %238, %241, %cst_100 {dimension_numbers = #tpu.dot_dimension_numbers<[1], [0], [0], [1], [0, 0, 1, 1], [], []>} : vector<16x8xf32>, vector<8x16xf32>, vector<16x16xf32> -> vector<16x16xf32>
    %cst_101 = arith.constant 0.353553385 : f32
    %243 = vector.broadcast %cst_101 : f32 to vector<16x16xf32>
    %244 = arith.mulf %242, %243 : vector<16x16xf32>
    %cst_102 = arith.constant dense<0xFF800000> : vector<16xf32>
    %245 = vector.multi_reduction <maximumf>, %244, %cst_102 [1] : vector<16x16xf32> to vector<16xf32>
    %246 = vector.shape_cast %245 : vector<16xf32> to vector<16x1xf32>
    %247 = vector.broadcast %246 : vector<16x1xf32> to vector<16x16xf32>
    %248 = arith.subf %244, %247 : vector<16x16xf32>
    %249 = math.exp %248 : vector<16x16xf32>
    %cst_103 = arith.constant dense<0.000000e+00> : vector<16xf32>
    %250 = vector.multi_reduction <add>, %249, %cst_103 [1] : vector<16x16xf32> to vector<16xf32>
    %251 = vector.shape_cast %250 : vector<16xf32> to vector<16x1xf32>
    %252 = tpu.reciprocal %251 {approx = true} : vector<16x1xf32> -> vector<16x1xf32>
    %253 = vector.broadcast %252 : vector<16x1xf32> to vector<16x16xf32>
    %254 = arith.mulf %249, %253 : vector<16x16xf32>
    %cst_104 = arith.constant dense<0.000000e+00> : vector<16x8xf32>
    %255 = tpu.matmul %254, %240, %cst_104 {dimension_numbers = #tpu.dot_dimension_numbers<[1], [0], [0], [1], [0, 0, 1, 1], [], []>} : vector<16x16xf32>, vector<16x8xf32>, vector<16x8xf32> -> vector<16x8xf32>
    %256 = vector.extract_strided_slice %79 {offsets = [16, 0], sizes = [8, 32], strides = [1, 1]} : vector<32x32xf32> to vector<8x32xf32>
    %cst_105 = arith.constant dense<0.000000e+00> : vector<16x32xf32>
    %257 = tpu.matmul %255, %256, %cst_105 {dimension_numbers = #tpu.dot_dimension_numbers<[1], [0], [0], [1], [0, 0, 1, 1], [], []>} : vector<16x8xf32>, vector<8x32xf32>, vector<16x32xf32> -> vector<16x32xf32>
    %258 = arith.addf %237, %257 : vector<16x32xf32>
    %259 = vector.extract_strided_slice %78 {offsets = [16, 24], sizes = [16, 8], strides = [1, 1]} : vector<32x96xf32> to vector<16x8xf32>
    %260 = vector.extract_strided_slice %78 {offsets = [16, 56], sizes = [16, 8], strides = [1, 1]} : vector<32x96xf32> to vector<16x8xf32>
    %261 = vector.extract_strided_slice %78 {offsets = [16, 88], sizes = [16, 8], strides = [1, 1]} : vector<32x96xf32> to vector<16x8xf32>
    %262 = tpu.transpose %260, [1, 0] : vector<16x8xf32> -> vector<8x16xf32>
    %cst_106 = arith.constant dense<0.000000e+00> : vector<16x16xf32>
    %263 = tpu.matmul %259, %262, %cst_106 {dimension_numbers = #tpu.dot_dimension_numbers<[1], [0], [0], [1], [0, 0, 1, 1], [], []>} : vector<16x8xf32>, vector<8x16xf32>, vector<16x16xf32> -> vector<16x16xf32>
    %cst_107 = arith.constant 0.353553385 : f32
    %264 = vector.broadcast %cst_107 : f32 to vector<16x16xf32>
    %265 = arith.mulf %263, %264 : vector<16x16xf32>
    %cst_108 = arith.constant dense<0xFF800000> : vector<16xf32>
    %266 = vector.multi_reduction <maximumf>, %265, %cst_108 [1] : vector<16x16xf32> to vector<16xf32>
    %267 = vector.shape_cast %266 : vector<16xf32> to vector<16x1xf32>
    %268 = vector.broadcast %267 : vector<16x1xf32> to vector<16x16xf32>
    %269 = arith.subf %265, %268 : vector<16x16xf32>
    %270 = math.exp %269 : vector<16x16xf32>
    %cst_109 = arith.constant dense<0.000000e+00> : vector<16xf32>
    %271 = vector.multi_reduction <add>, %270, %cst_109 [1] : vector<16x16xf32> to vector<16xf32>
    %272 = vector.shape_cast %271 : vector<16xf32> to vector<16x1xf32>
    %273 = tpu.reciprocal %272 {approx = true} : vector<16x1xf32> -> vector<16x1xf32>
    %274 = vector.broadcast %273 : vector<16x1xf32> to vector<16x16xf32>
    %275 = arith.mulf %270, %274 : vector<16x16xf32>
    %cst_110 = arith.constant dense<0.000000e+00> : vector<16x8xf32>
    %276 = tpu.matmul %275, %261, %cst_110 {dimension_numbers = #tpu.dot_dimension_numbers<[1], [0], [0], [1], [0, 0, 1, 1], [], []>} : vector<16x16xf32>, vector<16x8xf32>, vector<16x8xf32> -> vector<16x8xf32>
    %277 = vector.extract_strided_slice %79 {offsets = [24, 0], sizes = [8, 32], strides = [1, 1]} : vector<32x32xf32> to vector<8x32xf32>
    %cst_111 = arith.constant dense<0.000000e+00> : vector<16x32xf32>
    %278 = tpu.matmul %276, %277, %cst_111 {dimension_numbers = #tpu.dot_dimension_numbers<[1], [0], [0], [1], [0, 0, 1, 1], [], []>} : vector<16x8xf32>, vector<8x32xf32>, vector<16x32xf32> -> vector<16x32xf32>
    %279 = arith.addf %258, %278 : vector<16x32xf32>
    %280 = vector.extract_strided_slice %73 {offsets = [16, 0], sizes = [16, 32], strides = [1, 1]} : vector<32x32xf32> to vector<16x32xf32>
    %281 = arith.addf %280, %279 : vector<16x32xf32>
    %c0_112 = arith.constant 0 : index
    %c0_113 = arith.constant 0 : index
    %282 = vector.load %arg9[%c0_112, %c0_113] : memref<1x32xf32, #tpu.memory_space<vmem>>, vector<1x32xf32>
    %283 = vector.broadcast %282 : vector<1x32xf32> to vector<16x32xf32>
    %284 = arith.addf %281, %283 : vector<16x32xf32>
    %c0_114 = arith.constant 0 : index
    %c0_115 = arith.constant 0 : index
    %285 = vector.load %arg10[%c0_114, %c0_115] : memref<1x32xf32, #tpu.memory_space<vmem>>, vector<1x32xf32>
    %c0_116 = arith.constant 0 : index
    %c0_117 = arith.constant 0 : index
    %286 = vector.load %arg11[%c0_116, %c0_117] : memref<1x32xf32, #tpu.memory_space<vmem>>, vector<1x32xf32>
    %cst_118 = arith.constant dense<0.000000e+00> : vector<16xf32>
    %287 = vector.multi_reduction <add>, %284, %cst_118 [1] : vector<16x32xf32> to vector<16xf32>
    %288 = vector.shape_cast %287 : vector<16xf32> to vector<16x1xf32>
    %cst_119 = arith.constant 3.200000e+01 : f32
    %289 = vector.broadcast %cst_119 : f32 to vector<16x1xf32>
    %290 = arith.divf %288, %289 : vector<16x1xf32>
    %291 = vector.broadcast %290 : vector<16x1xf32> to vector<16x32xf32>
    %292 = arith.subf %284, %291 : vector<16x32xf32>
    %293 = arith.mulf %292, %292 : vector<16x32xf32>
    %cst_120 = arith.constant dense<0.000000e+00> : vector<16xf32>
    %294 = vector.multi_reduction <add>, %293, %cst_120 [1] : vector<16x32xf32> to vector<16xf32>
    %295 = vector.shape_cast %294 : vector<16xf32> to vector<16x1xf32>
    %cst_121 = arith.constant 3.200000e+01 : f32
    %296 = vector.broadcast %cst_121 : f32 to vector<16x1xf32>
    %297 = arith.divf %295, %296 : vector<16x1xf32>
    %298 = vector.broadcast %290 : vector<16x1xf32> to vector<16x32xf32>
    %299 = arith.subf %284, %298 : vector<16x32xf32>
    %cst_122 = arith.constant 9.99999974E-6 : f32
    %300 = vector.broadcast %cst_122 : f32 to vector<16x1xf32>
    %301 = arith.addf %297, %300 : vector<16x1xf32>
    %302 = math.rsqrt %301 : vector<16x1xf32>
    %303 = vector.broadcast %302 : vector<16x1xf32> to vector<16x32xf32>
    %304 = arith.mulf %299, %303 : vector<16x32xf32>
    %305 = vector.broadcast %285 : vector<1x32xf32> to vector<16x32xf32>
    %306 = arith.mulf %304, %305 : vector<16x32xf32>
    %307 = vector.broadcast %286 : vector<1x32xf32> to vector<16x32xf32>
    %308 = arith.addf %306, %307 : vector<16x32xf32>
    %c16_123 = arith.constant 16 : index
    %c0_124 = arith.constant 0 : index
    %309 = vector.load %arg31[%c16_123, %c0_124] : memref<32x32xf32, #tpu.memory_space<vmem>>, vector<16x32xf32>
    tpu.vector_store %arg31[%c16_123, %c0_124], %308 {strides = array<i32>} : memref<32x32xf32, #tpu.memory_space<vmem>>, vector<16x32xf32>,
    %c0_125 = arith.constant 0 : index
    %c0_126 = arith.constant 0 : index
    %310 = vector.load %arg31[%c0_125, %c0_126] : memref<32x32xf32, #tpu.memory_space<vmem>>, vector<32x32xf32>
    %c0_127 = arith.constant 0 : index
    %c0_128 = arith.constant 0 : index
    %311 = vector.load %arg12[%c0_127, %c0_128] : memref<32x64xf32, #tpu.memory_space<vmem>>, vector<32x64xf32>
    %cst_129 = arith.constant dense<0.000000e+00> : vector<32x64xf32>
    %312 = tpu.matmul %310, %311, %cst_129 {dimension_numbers = #tpu.dot_dimension_numbers<[1], [0], [0], [1], [0, 0, 1, 1], [], []>} : vector<32x32xf32>, vector<32x64xf32>, vector<32x64xf32> -> vector<32x64xf32>
    %c0_130 = arith.constant 0 : index
    %c0_131 = arith.constant 0 : index
    %313 = vector.load %arg13[%c0_130, %c0_131] : memref<1x64xf32, #tpu.memory_space<vmem>>, vector<1x64xf32>
    %314 = vector.broadcast %313 : vector<1x64xf32> to vector<32x64xf32>
    %315 = arith.addf %312, %314 : vector<32x64xf32>
    %cst_132 = arith.constant 5.000000e-01 : f32
    %316 = vector.broadcast %cst_132 : f32 to vector<32x64xf32>
    %317 = arith.mulf %316, %315 : vector<32x64xf32>
    %cst_133 = arith.constant 0.707106769 : f32
    %318 = vector.broadcast %cst_133 : f32 to vector<32x64xf32>
    %319 = arith.mulf %315, %318 : vector<32x64xf32>
    %320 = math.erf %319 : vector<32x64xf32>
    %cst_134 = arith.constant 1.000000e+00 : f32
    %321 = vector.broadcast %cst_134 : f32 to vector<32x64xf32>
    %322 = arith.addf %321, %320 : vector<32x64xf32>
    %323 = arith.mulf %317, %322 : vector<32x64xf32>
    %c0_135 = arith.constant 0 : index
    %c0_136 = arith.constant 0 : index
    %324 = vector.load %arg14[%c0_135, %c0_136] : memref<64x32xf32, #tpu.memory_space<vmem>>, vector<64x32xf32>
    %cst_137 = arith.constant dense<0.000000e+00> : vector<32x32xf32>
    %325 = tpu.matmul %323, %324, %cst_137 {dimension_numbers = #tpu.dot_dimension_numbers<[1], [0], [0], [1], [0, 0, 1, 1], [], []>} : vector<32x64xf32>, vector<64x32xf32>, vector<32x32xf32> -> vector<32x32xf32>
    %c0_138 = arith.constant 0 : index
    %c0_139 = arith.constant 0 : index
    %326 = vector.load %arg15[%c0_138, %c0_139] : memref<1x32xf32, #tpu.memory_space<vmem>>, vector<1x32xf32>
    %327 = vector.broadcast %326 : vector<1x32xf32> to vector<32x32xf32>
    %328 = arith.addf %325, %327 : vector<32x32xf32>
    %329 = arith.addf %310, %328 : vector<32x32xf32>
    %c0_140 = arith.constant 0 : index
    %c0_141 = arith.constant 0 : index
    %330 = vector.load %arg16[%c0_140, %c0_141] : memref<1x32xf32, #tpu.memory_space<vmem>>, vector<1x32xf32>
    %c0_142 = arith.constant 0 : index
    %c0_143 = arith.constant 0 : index
    %331 = vector.load %arg17[%c0_142, %c0_143] : memref<1x32xf32, #tpu.memory_space<vmem>>, vector<1x32xf32>
    %cst_144 = arith.constant dense<0.000000e+00> : vector<32xf32>
    %332 = vector.multi_reduction <add>, %329, %cst_144 [1] : vector<32x32xf32> to vector<32xf32>
    %333 = vector.shape_cast %332 : vector<32xf32> to vector<32x1xf32>
    %cst_145 = arith.constant 3.200000e+01 : f32
    %334 = vector.broadcast %cst_145 : f32 to vector<32x1xf32>
    %335 = arith.divf %333, %334 : vector<32x1xf32>
    %336 = vector.broadcast %335 : vector<32x1xf32> to vector<32x32xf32>
    %337 = arith.subf %329, %336 : vector<32x32xf32>
    %338 = arith.mulf %337, %337 : vector<32x32xf32>
    %cst_146 = arith.constant dense<0.000000e+00> : vector<32xf32>
    %339 = vector.multi_reduction <add>, %338, %cst_146 [1] : vector<32x32xf32> to vector<32xf32>
    %340 = vector.shape_cast %339 : vector<32xf32> to vector<32x1xf32>
    %cst_147 = arith.constant 3.200000e+01 : f32
    %341 = vector.broadcast %cst_147 : f32 to vector<32x1xf32>
    %342 = arith.divf %340, %341 : vector<32x1xf32>
    %343 = vector.broadcast %335 : vector<32x1xf32> to vector<32x32xf32>
    %344 = arith.subf %329, %343 : vector<32x32xf32>
    %cst_148 = arith.constant 9.99999974E-6 : f32
    %345 = vector.broadcast %cst_148 : f32 to vector<32x1xf32>
    %346 = arith.addf %342, %345 : vector<32x1xf32>
    %347 = math.rsqrt %346 : vector<32x1xf32>
    %348 = vector.broadcast %347 : vector<32x1xf32> to vector<32x32xf32>
    %349 = arith.mulf %344, %348 : vector<32x32xf32>
    %350 = vector.broadcast %330 : vector<1x32xf32> to vector<32x32xf32>
    %351 = arith.mulf %349, %350 : vector<32x32xf32>
    %352 = vector.broadcast %331 : vector<1x32xf32> to vector<32x32xf32>
    %353 = arith.addf %351, %352 : vector<32x32xf32>
    %c0_149 = arith.constant 0 : index
    %c0_150 = arith.constant 0 : index
    %354 = vector.load %arg31[%c0_149, %c0_150] : memref<32x32xf32, #tpu.memory_space<vmem>>, vector<32x32xf32>
    tpu.vector_store %arg31[%c0_149, %c0_150], %353 {strides = array<i32>} : memref<32x32xf32, #tpu.memory_space<vmem>>, vector<32x32xf32>,
    %c0_151 = arith.constant 0 : index
    %c0_152 = arith.constant 0 : index
    %355 = vector.load %arg31[%c0_151, %c0_152] : memref<32x32xf32, #tpu.memory_space<vmem>>, vector<32x32xf32>
    %c0_153 = arith.constant 0 : index
    %c0_154 = arith.constant 0 : index
    %356 = vector.load %arg18[%c0_153, %c0_154] : memref<32x96xf32, #tpu.memory_space<vmem>>, vector<32x96xf32>
    %cst_155 = arith.constant dense<0.000000e+00> : vector<32x96xf32>
    %357 = tpu.matmul %355, %356, %cst_155 {dimension_numbers = #tpu.dot_dimension_numbers<[1], [0], [0], [1], [0, 0, 1, 1], [], []>} : vector<32x32xf32>, vector<32x96xf32>, vector<32x96xf32> -> vector<32x96xf32>
    %c0_156 = arith.constant 0 : index
    %c0_157 = arith.constant 0 : index
    %358 = vector.load %arg19[%c0_156, %c0_157] : memref<1x96xf32, #tpu.memory_space<vmem>>, vector<1x96xf32>
    %359 = vector.broadcast %358 : vector<1x96xf32> to vector<32x96xf32>
    %360 = arith.addf %357, %359 : vector<32x96xf32>
    %c0_158 = arith.constant 0 : index
    %c0_159 = arith.constant 0 : index
    %361 = vector.load %arg20[%c0_158, %c0_159] : memref<32x32xf32, #tpu.memory_space<vmem>>, vector<32x32xf32>
    %cst_160 = arith.constant 0.000000e+00 : f32
    %362 = vector.broadcast %cst_160 : f32 to vector<16x32xf32>
    %363 = vector.extract_strided_slice %360 {offsets = [0, 0], sizes = [16, 8], strides = [1, 1]} : vector<32x96xf32> to vector<16x8xf32>
    %364 = vector.extract_strided_slice %360 {offsets = [0, 32], sizes = [16, 8], strides = [1, 1]} : vector<32x96xf32> to vector<16x8xf32>
    %365 = vector.extract_strided_slice %360 {offsets = [0, 64], sizes = [16, 8], strides = [1, 1]} : vector<32x96xf32> to vector<16x8xf32>
    %366 = tpu.transpose %364, [1, 0] : vector<16x8xf32> -> vector<8x16xf32>
    %cst_161 = arith.constant dense<0.000000e+00> : vector<16x16xf32>
    %367 = tpu.matmul %363, %366, %cst_161 {dimension_numbers = #tpu.dot_dimension_numbers<[1], [0], [0], [1], [0, 0, 1, 1], [], []>} : vector<16x8xf32>, vector<8x16xf32>, vector<16x16xf32> -> vector<16x16xf32>
    %cst_162 = arith.constant 0.353553385 : f32
    %368 = vector.broadcast %cst_162 : f32 to vector<16x16xf32>
    %369 = arith.mulf %367, %368 : vector<16x16xf32>
    %cst_163 = arith.constant dense<0xFF800000> : vector<16xf32>
    %370 = vector.multi_reduction <maximumf>, %369, %cst_163 [1] : vector<16x16xf32> to vector<16xf32>
    %371 = vector.shape_cast %370 : vector<16xf32> to vector<16x1xf32>
    %372 = vector.broadcast %371 : vector<16x1xf32> to vector<16x16xf32>
    %373 = arith.subf %369, %372 : vector<16x16xf32>
    %374 = math.exp %373 : vector<16x16xf32>
    %cst_164 = arith.constant dense<0.000000e+00> : vector<16xf32>
    %375 = vector.multi_reduction <add>, %374, %cst_164 [1] : vector<16x16xf32> to vector<16xf32>
    %376 = vector.shape_cast %375 : vector<16xf32> to vector<16x1xf32>
    %377 = tpu.reciprocal %376 {approx = true} : vector<16x1xf32> -> vector<16x1xf32>
    %378 = vector.broadcast %377 : vector<16x1xf32> to vector<16x16xf32>
    %379 = arith.mulf %374, %378 : vector<16x16xf32>
    %cst_165 = arith.constant dense<0.000000e+00> : vector<16x8xf32>
    %380 = tpu.matmul %379, %365, %cst_165 {dimension_numbers = #tpu.dot_dimension_numbers<[1], [0], [0], [1], [0, 0, 1, 1], [], []>} : vector<16x16xf32>, vector<16x8xf32>, vector<16x8xf32> -> vector<16x8xf32>
    %381 = vector.extract_strided_slice %361 {offsets = [0, 0], sizes = [8, 32], strides = [1, 1]} : vector<32x32xf32> to vector<8x32xf32>
    %cst_166 = arith.constant dense<0.000000e+00> : vector<16x32xf32>
    %382 = tpu.matmul %380, %381, %cst_166 {dimension_numbers = #tpu.dot_dimension_numbers<[1], [0], [0], [1], [0, 0, 1, 1], [], []>} : vector<16x8xf32>, vector<8x32xf32>, vector<16x32xf32> -> vector<16x32xf32>
    %383 = arith.addf %362, %382 : vector<16x32xf32>
    %384 = vector.extract_strided_slice %360 {offsets = [0, 8], sizes = [16, 8], strides = [1, 1]} : vector<32x96xf32> to vector<16x8xf32>
    %385 = vector.extract_strided_slice %360 {offsets = [0, 40], sizes = [16, 8], strides = [1, 1]} : vector<32x96xf32> to vector<16x8xf32>
    %386 = vector.extract_strided_slice %360 {offsets = [0, 72], sizes = [16, 8], strides = [1, 1]} : vector<32x96xf32> to vector<16x8xf32>
    %387 = tpu.transpose %385, [1, 0] : vector<16x8xf32> -> vector<8x16xf32>
    %cst_167 = arith.constant dense<0.000000e+00> : vector<16x16xf32>
    %388 = tpu.matmul %384, %387, %cst_167 {dimension_numbers = #tpu.dot_dimension_numbers<[1], [0], [0], [1], [0, 0, 1, 1], [], []>} : vector<16x8xf32>, vector<8x16xf32>, vector<16x16xf32> -> vector<16x16xf32>
    %cst_168 = arith.constant 0.353553385 : f32
    %389 = vector.broadcast %cst_168 : f32 to vector<16x16xf32>
    %390 = arith.mulf %388, %389 : vector<16x16xf32>
    %cst_169 = arith.constant dense<0xFF800000> : vector<16xf32>
    %391 = vector.multi_reduction <maximumf>, %390, %cst_169 [1] : vector<16x16xf32> to vector<16xf32>
    %392 = vector.shape_cast %391 : vector<16xf32> to vector<16x1xf32>
    %393 = vector.broadcast %392 : vector<16x1xf32> to vector<16x16xf32>
    %394 = arith.subf %390, %393 : vector<16x16xf32>
    %395 = math.exp %394 : vector<16x16xf32>
    %cst_170 = arith.constant dense<0.000000e+00> : vector<16xf32>
    %396 = vector.multi_reduction <add>, %395, %cst_170 [1] : vector<16x16xf32> to vector<16xf32>
    %397 = vector.shape_cast %396 : vector<16xf32> to vector<16x1xf32>
    %398 = tpu.reciprocal %397 {approx = true} : vector<16x1xf32> -> vector<16x1xf32>
    %399 = vector.broadcast %398 : vector<16x1xf32> to vector<16x16xf32>
    %400 = arith.mulf %395, %399 : vector<16x16xf32>
    %cst_171 = arith.constant dense<0.000000e+00> : vector<16x8xf32>
    %401 = tpu.matmul %400, %386, %cst_171 {dimension_numbers = #tpu.dot_dimension_numbers<[1], [0], [0], [1], [0, 0, 1, 1], [], []>} : vector<16x16xf32>, vector<16x8xf32>, vector<16x8xf32> -> vector<16x8xf32>
    %402 = vector.extract_strided_slice %361 {offsets = [8, 0], sizes = [8, 32], strides = [1, 1]} : vector<32x32xf32> to vector<8x32xf32>
    %cst_172 = arith.constant dense<0.000000e+00> : vector<16x32xf32>
    %403 = tpu.matmul %401, %402, %cst_172 {dimension_numbers = #tpu.dot_dimension_numbers<[1], [0], [0], [1], [0, 0, 1, 1], [], []>} : vector<16x8xf32>, vector<8x32xf32>, vector<16x32xf32> -> vector<16x32xf32>
    %404 = arith.addf %383, %403 : vector<16x32xf32>
    %405 = vector.extract_strided_slice %360 {offsets = [0, 16], sizes = [16, 8], strides = [1, 1]} : vector<32x96xf32> to vector<16x8xf32>
    %406 = vector.extract_strided_slice %360 {offsets = [0, 48], sizes = [16, 8], strides = [1, 1]} : vector<32x96xf32> to vector<16x8xf32>
    %407 = vector.extract_strided_slice %360 {offsets = [0, 80], sizes = [16, 8], strides = [1, 1]} : vector<32x96xf32> to vector<16x8xf32>
    %408 = tpu.transpose %406, [1, 0] : vector<16x8xf32> -> vector<8x16xf32>
    %cst_173 = arith.constant dense<0.000000e+00> : vector<16x16xf32>
    %409 = tpu.matmul %405, %408, %cst_173 {dimension_numbers = #tpu.dot_dimension_numbers<[1], [0], [0], [1], [0, 0, 1, 1], [], []>} : vector<16x8xf32>, vector<8x16xf32>, vector<16x16xf32> -> vector<16x16xf32>
    %cst_174 = arith.constant 0.353553385 : f32
    %410 = vector.broadcast %cst_174 : f32 to vector<16x16xf32>
    %411 = arith.mulf %409, %410 : vector<16x16xf32>
    %cst_175 = arith.constant dense<0xFF800000> : vector<16xf32>
    %412 = vector.multi_reduction <maximumf>, %411, %cst_175 [1] : vector<16x16xf32> to vector<16xf32>
    %413 = vector.shape_cast %412 : vector<16xf32> to vector<16x1xf32>
    %414 = vector.broadcast %413 : vector<16x1xf32> to vector<16x16xf32>
    %415 = arith.subf %411, %414 : vector<16x16xf32>
    %416 = math.exp %415 : vector<16x16xf32>
    %cst_176 = arith.constant dense<0.000000e+00> : vector<16xf32>
    %417 = vector.multi_reduction <add>, %416, %cst_176 [1] : vector<16x16xf32> to vector<16xf32>
    %418 = vector.shape_cast %417 : vector<16xf32> to vector<16x1xf32>
    %419 = tpu.reciprocal %418 {approx = true} : vector<16x1xf32> -> vector<16x1xf32>
    %420 = vector.broadcast %419 : vector<16x1xf32> to vector<16x16xf32>
    %421 = arith.mulf %416, %420 : vector<16x16xf32>
    %cst_177 = arith.constant dense<0.000000e+00> : vector<16x8xf32>
    %422 = tpu.matmul %421, %407, %cst_177 {dimension_numbers = #tpu.dot_dimension_numbers<[1], [0], [0], [1], [0, 0, 1, 1], [], []>} : vector<16x16xf32>, vector<16x8xf32>, vector<16x8xf32> -> vector<16x8xf32>
    %423 = vector.extract_strided_slice %361 {offsets = [16, 0], sizes = [8, 32], strides = [1, 1]} : vector<32x32xf32> to vector<8x32xf32>
    %cst_178 = arith.constant dense<0.000000e+00> : vector<16x32xf32>
    %424 = tpu.matmul %422, %423, %cst_178 {dimension_numbers = #tpu.dot_dimension_numbers<[1], [0], [0], [1], [0, 0, 1, 1], [], []>} : vector<16x8xf32>, vector<8x32xf32>, vector<16x32xf32> -> vector<16x32xf32>
    %425 = arith.addf %404, %424 : vector<16x32xf32>
    %426 = vector.extract_strided_slice %360 {offsets = [0, 24], sizes = [16, 8], strides = [1, 1]} : vector<32x96xf32> to vector<16x8xf32>
    %427 = vector.extract_strided_slice %360 {offsets = [0, 56], sizes = [16, 8], strides = [1, 1]} : vector<32x96xf32> to vector<16x8xf32>
    %428 = vector.extract_strided_slice %360 {offsets = [0, 88], sizes = [16, 8], strides = [1, 1]} : vector<32x96xf32> to vector<16x8xf32>
    %429 = tpu.transpose %427, [1, 0] : vector<16x8xf32> -> vector<8x16xf32>
    %cst_179 = arith.constant dense<0.000000e+00> : vector<16x16xf32>
    %430 = tpu.matmul %426, %429, %cst_179 {dimension_numbers = #tpu.dot_dimension_numbers<[1], [0], [0], [1], [0, 0, 1, 1], [], []>} : vector<16x8xf32>, vector<8x16xf32>, vector<16x16xf32> -> vector<16x16xf32>
    %cst_180 = arith.constant 0.353553385 : f32
    %431 = vector.broadcast %cst_180 : f32 to vector<16x16xf32>
    %432 = arith.mulf %430, %431 : vector<16x16xf32>
    %cst_181 = arith.constant dense<0xFF800000> : vector<16xf32>
    %433 = vector.multi_reduction <maximumf>, %432, %cst_181 [1] : vector<16x16xf32> to vector<16xf32>
    %434 = vector.shape_cast %433 : vector<16xf32> to vector<16x1xf32>
    %435 = vector.broadcast %434 : vector<16x1xf32> to vector<16x16xf32>
    %436 = arith.subf %432, %435 : vector<16x16xf32>
    %437 = math.exp %436 : vector<16x16xf32>
    %cst_182 = arith.constant dense<0.000000e+00> : vector<16xf32>
    %438 = vector.multi_reduction <add>, %437, %cst_182 [1] : vector<16x16xf32> to vector<16xf32>
    %439 = vector.shape_cast %438 : vector<16xf32> to vector<16x1xf32>
    %440 = tpu.reciprocal %439 {approx = true} : vector<16x1xf32> -> vector<16x1xf32>
    %441 = vector.broadcast %440 : vector<16x1xf32> to vector<16x16xf32>
    %442 = arith.mulf %437, %441 : vector<16x16xf32>
    %cst_183 = arith.constant dense<0.000000e+00> : vector<16x8xf32>
    %443 = tpu.matmul %442, %428, %cst_183 {dimension_numbers = #tpu.dot_dimension_numbers<[1], [0], [0], [1], [0, 0, 1, 1], [], []>} : vector<16x16xf32>, vector<16x8xf32>, vector<16x8xf32> -> vector<16x8xf32>
    %444 = vector.extract_strided_slice %361 {offsets = [24, 0], sizes = [8, 32], strides = [1, 1]} : vector<32x32xf32> to vector<8x32xf32>
    %cst_184 = arith.constant dense<0.000000e+00> : vector<16x32xf32>
    %445 = tpu.matmul %443, %444, %cst_184 {dimension_numbers = #tpu.dot_dimension_numbers<[1], [0], [0], [1], [0, 0, 1, 1], [], []>} : vector<16x8xf32>, vector<8x32xf32>, vector<16x32xf32> -> vector<16x32xf32>
    %446 = arith.addf %425, %445 : vector<16x32xf32>
    %447 = vector.extract_strided_slice %355 {offsets = [0, 0], sizes = [16, 32], strides = [1, 1]} : vector<32x32xf32> to vector<16x32xf32>
    %448 = arith.addf %447, %446 : vector<16x32xf32>
    %c0_185 = arith.constant 0 : index
    %c0_186 = arith.constant 0 : index
    %449 = vector.load %arg21[%c0_185, %c0_186] : memref<1x32xf32, #tpu.memory_space<vmem>>, vector<1x32xf32>
    %450 = vector.broadcast %449 : vector<1x32xf32> to vector<16x32xf32>
    %451 = arith.addf %448, %450 : vector<16x32xf32>
    %c0_187 = arith.constant 0 : index
    %c0_188 = arith.constant 0 : index
    %452 = vector.load %arg22[%c0_187, %c0_188] : memref<1x32xf32, #tpu.memory_space<vmem>>, vector<1x32xf32>
    %c0_189 = arith.constant 0 : index
    %c0_190 = arith.constant 0 : index
    %453 = vector.load %arg23[%c0_189, %c0_190] : memref<1x32xf32, #tpu.memory_space<vmem>>, vector<1x32xf32>
    %cst_191 = arith.constant dense<0.000000e+00> : vector<16xf32>
    %454 = vector.multi_reduction <add>, %451, %cst_191 [1] : vector<16x32xf32> to vector<16xf32>
    %455 = vector.shape_cast %454 : vector<16xf32> to vector<16x1xf32>
    %cst_192 = arith.constant 3.200000e+01 : f32
    %456 = vector.broadcast %cst_192 : f32 to vector<16x1xf32>
    %457 = arith.divf %455, %456 : vector<16x1xf32>
    %458 = vector.broadcast %457 : vector<16x1xf32> to vector<16x32xf32>
    %459 = arith.subf %451, %458 : vector<16x32xf32>
    %460 = arith.mulf %459, %459 : vector<16x32xf32>
    %cst_193 = arith.constant dense<0.000000e+00> : vector<16xf32>
    %461 = vector.multi_reduction <add>, %460, %cst_193 [1] : vector<16x32xf32> to vector<16xf32>
    %462 = vector.shape_cast %461 : vector<16xf32> to vector<16x1xf32>
    %cst_194 = arith.constant 3.200000e+01 : f32
    %463 = vector.broadcast %cst_194 : f32 to vector<16x1xf32>
    %464 = arith.divf %462, %463 : vector<16x1xf32>
    %465 = vector.broadcast %457 : vector<16x1xf32> to vector<16x32xf32>
    %466 = arith.subf %451, %465 : vector<16x32xf32>
    %cst_195 = arith.constant 9.99999974E-6 : f32
    %467 = vector.broadcast %cst_195 : f32 to vector<16x1xf32>
    %468 = arith.addf %464, %467 : vector<16x1xf32>
    %469 = math.rsqrt %468 : vector<16x1xf32>
    %470 = vector.broadcast %469 : vector<16x1xf32> to vector<16x32xf32>
    %471 = arith.mulf %466, %470 : vector<16x32xf32>
    %472 = vector.broadcast %452 : vector<1x32xf32> to vector<16x32xf32>
    %473 = arith.mulf %471, %472 : vector<16x32xf32>
    %474 = vector.broadcast %453 : vector<1x32xf32> to vector<16x32xf32>
    %475 = arith.addf %473, %474 : vector<16x32xf32>
    %c0_196 = arith.constant 0 : index
    %c0_197 = arith.constant 0 : index
    %476 = vector.load %arg31[%c0_196, %c0_197] : memref<32x32xf32, #tpu.memory_space<vmem>>, vector<16x32xf32>
    tpu.vector_store %arg31[%c0_196, %c0_197], %475 {strides = array<i32>} : memref<32x32xf32, #tpu.memory_space<vmem>>, vector<16x32xf32>,
    %cst_198 = arith.constant 0.000000e+00 : f32
    %477 = vector.broadcast %cst_198 : f32 to vector<16x32xf32>
    %478 = vector.extract_strided_slice %360 {offsets = [16, 0], sizes = [16, 8], strides = [1, 1]} : vector<32x96xf32> to vector<16x8xf32>
    %479 = vector.extract_strided_slice %360 {offsets = [16, 32], sizes = [16, 8], strides = [1, 1]} : vector<32x96xf32> to vector<16x8xf32>
    %480 = vector.extract_strided_slice %360 {offsets = [16, 64], sizes = [16, 8], strides = [1, 1]} : vector<32x96xf32> to vector<16x8xf32>
    %481 = tpu.transpose %479, [1, 0] : vector<16x8xf32> -> vector<8x16xf32>
    %cst_199 = arith.constant dense<0.000000e+00> : vector<16x16xf32>
    %482 = tpu.matmul %478, %481, %cst_199 {dimension_numbers = #tpu.dot_dimension_numbers<[1], [0], [0], [1], [0, 0, 1, 1], [], []>} : vector<16x8xf32>, vector<8x16xf32>, vector<16x16xf32> -> vector<16x16xf32>
    %cst_200 = arith.constant 0.353553385 : f32
    %483 = vector.broadcast %cst_200 : f32 to vector<16x16xf32>
    %484 = arith.mulf %482, %483 : vector<16x16xf32>
    %cst_201 = arith.constant dense<0xFF800000> : vector<16xf32>
    %485 = vector.multi_reduction <maximumf>, %484, %cst_201 [1] : vector<16x16xf32> to vector<16xf32>
    %486 = vector.shape_cast %485 : vector<16xf32> to vector<16x1xf32>
    %487 = vector.broadcast %486 : vector<16x1xf32> to vector<16x16xf32>
    %488 = arith.subf %484, %487 : vector<16x16xf32>
    %489 = math.exp %488 : vector<16x16xf32>
    %cst_202 = arith.constant dense<0.000000e+00> : vector<16xf32>
    %490 = vector.multi_reduction <add>, %489, %cst_202 [1] : vector<16x16xf32> to vector<16xf32>
    %491 = vector.shape_cast %490 : vector<16xf32> to vector<16x1xf32>
    %492 = tpu.reciprocal %491 {approx = true} : vector<16x1xf32> -> vector<16x1xf32>
    %493 = vector.broadcast %492 : vector<16x1xf32> to vector<16x16xf32>
    %494 = arith.mulf %489, %493 : vector<16x16xf32>
    %cst_203 = arith.constant dense<0.000000e+00> : vector<16x8xf32>
    %495 = tpu.matmul %494, %480, %cst_203 {dimension_numbers = #tpu.dot_dimension_numbers<[1], [0], [0], [1], [0, 0, 1, 1], [], []>} : vector<16x16xf32>, vector<16x8xf32>, vector<16x8xf32> -> vector<16x8xf32>
    %496 = vector.extract_strided_slice %361 {offsets = [0, 0], sizes = [8, 32], strides = [1, 1]} : vector<32x32xf32> to vector<8x32xf32>
    %cst_204 = arith.constant dense<0.000000e+00> : vector<16x32xf32>
    %497 = tpu.matmul %495, %496, %cst_204 {dimension_numbers = #tpu.dot_dimension_numbers<[1], [0], [0], [1], [0, 0, 1, 1], [], []>} : vector<16x8xf32>, vector<8x32xf32>, vector<16x32xf32> -> vector<16x32xf32>
    %498 = arith.addf %477, %497 : vector<16x32xf32>
    %499 = vector.extract_strided_slice %360 {offsets = [16, 8], sizes = [16, 8], strides = [1, 1]} : vector<32x96xf32> to vector<16x8xf32>
    %500 = vector.extract_strided_slice %360 {offsets = [16, 40], sizes = [16, 8], strides = [1, 1]} : vector<32x96xf32> to vector<16x8xf32>
    %501 = vector.extract_strided_slice %360 {offsets = [16, 72], sizes = [16, 8], strides = [1, 1]} : vector<32x96xf32> to vector<16x8xf32>
    %502 = tpu.transpose %500, [1, 0] : vector<16x8xf32> -> vector<8x16xf32>
    %cst_205 = arith.constant dense<0.000000e+00> : vector<16x16xf32>
    %503 = tpu.matmul %499, %502, %cst_205 {dimension_numbers = #tpu.dot_dimension_numbers<[1], [0], [0], [1], [0, 0, 1, 1], [], []>} : vector<16x8xf32>, vector<8x16xf32>, vector<16x16xf32> -> vector<16x16xf32>
    %cst_206 = arith.constant 0.353553385 : f32
    %504 = vector.broadcast %cst_206 : f32 to vector<16x16xf32>
    %505 = arith.mulf %503, %504 : vector<16x16xf32>
    %cst_207 = arith.constant dense<0xFF800000> : vector<16xf32>
    %506 = vector.multi_reduction <maximumf>, %505, %cst_207 [1] : vector<16x16xf32> to vector<16xf32>
    %507 = vector.shape_cast %506 : vector<16xf32> to vector<16x1xf32>
    %508 = vector.broadcast %507 : vector<16x1xf32> to vector<16x16xf32>
    %509 = arith.subf %505, %508 : vector<16x16xf32>
    %510 = math.exp %509 : vector<16x16xf32>
    %cst_208 = arith.constant dense<0.000000e+00> : vector<16xf32>
    %511 = vector.multi_reduction <add>, %510, %cst_208 [1] : vector<16x16xf32> to vector<16xf32>
    %512 = vector.shape_cast %511 : vector<16xf32> to vector<16x1xf32>
    %513 = tpu.reciprocal %512 {approx = true} : vector<16x1xf32> -> vector<16x1xf32>
    %514 = vector.broadcast %513 : vector<16x1xf32> to vector<16x16xf32>
    %515 = arith.mulf %510, %514 : vector<16x16xf32>
    %cst_209 = arith.constant dense<0.000000e+00> : vector<16x8xf32>
    %516 = tpu.matmul %515, %501, %cst_209 {dimension_numbers = #tpu.dot_dimension_numbers<[1], [0], [0], [1], [0, 0, 1, 1], [], []>} : vector<16x16xf32>, vector<16x8xf32>, vector<16x8xf32> -> vector<16x8xf32>
    %517 = vector.extract_strided_slice %361 {offsets = [8, 0], sizes = [8, 32], strides = [1, 1]} : vector<32x32xf32> to vector<8x32xf32>
    %cst_210 = arith.constant dense<0.000000e+00> : vector<16x32xf32>
    %518 = tpu.matmul %516, %517, %cst_210 {dimension_numbers = #tpu.dot_dimension_numbers<[1], [0], [0], [1], [0, 0, 1, 1], [], []>} : vector<16x8xf32>, vector<8x32xf32>, vector<16x32xf32> -> vector<16x32xf32>
    %519 = arith.addf %498, %518 : vector<16x32xf32>
    %520 = vector.extract_strided_slice %360 {offsets = [16, 16], sizes = [16, 8], strides = [1, 1]} : vector<32x96xf32> to vector<16x8xf32>
    %521 = vector.extract_strided_slice %360 {offsets = [16, 48], sizes = [16, 8], strides = [1, 1]} : vector<32x96xf32> to vector<16x8xf32>
    %522 = vector.extract_strided_slice %360 {offsets = [16, 80], sizes = [16, 8], strides = [1, 1]} : vector<32x96xf32> to vector<16x8xf32>
    %523 = tpu.transpose %521, [1, 0] : vector<16x8xf32> -> vector<8x16xf32>
    %cst_211 = arith.constant dense<0.000000e+00> : vector<16x16xf32>
    %524 = tpu.matmul %520, %523, %cst_211 {dimension_numbers = #tpu.dot_dimension_numbers<[1], [0], [0], [1], [0, 0, 1, 1], [], []>} : vector<16x8xf32>, vector<8x16xf32>, vector<16x16xf32> -> vector<16x16xf32>
    %cst_212 = arith.constant 0.353553385 : f32
    %525 = vector.broadcast %cst_212 : f32 to vector<16x16xf32>
    %526 = arith.mulf %524, %525 : vector<16x16xf32>
    %cst_213 = arith.constant dense<0xFF800000> : vector<16xf32>
    %527 = vector.multi_reduction <maximumf>, %526, %cst_213 [1] : vector<16x16xf32> to vector<16xf32>
    %528 = vector.shape_cast %527 : vector<16xf32> to vector<16x1xf32>
    %529 = vector.broadcast %528 : vector<16x1xf32> to vector<16x16xf32>
    %530 = arith.subf %526, %529 : vector<16x16xf32>
    %531 = math.exp %530 : vector<16x16xf32>
    %cst_214 = arith.constant dense<0.000000e+00> : vector<16xf32>
    %532 = vector.multi_reduction <add>, %531, %cst_214 [1] : vector<16x16xf32> to vector<16xf32>
    %533 = vector.shape_cast %532 : vector<16xf32> to vector<16x1xf32>
    %534 = tpu.reciprocal %533 {approx = true} : vector<16x1xf32> -> vector<16x1xf32>
    %535 = vector.broadcast %534 : vector<16x1xf32> to vector<16x16xf32>
    %536 = arith.mulf %531, %535 : vector<16x16xf32>
    %cst_215 = arith.constant dense<0.000000e+00> : vector<16x8xf32>
    %537 = tpu.matmul %536, %522, %cst_215 {dimension_numbers = #tpu.dot_dimension_numbers<[1], [0], [0], [1], [0, 0, 1, 1], [], []>} : vector<16x16xf32>, vector<16x8xf32>, vector<16x8xf32> -> vector<16x8xf32>
    %538 = vector.extract_strided_slice %361 {offsets = [16, 0], sizes = [8, 32], strides = [1, 1]} : vector<32x32xf32> to vector<8x32xf32>
    %cst_216 = arith.constant dense<0.000000e+00> : vector<16x32xf32>
    %539 = tpu.matmul %537, %538, %cst_216 {dimension_numbers = #tpu.dot_dimension_numbers<[1], [0], [0], [1], [0, 0, 1, 1], [], []>} : vector<16x8xf32>, vector<8x32xf32>, vector<16x32xf32> -> vector<16x32xf32>
    %540 = arith.addf %519, %539 : vector<16x32xf32>
    %541 = vector.extract_strided_slice %360 {offsets = [16, 24], sizes = [16, 8], strides = [1, 1]} : vector<32x96xf32> to vector<16x8xf32>
    %542 = vector.extract_strided_slice %360 {offsets = [16, 56], sizes = [16, 8], strides = [1, 1]} : vector<32x96xf32> to vector<16x8xf32>
    %543 = vector.extract_strided_slice %360 {offsets = [16, 88], sizes = [16, 8], strides = [1, 1]} : vector<32x96xf32> to vector<16x8xf32>
    %544 = tpu.transpose %542, [1, 0] : vector<16x8xf32> -> vector<8x16xf32>
    %cst_217 = arith.constant dense<0.000000e+00> : vector<16x16xf32>
    %545 = tpu.matmul %541, %544, %cst_217 {dimension_numbers = #tpu.dot_dimension_numbers<[1], [0], [0], [1], [0, 0, 1, 1], [], []>} : vector<16x8xf32>, vector<8x16xf32>, vector<16x16xf32> -> vector<16x16xf32>
    %cst_218 = arith.constant 0.353553385 : f32
    %546 = vector.broadcast %cst_218 : f32 to vector<16x16xf32>
    %547 = arith.mulf %545, %546 : vector<16x16xf32>
    %cst_219 = arith.constant dense<0xFF800000> : vector<16xf32>
    %548 = vector.multi_reduction <maximumf>, %547, %cst_219 [1] : vector<16x16xf32> to vector<16xf32>
    %549 = vector.shape_cast %548 : vector<16xf32> to vector<16x1xf32>
    %550 = vector.broadcast %549 : vector<16x1xf32> to vector<16x16xf32>
    %551 = arith.subf %547, %550 : vector<16x16xf32>
    %552 = math.exp %551 : vector<16x16xf32>
    %cst_220 = arith.constant dense<0.000000e+00> : vector<16xf32>
    %553 = vector.multi_reduction <add>, %552, %cst_220 [1] : vector<16x16xf32> to vector<16xf32>
    %554 = vector.shape_cast %553 : vector<16xf32> to vector<16x1xf32>
    %555 = tpu.reciprocal %554 {approx = true} : vector<16x1xf32> -> vector<16x1xf32>
    %556 = vector.broadcast %555 : vector<16x1xf32> to vector<16x16xf32>
    %557 = arith.mulf %552, %556 : vector<16x16xf32>
    %cst_221 = arith.constant dense<0.000000e+00> : vector<16x8xf32>
    %558 = tpu.matmul %557, %543, %cst_221 {dimension_numbers = #tpu.dot_dimension_numbers<[1], [0], [0], [1], [0, 0, 1, 1], [], []>} : vector<16x16xf32>, vector<16x8xf32>, vector<16x8xf32> -> vector<16x8xf32>
    %559 = vector.extract_strided_slice %361 {offsets = [24, 0], sizes = [8, 32], strides = [1, 1]} : vector<32x32xf32> to vector<8x32xf32>
    %cst_222 = arith.constant dense<0.000000e+00> : vector<16x32xf32>
    %560 = tpu.matmul %558, %559, %cst_222 {dimension_numbers = #tpu.dot_dimension_numbers<[1], [0], [0], [1], [0, 0, 1, 1], [], []>} : vector<16x8xf32>, vector<8x32xf32>, vector<16x32xf32> -> vector<16x32xf32>
    %561 = arith.addf %540, %560 : vector<16x32xf32>
    %562 = vector.extract_strided_slice %355 {offsets = [16, 0], sizes = [16, 32], strides = [1, 1]} : vector<32x32xf32> to vector<16x32xf32>
    %563 = arith.addf %562, %561 : vector<16x32xf32>
    %c0_223 = arith.constant 0 : index
    %c0_224 = arith.constant 0 : index
    %564 = vector.load %arg21[%c0_223, %c0_224] : memref<1x32xf32, #tpu.memory_space<vmem>>, vector<1x32xf32>
    %565 = vector.broadcast %564 : vector<1x32xf32> to vector<16x32xf32>
    %566 = arith.addf %563, %565 : vector<16x32xf32>
    %c0_225 = arith.constant 0 : index
    %c0_226 = arith.constant 0 : index
    %567 = vector.load %arg22[%c0_225, %c0_226] : memref<1x32xf32, #tpu.memory_space<vmem>>, vector<1x32xf32>
    %c0_227 = arith.constant 0 : index
    %c0_228 = arith.constant 0 : index
    %568 = vector.load %arg23[%c0_227, %c0_228] : memref<1x32xf32, #tpu.memory_space<vmem>>, vector<1x32xf32>
    %cst_229 = arith.constant dense<0.000000e+00> : vector<16xf32>
    %569 = vector.multi_reduction <add>, %566, %cst_229 [1] : vector<16x32xf32> to vector<16xf32>
    %570 = vector.shape_cast %569 : vector<16xf32> to vector<16x1xf32>
    %cst_230 = arith.constant 3.200000e+01 : f32
    %571 = vector.broadcast %cst_230 : f32 to vector<16x1xf32>
    %572 = arith.divf %570, %571 : vector<16x1xf32>
    %573 = vector.broadcast %572 : vector<16x1xf32> to vector<16x32xf32>
    %574 = arith.subf %566, %573 : vector<16x32xf32>
    %575 = arith.mulf %574, %574 : vector<16x32xf32>
    %cst_231 = arith.constant dense<0.000000e+00> : vector<16xf32>
    %576 = vector.multi_reduction <add>, %575, %cst_231 [1] : vector<16x32xf32> to vector<16xf32>
    %577 = vector.shape_cast %576 : vector<16xf32> to vector<16x1xf32>
    %cst_232 = arith.constant 3.200000e+01 : f32
    %578 = vector.broadcast %cst_232 : f32 to vector<16x1xf32>
    %579 = arith.divf %577, %578 : vector<16x1xf32>
    %580 = vector.broadcast %572 : vector<16x1xf32> to vector<16x32xf32>
    %581 = arith.subf %566, %580 : vector<16x32xf32>
    %cst_233 = arith.constant 9.99999974E-6 : f32
    %582 = vector.broadcast %cst_233 : f32 to vector<16x1xf32>
    %583 = arith.addf %579, %582 : vector<16x1xf32>
    %584 = math.rsqrt %583 : vector<16x1xf32>
    %585 = vector.broadcast %584 : vector<16x1xf32> to vector<16x32xf32>
    %586 = arith.mulf %581, %585 : vector<16x32xf32>
    %587 = vector.broadcast %567 : vector<1x32xf32> to vector<16x32xf32>
    %588 = arith.mulf %586, %587 : vector<16x32xf32>
    %589 = vector.broadcast %568 : vector<1x32xf32> to vector<16x32xf32>
    %590 = arith.addf %588, %589 : vector<16x32xf32>
    %c16_234 = arith.constant 16 : index
    %c0_235 = arith.constant 0 : index
    %591 = vector.load %arg31[%c16_234, %c0_235] : memref<32x32xf32, #tpu.memory_space<vmem>>, vector<16x32xf32>
    tpu.vector_store %arg31[%c16_234, %c0_235], %590 {strides = array<i32>} : memref<32x32xf32, #tpu.memory_space<vmem>>, vector<16x32xf32>,
    %c0_236 = arith.constant 0 : index
    %c0_237 = arith.constant 0 : index
    %592 = vector.load %arg31[%c0_236, %c0_237] : memref<32x32xf32, #tpu.memory_space<vmem>>, vector<32x32xf32>
    %c0_238 = arith.constant 0 : index
    %c0_239 = arith.constant 0 : index
    %593 = vector.load %arg24[%c0_238, %c0_239] : memref<32x64xf32, #tpu.memory_space<vmem>>, vector<32x64xf32>
    %cst_240 = arith.constant dense<0.000000e+00> : vector<32x64xf32>
    %594 = tpu.matmul %592, %593, %cst_240 {dimension_numbers = #tpu.dot_dimension_numbers<[1], [0], [0], [1], [0, 0, 1, 1], [], []>} : vector<32x32xf32>, vector<32x64xf32>, vector<32x64xf32> -> vector<32x64xf32>
    %c0_241 = arith.constant 0 : index
    %c0_242 = arith.constant 0 : index
    %595 = vector.load %arg25[%c0_241, %c0_242] : memref<1x64xf32, #tpu.memory_space<vmem>>, vector<1x64xf32>
    %596 = vector.broadcast %595 : vector<1x64xf32> to vector<32x64xf32>
    %597 = arith.addf %594, %596 : vector<32x64xf32>
    %cst_243 = arith.constant 5.000000e-01 : f32
    %598 = vector.broadcast %cst_243 : f32 to vector<32x64xf32>
    %599 = arith.mulf %598, %597 : vector<32x64xf32>
    %cst_244 = arith.constant 0.707106769 : f32
    %600 = vector.broadcast %cst_244 : f32 to vector<32x64xf32>
    %601 = arith.mulf %597, %600 : vector<32x64xf32>
    %602 = math.erf %601 : vector<32x64xf32>
    %cst_245 = arith.constant 1.000000e+00 : f32
    %603 = vector.broadcast %cst_245 : f32 to vector<32x64xf32>
    %604 = arith.addf %603, %602 : vector<32x64xf32>
    %605 = arith.mulf %599, %604 : vector<32x64xf32>
    %c0_246 = arith.constant 0 : index
    %c0_247 = arith.constant 0 : index
    %606 = vector.load %arg26[%c0_246, %c0_247] : memref<64x32xf32, #tpu.memory_space<vmem>>, vector<64x32xf32>
    %cst_248 = arith.constant dense<0.000000e+00> : vector<32x32xf32>
    %607 = tpu.matmul %605, %606, %cst_248 {dimension_numbers = #tpu.dot_dimension_numbers<[1], [0], [0], [1], [0, 0, 1, 1], [], []>} : vector<32x64xf32>, vector<64x32xf32>, vector<32x32xf32> -> vector<32x32xf32>
    %c0_249 = arith.constant 0 : index
    %c0_250 = arith.constant 0 : index
    %608 = vector.load %arg27[%c0_249, %c0_250] : memref<1x32xf32, #tpu.memory_space<vmem>>, vector<1x32xf32>
    %609 = vector.broadcast %608 : vector<1x32xf32> to vector<32x32xf32>
    %610 = arith.addf %607, %609 : vector<32x32xf32>
    %611 = arith.addf %592, %610 : vector<32x32xf32>
    %c0_251 = arith.constant 0 : index
    %c0_252 = arith.constant 0 : index
    %612 = vector.load %arg28[%c0_251, %c0_252] : memref<1x32xf32, #tpu.memory_space<vmem>>, vector<1x32xf32>
    %c0_253 = arith.constant 0 : index
    %c0_254 = arith.constant 0 : index
    %613 = vector.load %arg29[%c0_253, %c0_254] : memref<1x32xf32, #tpu.memory_space<vmem>>, vector<1x32xf32>
    %cst_255 = arith.constant dense<0.000000e+00> : vector<32xf32>
    %614 = vector.multi_reduction <add>, %611, %cst_255 [1] : vector<32x32xf32> to vector<32xf32>
    %615 = vector.shape_cast %614 : vector<32xf32> to vector<32x1xf32>
    %cst_256 = arith.constant 3.200000e+01 : f32
    %616 = vector.broadcast %cst_256 : f32 to vector<32x1xf32>
    %617 = arith.divf %615, %616 : vector<32x1xf32>
    %618 = vector.broadcast %617 : vector<32x1xf32> to vector<32x32xf32>
    %619 = arith.subf %611, %618 : vector<32x32xf32>
    %620 = arith.mulf %619, %619 : vector<32x32xf32>
    %cst_257 = arith.constant dense<0.000000e+00> : vector<32xf32>
    %621 = vector.multi_reduction <add>, %620, %cst_257 [1] : vector<32x32xf32> to vector<32xf32>
    %622 = vector.shape_cast %621 : vector<32xf32> to vector<32x1xf32>
    %cst_258 = arith.constant 3.200000e+01 : f32
    %623 = vector.broadcast %cst_258 : f32 to vector<32x1xf32>
    %624 = arith.divf %622, %623 : vector<32x1xf32>
    %625 = vector.broadcast %617 : vector<32x1xf32> to vector<32x32xf32>
    %626 = arith.subf %611, %625 : vector<32x32xf32>
    %cst_259 = arith.constant 9.99999974E-6 : f32
    %627 = vector.broadcast %cst_259 : f32 to vector<32x1xf32>
    %628 = arith.addf %624, %627 : vector<32x1xf32>
    %629 = math.rsqrt %628 : vector<32x1xf32>
    %630 = vector.broadcast %629 : vector<32x1xf32> to vector<32x32xf32>
    %631 = arith.mulf %626, %630 : vector<32x32xf32>
    %632 = vector.broadcast %612 : vector<1x32xf32> to vector<32x32xf32>
    %633 = arith.mulf %631, %632 : vector<32x32xf32>
    %634 = vector.broadcast %613 : vector<1x32xf32> to vector<32x32xf32>
    %635 = arith.addf %633, %634 : vector<32x32xf32>
    %c0_260 = arith.constant 0 : index
    %c0_261 = arith.constant 0 : index
    %636 = vector.load %arg31[%c0_260, %c0_261] : memref<32x32xf32, #tpu.memory_space<vmem>>, vector<32x32xf32>
    tpu.vector_store %arg31[%c0_260, %c0_261], %635 {strides = array<i32>} : memref<32x32xf32, #tpu.memory_space<vmem>>, vector<32x32xf32>,
    %c0_262 = arith.constant 0 : index
    %c0_263 = arith.constant 0 : index
    %637 = vector.load %arg31[%c0_262, %c0_263] : memref<32x32xf32, #tpu.memory_space<vmem>>, vector<32x32xf32>
    %c0_264 = arith.constant 0 : index
    %c0_265 = arith.constant 0 : index
    %638 = vector.load %arg4[%c0_264, %c0_265] : memref<32x49xf32, #tpu.memory_space<vmem>>, vector<32x49xf32>
    %cst_266 = arith.constant dense<0.000000e+00> : vector<32x49xf32>
    %639 = tpu.matmul %637, %638, %cst_266 {dimension_numbers = #tpu.dot_dimension_numbers<[1], [0], [0], [1], [0, 0, 1, 1], [], []>} : vector<32x32xf32>, vector<32x49xf32>, vector<32x49xf32> -> vector<32x49xf32>
    %c0_267 = arith.constant 0 : index
    %c0_268 = arith.constant 0 : index
    %640 = vector.load %arg5[%c0_267, %c0_268] : memref<1x49xf32, #tpu.memory_space<vmem>>, vector<1x49xf32>
    %641 = vector.broadcast %640 : vector<1x49xf32> to vector<32x49xf32>
    %642 = arith.addf %639, %641 : vector<32x49xf32>
    %cst_269 = arith.constant 0.000000e+00 : f32
    %643 = vector.broadcast %cst_269 : f32 to vector<32x49xf32>
    %644 = arith.subf %643, %642 : vector<32x49xf32>
    %645 = math.exp %644 : vector<32x49xf32>
    %cst_270 = arith.constant 1.000000e+00 : f32
    %646 = vector.broadcast %cst_270 : f32 to vector<32x49xf32>
    %647 = arith.addf %646, %645 : vector<32x49xf32>
    %cst_271 = arith.constant 1.000000e+00 : f32
    %648 = vector.broadcast %cst_271 : f32 to vector<32x49xf32>
    %649 = arith.divf %648, %647 : vector<32x49xf32>
    %c0_272 = arith.constant 0 : index
    %c0_273 = arith.constant 0 : index
    %650 = vector.load %arg30[%c0_272, %c0_273] : memref<32x49xf32, #tpu.memory_space<vmem>>, vector<32x49xf32>
    tpu.vector_store %arg30[%c0_272, %c0_273], %649 {strides = array<i32>} : memref<32x49xf32, #tpu.memory_space<vmem>>, vector<32x49xf32>,
    return
  }
}

</mosaic_0001>

<llo_original>
// kernel: vit_decoder_forward.1
$region0: #{vit_decoder_forward.1}
  #allocation0 [shape = 'u32[]', space=smem, size = 0x4, offset = 0x4, fixed_abs, tag = 'smem constant byte address 0x4 - core index']
  #allocation1 [shape = 'u32[144,128]{1,0:T(1,128)}', space=vmem, size = 0x12000, scoped, tag = 'internal scratch']
  #allocation2 [shape = 'f32[32,32]{1,0:T(8,128)}', space=vmem, size = 0x4000, scoped, tag = 'scratch operand']
  %s0 = inlined_call_operand.smem [shape: u32[31], index: -1, kind: input, shape index: {}]
  %s1 = sld [smem:[%s0]]
  %s2 = scalar_lea.smem %s0, 1
  %s3 = sld [smem:[%s2]]
  %s4 = scalar_lea.smem %s0, 2
  %s5 = sld [smem:[%s4]]
  %s6 = scalar_lea.smem %s0, 3
  %s7 = sld [smem:[%s6]]
  %s8 = scalar_lea.smem %s0, 4
  %s9 = sld [smem:[%s8]]
  %s10 = scalar_lea.smem %s0, 5
  %s11 = sld [smem:[%s10]]
  %s12 = scalar_lea.smem %s0, 6
  %s13 = sld [smem:[%s12]]
  %s14 = scalar_lea.smem %s0, 7
  %s15 = sld [smem:[%s14]]
  %s16 = scalar_lea.smem %s0, 8
  %s17 = sld [smem:[%s16]]
  %s18 = scalar_lea.smem %s0, 9
  %s19 = sld [smem:[%s18]]
  %s20 = scalar_lea.smem %s0, 10
  %s21 = sld [smem:[%s20]]
  %s22 = scalar_lea.smem %s0, 11
  %s23 = sld [smem:[%s22]]
  %s24 = scalar_lea.smem %s0, 12
  %s25 = sld [smem:[%s24]]
  %s26 = scalar_lea.smem %s0, 13
  %s27 = sld [smem:[%s26]]
  %s28 = scalar_lea.smem %s0, 14
  %s29 = sld [smem:[%s28]]
  %s30 = scalar_lea.smem %s0, 15
  %s31 = sld [smem:[%s30]]
  %s32 = scalar_lea.smem %s0, 16
  %s33 = sld [smem:[%s32]]
  %s34 = scalar_lea.smem %s0, 17
  %s35 = sld [smem:[%s34]]
  %s36 = scalar_lea.smem %s0, 18
  %s37 = sld [smem:[%s36]]
  %s38 = scalar_lea.smem %s0, 19
  %s39 = sld [smem:[%s38]]
  %s40 = scalar_lea.smem %s0, 20
  %s41 = sld [smem:[%s40]]
  %s42 = scalar_lea.smem %s0, 21
  %s43 = sld [smem:[%s42]]
  %s44 = scalar_lea.smem %s0, 22
  %s45 = sld [smem:[%s44]]
  %s46 = scalar_lea.smem %s0, 23
  %s47 = sld [smem:[%s46]]
  %s48 = scalar_lea.smem %s0, 24
  %s49 = sld [smem:[%s48]]
  %s50 = scalar_lea.smem %s0, 25
  %s51 = sld [smem:[%s50]]
  %s52 = scalar_lea.smem %s0, 26
  %s53 = sld [smem:[%s52]]
  %s54 = scalar_lea.smem %s0, 27
  %s55 = sld [smem:[%s54]]
  %s56 = scalar_lea.smem %s0, 28
  %s57 = sld [smem:[%s56]]
  %s58 = scalar_lea.smem %s0, 29
  %s59 = sld [smem:[%s58]]
  %s60 = scalar_lea.smem %s0, 30
  %s61 = sld [smem:[%s60]]
  %s62 = sld [smem:[#allocation0]]
  $region170: #{vit_decoder_forward.1} parent=0
    _
  %s64 = ssub.s32 1, %s62
  %s65 = scalar_select 0, %s64, %s62
  $region1: #{vit_decoder_forward.1} parent=0
    #allocation3 [shape = 'u8[16384]{0}', space=vmem, size = 0x4000, scoped, tag = 'input window, operand 12, single buffered']
    #allocation4 [shape = 's32[1]{0}', space=sflag, size = 0x4, scoped, tag = 'scoped memory for vit_decoder_forward.1']
    #allocation5 [shape = 'u8[16384]{0}', space=vmem, size = 0x4000, scoped, tag = 'input window, operand 18, single buffered']
    #allocation6 [shape = 's32[1]{0}', space=sflag, size = 0x4, scoped, tag = 'scoped memory for vit_decoder_forward.1']
    #allocation7 [shape = 'u8[16384]{0}', space=vmem, size = 0x4000, scoped, tag = 'input window, operand 20, single buffered']
    #allocation8 [shape = 'u8[512]{0}', space=vmem, size = 0x400, scoped, tag = 'input window, operand 22, single buffered']
    #allocation9 [shape = 's32[1]{0}', space=sflag, size = 0x4, scoped, tag = 'scoped memory for vit_decoder_forward.1']
    #allocation10 [shape = 'u8[512]{0}', space=vmem, size = 0x400, scoped, tag = 'input window, operand 23, single buffered']
    #allocation11 [shape = 'u8[16384]{0}', space=vmem, size = 0x4000, scoped, tag = 'input window, operand 24, single buffered']
    #allocation12 [shape = 's32[1]{0}', space=sflag, size = 0x4, scoped, tag = 'scoped memory for vit_decoder_forward.1']
    #allocation13 [shape = 'u8[512]{0}', space=vmem, size = 0x400, scoped, tag = 'input window, operand 25, single buffered']
    #allocation14 [shape = 'u8[512]{0}', space=vmem, size = 0x400, scoped, tag = 'input window, operand 27, single buffered']
    #allocation15 [shape = 's32[1]{0}', space=sflag, size = 0x4, scoped, tag = 'scoped memory for vit_decoder_forward.1']
    #allocation16 [shape = 'u8[512]{0}', space=vmem, size = 0x400, scoped, tag = 'input window, operand 28, single buffered']
    #allocation17 [shape = 'u8[512]{0}', space=vmem, size = 0x400, scoped, tag = 'input window, operand 29, single buffered']
    #allocation18 [shape = 's32[1]{0}', space=sflag, size = 0x4, scoped, tag = 'scoped memory for vit_decoder_forward.1']
    %66 = vsyncpa [#allocation4], 0
    %67 = vsyncpa [#allocation6], 0
    %68 = vsyncpa [#allocation9], 0
    %69 = vsyncpa [#allocation12], 0
    %70 = vsyncpa [#allocation15], 0
    %71 = vsyncpa [#allocation18], 0
    // Predicated region
    $region2: #{vit_decoder_forward.1} parent=1 // pred_check
      _
    $region3: #{vit_decoder_forward.1} parent=1 // pred_check_branch
      %73 = sbr.rel (0) target = $region5
    $region4: #{vit_decoder_forward.1} parent=1 // pred_region
      _
    $region5: #{vit_decoder_forward.1} parent=1 // pred_fallthru
      _
    // Predicated region
    $region6: #{vit_decoder_forward.1} parent=1 // pred_check
      _
    $region7: #{vit_decoder_forward.1} parent=1 // pred_check_branch
      %75 = sbr.rel (0) target = $region9
    $region8: #{vit_decoder_forward.1} parent=1 // pred_region
      _
    $region9: #{vit_decoder_forward.1} parent=1 // pred_fallthru
      _
    // Predicated region
    $region10: #{vit_decoder_forward.1} parent=1 // pred_check
      _
    $region11: #{vit_decoder_forward.1} parent=1 // pred_check_branch
      %77 = sbr.rel (0) target = $region13
    $region12: #{vit_decoder_forward.1} parent=1 // pred_region
      _
    $region13: #{vit_decoder_forward.1} parent=1 // pred_fallthru
      _
    // Predicated region
    $region14: #{vit_decoder_forward.1} parent=1 // pred_check
      _
    $region15: #{vit_decoder_forward.1} parent=1 // pred_check_branch
      %79 = sbr.rel (0) target = $region17
    $region16: #{vit_decoder_forward.1} parent=1 // pred_region
      _
    $region17: #{vit_decoder_forward.1} parent=1 // pred_fallthru
      _
    // Predicated region
    $region18: #{vit_decoder_forward.1} parent=1 // pred_check
      _
    $region19: #{vit_decoder_forward.1} parent=1 // pred_check_branch
      %81 = sbr.rel (0) target = $region21
    $region20: #{vit_decoder_forward.1} parent=1 // pred_region
      _
    $region21: #{vit_decoder_forward.1} parent=1 // pred_fallthru
      _
    // Predicated region
    $region22: #{vit_decoder_forward.1} parent=1 // pred_check
      _
    $region23: #{vit_decoder_forward.1} parent=1 // pred_check_branch
      %83 = sbr.rel (0) target = $region25
    $region24: #{vit_decoder_forward.1} parent=1 // pred_region
      _
    $region25: #{vit_decoder_forward.1} parent=1 // pred_fallthru
      _
    // Predicated region
    $region26: #{vit_decoder_forward.1} parent=1 // pred_check
      _
    $region27: #{vit_decoder_forward.1} parent=1 // pred_check_branch
      %85 = sbr.rel (0) target = $region29
    $region28: #{vit_decoder_forward.1} parent=1 // pred_region
      _
    $region29: #{vit_decoder_forward.1} parent=1 // pred_fallthru
      _
    // Predicated region
    $region30: #{vit_decoder_forward.1} parent=1 // pred_check
      _
    $region31: #{vit_decoder_forward.1} parent=1 // pred_check_branch
      %87 = sbr.rel (0) target = $region33
    $region32: #{vit_decoder_forward.1} parent=1 // pred_region
      _
    $region33: #{vit_decoder_forward.1} parent=1 // pred_fallthru
      _
    // Predicated region
    $region34: #{vit_decoder_forward.1} parent=1 // pred_check
      _
    $region35: #{vit_decoder_forward.1} parent=1 // pred_check_branch
      %89 = sbr.rel (0) target = $region37
    $region36: #{vit_decoder_forward.1} parent=1 // pred_region
      _
    $region37: #{vit_decoder_forward.1} parent=1 // pred_fallthru
      _
    // Predicated region
    $region38: #{vit_decoder_forward.1} parent=1 // pred_check
      _
    $region39: #{vit_decoder_forward.1} parent=1 // pred_check_branch
      %91 = sbr.rel (0) target = $region41
    $region40: #{vit_decoder_forward.1} parent=1 // pred_region
      _
    $region41: #{vit_decoder_forward.1} parent=1 // pred_fallthru
      _
    // Predicated region
    $region42: #{vit_decoder_forward.1} parent=1 // pred_check
      _
    $region43: #{vit_decoder_forward.1} parent=1 // pred_check_branch
      %93 = sbr.rel (0) target = $region45
    $region44: #{vit_decoder_forward.1} parent=1 // pred_region
      _
    $region45: #{vit_decoder_forward.1} parent=1 // pred_fallthru
      _
    // Predicated region
    $region46: #{vit_decoder_forward.1} parent=1 // pred_check
      _
    $region47: #{vit_decoder_forward.1} parent=1 // pred_check_branch
      %95 = sbr.rel (0) target = $region49
    $region48: #{vit_decoder_forward.1} parent=1 // pred_region
      _
    $region49: #{vit_decoder_forward.1} parent=1 // pred_fallthru
      _
    // Predicated region
    $region50: #{vit_decoder_forward.1} parent=1 // pred_check
      _
    $region51: #{vit_decoder_forward.1} parent=1 // pred_check_branch
      %97 = sbr.rel (0) target = $region53
    $region52: #{vit_decoder_forward.1} parent=1 // pred_region
      %s99 = ssub.s32 512, 512
      %100 = vsyncadd [#allocation4], %s99
      %s101 = sshll.u32 [#allocation3], 4
      %s102 = int_to_ptr.vmem [resolvable:$true] %s101
      %107 = dma.hbm_to_vmem [thread:$0]  %s25, 512, %s102, [#allocation4], 128, 128, 8
    $region53: #{vit_decoder_forward.1} parent=1 // pred_fallthru
      _
    // Predicated region
    $region54: #{vit_decoder_forward.1} parent=1 // pred_check
      _
    $region55: #{vit_decoder_forward.1} parent=1 // pred_check_branch
      %109 = sbr.rel (0) target = $region57
    $region56: #{vit_decoder_forward.1} parent=1 // pred_region
      _
    $region57: #{vit_decoder_forward.1} parent=1 // pred_fallthru
      _
    // Predicated region
    $region58: #{vit_decoder_forward.1} parent=1 // pred_check
      _
    $region59: #{vit_decoder_forward.1} parent=1 // pred_check_branch
      %111 = sbr.rel (0) target = $region61
    $region60: #{vit_decoder_forward.1} parent=1 // pred_region
      _
    $region61: #{vit_decoder_forward.1} parent=1 // pred_fallthru
      _
    // Predicated region
    $region62: #{vit_decoder_forward.1} parent=1 // pred_check
      _
    $region63: #{vit_decoder_forward.1} parent=1 // pred_check_branch
      %113 = sbr.rel (0) target = $region65
    $region64: #{vit_decoder_forward.1} parent=1 // pred_region
      _
    $region65: #{vit_decoder_forward.1} parent=1 // pred_fallthru
      _
    // Predicated region
    $region66: #{vit_decoder_forward.1} parent=1 // pred_check
      _
    $region67: #{vit_decoder_forward.1} parent=1 // pred_check_branch
      %115 = sbr.rel (0) target = $region69
    $region68: #{vit_decoder_forward.1} parent=1 // pred_region
      _
    $region69: #{vit_decoder_forward.1} parent=1 // pred_fallthru
      _
    // Predicated region
    $region70: #{vit_decoder_forward.1} parent=1 // pred_check
      _
    $region71: #{vit_decoder_forward.1} parent=1 // pred_check_branch
      %117 = sbr.rel (0) target = $region73
    $region72: #{vit_decoder_forward.1} parent=1 // pred_region
      _
    $region73: #{vit_decoder_forward.1} parent=1 // pred_fallthru
      _
    // Predicated region
    $region74: #{vit_decoder_forward.1} parent=1 // pred_check
      _
    $region75: #{vit_decoder_forward.1} parent=1 // pred_check_branch
      %119 = sbr.rel (0) target = $region77
    $region76: #{vit_decoder_forward.1} parent=1 // pred_region
      %s121 = ssub.s32 512, 512
      %122 = vsyncadd [#allocation6], %s121
      %s123 = sshll.u32 [#allocation5], 4
      %s124 = int_to_ptr.vmem [resolvable:$true] %s123
      %129 = dma.hbm_to_vmem [thread:$0]  %s37, 512, %s124, [#allocation6], 128, 128, 8
    $region77: #{vit_decoder_forward.1} parent=1 // pred_fallthru
      _
    // Predicated region
    $region78: #{vit_decoder_forward.1} parent=1 // pred_check
      _
    $region79: #{vit_decoder_forward.1} parent=1 // pred_check_branch
      %131 = sbr.rel (0) target = $region81
    $region80: #{vit_decoder_forward.1} parent=1 // pred_region
      _
    $region81: #{vit_decoder_forward.1} parent=1 // pred_fallthru
      _
    // Predicated region
    $region82: #{vit_decoder_forward.1} parent=1 // pred_check
      _
    $region83: #{vit_decoder_forward.1} parent=1 // pred_check_branch
      %133 = sbr.rel (0) target = $region85
    $region84: #{vit_decoder_forward.1} parent=1 // pred_region
      %s135 = ssub.s32 512, 512
      %136 = vsyncadd [#allocation6], %s135
      %s137 = sshll.u32 [#allocation7], 4
      %s138 = int_to_ptr.vmem [resolvable:$true] %s137
      %143 = dma.hbm_to_vmem [thread:$0]  %s41, 512, %s138, [#allocation6], 128, 128, 8
    $region85: #{vit_decoder_forward.1} parent=1 // pred_fallthru
      _
    // Predicated region
    $region86: #{vit_decoder_forward.1} parent=1 // pred_check
      _
    $region87: #{vit_decoder_forward.1} parent=1 // pred_check_branch
      %145 = sbr.rel (0) target = $region89
    $region88: #{vit_decoder_forward.1} parent=1 // pred_region
      _
    $region89: #{vit_decoder_forward.1} parent=1 // pred_fallthru
      _
    // Predicated region
    $region90: #{vit_decoder_forward.1} parent=1 // pred_check
      _
    $region91: #{vit_decoder_forward.1} parent=1 // pred_check_branch
      %147 = sbr.rel (0) target = $region93
    $region92: #{vit_decoder_forward.1} parent=1 // pred_region
      %s149 = ssub.s32 16, 16
      %150 = vsyncadd [#allocation9], %s149
      %s152 = sshll.u32 [#allocation8], 4
      %s153 = int_to_ptr.vmem [resolvable:$true] %s152
      %155 = dma.hbm_to_vmem [thread:$0]  %s45, 16, %s153, [#allocation9]
    $region93: #{vit_decoder_forward.1} parent=1 // pred_fallthru
      _
    // Predicated region
    $region94: #{vit_decoder_forward.1} parent=1 // pred_check
      _
    $region95: #{vit_decoder_forward.1} parent=1 // pred_check_branch
      %157 = sbr.rel (0) target = $region97
    $region96: #{vit_decoder_forward.1} parent=1 // pred_region
      %s159 = ssub.s32 16, 16
      %160 = vsyncadd [#allocation9], %s159
      %s162 = sshll.u32 [#allocation10], 4
      %s163 = int_to_ptr.vmem [resolvable:$true] %s162
      %165 = dma.hbm_to_vmem [thread:$0]  %s47, 16, %s163, [#allocation9]
    $region97: #{vit_decoder_forward.1} parent=1 // pred_fallthru
      _
    // Predicated region
    $region98: #{vit_decoder_forward.1} parent=1 // pred_check
      _
    $region99: #{vit_decoder_forward.1} parent=1 // pred_check_branch
      %167 = sbr.rel (0) target = $region101
    $region100: #{vit_decoder_forward.1} parent=1 // pred_region
      %s169 = ssub.s32 512, 512
      %170 = vsyncadd [#allocation12], %s169
      %s171 = sshll.u32 [#allocation11], 4
      %s172 = int_to_ptr.vmem [resolvable:$true] %s171
      %177 = dma.hbm_to_vmem [thread:$0]  %s49, 512, %s172, [#allocation12], 128, 128, 8
    $region101: #{vit_decoder_forward.1} parent=1 // pred_fallthru
      _
    // Predicated region
    $region102: #{vit_decoder_forward.1} parent=1 // pred_check
      _
    $region103: #{vit_decoder_forward.1} parent=1 // pred_check_branch
      %179 = sbr.rel (0) target = $region105
    $region104: #{vit_decoder_forward.1} parent=1 // pred_region
      %s181 = ssub.s32 16, 16
      %182 = vsyncadd [#allocation12], %s181
      %s184 = sshll.u32 [#allocation13], 4
      %s185 = int_to_ptr.vmem [resolvable:$true] %s184
      %187 = dma.hbm_to_vmem [thread:$0]  %s51, 16, %s185, [#allocation12]
    $region105: #{vit_decoder_forward.1} parent=1 // pred_fallthru
      _
    // Predicated region
    $region106: #{vit_decoder_forward.1} parent=1 // pred_check
      _
    $region107: #{vit_decoder_forward.1} parent=1 // pred_check_branch
      %189 = sbr.rel (0) target = $region109
    $region108: #{vit_decoder_forward.1} parent=1 // pred_region
      _
    $region109: #{vit_decoder_forward.1} parent=1 // pred_fallthru
      _
    // Predicated region
    $region110: #{vit_decoder_forward.1} parent=1 // pred_check
      _
    $region111: #{vit_decoder_forward.1} parent=1 // pred_check_branch
      %191 = sbr.rel (0) target = $region113
    $region112: #{vit_decoder_forward.1} parent=1 // pred_region
      %s193 = ssub.s32 16, 16
      %194 = vsyncadd [#allocation15], %s193
      %s196 = sshll.u32 [#allocation14], 4
      %s197 = int_to_ptr.vmem [resolvable:$true] %s196
      %199 = dma.hbm_to_vmem [thread:$0]  %s55, 16, %s197, [#allocation15]
    $region113: #{vit_decoder_forward.1} parent=1 // pred_fallthru
      _
    // Predicated region
    $region114: #{vit_decoder_forward.1} parent=1 // pred_check
      _
    $region115: #{vit_decoder_forward.1} parent=1 // pred_check_branch
      %201 = sbr.rel (0) target = $region117
    $region116: #{vit_decoder_forward.1} parent=1 // pred_region
      %s203 = ssub.s32 16, 16
      %204 = vsyncadd [#allocation15], %s203
      %s206 = sshll.u32 [#allocation16], 4
      %s207 = int_to_ptr.vmem [resolvable:$true] %s206
      %209 = dma.hbm_to_vmem [thread:$0]  %s57, 16, %s207, [#allocation15]
    $region117: #{vit_decoder_forward.1} parent=1 // pred_fallthru
      _
    // Predicated region
    $region118: #{vit_decoder_forward.1} parent=1 // pred_check
      _
    $region119: #{vit_decoder_forward.1} parent=1 // pred_check_branch
      %211 = sbr.rel (0) target = $region121
    $region120: #{vit_decoder_forward.1} parent=1 // pred_region
      %s213 = ssub.s32 16, 16
      %214 = vsyncadd [#allocation18], %s213
      %s216 = sshll.u32 [#allocation17], 4
      %s217 = int_to_ptr.vmem [resolvable:$true] %s216
      %219 = dma.hbm_to_vmem [thread:$0]  %s59, 16, %s217, [#allocation18]
    $region121: #{vit_decoder_forward.1} parent=1 // pred_fallthru
      _
    // Predicated region
    $region122: #{vit_decoder_forward.1} parent=1 // pred_check
      _
    $region123: #{vit_decoder_forward.1} parent=1 // pred_check_branch
      %221 = sbr.rel (0) target = $region125
    $region124: #{vit_decoder_forward.1} parent=1 // pred_region
      %222 = dma.done [#allocation4], 512
    $region125: #{vit_decoder_forward.1} parent=1 // pred_fallthru
      _
    // Predicated region
    $region126: #{vit_decoder_forward.1} parent=1 // pred_check
      _
    $region127: #{vit_decoder_forward.1} parent=1 // pred_check_branch
      %224 = sbr.rel (0) target = $region129
    $region128: #{vit_decoder_forward.1} parent=1 // pred_region
      %225 = dma.done [#allocation6], 512
    $region129: #{vit_decoder_forward.1} parent=1 // pred_fallthru
      _
    // Predicated region
    $region130: #{vit_decoder_forward.1} parent=1 // pred_check
      _
    $region131: #{vit_decoder_forward.1} parent=1 // pred_check_branch
      %227 = sbr.rel (0) target = $region133
    $region132: #{vit_decoder_forward.1} parent=1 // pred_region
      %228 = dma.done [#allocation6], 512
    $region133: #{vit_decoder_forward.1} parent=1 // pred_fallthru
      _
    // Predicated region
    $region134: #{vit_decoder_forward.1} parent=1 // pred_check
      _
    $region135: #{vit_decoder_forward.1} parent=1 // pred_check_branch
      %230 = sbr.rel (0) target = $region137
    $region136: #{vit_decoder_forward.1} parent=1 // pred_region
      %231 = dma.done [#allocation9], 16
    $region137: #{vit_decoder_forward.1} parent=1 // pred_fallthru
      _
    // Predicated region
    $region138: #{vit_decoder_forward.1} parent=1 // pred_check
      _
    $region139: #{vit_decoder_forward.1} parent=1 // pred_check_branch
      %233 = sbr.rel (0) target = $region141
    $region140: #{vit_decoder_forward.1} parent=1 // pred_region
      %234 = dma.done [#allocation9], 16
    $region141: #{vit_decoder_forward.1} parent=1 // pred_fallthru
      _
    // Predicated region
    $region142: #{vit_decoder_forward.1} parent=1 // pred_check
      _
    $region143: #{vit_decoder_forward.1} parent=1 // pred_check_branch
      %236 = sbr.rel (0) target = $region145
    $region144: #{vit_decoder_forward.1} parent=1 // pred_region
      %237 = dma.done [#allocation12], 512
    $region145: #{vit_decoder_forward.1} parent=1 // pred_fallthru
      _
    // Predicated region
    $region146: #{vit_decoder_forward.1} parent=1 // pred_check
      _
    $region147: #{vit_decoder_forward.1} parent=1 // pred_check_branch
      %239 = sbr.rel (0) target = $region149
    $region148: #{vit_decoder_forward.1} parent=1 // pred_region
      %240 = dma.done [#allocation12], 16
    $region149: #{vit_decoder_forward.1} parent=1 // pred_fallthru
      _
    // Predicated region
    $region150: #{vit_decoder_forward.1} parent=1 // pred_check
      _
    $region151: #{vit_decoder_forward.1} parent=1 // pred_check_branch
      %242 = sbr.rel (0) target = $region153
    $region152: #{vit_decoder_forward.1} parent=1 // pred_region
      %243 = dma.done [#allocation15], 16
    $region153: #{vit_decoder_forward.1} parent=1 // pred_fallthru
      _
    // Predicated region
    $region154: #{vit_decoder_forward.1} parent=1 // pred_check
      _
    $region155: #{vit_decoder_forward.1} parent=1 // pred_check_branch
      %245 = sbr.rel (0) target = $region157
    $region156: #{vit_decoder_forward.1} parent=1 // pred_region
      %246 = dma.done [#allocation15], 16
    $region157: #{vit_decoder_forward.1} parent=1 // pred_fallthru
      _
    // Predicated region
    $region158: #{vit_decoder_forward.1} parent=1 // pred_check
      _
    $region159: #{vit_decoder_forward.1} parent=1 // pred_check_branch
      %248 = sbr.rel (0) target = $region161
    $region160: #{vit_decoder_forward.1} parent=1 // pred_region
      %249 = dma.done [#allocation18], 16
    $region161: #{vit_decoder_forward.1} parent=1 // pred_fallthru
      _
    %v250 = vld [vmem:[%s1] sm:$0x3]
    %v251 = vld [vmem:[%s3] sm:$0xff]
    %v252 = vld [vmem:[%s3 + $0x8] sm:$0xff]
    %v253 = vld [vmem:[%s3 + $0x10] sm:$0xff]
    %v254 = vld [vmem:[%s3 + $0x18] sm:$0xff]
    %v255 = vld [vmem:[%s3 + $0x20] sm:$0xff]
    %v256 = vld [vmem:[%s3 + $0x28] sm:$0xff]
    %v257 = vld [vmem:[%s3 + $0x30] sm:$0xff]
    %v258 = vld [vmem:[%s3 + $0x38] sm:$0xff]
    %v259 = vld [vmem:[%s3 + $0x40] sm:$0xff]
    %v260 = vld [vmem:[%s3 + $0x48] sm:$0xff]
    %v261 = vld [vmem:[%s3 + $0x50] sm:$0xff]
    %v262 = vld [vmem:[%s3 + $0x58] sm:$0xff]
    %v263 = vld [vmem:[%s3 + $0x60] sm:$0xff]
    %v264 = vld [vmem:[%s3 + $0x68] sm:$0xff]
    %v265 = vld [vmem:[%s3 + $0x70] sm:$0xff]
    %v266 = vld [vmem:[%s3 + $0x78] sm:$0xff]
    %v267 = vld [vmem:[%s5] sm:$0xf]
    %v269 = vlaneseq
    %v270 = vshrl.u32 %v269, 7
    %v271 = vsub.s32 0, %v270
    %v272 = vrot.slane %v267, %v271
    %v273 = vlaneseq
    %v274 = vshrl.u32 %v273, 7
    %v275 = vsub.s32 1, %v274
    %v276 = vrot.slane %v267, %v275
    %v277 = vlaneseq
    %v278 = vshrl.u32 %v277, 7
    %v279 = vsub.s32 2, %v278
    %v280 = vrot.slane %v267, %v279
    %v281 = vlaneseq
    %v282 = vshrl.u32 %v281, 7
    %v283 = vsub.s32 3, %v282
    %v284 = vrot.slane %v267, %v283
    %vm289 = vcmask 261120
    %v291 = vsel %vm289, %v250, 0
    %293 = vmatprep.subr.mxu0 0.0
    %294 = vmatpush1.msra.mxu0 0.0
    %295 = vmatprep.subr.mxu0 0.0
    %296 = vmatpush1.msra.mxu0 0.0
    %297 = vmatprep.subr.mxu0 0.0
    %298 = vmatpush1.msra.mxu0 0.0
    %299 = vmatprep.subr.mxu0 0.0
    %300 = vmatpush1.msra.mxu0 0.0
    %301 = vmatprep.subr.mxu0 0.0
    %302 = vmatpush1.msra.mxu0 0.0
    %303 = vmatprep.subr.mxu0 0.0
    %304 = vmatpush1.msra.mxu0 0.0
    %305 = vmatprep.subr.mxu0 0.0
    %306 = vmatpush1.msra.mxu0 0.0
    %307 = vmatprep.subr.mxu0 0.0
    %308 = vmatpush1.msra.mxu0 0.0
    %309 = vmatprep.subr.mxu0 0.0
    %310 = vmatpush1.msra.mxu0 0.0
    %311 = vmatprep.subr.mxu0 0.0
    %312 = vmatpush1.msra.mxu0 0.0
    %313 = vmatprep.subr.mxu0 0.0
    %314 = vmatpush1.msra.mxu0 0.0
    %315 = vmatprep.subr.mxu0 0.0
    %316 = vmatpush1.msra.mxu0 0.0
    %317 = vmatprep.subr.mxu0 %v264
    %318 = vmatpush1.msra.mxu0 %v263
    %319 = vmatprep.subr.mxu0 %v260
    %320 = vmatpush1.msra.mxu0 %v259
    %321 = vmatprep.subr.mxu0 %v256
    %322 = vmatpush1.msra.mxu0 %v255
    %323 = vmatprep.subr.mxu0 %v252
    %324 = vmatpush1.msra.mxu0 %v251
    %325 = vmatprep.subr.mxu0 0.0
    %326 = vmatpush2.msra.mxu0 0.0
    %327 = vmatprep.subr.mxu0 0.0
    %328 = vmatpush2.msra.mxu0 0.0
    %329 = vmatprep.subr.mxu0 0.0
    %330 = vmatpush2.msra.mxu0 0.0
    %331 = vmatprep.subr.mxu0 0.0
    %332 = vmatpush2.msra.mxu0 0.0
    %333 = vmatprep.subr.mxu0 0.0
    %334 = vmatpush2.msra.mxu0 0.0
    %335 = vmatprep.subr.mxu0 0.0
    %336 = vmatpush2.msra.mxu0 0.0
    %337 = vmatprep.subr.mxu0 0.0
    %338 = vmatpush2.msra.mxu0 0.0
    %339 = vmatprep.subr.mxu0 0.0
    %340 = vmatpush2.msra.mxu0 0.0
    %341 = vmatprep.subr.mxu0 0.0
    %342 = vmatpush2.msra.mxu0 0.0
    %343 = vmatprep.subr.mxu0 0.0
    %344 = vmatpush2.msra.mxu0 0.0
    %345 = vmatprep.subr.mxu0 0.0
    %346 = vmatpush2.msra.mxu0 0.0
    %347 = vmatprep.subr.mxu0 0.0
    %348 = vmatpush2.msra.mxu0 0.0
    %349 = vmatprep.subr.mxu0 0.0
    %350 = vmatpush2.msra.mxu0 0.0
    %351 = vmatprep.subr.mxu0 0.0
    %352 = vmatpush2.msra.mxu0 0.0
    %353 = vmatprep.subr.mxu0 0.0
    %354 = vmatpush2.msra.mxu0 0.0
    %355 = vmatprep.subr.mxu0 0.0
    %356 = vmatpush2.msra.mxu0 0.0
    %357 = vmatprep.mubr.f32.mxu0 0.0
    %358 = vmatmul.mubr.f32.gmra.mxu0 %v291
    %v359 = vpop.f32.mrf.mxu0
    %v360 = vadd.f32 %v272, %v359
    %v361 = vpop.f32.mrf.mxu0
    %v362 = vadd.f32 %v276, %v361
    %363 = vdwg.mxu0
    %364 = vmatprep.subr.mxu0 0.0
    %365 = vmatpush1.msra.mxu0 0.0
    %366 = vmatprep.subr.mxu0 0.0
    %367 = vmatpush1.msra.mxu0 0.0
    %368 = vmatprep.subr.mxu0 0.0
    %369 = vmatpush1.msra.mxu0 0.0
    %370 = vmatprep.subr.mxu0 0.0
    %371 = vmatpush1.msra.mxu0 0.0
    %372 = vmatprep.subr.mxu0 0.0
    %373 = vmatpush1.msra.mxu0 0.0
    %374 = vmatprep.subr.mxu0 0.0
    %375 = vmatpush1.msra.mxu0 0.0
    %376 = vmatprep.subr.mxu0 0.0
    %377 = vmatpush1.msra.mxu0 0.0
    %378 = vmatprep.subr.mxu0 0.0
    %379 = vmatpush1.msra.mxu0 0.0
    %380 = vmatprep.subr.mxu0 0.0
    %381 = vmatpush1.msra.mxu0 0.0
    %382 = vmatprep.subr.mxu0 0.0
    %383 = vmatpush1.msra.mxu0 0.0
    %384 = vmatprep.subr.mxu0 0.0
    %385 = vmatpush1.msra.mxu0 0.0
    %386 = vmatprep.subr.mxu0 0.0
    %387 = vmatpush1.msra.mxu0 0.0
    %388 = vmatprep.subr.mxu0 %v266
    %389 = vmatpush1.msra.mxu0 %v265
    %390 = vmatprep.subr.mxu0 %v262
    %391 = vmatpush1.msra.mxu0 %v261
    %392 = vmatprep.subr.mxu0 %v258
    %393 = vmatpush1.msra.mxu0 %v257
    %394 = vmatprep.subr.mxu0 %v254
    %395 = vmatpush1.msra.mxu0 %v253
    %396 = vmatprep.subr.mxu0 0.0
    %397 = vmatpush2.msra.mxu0 0.0
    %398 = vmatprep.subr.mxu0 0.0
    %399 = vmatpush2.msra.mxu0 0.0
    %400 = vmatprep.subr.mxu0 0.0
    %401 = vmatpush2.msra.mxu0 0.0
    %402 = vmatprep.subr.mxu0 0.0
    %403 = vmatpush2.msra.mxu0 0.0
    %404 = vmatprep.subr.mxu0 0.0
    %405 = vmatpush2.msra.mxu0 0.0
    %406 = vmatprep.subr.mxu0 0.0
    %407 = vmatpush2.msra.mxu0 0.0
    %408 = vmatprep.subr.mxu0 0.0
    %409 = vmatpush2.msra.mxu0 0.0
    %410 = vmatprep.subr.mxu0 0.0
    %411 = vmatpush2.msra.mxu0 0.0
    %412 = vmatprep.subr.mxu0 0.0
    %413 = vmatpush2.msra.mxu0 0.0
    %414 = vmatprep.subr.mxu0 0.0
    %415 = vmatpush2.msra.mxu0 0.0
    %416 = vmatprep.subr.mxu0 0.0
    %417 = vmatpush2.msra.mxu0 0.0
    %418 = vmatprep.subr.mxu0 0.0
    %419 = vmatpush2.msra.mxu0 0.0
    %420 = vmatprep.subr.mxu0 0.0
    %421 = vmatpush2.msra.mxu0 0.0
    %422 = vmatprep.subr.mxu0 0.0
    %423 = vmatpush2.msra.mxu0 0.0
    %424 = vmatprep.subr.mxu0 0.0
    %425 = vmatpush2.msra.mxu0 0.0
    %426 = vmatprep.subr.mxu0 0.0
    %427 = vmatpush2.msra.mxu0 0.0
    %428 = vmatprep.mubr.f32.mxu0 0.0
    %429 = vmatmul.mubr.f32.gmra.mxu0 %v291
    %v430 = vpop.f32.mrf.mxu0
    %v431 = vadd.f32 %v280, %v430
    %v432 = vpop.f32.mrf.mxu0
    %v433 = vadd.f32 %v284, %v432
    %434 = vdwg.mxu0
    %v435 = vld [vmem:[%s7] sm:$0xf]
    %v437 = vlaneseq
    %v438 = vshrl.u32 %v437, 7
    %v439 = vsub.s32 0, %v438
    %v440 = vrot.slane %v435, %v439
    %v441 = vlaneseq
    %v442 = vshrl.u32 %v441, 7
    %v443 = vsub.s32 1, %v442
    %v444 = vrot.slane %v435, %v443
    %v445 = vlaneseq
    %v446 = vshrl.u32 %v445, 7
    %v447 = vsub.s32 2, %v446
    %v448 = vrot.slane %v435, %v447
    %v449 = vlaneseq
    %v450 = vshrl.u32 %v449, 7
    %v451 = vsub.s32 3, %v450
    %v452 = vrot.slane %v435, %v451
    %v457 = vadd.f32 %v360, %v440
    %v458 = vadd.f32 %v362, %v444
    %v459 = vadd.f32 %v431, %v448
    %v460 = vadd.f32 %v433, %v452
    %vm461 = vcmask 253952
    %462 = vst.msk [vmem:[#allocation2] sm:$0x1] %vm461, %v457
    %464 = vrot.lane.b32.xlu0 %v457, 96
    %v465 = vpop.permute.xlu0 %464
    %467 = vst.msk [vmem:[#allocation2 + $0x1] sm:$0x1] %vm461, %v465
    %468 = vrot.lane.b32.xlu0 %v457, 64
    %v469 = vpop.permute.xlu0 %468
    %471 = vst.msk [vmem:[#allocation2 + $0x2] sm:$0x1] %vm461, %v469
    %472 = vrot.lane.b32.xlu0 %v457, 32
    %v473 = vpop.permute.xlu0 %472
    %475 = vst.msk [vmem:[#allocation2 + $0x3] sm:$0x1] %vm461, %v473
    %476 = vst.msk [vmem:[#allocation2 + $0x4] sm:$0x1] %vm461, %v458
    %478 = vrot.lane.b32.xlu0 %v458, 96
    %v479 = vpop.permute.xlu0 %478
    %481 = vst.msk [vmem:[#allocation2 + $0x5] sm:$0x1] %vm461, %v479
    %482 = vrot.lane.b32.xlu0 %v458, 64
    %v483 = vpop.permute.xlu0 %482
    %485 = vst.msk [vmem:[#allocation2 + $0x6] sm:$0x1] %vm461, %v483
    %486 = vrot.lane.b32.xlu0 %v458, 32
    %v487 = vpop.permute.xlu0 %486
    %489 = vst.msk [vmem:[#allocation2 + $0x7] sm:$0x1] %vm461, %v487
    %490 = vst.msk [vmem:[#allocation2 + $0x8] sm:$0x1] %vm461, %v459
    %492 = vrot.lane.b32.xlu0 %v459, 96
    %v493 = vpop.permute.xlu0 %492
    %495 = vst.msk [vmem:[#allocation2 + $0x9] sm:$0x1] %vm461, %v493
    %496 = vrot.lane.b32.xlu0 %v459, 64
    %v497 = vpop.permute.xlu0 %496
    %499 = vst.msk [vmem:[#allocation2 + $0xa] sm:$0x1] %vm461, %v497
    %500 = vrot.lane.b32.xlu0 %v459, 32
    %v501 = vpop.permute.xlu0 %500
    %503 = vst.msk [vmem:[#allocation2 + $0xb] sm:$0x1] %vm461, %v501
    %504 = vst.msk [vmem:[#allocation2 + $0xc] sm:$0x1] %vm461, %v460
    %506 = vrot.lane.b32.xlu0 %v460, 96
    %v507 = vpop.permute.xlu0 %506
    %509 = vst.msk [vmem:[#allocation2 + $0xd] sm:$0x1] %vm461, %v507
    %510 = vrot.lane.b32.xlu0 %v460, 64
    %v511 = vpop.permute.xlu0 %510
    %513 = vst.msk [vmem:[#allocation2 + $0xe] sm:$0x1] %vm461, %v511
    %514 = vrot.lane.b32.xlu0 %v460, 32
    %v515 = vpop.permute.xlu0 %514
    %517 = vst.msk [vmem:[#allocation2 + $0xf] sm:$0x1] %vm461, %v515
    %vm518 = vcmask 254977
    %519 = vst.msk [vmem:[#allocation2 + $0xf] sm:$0x2] %vm518, %v457
    %520 = vst.msk [vmem:[#allocation2 + $0x10] sm:$0x2] %vm518, %v465
    %521 = vst.msk [vmem:[#allocation2 + $0x11] sm:$0x2] %vm518, %v469
    %522 = vst.msk [vmem:[#allocation2 + $0x12] sm:$0x2] %vm518, %v473
    %523 = vst.msk [vmem:[#allocation2 + $0x13] sm:$0x2] %vm518, %v458
    %524 = vst.msk [vmem:[#allocation2 + $0x14] sm:$0x2] %vm518, %v479
    %525 = vst.msk [vmem:[#allocation2 + $0x15] sm:$0x2] %vm518, %v483
    %526 = vst.msk [vmem:[#allocation2 + $0x16] sm:$0x2] %vm518, %v487
    %527 = vst.msk [vmem:[#allocation2 + $0x17] sm:$0x2] %vm518, %v459
    %528 = vst.msk [vmem:[#allocation2 + $0x18] sm:$0x2] %vm518, %v493
    %529 = vst.msk [vmem:[#allocation2 + $0x19] sm:$0x2] %vm518, %v497
    %530 = vst.msk [vmem:[#allocation2 + $0x1a] sm:$0x2] %vm518, %v501
    %531 = vst.msk [vmem:[#allocation2 + $0x1b] sm:$0x2] %vm518, %v460
    %532 = vst.msk [vmem:[#allocation2 + $0x1c] sm:$0x2] %vm518, %v507
    %533 = vst.msk [vmem:[#allocation2 + $0x1d] sm:$0x2] %vm518, %v511
    %534 = vst.msk [vmem:[#allocation2 + $0x1e] sm:$0x2] %vm518, %v515
    %v535 = vld [vmem:[#allocation2] sm:$0xff]
    %v536 = vld [vmem:[#allocation2 + $0x8] sm:$0xff]
    %v537 = vld [vmem:[#allocation2 + $0x10] sm:$0xff]
    %v538 = vld [vmem:[#allocation2 + $0x18] sm:$0xff]
    %v539 = vld [vmem:[%s13] sm:$0xff]
    %v540 = vld [vmem:[%s13 + $0x8] sm:$0xff]
    %v541 = vld [vmem:[%s13 + $0x10] sm:$0xff]
    %v542 = vld [vmem:[%s13 + $0x18] sm:$0xff]
    %v543 = vld [vmem:[%s15] sm:$0x1]
    %v545 = vlaneseq
    %v546 = vshrl.u32 %v545, 7
    %v547 = vsub.s32 0, %v546
    %v548 = vrot.slane %v543, %v547
    %v551 = vsel %vm289, %v535, 0
    %v554 = vsel %vm289, %v536, 0
    %v557 = vsel %vm289, %v537, 0
    %v560 = vsel %vm289, %v538, 0
    %562 = vmatprep.subr.mxu0 0.0
    %563 = vmatpush1.msra.mxu0 0.0
    %564 = vmatprep.subr.mxu0 0.0
    %565 = vmatpush1.msra.mxu0 0.0
    %566 = vmatprep.subr.mxu0 0.0
    %567 = vmatpush1.msra.mxu0 0.0
    %568 = vmatprep.subr.mxu0 0.0
    %569 = vmatpush1.msra.mxu0 0.0
    %570 = vmatprep.subr.mxu0 0.0
    %571 = vmatpush1.msra.mxu0 0.0
    %572 = vmatprep.subr.mxu0 0.0
    %573 = vmatpush1.msra.mxu0 0.0
    %574 = vmatprep.subr.mxu0 0.0
    %575 = vmatpush1.msra.mxu0 0.0
    %576 = vmatprep.subr.mxu0 0.0
    %577 = vmatpush1.msra.mxu0 0.0
    %578 = vmatprep.subr.mxu0 0.0
    %579 = vmatpush1.msra.mxu0 0.0
    %580 = vmatprep.subr.mxu0 0.0
    %581 = vmatpush1.msra.mxu0 0.0
    %582 = vmatprep.subr.mxu0 0.0
    %583 = vmatpush1.msra.mxu0 0.0
    %584 = vmatprep.subr.mxu0 0.0
    %585 = vmatpush1.msra.mxu0 0.0
    %586 = vmatprep.subr.mxu0 0.0
    %587 = vmatpush1.msra.mxu0 %v542
    %588 = vmatprep.subr.mxu0 0.0
    %589 = vmatpush1.msra.mxu0 %v541
    %590 = vmatprep.subr.mxu0 0.0
    %591 = vmatpush1.msra.mxu0 %v540
    %592 = vmatprep.subr.mxu0 0.0
    %593 = vmatpush1.msra.mxu0 %v539
    %594 = vmatprep.subr.mxu0 0.0
    %595 = vmatpush2.msra.mxu0 0.0
    %596 = vmatprep.subr.mxu0 0.0
    %597 = vmatpush2.msra.mxu0 0.0
    %598 = vmatprep.subr.mxu0 0.0
    %599 = vmatpush2.msra.mxu0 0.0
    %600 = vmatprep.subr.mxu0 0.0
    %601 = vmatpush2.msra.mxu0 0.0
    %602 = vmatprep.subr.mxu0 0.0
    %603 = vmatpush2.msra.mxu0 0.0
    %604 = vmatprep.subr.mxu0 0.0
    %605 = vmatpush2.msra.mxu0 0.0
    %606 = vmatprep.subr.mxu0 0.0
    %607 = vmatpush2.msra.mxu0 0.0
    %608 = vmatprep.subr.mxu0 0.0
    %609 = vmatpush2.msra.mxu0 0.0
    %610 = vmatprep.subr.mxu0 0.0
    %611 = vmatpush2.msra.mxu0 0.0
    %612 = vmatprep.subr.mxu0 0.0
    %613 = vmatpush2.msra.mxu0 0.0
    %614 = vmatprep.subr.mxu0 0.0
    %615 = vmatpush2.msra.mxu0 0.0
    %616 = vmatprep.subr.mxu0 0.0
    %617 = vmatpush2.msra.mxu0 0.0
    %618 = vmatprep.subr.mxu0 0.0
    %619 = vmatpush2.msra.mxu0 0.0
    %620 = vmatprep.subr.mxu0 0.0
    %621 = vmatpush2.msra.mxu0 0.0
    %622 = vmatprep.subr.mxu0 0.0
    %623 = vmatpush2.msra.mxu0 0.0
    %624 = vmatprep.subr.mxu0 0.0
    %625 = vmatpush2.msra.mxu0 0.0
    %626 = vmatprep.mubr.f32.mxu0 0.0
    %627 = vmatmul.mubr.f32.gmra.mxu0 %v551
    %v628 = vpop.f32.mrf.mxu0
    %v629 = vadd.f32 %v548, %v628
    %v630 = vpop.f32.mrf.mxu0
    %631 = vmatprep.mubr.f32.mxu0 0.0
    %632 = vmatmul.mubr.f32.gmra.mxu0 %v554
    %v633 = vpop.f32.mrf.mxu0
    %v634 = vadd.f32 %v548, %v633
    %v635 = vpop.f32.mrf.mxu0
    %636 = vmatprep.mubr.f32.mxu0 0.0
    %637 = vmatmul.mubr.f32.gmra.mxu0 %v557
    %v638 = vpop.f32.mrf.mxu0
    %v639 = vadd.f32 %v548, %v638
    %v640 = vpop.f32.mrf.mxu0
    %641 = vmatprep.mubr.f32.mxu0 0.0
    %642 = vmatmul.mubr.f32.gmra.mxu0 %v560
    %v643 = vpop.f32.mrf.mxu0
    %v644 = vadd.f32 %v548, %v643
    %v645 = vpop.f32.mrf.mxu0
    %646 = vdwg.mxu0
    %v647 = vld [vmem:[%s17] sm:$0xff]
    %v648 = vld [vmem:[%s17 + $0x8] sm:$0xff]
    %v649 = vld [vmem:[%s17 + $0x10] sm:$0xff]
    %v650 = vld [vmem:[%s17 + $0x18] sm:$0xff]
    %653 = vrot.lane.b32.xlu0 %v629, 96
    %v654 = vpop.permute.xlu0 %653
    %655 = vrot.lane.b32.xlu0 %v634, 96
    %v656 = vpop.permute.xlu0 %655
    %vm657 = vcmask 64512
    %v658 = vsel %vm657, %v629, 0
    %v660 = vsel %vm657, %v634, 0
    %v662 = vsel %vm657, %v654, 0
    %v664 = vsel %vm657, %v656, 0
    %666 = vmatprep.subr.mxu0 0.0
    %667 = vmatpush1.xpose.msra.mxu0 0.0
    %668 = vmatprep.subr.mxu0 0.0
    %669 = vmatpush1.xpose.msra.mxu0 0.0
    %670 = vmatprep.subr.mxu0 0.0
    %671 = vmatpush1.xpose.msra.mxu0 0.0
    %672 = vmatprep.subr.mxu0 0.0
    %673 = vmatpush1.xpose.msra.mxu0 0.0
    %674 = vmatprep.subr.mxu0 0.0
    %675 = vmatpush1.xpose.msra.mxu0 0.0
    %676 = vmatprep.subr.mxu0 0.0
    %677 = vmatpush1.xpose.msra.mxu0 0.0
    %678 = vmatprep.subr.mxu0 0.0
    %679 = vmatpush1.xpose.msra.mxu0 0.0
    %680 = vmatprep.subr.mxu0 0.0
    %681 = vmatpush1.xpose.msra.mxu0 0.0
    %682 = vmatprep.subr.mxu0 0.0
    %683 = vmatpush1.xpose.msra.mxu0 0.0
    %684 = vmatprep.subr.mxu0 0.0
    %685 = vmatpush1.xpose.msra.mxu0 0.0
    %686 = vmatprep.subr.mxu0 0.0
    %687 = vmatpush1.xpose.msra.mxu0 0.0
    %688 = vmatprep.subr.mxu0 0.0
    %689 = vmatpush1.xpose.msra.mxu0 0.0
    %690 = vmatprep.subr.mxu0 0.0
    %691 = vmatpush1.xpose.msra.mxu0 0.0
    %692 = vmatprep.subr.mxu0 0.0
    %693 = vmatpush1.xpose.msra.mxu0 0.0
    %694 = vmatprep.subr.mxu0 0.0
    %695 = vmatpush1.xpose.msra.mxu0 %v664
    %696 = vmatprep.subr.mxu0 0.0
    %697 = vmatpush1.xpose.msra.mxu0 %v662
    %698 = vmatprep.subr.mxu0 0.0
    %699 = vmatpush2.xpose.msra.mxu0 0.0
    %700 = vmatprep.subr.mxu0 0.0
    %701 = vmatpush2.xpose.msra.mxu0 0.0
    %702 = vmatprep.subr.mxu0 0.0
    %703 = vmatpush2.xpose.msra.mxu0 0.0
    %704 = vmatprep.subr.mxu0 0.0
    %705 = vmatpush2.xpose.msra.mxu0 0.0
    %706 = vmatprep.subr.mxu0 0.0
    %707 = vmatpush2.xpose.msra.mxu0 0.0
    %708 = vmatprep.subr.mxu0 0.0
    %709 = vmatpush2.xpose.msra.mxu0 0.0
    %710 = vmatprep.subr.mxu0 0.0
    %711 = vmatpush2.xpose.msra.mxu0 0.0
    %712 = vmatprep.subr.mxu0 0.0
    %713 = vmatpush2.xpose.msra.mxu0 0.0
    %714 = vmatprep.subr.mxu0 0.0
    %715 = vmatpush2.xpose.msra.mxu0 0.0
    %716 = vmatprep.subr.mxu0 0.0
    %717 = vmatpush2.xpose.msra.mxu0 0.0
    %718 = vmatprep.subr.mxu0 0.0
    %719 = vmatpush2.xpose.msra.mxu0 0.0
    %720 = vmatprep.subr.mxu0 0.0
    %721 = vmatpush2.xpose.msra.mxu0 0.0
    %722 = vmatprep.subr.mxu0 0.0
    %723 = vmatpush2.xpose.msra.mxu0 0.0
    %724 = vmatprep.subr.mxu0 0.0
    %725 = vmatpush2.xpose.msra.mxu0 0.0
    %726 = vmatprep.subr.mxu0 0.0
    %727 = vmatpush2.xpose.msra.mxu0 0.0
    %728 = vmatprep.subr.mxu0 0.0
    %729 = vmatpush2.xpose.msra.mxu0 0.0
    %730 = vmatprep.mubr.f32.mxu0 0.0
    %731 = vmatmul.mubr.f32.gmra.mxu0 %v658
    %v732 = vpop.f32.mrf.mxu0
    %v733 = vadd.f32 0.0, %v732
    %v734 = vpop.f32.mrf.mxu0
    %735 = vmatprep.mubr.f32.mxu0 0.0
    %736 = vmatmul.mubr.f32.gmra.mxu0 %v660
    %v737 = vpop.f32.mrf.mxu0
    %v738 = vadd.f32 0.0, %v737
    %v739 = vpop.f32.mrf.mxu0
    %740 = vdwg.mxu0
    %v741 = vmul.f32 %v733, 0.35355338
    %v742 = vmul.f32 %v738, 0.35355338
    %vm743 = vcmask 130048
    %v744 = vsel %vm743, %v741, -inf
    %745 = vmax.xlane.f32.xlu0 %v744
    %v746 = vpop.xlane.xlu0 %745
    %v747 = vsel %vm743, %v742, -inf
    %748 = vmax.xlane.f32.xlu0 %v747
    %v749 = vpop.xlane.xlu0 %748
    %v750 = vsub.f32 %v741, %v746
    %v751 = vsub.f32 %v742, %v749
    %v752 = vmul.f32 %v750, 1.442695
    %v753 = vpow.pop %v752
    %v754 = vmul.f32 %v751, 1.442695
    %v755 = vpow.pop %v754
    %v756 = vsel %vm743, %v753, 0.0
    %757 = vadd.xlane.f32.xlu0 %v756
    %v758 = vpop.xlane.xlu0 %757
    %v759 = vsel %vm743, %v755, 0.0
    %760 = vadd.xlane.f32.xlu0 %v759
    %v761 = vpop.xlane.xlu0 %760
    %v762 = vrcp.pop %v758
    %v763 = vrcp.pop %v761
    %v764 = vmul.f32 %v753, %v762
    %v765 = vmul.f32 %v755, %v763
    %766 = vrot.lane.b32.xlu0 %v629, 64
    %v767 = vpop.permute.xlu0 %766
    %768 = vrot.lane.b32.xlu0 %v634, 64
    %v769 = vpop.permute.xlu0 %768
    %v773 = vsel %vm743, %v764, 0
    %v776 = vsel %vm743, %v765, 0
    %778 = vmatprep.subr.mxu0 0.0
    %779 = vmatpush1.msra.mxu0 0.0
    %780 = vmatprep.subr.mxu0 0.0
    %781 = vmatpush1.msra.mxu0 0.0
    %782 = vmatprep.subr.mxu0 0.0
    %783 = vmatpush1.msra.mxu0 0.0
    %784 = vmatprep.subr.mxu0 0.0
    %785 = vmatpush1.msra.mxu0 0.0
    %786 = vmatprep.subr.mxu0 0.0
    %787 = vmatpush1.msra.mxu0 0.0
    %788 = vmatprep.subr.mxu0 0.0
    %789 = vmatpush1.msra.mxu0 0.0
    %790 = vmatprep.subr.mxu0 0.0
    %791 = vmatpush1.msra.mxu0 0.0
    %792 = vmatprep.subr.mxu0 0.0
    %793 = vmatpush1.msra.mxu0 0.0
    %794 = vmatprep.subr.mxu0 0.0
    %795 = vmatpush1.msra.mxu0 0.0
    %796 = vmatprep.subr.mxu0 0.0
    %797 = vmatpush1.msra.mxu0 0.0
    %798 = vmatprep.subr.mxu0 0.0
    %799 = vmatpush1.msra.mxu0 0.0
    %800 = vmatprep.subr.mxu0 0.0
    %801 = vmatpush1.msra.mxu0 0.0
    %802 = vmatprep.subr.mxu0 0.0
    %803 = vmatpush1.msra.mxu0 0.0
    %804 = vmatprep.subr.mxu0 0.0
    %805 = vmatpush1.msra.mxu0 0.0
    %806 = vmatprep.subr.mxu0 0.0
    %807 = vmatpush1.msra.mxu0 %v769
    %808 = vmatprep.subr.mxu0 0.0
    %809 = vmatpush1.msra.mxu0 %v767
    %810 = vmatprep.subr.mxu0 0.0
    %811 = vmatpush2.msra.mxu0 0.0
    %812 = vmatprep.subr.mxu0 0.0
    %813 = vmatpush2.msra.mxu0 0.0
    %814 = vmatprep.subr.mxu0 0.0
    %815 = vmatpush2.msra.mxu0 0.0
    %816 = vmatprep.subr.mxu0 0.0
    %817 = vmatpush2.msra.mxu0 0.0
    %818 = vmatprep.subr.mxu0 0.0
    %819 = vmatpush2.msra.mxu0 0.0
    %820 = vmatprep.subr.mxu0 0.0
    %821 = vmatpush2.msra.mxu0 0.0
    %822 = vmatprep.subr.mxu0 0.0
    %823 = vmatpush2.msra.mxu0 0.0
    %824 = vmatprep.subr.mxu0 0.0
    %825 = vmatpush2.msra.mxu0 0.0
    %826 = vmatprep.subr.mxu0 0.0
    %827 = vmatpush2.msra.mxu0 0.0
    %828 = vmatprep.subr.mxu0 0.0
    %829 = vmatpush2.msra.mxu0 0.0
    %830 = vmatprep.subr.mxu0 0.0
    %831 = vmatpush2.msra.mxu0 0.0
    %832 = vmatprep.subr.mxu0 0.0
    %833 = vmatpush2.msra.mxu0 0.0
    %834 = vmatprep.subr.mxu0 0.0
    %835 = vmatpush2.msra.mxu0 0.0
    %836 = vmatprep.subr.mxu0 0.0
    %837 = vmatpush2.msra.mxu0 0.0
    %838 = vmatprep.subr.mxu0 0.0
    %839 = vmatpush2.msra.mxu0 0.0
    %840 = vmatprep.subr.mxu0 0.0
    %841 = vmatpush2.msra.mxu0 0.0
    %842 = vmatprep.mubr.f32.mxu0 0.0
    %843 = vmatmul.mubr.f32.gmra.mxu0 %v773
    %v844 = vpop.f32.mrf.mxu0
    %v845 = vadd.f32 0.0, %v844
    %v846 = vpop.f32.mrf.mxu0
    %847 = vmatprep.mubr.f32.mxu0 0.0
    %848 = vmatmul.mubr.f32.gmra.mxu0 %v776
    %v849 = vpop.f32.mrf.mxu0
    %v850 = vadd.f32 0.0, %v849
    %v851 = vpop.f32.mrf.mxu0
    %852 = vdwg.mxu0
    %853 = vrot.lane.b32.xlu0 %v629, 120
    %v854 = vpop.permute.xlu0 %853
    %855 = vrot.lane.b32.xlu0 %v634, 120
    %v856 = vpop.permute.xlu0 %855
    %857 = vrot.lane.b32.xlu0 %v629, 88
    %v858 = vpop.permute.xlu0 %857
    %859 = vrot.lane.b32.xlu0 %v634, 88
    %v860 = vpop.permute.xlu0 %859
    %v861 = vsel %vm657, %v854, 0
    %v863 = vsel %vm657, %v856, 0
    %v865 = vsel %vm657, %v858, 0
    %v867 = vsel %vm657, %v860, 0
    %869 = vmatprep.subr.mxu0 0.0
    %870 = vmatpush1.xpose.msra.mxu0 0.0
    %871 = vmatprep.subr.mxu0 0.0
    %872 = vmatpush1.xpose.msra.mxu0 0.0
    %873 = vmatprep.subr.mxu0 0.0
    %874 = vmatpush1.xpose.msra.mxu0 0.0
    %875 = vmatprep.subr.mxu0 0.0
    %876 = vmatpush1.xpose.msra.mxu0 0.0
    %877 = vmatprep.subr.mxu0 0.0
    %878 = vmatpush1.xpose.msra.mxu0 0.0
    %879 = vmatprep.subr.mxu0 0.0
    %880 = vmatpush1.xpose.msra.mxu0 0.0
    %881 = vmatprep.subr.mxu0 0.0
    %882 = vmatpush1.xpose.msra.mxu0 0.0
    %883 = vmatprep.subr.mxu0 0.0
    %884 = vmatpush1.xpose.msra.mxu0 0.0
    %885 = vmatprep.subr.mxu0 0.0
    %886 = vmatpush1.xpose.msra.mxu0 0.0
    %887 = vmatprep.subr.mxu0 0.0
    %888 = vmatpush1.xpose.msra.mxu0 0.0
    %889 = vmatprep.subr.mxu0 0.0
    %890 = vmatpush1.xpose.msra.mxu0 0.0
    %891 = vmatprep.subr.mxu0 0.0
    %892 = vmatpush1.xpose.msra.mxu0 0.0
    %893 = vmatprep.subr.mxu0 0.0
    %894 = vmatpush1.xpose.msra.mxu0 0.0
    %895 = vmatprep.subr.mxu0 0.0
    %896 = vmatpush1.xpose.msra.mxu0 0.0
    %897 = vmatprep.subr.mxu0 0.0
    %898 = vmatpush1.xpose.msra.mxu0 %v867
    %899 = vmatprep.subr.mxu0 0.0
    %900 = vmatpush1.xpose.msra.mxu0 %v865
    %901 = vmatprep.subr.mxu0 0.0
    %902 = vmatpush2.xpose.msra.mxu0 0.0
    %903 = vmatprep.subr.mxu0 0.0
    %904 = vmatpush2.xpose.msra.mxu0 0.0
    %905 = vmatprep.subr.mxu0 0.0
    %906 = vmatpush2.xpose.msra.mxu0 0.0
    %907 = vmatprep.subr.mxu0 0.0
    %908 = vmatpush2.xpose.msra.mxu0 0.0
    %909 = vmatprep.subr.mxu0 0.0
    %910 = vmatpush2.xpose.msra.mxu0 0.0
    %911 = vmatprep.subr.mxu0 0.0
    %912 = vmatpush2.xpose.msra.mxu0 0.0
    %913 = vmatprep.subr.mxu0 0.0
    %914 = vmatpush2.xpose.msra.mxu0 0.0
    %915 = vmatprep.subr.mxu0 0.0
    %916 = vmatpush2.xpose.msra.mxu0 0.0
    %917 = vmatprep.subr.mxu0 0.0
    %918 = vmatpush2.xpose.msra.mxu0 0.0
    %919 = vmatprep.subr.mxu0 0.0
    %920 = vmatpush2.xpose.msra.mxu0 0.0
    %921 = vmatprep.subr.mxu0 0.0
    %922 = vmatpush2.xpose.msra.mxu0 0.0
    %923 = vmatprep.subr.mxu0 0.0
    %924 = vmatpush2.xpose.msra.mxu0 0.0
    %925 = vmatprep.subr.mxu0 0.0
    %926 = vmatpush2.xpose.msra.mxu0 0.0
    %927 = vmatprep.subr.mxu0 0.0
    %928 = vmatpush2.xpose.msra.mxu0 0.0
    %929 = vmatprep.subr.mxu0 0.0
    %930 = vmatpush2.xpose.msra.mxu0 0.0
    %931 = vmatprep.subr.mxu0 0.0
    %932 = vmatpush2.xpose.msra.mxu0 0.0
    %933 = vmatprep.mubr.f32.mxu0 0.0
    %934 = vmatmul.mubr.f32.gmra.mxu0 %v861
    %v935 = vpop.f32.mrf.mxu0
    %v936 = vadd.f32 0.0, %v935
    %v937 = vpop.f32.mrf.mxu0
    %938 = vmatprep.mubr.f32.mxu0 0.0
    %939 = vmatmul.mubr.f32.gmra.mxu0 %v863
    %v940 = vpop.f32.mrf.mxu0
    %v941 = vadd.f32 0.0, %v940
    %v942 = vpop.f32.mrf.mxu0
    %943 = vdwg.mxu0
    %v944 = vmul.f32 %v936, 0.35355338
    %v945 = vmul.f32 %v941, 0.35355338
    %v946 = vsel %vm743, %v944, -inf
    %947 = vmax.xlane.f32.xlu0 %v946
    %v948 = vpop.xlane.xlu0 %947
    %v949 = vsel %vm743, %v945, -inf
    %950 = vmax.xlane.f32.xlu0 %v949
    %v951 = vpop.xlane.xlu0 %950
    %v952 = vsub.f32 %v944, %v948
    %v953 = vsub.f32 %v945, %v951
    %v954 = vmul.f32 %v952, 1.442695
    %v955 = vpow.pop %v954
    %v956 = vmul.f32 %v953, 1.442695
    %v957 = vpow.pop %v956
    %v958 = vsel %vm743, %v955, 0.0
    %959 = vadd.xlane.f32.xlu0 %v958
    %v960 = vpop.xlane.xlu0 %959
    %v961 = vsel %vm743, %v957, 0.0
    %962 = vadd.xlane.f32.xlu0 %v961
    %v963 = vpop.xlane.xlu0 %962
    %v964 = vrcp.pop %v960
    %v965 = vrcp.pop %v963
    %v966 = vmul.f32 %v955, %v964
    %v967 = vmul.f32 %v957, %v965
    %968 = vrot.lane.b32.xlu0 %v629, 56
    %v969 = vpop.permute.xlu0 %968
    %970 = vrot.lane.b32.xlu0 %v634, 56
    %v971 = vpop.permute.xlu0 %970
    %v975 = vsel %vm743, %v966, 0
    %v978 = vsel %vm743, %v967, 0
    %980 = vmatprep.subr.mxu0 0.0
    %981 = vmatpush1.msra.mxu0 0.0
    %982 = vmatprep.subr.mxu0 0.0
    %983 = vmatpush1.msra.mxu0 0.0
    %984 = vmatprep.subr.mxu0 0.0
    %985 = vmatpush1.msra.mxu0 0.0
    %986 = vmatprep.subr.mxu0 0.0
    %987 = vmatpush1.msra.mxu0 0.0
    %988 = vmatprep.subr.mxu0 0.0
    %989 = vmatpush1.msra.mxu0 0.0
    %990 = vmatprep.subr.mxu0 0.0
    %991 = vmatpush1.msra.mxu0 0.0
    %992 = vmatprep.subr.mxu0 0.0
    %993 = vmatpush1.msra.mxu0 0.0
    %994 = vmatprep.subr.mxu0 0.0
    %995 = vmatpush1.msra.mxu0 0.0
    %996 = vmatprep.subr.mxu0 0.0
    %997 = vmatpush1.msra.mxu0 0.0
    %998 = vmatprep.subr.mxu0 0.0
    %999 = vmatpush1.msra.mxu0 0.0
    %1000 = vmatprep.subr.mxu0 0.0
    %1001 = vmatpush1.msra.mxu0 0.0
    %1002 = vmatprep.subr.mxu0 0.0
    %1003 = vmatpush1.msra.mxu0 0.0
    %1004 = vmatprep.subr.mxu0 0.0
    %1005 = vmatpush1.msra.mxu0 0.0
    %1006 = vmatprep.subr.mxu0 0.0
    %1007 = vmatpush1.msra.mxu0 0.0
    %1008 = vmatprep.subr.mxu0 0.0
    %1009 = vmatpush1.msra.mxu0 %v971
    %1010 = vmatprep.subr.mxu0 0.0
    %1011 = vmatpush1.msra.mxu0 %v969
    %1012 = vmatprep.subr.mxu0 0.0
    %1013 = vmatpush2.msra.mxu0 0.0
    %1014 = vmatprep.subr.mxu0 0.0
    %1015 = vmatpush2.msra.mxu0 0.0
    %1016 = vmatprep.subr.mxu0 0.0
    %1017 = vmatpush2.msra.mxu0 0.0
    %1018 = vmatprep.subr.mxu0 0.0
    %1019 = vmatpush2.msra.mxu0 0.0
    %1020 = vmatprep.subr.mxu0 0.0
    %1021 = vmatpush2.msra.mxu0 0.0
    %1022 = vmatprep.subr.mxu0 0.0
    %1023 = vmatpush2.msra.mxu0 0.0
    %1024 = vmatprep.subr.mxu0 0.0
    %1025 = vmatpush2.msra.mxu0 0.0
    %1026 = vmatprep.subr.mxu0 0.0
    %1027 = vmatpush2.msra.mxu0 0.0
    %1028 = vmatprep.subr.mxu0 0.0
    %1029 = vmatpush2.msra.mxu0 0.0
    %1030 = vmatprep.subr.mxu0 0.0
    %1031 = vmatpush2.msra.mxu0 0.0
    %1032 = vmatprep.subr.mxu0 0.0
    %1033 = vmatpush2.msra.mxu0 0.0
    %1034 = vmatprep.subr.mxu0 0.0
    %1035 = vmatpush2.msra.mxu0 0.0
    %1036 = vmatprep.subr.mxu0 0.0
    %1037 = vmatpush2.msra.mxu0 0.0
    %1038 = vmatprep.subr.mxu0 0.0
    %1039 = vmatpush2.msra.mxu0 0.0
    %1040 = vmatprep.subr.mxu0 0.0
    %1041 = vmatpush2.msra.mxu0 0.0
    %1042 = vmatprep.subr.mxu0 0.0
    %1043 = vmatpush2.msra.mxu0 0.0
    %1044 = vmatprep.mubr.f32.mxu0 0.0
    %1045 = vmatmul.mubr.f32.gmra.mxu0 %v975
    %v1046 = vpop.f32.mrf.mxu0
    %v1047 = vadd.f32 0.0, %v1046
    %v1048 = vpop.f32.mrf.mxu0
    %1049 = vmatprep.mubr.f32.mxu0 0.0
    %1050 = vmatmul.mubr.f32.gmra.mxu0 %v978
    %v1051 = vpop.f32.mrf.mxu0
    %v1052 = vadd.f32 0.0, %v1051
    %v1053 = vpop.f32.mrf.mxu0
    %1054 = vdwg.mxu0
    %v1056 = vsel %vm657, %v1047, 0
    %v1059 = vsel %vm657, %v1052, 0
    %1061 = vmatprep.subr.mxu0 0.0
    %1062 = vmatpush1.msra.mxu0 0.0
    %1063 = vmatprep.subr.mxu0 0.0
    %1064 = vmatpush1.msra.mxu0 0.0
    %1065 = vmatprep.subr.mxu0 0.0
    %1066 = vmatpush1.msra.mxu0 0.0
    %1067 = vmatprep.subr.mxu0 0.0
    %1068 = vmatpush1.msra.mxu0 0.0
    %1069 = vmatprep.subr.mxu0 0.0
    %1070 = vmatpush1.msra.mxu0 0.0
    %1071 = vmatprep.subr.mxu0 0.0
    %1072 = vmatpush1.msra.mxu0 0.0
    %1073 = vmatprep.subr.mxu0 0.0
    %1074 = vmatpush1.msra.mxu0 0.0
    %1075 = vmatprep.subr.mxu0 0.0
    %1076 = vmatpush1.msra.mxu0 0.0
    %1077 = vmatprep.subr.mxu0 0.0
    %1078 = vmatpush1.msra.mxu0 0.0
    %1079 = vmatprep.subr.mxu0 0.0
    %1080 = vmatpush1.msra.mxu0 0.0
    %1081 = vmatprep.subr.mxu0 0.0
    %1082 = vmatpush1.msra.mxu0 0.0
    %1083 = vmatprep.subr.mxu0 0.0
    %1084 = vmatpush1.msra.mxu0 0.0
    %1085 = vmatprep.subr.mxu0 0.0
    %1086 = vmatpush1.msra.mxu0 0.0
    %1087 = vmatprep.subr.mxu0 0.0
    %1088 = vmatpush1.msra.mxu0 0.0
    %1089 = vmatprep.subr.mxu0 0.0
    %1090 = vmatpush1.msra.mxu0 0.0
    %1091 = vmatprep.subr.mxu0 0.0
    %1092 = vmatpush1.msra.mxu0 %v648
    %1093 = vmatprep.subr.mxu0 0.0
    %1094 = vmatpush2.msra.mxu0 0.0
    %1095 = vmatprep.subr.mxu0 0.0
    %1096 = vmatpush2.msra.mxu0 0.0
    %1097 = vmatprep.subr.mxu0 0.0
    %1098 = vmatpush2.msra.mxu0 0.0
    %1099 = vmatprep.subr.mxu0 0.0
    %1100 = vmatpush2.msra.mxu0 0.0
    %1101 = vmatprep.subr.mxu0 0.0
    %1102 = vmatpush2.msra.mxu0 0.0
    %1103 = vmatprep.subr.mxu0 0.0
    %1104 = vmatpush2.msra.mxu0 0.0
    %1105 = vmatprep.subr.mxu0 0.0
    %1106 = vmatpush2.msra.mxu0 0.0
    %1107 = vmatprep.subr.mxu0 0.0
    %1108 = vmatpush2.msra.mxu0 0.0
    %1109 = vmatprep.subr.mxu0 0.0
    %1110 = vmatpush2.msra.mxu0 0.0
    %1111 = vmatprep.subr.mxu0 0.0
    %1112 = vmatpush2.msra.mxu0 0.0
    %1113 = vmatprep.subr.mxu0 0.0
    %1114 = vmatpush2.msra.mxu0 0.0
    %1115 = vmatprep.subr.mxu0 0.0
    %1116 = vmatpush2.msra.mxu0 0.0
    %1117 = vmatprep.subr.mxu0 0.0
    %1118 = vmatpush2.msra.mxu0 0.0
    %1119 = vmatprep.subr.mxu0 0.0
    %1120 = vmatpush2.msra.mxu0 0.0
    %1121 = vmatprep.subr.mxu0 0.0
    %1122 = vmatpush2.msra.mxu0 0.0
    %1123 = vmatprep.subr.mxu0 0.0
    %1124 = vmatpush2.msra.mxu0 0.0
    %1125 = vmatprep.mubr.f32.mxu0 0.0
    %1126 = vmatmul.mubr.f32.gmra.mxu0 %v1056
    %v1127 = vpop.f32.mrf.mxu0
    %v1128 = vadd.f32 0.0, %v1127
    %v1129 = vpop.f32.mrf.mxu0
    %1130 = vmatprep.mubr.f32.mxu0 0.0
    %1131 = vmatmul.mubr.f32.gmra.mxu0 %v1059
    %v1132 = vpop.f32.mrf.mxu0
    %v1133 = vadd.f32 0.0, %v1132
    %v1134 = vpop.f32.mrf.mxu0
    %1135 = vdwg.mxu0
    %v1137 = vsel %vm657, %v845, 0
    %v1140 = vsel %vm657, %v850, 0
    %1142 = vmatprep.subr.mxu0 0.0
    %1143 = vmatpush1.msra.mxu0 0.0
    %1144 = vmatprep.subr.mxu0 0.0
    %1145 = vmatpush1.msra.mxu0 0.0
    %1146 = vmatprep.subr.mxu0 0.0
    %1147 = vmatpush1.msra.mxu0 0.0
    %1148 = vmatprep.subr.mxu0 0.0
    %1149 = vmatpush1.msra.mxu0 0.0
    %1150 = vmatprep.subr.mxu0 0.0
    %1151 = vmatpush1.msra.mxu0 0.0
    %1152 = vmatprep.subr.mxu0 0.0
    %1153 = vmatpush1.msra.mxu0 0.0
    %1154 = vmatprep.subr.mxu0 0.0
    %1155 = vmatpush1.msra.mxu0 0.0
    %1156 = vmatprep.subr.mxu0 0.0
    %1157 = vmatpush1.msra.mxu0 0.0
    %1158 = vmatprep.subr.mxu0 0.0
    %1159 = vmatpush1.msra.mxu0 0.0
    %1160 = vmatprep.subr.mxu0 0.0
    %1161 = vmatpush1.msra.mxu0 0.0
    %1162 = vmatprep.subr.mxu0 0.0
    %1163 = vmatpush1.msra.mxu0 0.0
    %1164 = vmatprep.subr.mxu0 0.0
    %1165 = vmatpush1.msra.mxu0 0.0
    %1166 = vmatprep.subr.mxu0 0.0
    %1167 = vmatpush1.msra.mxu0 0.0
    %1168 = vmatprep.subr.mxu0 0.0
    %1169 = vmatpush1.msra.mxu0 0.0
    %1170 = vmatprep.subr.mxu0 0.0
    %1171 = vmatpush1.msra.mxu0 0.0
    %1172 = vmatprep.subr.mxu0 0.0
    %1173 = vmatpush1.msra.mxu0 %v647
    %1174 = vmatprep.subr.mxu0 0.0
    %1175 = vmatpush2.msra.mxu0 0.0
    %1176 = vmatprep.subr.mxu0 0.0
    %1177 = vmatpush2.msra.mxu0 0.0
    %1178 = vmatprep.subr.mxu0 0.0
    %1179 = vmatpush2.msra.mxu0 0.0
    %1180 = vmatprep.subr.mxu0 0.0
    %1181 = vmatpush2.msra.mxu0 0.0
    %1182 = vmatprep.subr.mxu0 0.0
    %1183 = vmatpush2.msra.mxu0 0.0
    %1184 = vmatprep.subr.mxu0 0.0
    %1185 = vmatpush2.msra.mxu0 0.0
    %1186 = vmatprep.subr.mxu0 0.0
    %1187 = vmatpush2.msra.mxu0 0.0
    %1188 = vmatprep.subr.mxu0 0.0
    %1189 = vmatpush2.msra.mxu0 0.0
    %1190 = vmatprep.subr.mxu0 0.0
    %1191 = vmatpush2.msra.mxu0 0.0
    %1192 = vmatprep.subr.mxu0 0.0
    %1193 = vmatpush2.msra.mxu0 0.0
    %1194 = vmatprep.subr.mxu0 0.0
    %1195 = vmatpush2.msra.mxu0 0.0
    %1196 = vmatprep.subr.mxu0 0.0
    %1197 = vmatpush2.msra.mxu0 0.0
    %1198 = vmatprep.subr.mxu0 0.0
    %1199 = vmatpush2.msra.mxu0 0.0
    %1200 = vmatprep.subr.mxu0 0.0
    %1201 = vmatpush2.msra.mxu0 0.0
    %1202 = vmatprep.subr.mxu0 0.0
    %1203 = vmatpush2.msra.mxu0 0.0
    %1204 = vmatprep.subr.mxu0 0.0
    %1205 = vmatpush2.msra.mxu0 0.0
    %1206 = vmatprep.mubr.f32.mxu0 0.0
    %1207 = vmatmul.mubr.f32.gmra.mxu0 %v1137
    %v1208 = vpop.f32.mrf.mxu0
    %v1209 = vadd.f32 %v1128, %v1208
    %v1210 = vpop.f32.mrf.mxu0
    %1211 = vmatprep.mubr.f32.mxu0 0.0
    %1212 = vmatmul.mubr.f32.gmra.mxu0 %v1140
    %v1213 = vpop.f32.mrf.mxu0
    %v1214 = vadd.f32 %v1133, %v1213
    %v1215 = vpop.f32.mrf.mxu0
    %1216 = vdwg.mxu0
    %1217 = vrot.lane.b32.xlu0 %v629, 112
    %v1218 = vpop.permute.xlu0 %1217
    %1219 = vrot.lane.b32.xlu0 %v634, 112
    %v1220 = vpop.permute.xlu0 %1219
    %1221 = vrot.lane.b32.xlu0 %v629, 80
    %v1222 = vpop.permute.xlu0 %1221
    %1223 = vrot.lane.b32.xlu0 %v634, 80
    %v1224 = vpop.permute.xlu0 %1223
    %v1225 = vsel %vm657, %v1218, 0
    %v1227 = vsel %vm657, %v1220, 0
    %v1229 = vsel %vm657, %v1222, 0
    %v1231 = vsel %vm657, %v1224, 0
    %1233 = vmatprep.subr.mxu0 0.0
    %1234 = vmatpush1.xpose.msra.mxu0 0.0
    %1235 = vmatprep.subr.mxu0 0.0
    %1236 = vmatpush1.xpose.msra.mxu0 0.0
    %1237 = vmatprep.subr.mxu0 0.0
    %1238 = vmatpush1.xpose.msra.mxu0 0.0
    %1239 = vmatprep.subr.mxu0 0.0
    %1240 = vmatpush1.xpose.msra.mxu0 0.0
    %1241 = vmatprep.subr.mxu0 0.0
    %1242 = vmatpush1.xpose.msra.mxu0 0.0
    %1243 = vmatprep.subr.mxu0 0.0
    %1244 = vmatpush1.xpose.msra.mxu0 0.0
    %1245 = vmatprep.subr.mxu0 0.0
    %1246 = vmatpush1.xpose.msra.mxu0 0.0
    %1247 = vmatprep.subr.mxu0 0.0
    %1248 = vmatpush1.xpose.msra.mxu0 0.0
    %1249 = vmatprep.subr.mxu0 0.0
    %1250 = vmatpush1.xpose.msra.mxu0 0.0
    %1251 = vmatprep.subr.mxu0 0.0
    %1252 = vmatpush1.xpose.msra.mxu0 0.0
    %1253 = vmatprep.subr.mxu0 0.0
    %1254 = vmatpush1.xpose.msra.mxu0 0.0
    %1255 = vmatprep.subr.mxu0 0.0
    %1256 = vmatpush1.xpose.msra.mxu0 0.0
    %1257 = vmatprep.subr.mxu0 0.0
    %1258 = vmatpush1.xpose.msra.mxu0 0.0
    %1259 = vmatprep.subr.mxu0 0.0
    %1260 = vmatpush1.xpose.msra.mxu0 0.0
    %1261 = vmatprep.subr.mxu0 0.0
    %1262 = vmatpush1.xpose.msra.mxu0 %v1231
    %1263 = vmatprep.subr.mxu0 0.0
    %1264 = vmatpush1.xpose.msra.mxu0 %v1229
    %1265 = vmatprep.subr.mxu0 0.0
    %1266 = vmatpush2.xpose.msra.mxu0 0.0
    %1267 = vmatprep.subr.mxu0 0.0
    %1268 = vmatpush2.xpose.msra.mxu0 0.0
    %1269 = vmatprep.subr.mxu0 0.0
    %1270 = vmatpush2.xpose.msra.mxu0 0.0
    %1271 = vmatprep.subr.mxu0 0.0
    %1272 = vmatpush2.xpose.msra.mxu0 0.0
    %1273 = vmatprep.subr.mxu0 0.0
    %1274 = vmatpush2.xpose.msra.mxu0 0.0
    %1275 = vmatprep.subr.mxu0 0.0
    %1276 = vmatpush2.xpose.msra.mxu0 0.0
    %1277 = vmatprep.subr.mxu0 0.0
    %1278 = vmatpush2.xpose.msra.mxu0 0.0
    %1279 = vmatprep.subr.mxu0 0.0
    %1280 = vmatpush2.xpose.msra.mxu0 0.0
    %1281 = vmatprep.subr.mxu0 0.0
    %1282 = vmatpush2.xpose.msra.mxu0 0.0
    %1283 = vmatprep.subr.mxu0 0.0
    %1284 = vmatpush2.xpose.msra.mxu0 0.0
    %1285 = vmatprep.subr.mxu0 0.0
    %1286 = vmatpush2.xpose.msra.mxu0 0.0
    %1287 = vmatprep.subr.mxu0 0.0
    %1288 = vmatpush2.xpose.msra.mxu0 0.0
    %1289 = vmatprep.subr.mxu0 0.0
    %1290 = vmatpush2.xpose.msra.mxu0 0.0
    %1291 = vmatprep.subr.mxu0 0.0
    %1292 = vmatpush2.xpose.msra.mxu0 0.0
    %1293 = vmatprep.subr.mxu0 0.0
    %1294 = vmatpush2.xpose.msra.mxu0 0.0
    %1295 = vmatprep.subr.mxu0 0.0
    %1296 = vmatpush2.xpose.msra.mxu0 0.0
    %1297 = vmatprep.mubr.f32.mxu0 0.0
    %1298 = vmatmul.mubr.f32.gmra.mxu0 %v1225
    %v1299 = vpop.f32.mrf.mxu0
    %v1300 = vadd.f32 0.0, %v1299
    %v1301 = vpop.f32.mrf.mxu0
    %1302 = vmatprep.mubr.f32.mxu0 0.0
    %1303 = vmatmul.mubr.f32.gmra.mxu0 %v1227
    %v1304 = vpop.f32.mrf.mxu0
    %v1305 = vadd.f32 0.0, %v1304
    %v1306 = vpop.f32.mrf.mxu0
    %1307 = vdwg.mxu0
    %v1308 = vmul.f32 %v1300, 0.35355338
    %v1309 = vmul.f32 %v1305, 0.35355338
    %v1310 = vsel %vm743, %v1308, -inf
    %1311 = vmax.xlane.f32.xlu0 %v1310
    %v1312 = vpop.xlane.xlu0 %1311
    %v1313 = vsel %vm743, %v1309, -inf
    %1314 = vmax.xlane.f32.xlu0 %v1313
    %v1315 = vpop.xlane.xlu0 %1314
    %v1316 = vsub.f32 %v1308, %v1312
    %v1317 = vsub.f32 %v1309, %v1315
    %v1318 = vmul.f32 %v1316, 1.442695
    %v1319 = vpow.pop %v1318
    %v1320 = vmul.f32 %v1317, 1.442695
    %v1321 = vpow.pop %v1320
    %v1322 = vsel %vm743, %v1319, 0.0
    %1323 = vadd.xlane.f32.xlu0 %v1322
    %v1324 = vpop.xlane.xlu0 %1323
    %v1325 = vsel %vm743, %v1321, 0.0
    %1326 = vadd.xlane.f32.xlu0 %v1325
    %v1327 = vpop.xlane.xlu0 %1326
    %v1328 = vrcp.pop %v1324
    %v1329 = vrcp.pop %v1327
    %v1330 = vmul.f32 %v1319, %v1328
    %v1331 = vmul.f32 %v1321, %v1329
    %1332 = vrot.lane.b32.xlu0 %v629, 48
    %v1333 = vpop.permute.xlu0 %1332
    %1334 = vrot.lane.b32.xlu0 %v634, 48
    %v1335 = vpop.permute.xlu0 %1334
    %v1339 = vsel %vm743, %v1330, 0
    %v1342 = vsel %vm743, %v1331, 0
    %1344 = vmatprep.subr.mxu0 0.0
    %1345 = vmatpush1.msra.mxu0 0.0
    %1346 = vmatprep.subr.mxu0 0.0
    %1347 = vmatpush1.msra.mxu0 0.0
    %1348 = vmatprep.subr.mxu0 0.0
    %1349 = vmatpush1.msra.mxu0 0.0
    %1350 = vmatprep.subr.mxu0 0.0
    %1351 = vmatpush1.msra.mxu0 0.0
    %1352 = vmatprep.subr.mxu0 0.0
    %1353 = vmatpush1.msra.mxu0 0.0
    %1354 = vmatprep.subr.mxu0 0.0
    %1355 = vmatpush1.msra.mxu0 0.0
    %1356 = vmatprep.subr.mxu0 0.0
    %1357 = vmatpush1.msra.mxu0 0.0
    %1358 = vmatprep.subr.mxu0 0.0
    %1359 = vmatpush1.msra.mxu0 0.0
    %1360 = vmatprep.subr.mxu0 0.0
    %1361 = vmatpush1.msra.mxu0 0.0
    %1362 = vmatprep.subr.mxu0 0.0
    %1363 = vmatpush1.msra.mxu0 0.0
    %1364 = vmatprep.subr.mxu0 0.0
    %1365 = vmatpush1.msra.mxu0 0.0
    %1366 = vmatprep.subr.mxu0 0.0
    %1367 = vmatpush1.msra.mxu0 0.0
    %1368 = vmatprep.subr.mxu0 0.0
    %1369 = vmatpush1.msra.mxu0 0.0
    %1370 = vmatprep.subr.mxu0 0.0
    %1371 = vmatpush1.msra.mxu0 0.0
    %1372 = vmatprep.subr.mxu0 0.0
    %1373 = vmatpush1.msra.mxu0 %v1335
    %1374 = vmatprep.subr.mxu0 0.0
    %1375 = vmatpush1.msra.mxu0 %v1333
    %1376 = vmatprep.subr.mxu0 0.0
    %1377 = vmatpush2.msra.mxu0 0.0
    %1378 = vmatprep.subr.mxu0 0.0
    %1379 = vmatpush2.msra.mxu0 0.0
    %1380 = vmatprep.subr.mxu0 0.0
    %1381 = vmatpush2.msra.mxu0 0.0
    %1382 = vmatprep.subr.mxu0 0.0
    %1383 = vmatpush2.msra.mxu0 0.0
    %1384 = vmatprep.subr.mxu0 0.0
    %1385 = vmatpush2.msra.mxu0 0.0
    %1386 = vmatprep.subr.mxu0 0.0
    %1387 = vmatpush2.msra.mxu0 0.0
    %1388 = vmatprep.subr.mxu0 0.0
    %1389 = vmatpush2.msra.mxu0 0.0
    %1390 = vmatprep.subr.mxu0 0.0
    %1391 = vmatpush2.msra.mxu0 0.0
    %1392 = vmatprep.subr.mxu0 0.0
    %1393 = vmatpush2.msra.mxu0 0.0
    %1394 = vmatprep.subr.mxu0 0.0
    %1395 = vmatpush2.msra.mxu0 0.0
    %1396 = vmatprep.subr.mxu0 0.0
    %1397 = vmatpush2.msra.mxu0 0.0
    %1398 = vmatprep.subr.mxu0 0.0
    %1399 = vmatpush2.msra.mxu0 0.0
    %1400 = vmatprep.subr.mxu0 0.0
    %1401 = vmatpush2.msra.mxu0 0.0
    %1402 = vmatprep.subr.mxu0 0.0
    %1403 = vmatpush2.msra.mxu0 0.0
    %1404 = vmatprep.subr.mxu0 0.0
    %1405 = vmatpush2.msra.mxu0 0.0
    %1406 = vmatprep.subr.mxu0 0.0
    %1407 = vmatpush2.msra.mxu0 0.0
    %1408 = vmatprep.mubr.f32.mxu0 0.0
    %1409 = vmatmul.mubr.f32.gmra.mxu0 %v1339
    %v1410 = vpop.f32.mrf.mxu0
    %v1411 = vadd.f32 0.0, %v1410
    %v1412 = vpop.f32.mrf.mxu0
    %1413 = vmatprep.mubr.f32.mxu0 0.0
    %1414 = vmatmul.mubr.f32.gmra.mxu0 %v1342
    %v1415 = vpop.f32.mrf.mxu0
    %v1416 = vadd.f32 0.0, %v1415
    %v1417 = vpop.f32.mrf.mxu0
    %1418 = vdwg.mxu0
    %v1420 = vsel %vm657, %v1411, 0
    %v1423 = vsel %vm657, %v1416, 0
    %1425 = vmatprep.subr.mxu0 0.0
    %1426 = vmatpush1.msra.mxu0 0.0
    %1427 = vmatprep.subr.mxu0 0.0
    %1428 = vmatpush1.msra.mxu0 0.0
    %1429 = vmatprep.subr.mxu0 0.0
    %1430 = vmatpush1.msra.mxu0 0.0
    %1431 = vmatprep.subr.mxu0 0.0
    %1432 = vmatpush1.msra.mxu0 0.0
    %1433 = vmatprep.subr.mxu0 0.0
    %1434 = vmatpush1.msra.mxu0 0.0
    %1435 = vmatprep.subr.mxu0 0.0
    %1436 = vmatpush1.msra.mxu0 0.0
    %1437 = vmatprep.subr.mxu0 0.0
    %1438 = vmatpush1.msra.mxu0 0.0
    %1439 = vmatprep.subr.mxu0 0.0
    %1440 = vmatpush1.msra.mxu0 0.0
    %1441 = vmatprep.subr.mxu0 0.0
    %1442 = vmatpush1.msra.mxu0 0.0
    %1443 = vmatprep.subr.mxu0 0.0
    %1444 = vmatpush1.msra.mxu0 0.0
    %1445 = vmatprep.subr.mxu0 0.0
    %1446 = vmatpush1.msra.mxu0 0.0
    %1447 = vmatprep.subr.mxu0 0.0
    %1448 = vmatpush1.msra.mxu0 0.0
    %1449 = vmatprep.subr.mxu0 0.0
    %1450 = vmatpush1.msra.mxu0 0.0
    %1451 = vmatprep.subr.mxu0 0.0
    %1452 = vmatpush1.msra.mxu0 0.0
    %1453 = vmatprep.subr.mxu0 0.0
    %1454 = vmatpush1.msra.mxu0 0.0
    %1455 = vmatprep.subr.mxu0 0.0
    %1456 = vmatpush1.msra.mxu0 %v649
    %1457 = vmatprep.subr.mxu0 0.0
    %1458 = vmatpush2.msra.mxu0 0.0
    %1459 = vmatprep.subr.mxu0 0.0
    %1460 = vmatpush2.msra.mxu0 0.0
    %1461 = vmatprep.subr.mxu0 0.0
    %1462 = vmatpush2.msra.mxu0 0.0
    %1463 = vmatprep.subr.mxu0 0.0
    %1464 = vmatpush2.msra.mxu0 0.0
    %1465 = vmatprep.subr.mxu0 0.0
    %1466 = vmatpush2.msra.mxu0 0.0
    %1467 = vmatprep.subr.mxu0 0.0
    %1468 = vmatpush2.msra.mxu0 0.0
    %1469 = vmatprep.subr.mxu0 0.0
    %1470 = vmatpush2.msra.mxu0 0.0
    %1471 = vmatprep.subr.mxu0 0.0
    %1472 = vmatpush2.msra.mxu0 0.0
    %1473 = vmatprep.subr.mxu0 0.0
    %1474 = vmatpush2.msra.mxu0 0.0
    %1475 = vmatprep.subr.mxu0 0.0
    %1476 = vmatpush2.msra.mxu0 0.0
    %1477 = vmatprep.subr.mxu0 0.0
    %1478 = vmatpush2.msra.mxu0 0.0
    %1479 = vmatprep.subr.mxu0 0.0
    %1480 = vmatpush2.msra.mxu0 0.0
    %1481 = vmatprep.subr.mxu0 0.0
    %1482 = vmatpush2.msra.mxu0 0.0
    %1483 = vmatprep.subr.mxu0 0.0
    %1484 = vmatpush2.msra.mxu0 0.0
    %1485 = vmatprep.subr.mxu0 0.0
    %1486 = vmatpush2.msra.mxu0 0.0
    %1487 = vmatprep.subr.mxu0 0.0
    %1488 = vmatpush2.msra.mxu0 0.0
    %1489 = vmatprep.mubr.f32.mxu0 0.0
    %1490 = vmatmul.mubr.f32.gmra.mxu0 %v1420
    %v1491 = vpop.f32.mrf.mxu0
    %v1492 = vadd.f32 0.0, %v1491
    %v1493 = vpop.f32.mrf.mxu0
    %1494 = vmatprep.mubr.f32.mxu0 0.0
    %1495 = vmatmul.mubr.f32.gmra.mxu0 %v1423
    %v1496 = vpop.f32.mrf.mxu0
    %v1497 = vadd.f32 0.0, %v1496
    %v1498 = vpop.f32.mrf.mxu0
    %1499 = vdwg.mxu0
    %v1500 = vadd.f32 %v1209, %v1492
    %v1501 = vadd.f32 %v1214, %v1497
    %1502 = vrot.lane.b32.xlu0 %v629, 104
    %v1503 = vpop.permute.xlu0 %1502
    %1504 = vrot.lane.b32.xlu0 %v634, 104
    %v1505 = vpop.permute.xlu0 %1504
    %1506 = vrot.lane.b32.xlu0 %v629, 72
    %v1507 = vpop.permute.xlu0 %1506
    %1508 = vrot.lane.b32.xlu0 %v634, 72
    %v1509 = vpop.permute.xlu0 %1508
    %v1510 = vsel %vm657, %v1503, 0
    %v1512 = vsel %vm657, %v1505, 0
    %v1514 = vsel %vm657, %v1507, 0
    %v1516 = vsel %vm657, %v1509, 0
    %1518 = vmatprep.subr.mxu0 0.0
    %1519 = vmatpush1.xpose.msra.mxu0 0.0
    %1520 = vmatprep.subr.mxu0 0.0
    %1521 = vmatpush1.xpose.msra.mxu0 0.0
    %1522 = vmatprep.subr.mxu0 0.0
    %1523 = vmatpush1.xpose.msra.mxu0 0.0
    %1524 = vmatprep.subr.mxu0 0.0
    %1525 = vmatpush1.xpose.msra.mxu0 0.0
    %1526 = vmatprep.subr.mxu0 0.0
    %1527 = vmatpush1.xpose.msra.mxu0 0.0
    %1528 = vmatprep.subr.mxu0 0.0
    %1529 = vmatpush1.xpose.msra.mxu0 0.0
    %1530 = vmatprep.subr.mxu0 0.0
    %1531 = vmatpush1.xpose.msra.mxu0 0.0
    %1532 = vmatprep.subr.mxu0 0.0
    %1533 = vmatpush1.xpose.msra.mxu0 0.0
    %1534 = vmatprep.subr.mxu0 0.0
    %1535 = vmatpush1.xpose.msra.mxu0 0.0
    %1536 = vmatprep.subr.mxu0 0.0
    %1537 = vmatpush1.xpose.msra.mxu0 0.0
    %1538 = vmatprep.subr.mxu0 0.0
    %1539 = vmatpush1.xpose.msra.mxu0 0.0
    %1540 = vmatprep.subr.mxu0 0.0
    %1541 = vmatpush1.xpose.msra.mxu0 0.0
    %1542 = vmatprep.subr.mxu0 0.0
    %1543 = vmatpush1.xpose.msra.mxu0 0.0
    %1544 = vmatprep.subr.mxu0 0.0
    %1545 = vmatpush1.xpose.msra.mxu0 0.0
    %1546 = vmatprep.subr.mxu0 0.0
    %1547 = vmatpush1.xpose.msra.mxu0 %v1516
    %1548 = vmatprep.subr.mxu0 0.0
    %1549 = vmatpush1.xpose.msra.mxu0 %v1514
    %1550 = vmatprep.subr.mxu0 0.0
    %1551 = vmatpush2.xpose.msra.mxu0 0.0
    %1552 = vmatprep.subr.mxu0 0.0
    %1553 = vmatpush2.xpose.msra.mxu0 0.0
    %1554 = vmatprep.subr.mxu0 0.0
    %1555 = vmatpush2.xpose.msra.mxu0 0.0
    %1556 = vmatprep.subr.mxu0 0.0
    %1557 = vmatpush2.xpose.msra.mxu0 0.0
    %1558 = vmatprep.subr.mxu0 0.0
    %1559 = vmatpush2.xpose.msra.mxu0 0.0
    %1560 = vmatprep.subr.mxu0 0.0
    %1561 = vmatpush2.xpose.msra.mxu0 0.0
    %1562 = vmatprep.subr.mxu0 0.0
    %1563 = vmatpush2.xpose.msra.mxu0 0.0
    %1564 = vmatprep.subr.mxu0 0.0
    %1565 = vmatpush2.xpose.msra.mxu0 0.0
    %1566 = vmatprep.subr.mxu0 0.0
    %1567 = vmatpush2.xpose.msra.mxu0 0.0
    %1568 = vmatprep.subr.mxu0 0.0
    %1569 = vmatpush2.xpose.msra.mxu0 0.0
    %1570 = vmatprep.subr.mxu0 0.0
    %1571 = vmatpush2.xpose.msra.mxu0 0.0
    %1572 = vmatprep.subr.mxu0 0.0
    %1573 = vmatpush2.xpose.msra.mxu0 0.0
    %1574 = vmatprep.subr.mxu0 0.0
    %1575 = vmatpush2.xpose.msra.mxu0 0.0
    %1576 = vmatprep.subr.mxu0 0.0
    %1577 = vmatpush2.xpose.msra.mxu0 0.0
    %1578 = vmatprep.subr.mxu0 0.0
    %1579 = vmatpush2.xpose.msra.mxu0 0.0
    %1580 = vmatprep.subr.mxu0 0.0
    %1581 = vmatpush2.xpose.msra.mxu0 0.0
    %1582 = vmatprep.mubr.f32.mxu0 0.0
    %1583 = vmatmul.mubr.f32.gmra.mxu0 %v1510
    %v1584 = vpop.f32.mrf.mxu0
    %v1585 = vadd.f32 0.0, %v1584
    %v1586 = vpop.f32.mrf.mxu0
    %1587 = vmatprep.mubr.f32.mxu0 0.0
    %1588 = vmatmul.mubr.f32.gmra.mxu0 %v1512
    %v1589 = vpop.f32.mrf.mxu0
    %v1590 = vadd.f32 0.0, %v1589
    %v1591 = vpop.f32.mrf.mxu0
    %1592 = vdwg.mxu0
    %v1593 = vmul.f32 %v1585, 0.35355338
    %v1594 = vmul.f32 %v1590, 0.35355338
    %v1595 = vsel %vm743, %v1593, -inf
    %1596 = vmax.xlane.f32.xlu0 %v1595
    %v1597 = vpop.xlane.xlu0 %1596
    %v1598 = vsel %vm743, %v1594, -inf
    %1599 = vmax.xlane.f32.xlu0 %v1598
    %v1600 = vpop.xlane.xlu0 %1599
    %v1601 = vsub.f32 %v1593, %v1597
    %v1602 = vsub.f32 %v1594, %v1600
    %v1603 = vmul.f32 %v1601, 1.442695
    %v1604 = vpow.pop %v1603
    %v1605 = vmul.f32 %v1602, 1.442695
    %v1606 = vpow.pop %v1605
    %v1607 = vsel %vm743, %v1604, 0.0
    %1608 = vadd.xlane.f32.xlu0 %v1607
    %v1609 = vpop.xlane.xlu0 %1608
    %v1610 = vsel %vm743, %v1606, 0.0
    %1611 = vadd.xlane.f32.xlu0 %v1610
    %v1612 = vpop.xlane.xlu0 %1611
    %v1613 = vrcp.pop %v1609
    %v1614 = vrcp.pop %v1612
    %v1615 = vmul.f32 %v1604, %v1613
    %v1616 = vmul.f32 %v1606, %v1614
    %1617 = vrot.lane.b32.xlu0 %v629, 40
    %v1618 = vpop.permute.xlu0 %1617
    %1619 = vrot.lane.b32.xlu0 %v634, 40
    %v1620 = vpop.permute.xlu0 %1619
    %v1624 = vsel %vm743, %v1615, 0
    %v1627 = vsel %vm743, %v1616, 0
    %1629 = vmatprep.subr.mxu0 0.0
    %1630 = vmatpush1.msra.mxu0 0.0
    %1631 = vmatprep.subr.mxu0 0.0
    %1632 = vmatpush1.msra.mxu0 0.0
    %1633 = vmatprep.subr.mxu0 0.0
    %1634 = vmatpush1.msra.mxu0 0.0
    %1635 = vmatprep.subr.mxu0 0.0
    %1636 = vmatpush1.msra.mxu0 0.0
    %1637 = vmatprep.subr.mxu0 0.0
    %1638 = vmatpush1.msra.mxu0 0.0
    %1639 = vmatprep.subr.mxu0 0.0
    %1640 = vmatpush1.msra.mxu0 0.0
    %1641 = vmatprep.subr.mxu0 0.0
    %1642 = vmatpush1.msra.mxu0 0.0
    %1643 = vmatprep.subr.mxu0 0.0
    %1644 = vmatpush1.msra.mxu0 0.0
    %1645 = vmatprep.subr.mxu0 0.0
    %1646 = vmatpush1.msra.mxu0 0.0
    %1647 = vmatprep.subr.mxu0 0.0
    %1648 = vmatpush1.msra.mxu0 0.0
    %1649 = vmatprep.subr.mxu0 0.0
    %1650 = vmatpush1.msra.mxu0 0.0
    %1651 = vmatprep.subr.mxu0 0.0
    %1652 = vmatpush1.msra.mxu0 0.0
    %1653 = vmatprep.subr.mxu0 0.0
    %1654 = vmatpush1.msra.mxu0 0.0
    %1655 = vmatprep.subr.mxu0 0.0
    %1656 = vmatpush1.msra.mxu0 0.0
    %1657 = vmatprep.subr.mxu0 0.0
    %1658 = vmatpush1.msra.mxu0 %v1620
    %1659 = vmatprep.subr.mxu0 0.0
    %1660 = vmatpush1.msra.mxu0 %v1618
    %1661 = vmatprep.subr.mxu0 0.0
    %1662 = vmatpush2.msra.mxu0 0.0
    %1663 = vmatprep.subr.mxu0 0.0
    %1664 = vmatpush2.msra.mxu0 0.0
    %1665 = vmatprep.subr.mxu0 0.0
    %1666 = vmatpush2.msra.mxu0 0.0
    %1667 = vmatprep.subr.mxu0 0.0
    %1668 = vmatpush2.msra.mxu0 0.0
    %1669 = vmatprep.subr.mxu0 0.0
    %1670 = vmatpush2.msra.mxu0 0.0
    %1671 = vmatprep.subr.mxu0 0.0
    %1672 = vmatpush2.msra.mxu0 0.0
    %1673 = vmatprep.subr.mxu0 0.0
    %1674 = vmatpush2.msra.mxu0 0.0
    %1675 = vmatprep.subr.mxu0 0.0
    %1676 = vmatpush2.msra.mxu0 0.0
    %1677 = vmatprep.subr.mxu0 0.0
    %1678 = vmatpush2.msra.mxu0 0.0
    %1679 = vmatprep.subr.mxu0 0.0
    %1680 = vmatpush2.msra.mxu0 0.0
    %1681 = vmatprep.subr.mxu0 0.0
    %1682 = vmatpush2.msra.mxu0 0.0
    %1683 = vmatprep.subr.mxu0 0.0
    %1684 = vmatpush2.msra.mxu0 0.0
    %1685 = vmatprep.subr.mxu0 0.0
    %1686 = vmatpush2.msra.mxu0 0.0
    %1687 = vmatprep.subr.mxu0 0.0
    %1688 = vmatpush2.msra.mxu0 0.0
    %1689 = vmatprep.subr.mxu0 0.0
    %1690 = vmatpush2.msra.mxu0 0.0
    %1691 = vmatprep.subr.mxu0 0.0
    %1692 = vmatpush2.msra.mxu0 0.0
    %1693 = vmatprep.mubr.f32.mxu0 0.0
    %1694 = vmatmul.mubr.f32.gmra.mxu0 %v1624
    %v1695 = vpop.f32.mrf.mxu0
    %v1696 = vadd.f32 0.0, %v1695
    %v1697 = vpop.f32.mrf.mxu0
    %1698 = vmatprep.mubr.f32.mxu0 0.0
    %1699 = vmatmul.mubr.f32.gmra.mxu0 %v1627
    %v1700 = vpop.f32.mrf.mxu0
    %v1701 = vadd.f32 0.0, %v1700
    %v1702 = vpop.f32.mrf.mxu0
    %1703 = vdwg.mxu0
    %v1705 = vsel %vm657, %v1696, 0
    %v1708 = vsel %vm657, %v1701, 0
    %1710 = vmatprep.subr.mxu0 0.0
    %1711 = vmatpush1.msra.mxu0 0.0
    %1712 = vmatprep.subr.mxu0 0.0
    %1713 = vmatpush1.msra.mxu0 0.0
    %1714 = vmatprep.subr.mxu0 0.0
    %1715 = vmatpush1.msra.mxu0 0.0
    %1716 = vmatprep.subr.mxu0 0.0
    %1717 = vmatpush1.msra.mxu0 0.0
    %1718 = vmatprep.subr.mxu0 0.0
    %1719 = vmatpush1.msra.mxu0 0.0
    %1720 = vmatprep.subr.mxu0 0.0
    %1721 = vmatpush1.msra.mxu0 0.0
    %1722 = vmatprep.subr.mxu0 0.0
    %1723 = vmatpush1.msra.mxu0 0.0
    %1724 = vmatprep.subr.mxu0 0.0
    %1725 = vmatpush1.msra.mxu0 0.0
    %1726 = vmatprep.subr.mxu0 0.0
    %1727 = vmatpush1.msra.mxu0 0.0
    %1728 = vmatprep.subr.mxu0 0.0
    %1729 = vmatpush1.msra.mxu0 0.0
    %1730 = vmatprep.subr.mxu0 0.0
    %1731 = vmatpush1.msra.mxu0 0.0
    %1732 = vmatprep.subr.mxu0 0.0
    %1733 = vmatpush1.msra.mxu0 0.0
    %1734 = vmatprep.subr.mxu0 0.0
    %1735 = vmatpush1.msra.mxu0 0.0
    %1736 = vmatprep.subr.mxu0 0.0
    %1737 = vmatpush1.msra.mxu0 0.0
    %1738 = vmatprep.subr.mxu0 0.0
    %1739 = vmatpush1.msra.mxu0 0.0
    %1740 = vmatprep.subr.mxu0 0.0
    %1741 = vmatpush1.msra.mxu0 %v650
    %1742 = vmatprep.subr.mxu0 0.0
    %1743 = vmatpush2.msra.mxu0 0.0
    %1744 = vmatprep.subr.mxu0 0.0
    %1745 = vmatpush2.msra.mxu0 0.0
    %1746 = vmatprep.subr.mxu0 0.0
    %1747 = vmatpush2.msra.mxu0 0.0
    %1748 = vmatprep.subr.mxu0 0.0
    %1749 = vmatpush2.msra.mxu0 0.0
    %1750 = vmatprep.subr.mxu0 0.0
    %1751 = vmatpush2.msra.mxu0 0.0
    %1752 = vmatprep.subr.mxu0 0.0
    %1753 = vmatpush2.msra.mxu0 0.0
    %1754 = vmatprep.subr.mxu0 0.0
    %1755 = vmatpush2.msra.mxu0 0.0
    %1756 = vmatprep.subr.mxu0 0.0
    %1757 = vmatpush2.msra.mxu0 0.0
    %1758 = vmatprep.subr.mxu0 0.0
    %1759 = vmatpush2.msra.mxu0 0.0
    %1760 = vmatprep.subr.mxu0 0.0
    %1761 = vmatpush2.msra.mxu0 0.0
    %1762 = vmatprep.subr.mxu0 0.0
    %1763 = vmatpush2.msra.mxu0 0.0
    %1764 = vmatprep.subr.mxu0 0.0
    %1765 = vmatpush2.msra.mxu0 0.0
    %1766 = vmatprep.subr.mxu0 0.0
    %1767 = vmatpush2.msra.mxu0 0.0
    %1768 = vmatprep.subr.mxu0 0.0
    %1769 = vmatpush2.msra.mxu0 0.0
    %1770 = vmatprep.subr.mxu0 0.0
    %1771 = vmatpush2.msra.mxu0 0.0
    %1772 = vmatprep.subr.mxu0 0.0
    %1773 = vmatpush2.msra.mxu0 0.0
    %1774 = vmatprep.mubr.f32.mxu0 0.0
    %1775 = vmatmul.mubr.f32.gmra.mxu0 %v1705
    %v1776 = vpop.f32.mrf.mxu0
    %v1777 = vadd.f32 0.0, %v1776
    %v1778 = vpop.f32.mrf.mxu0
    %1779 = vmatprep.mubr.f32.mxu0 0.0
    %1780 = vmatmul.mubr.f32.gmra.mxu0 %v1708
    %v1781 = vpop.f32.mrf.mxu0
    %v1782 = vadd.f32 0.0, %v1781
    %v1783 = vpop.f32.mrf.mxu0
    %1784 = vdwg.mxu0
    %v1785 = vadd.f32 %v1500, %v1777
    %v1786 = vadd.f32 %v1501, %v1782
    %v1787 = vadd.f32 %v535, %v1785
    %v1788 = vadd.f32 %v536, %v1786
    %v1789 = vld [vmem:[%s19] sm:$0x1]
    %v1791 = vlaneseq
    %v1792 = vshrl.u32 %v1791, 7
    %v1793 = vsub.s32 0, %v1792
    %v1794 = vrot.slane %v1789, %v1793
    %v1796 = vadd.f32 %v1787, %v1794
    %v1797 = vadd.f32 %v1788, %v1794
    %v1798 = vld [vmem:[%s21] sm:$0x1]
    %v1799 = vld [vmem:[%s23] sm:$0x1]
    %v1800 = vsel %vm289, %v1796, 0.0
    %1801 = vadd.xlane.f32.xlu0 %v1800
    %v1802 = vpop.xlane.xlu0 %1801
    %v1803 = vsel %vm289, %v1797, 0.0
    %1804 = vadd.xlane.f32.xlu0 %v1803
    %v1805 = vpop.xlane.xlu0 %1804
    %v1806 = vrcp.pop 32.0
    %v1807 = vmul.f32 %v1802, %v1806
    %v1808 = vmul.f32 %v1805, %v1806
    %v1809 = vsub.f32 %v1796, %v1807
    %v1810 = vsub.f32 %v1797, %v1808
    %v1811 = vmul.f32 %v1809, %v1809
    %v1812 = vmul.f32 %v1810, %v1810
    %v1813 = vsel %vm289, %v1811, 0.0
    %1814 = vadd.xlane.f32.xlu0 %v1813
    %v1815 = vpop.xlane.xlu0 %1814
    %v1816 = vsel %vm289, %v1812, 0.0
    %1817 = vadd.xlane.f32.xlu0 %v1816
    %v1818 = vpop.xlane.xlu0 %1817
    %v1819 = vmul.f32 %v1815, %v1806
    %v1820 = vmul.f32 %v1818, %v1806
    %v1821 = vadd.f32 %v1819, 1e-05
    %v1822 = vadd.f32 %v1820, 1e-05
    %v1823 = vrsqrt.pop %v1821
    %v1824 = vrsqrt.pop %v1822
    %v1825 = vmul.f32 %v1809, %v1823
    %v1826 = vmul.f32 %v1810, %v1824
    %v1828 = vlaneseq
    %v1829 = vshrl.u32 %v1828, 7
    %v1830 = vsub.s32 0, %v1829
    %v1831 = vrot.slane %v1798, %v1830
    %v1833 = vmul.f32 %v1825, %v1831
    %v1834 = vmul.f32 %v1826, %v1831
    %v1836 = vlaneseq
    %v1837 = vshrl.u32 %v1836, 7
    %v1838 = vsub.s32 0, %v1837
    %v1839 = vrot.slane %v1799, %v1838
    %v1841 = vadd.f32 %v1833, %v1839
    %v1842 = vadd.f32 %v1834, %v1839
    %1843 = vst.msk [vmem:[#allocation2] sm:$0xff] %vm289, %v1841
    %1844 = vst.msk [vmem:[#allocation2 + $0x8] sm:$0xff] %vm289, %v1842
    %1847 = vrot.lane.b32.xlu0 %v639, 96
    %v1848 = vpop.permute.xlu0 %1847
    %1849 = vrot.lane.b32.xlu0 %v644, 96
    %v1850 = vpop.permute.xlu0 %1849
    %v1851 = vsel %vm657, %v639, 0
    %v1853 = vsel %vm657, %v644, 0
    %v1855 = vsel %vm657, %v1848, 0
    %v1857 = vsel %vm657, %v1850, 0
    %1859 = vmatprep.subr.mxu0 0.0
    %1860 = vmatpush1.xpose.msra.mxu0 0.0
    %1861 = vmatprep.subr.mxu0 0.0
    %1862 = vmatpush1.xpose.msra.mxu0 0.0
    %1863 = vmatprep.subr.mxu0 0.0
    %1864 = vmatpush1.xpose.msra.mxu0 0.0
    %1865 = vmatprep.subr.mxu0 0.0
    %1866 = vmatpush1.xpose.msra.mxu0 0.0
    %1867 = vmatprep.subr.mxu0 0.0
    %1868 = vmatpush1.xpose.msra.mxu0 0.0
    %1869 = vmatprep.subr.mxu0 0.0
    %1870 = vmatpush1.xpose.msra.mxu0 0.0
    %1871 = vmatprep.subr.mxu0 0.0
    %1872 = vmatpush1.xpose.msra.mxu0 0.0
    %1873 = vmatprep.subr.mxu0 0.0
    %1874 = vmatpush1.xpose.msra.mxu0 0.0
    %1875 = vmatprep.subr.mxu0 0.0
    %1876 = vmatpush1.xpose.msra.mxu0 0.0
    %1877 = vmatprep.subr.mxu0 0.0
    %1878 = vmatpush1.xpose.msra.mxu0 0.0
    %1879 = vmatprep.subr.mxu0 0.0
    %1880 = vmatpush1.xpose.msra.mxu0 0.0
    %1881 = vmatprep.subr.mxu0 0.0
    %1882 = vmatpush1.xpose.msra.mxu0 0.0
    %1883 = vmatprep.subr.mxu0 0.0
    %1884 = vmatpush1.xpose.msra.mxu0 0.0
    %1885 = vmatprep.subr.mxu0 0.0
    %1886 = vmatpush1.xpose.msra.mxu0 0.0
    %1887 = vmatprep.subr.mxu0 0.0
    %1888 = vmatpush1.xpose.msra.mxu0 %v1857
    %1889 = vmatprep.subr.mxu0 0.0
    %1890 = vmatpush1.xpose.msra.mxu0 %v1855
    %1891 = vmatprep.subr.mxu0 0.0
    %1892 = vmatpush2.xpose.msra.mxu0 0.0
    %1893 = vmatprep.subr.mxu0 0.0
    %1894 = vmatpush2.xpose.msra.mxu0 0.0
    %1895 = vmatprep.subr.mxu0 0.0
    %1896 = vmatpush2.xpose.msra.mxu0 0.0
    %1897 = vmatprep.subr.mxu0 0.0
    %1898 = vmatpush2.xpose.msra.mxu0 0.0
    %1899 = vmatprep.subr.mxu0 0.0
    %1900 = vmatpush2.xpose.msra.mxu0 0.0
    %1901 = vmatprep.subr.mxu0 0.0
    %1902 = vmatpush2.xpose.msra.mxu0 0.0
    %1903 = vmatprep.subr.mxu0 0.0
    %1904 = vmatpush2.xpose.msra.mxu0 0.0
    %1905 = vmatprep.subr.mxu0 0.0
    %1906 = vmatpush2.xpose.msra.mxu0 0.0
    %1907 = vmatprep.subr.mxu0 0.0
    %1908 = vmatpush2.xpose.msra.mxu0 0.0
    %1909 = vmatprep.subr.mxu0 0.0
    %1910 = vmatpush2.xpose.msra.mxu0 0.0
    %1911 = vmatprep.subr.mxu0 0.0
    %1912 = vmatpush2.xpose.msra.mxu0 0.0
    %1913 = vmatprep.subr.mxu0 0.0
    %1914 = vmatpush2.xpose.msra.mxu0 0.0
    %1915 = vmatprep.subr.mxu0 0.0
    %1916 = vmatpush2.xpose.msra.mxu0 0.0
    %1917 = vmatprep.subr.mxu0 0.0
    %1918 = vmatpush2.xpose.msra.mxu0 0.0
    %1919 = vmatprep.subr.mxu0 0.0
    %1920 = vmatpush2.xpose.msra.mxu0 0.0
    %1921 = vmatprep.subr.mxu0 0.0
    %1922 = vmatpush2.xpose.msra.mxu0 0.0
    %1923 = vmatprep.mubr.f32.mxu0 0.0
    %1924 = vmatmul.mubr.f32.gmra.mxu0 %v1851
    %v1925 = vpop.f32.mrf.mxu0
    %v1926 = vadd.f32 0.0, %v1925
    %v1927 = vpop.f32.mrf.mxu0
    %1928 = vmatprep.mubr.f32.mxu0 0.0
    %1929 = vmatmul.mubr.f32.gmra.mxu0 %v1853
    %v1930 = vpop.f32.mrf.mxu0
    %v1931 = vadd.f32 0.0, %v1930
    %v1932 = vpop.f32.mrf.mxu0
    %1933 = vdwg.mxu0
    %v1934 = vmul.f32 %v1926, 0.35355338
    %v1935 = vmul.f32 %v1931, 0.35355338
    %v1936 = vsel %vm743, %v1934, -inf
    %1937 = vmax.xlane.f32.xlu0 %v1936
    %v1938 = vpop.xlane.xlu0 %1937
    %v1939 = vsel %vm743, %v1935, -inf
    %1940 = vmax.xlane.f32.xlu0 %v1939
    %v1941 = vpop.xlane.xlu0 %1940
    %v1942 = vsub.f32 %v1934, %v1938
    %v1943 = vsub.f32 %v1935, %v1941
    %v1944 = vmul.f32 %v1942, 1.442695
    %v1945 = vpow.pop %v1944
    %v1946 = vmul.f32 %v1943, 1.442695
    %v1947 = vpow.pop %v1946
    %v1948 = vsel %vm743, %v1945, 0.0
    %1949 = vadd.xlane.f32.xlu0 %v1948
    %v1950 = vpop.xlane.xlu0 %1949
    %v1951 = vsel %vm743, %v1947, 0.0
    %1952 = vadd.xlane.f32.xlu0 %v1951
    %v1953 = vpop.xlane.xlu0 %1952
    %v1954 = vrcp.pop %v1950
    %v1955 = vrcp.pop %v1953
    %v1956 = vmul.f32 %v1945, %v1954
    %v1957 = vmul.f32 %v1947, %v1955
    %1958 = vrot.lane.b32.xlu0 %v639, 64
    %v1959 = vpop.permute.xlu0 %1958
    %1960 = vrot.lane.b32.xlu0 %v644, 64
    %v1961 = vpop.permute.xlu0 %1960
    %v1965 = vsel %vm743, %v1956, 0
    %v1968 = vsel %vm743, %v1957, 0
    %1970 = vmatprep.subr.mxu0 0.0
    %1971 = vmatpush1.msra.mxu0 0.0
    %1972 = vmatprep.subr.mxu0 0.0
    %1973 = vmatpush1.msra.mxu0 0.0
    %1974 = vmatprep.subr.mxu0 0.0
    %1975 = vmatpush1.msra.mxu0 0.0
    %1976 = vmatprep.subr.mxu0 0.0
    %1977 = vmatpush1.msra.mxu0 0.0
    %1978 = vmatprep.subr.mxu0 0.0
    %1979 = vmatpush1.msra.mxu0 0.0
    %1980 = vmatprep.subr.mxu0 0.0
    %1981 = vmatpush1.msra.mxu0 0.0
    %1982 = vmatprep.subr.mxu0 0.0
    %1983 = vmatpush1.msra.mxu0 0.0
    %1984 = vmatprep.subr.mxu0 0.0
    %1985 = vmatpush1.msra.mxu0 0.0
    %1986 = vmatprep.subr.mxu0 0.0
    %1987 = vmatpush1.msra.mxu0 0.0
    %1988 = vmatprep.subr.mxu0 0.0
    %1989 = vmatpush1.msra.mxu0 0.0
    %1990 = vmatprep.subr.mxu0 0.0
    %1991 = vmatpush1.msra.mxu0 0.0
    %1992 = vmatprep.subr.mxu0 0.0
    %1993 = vmatpush1.msra.mxu0 0.0
    %1994 = vmatprep.subr.mxu0 0.0
    %1995 = vmatpush1.msra.mxu0 0.0
    %1996 = vmatprep.subr.mxu0 0.0
    %1997 = vmatpush1.msra.mxu0 0.0
    %1998 = vmatprep.subr.mxu0 0.0
    %1999 = vmatpush1.msra.mxu0 %v1961
    %2000 = vmatprep.subr.mxu0 0.0
    %2001 = vmatpush1.msra.mxu0 %v1959
    %2002 = vmatprep.subr.mxu0 0.0
    %2003 = vmatpush2.msra.mxu0 0.0
    %2004 = vmatprep.subr.mxu0 0.0
    %2005 = vmatpush2.msra.mxu0 0.0
    %2006 = vmatprep.subr.mxu0 0.0
    %2007 = vmatpush2.msra.mxu0 0.0
    %2008 = vmatprep.subr.mxu0 0.0
    %2009 = vmatpush2.msra.mxu0 0.0
    %2010 = vmatprep.subr.mxu0 0.0
    %2011 = vmatpush2.msra.mxu0 0.0
    %2012 = vmatprep.subr.mxu0 0.0
    %2013 = vmatpush2.msra.mxu0 0.0
    %2014 = vmatprep.subr.mxu0 0.0
    %2015 = vmatpush2.msra.mxu0 0.0
    %2016 = vmatprep.subr.mxu0 0.0
    %2017 = vmatpush2.msra.mxu0 0.0
    %2018 = vmatprep.subr.mxu0 0.0
    %2019 = vmatpush2.msra.mxu0 0.0
    %2020 = vmatprep.subr.mxu0 0.0
    %2021 = vmatpush2.msra.mxu0 0.0
    %2022 = vmatprep.subr.mxu0 0.0
    %2023 = vmatpush2.msra.mxu0 0.0
    %2024 = vmatprep.subr.mxu0 0.0
    %2025 = vmatpush2.msra.mxu0 0.0
    %2026 = vmatprep.subr.mxu0 0.0
    %2027 = vmatpush2.msra.mxu0 0.0
    %2028 = vmatprep.subr.mxu0 0.0
    %2029 = vmatpush2.msra.mxu0 0.0
    %2030 = vmatprep.subr.mxu0 0.0
    %2031 = vmatpush2.msra.mxu0 0.0
    %2032 = vmatprep.subr.mxu0 0.0
    %2033 = vmatpush2.msra.mxu0 0.0
    %2034 = vmatprep.mubr.f32.mxu0 0.0
    %2035 = vmatmul.mubr.f32.gmra.mxu0 %v1965
    %v2036 = vpop.f32.mrf.mxu0
    %v2037 = vadd.f32 0.0, %v2036
    %v2038 = vpop.f32.mrf.mxu0
    %2039 = vmatprep.mubr.f32.mxu0 0.0
    %2040 = vmatmul.mubr.f32.gmra.mxu0 %v1968
    %v2041 = vpop.f32.mrf.mxu0
    %v2042 = vadd.f32 0.0, %v2041
    %v2043 = vpop.f32.mrf.mxu0
    %2044 = vdwg.mxu0
    %2045 = vrot.lane.b32.xlu0 %v639, 120
    %v2046 = vpop.permute.xlu0 %2045
    %2047 = vrot.lane.b32.xlu0 %v644, 120
    %v2048 = vpop.permute.xlu0 %2047
    %2049 = vrot.lane.b32.xlu0 %v639, 88
    %v2050 = vpop.permute.xlu0 %2049
    %2051 = vrot.lane.b32.xlu0 %v644, 88
    %v2052 = vpop.permute.xlu0 %2051
    %v2053 = vsel %vm657, %v2046, 0
    %v2055 = vsel %vm657, %v2048, 0
    %v2057 = vsel %vm657, %v2050, 0
    %v2059 = vsel %vm657, %v2052, 0
    %2061 = vmatprep.subr.mxu0 0.0
    %2062 = vmatpush1.xpose.msra.mxu0 0.0
    %2063 = vmatprep.subr.mxu0 0.0
    %2064 = vmatpush1.xpose.msra.mxu0 0.0
    %2065 = vmatprep.subr.mxu0 0.0
    %2066 = vmatpush1.xpose.msra.mxu0 0.0
    %2067 = vmatprep.subr.mxu0 0.0
    %2068 = vmatpush1.xpose.msra.mxu0 0.0
    %2069 = vmatprep.subr.mxu0 0.0
    %2070 = vmatpush1.xpose.msra.mxu0 0.0
    %2071 = vmatprep.subr.mxu0 0.0
    %2072 = vmatpush1.xpose.msra.mxu0 0.0
    %2073 = vmatprep.subr.mxu0 0.0
    %2074 = vmatpush1.xpose.msra.mxu0 0.0
    %2075 = vmatprep.subr.mxu0 0.0
    %2076 = vmatpush1.xpose.msra.mxu0 0.0
    %2077 = vmatprep.subr.mxu0 0.0
    %2078 = vmatpush1.xpose.msra.mxu0 0.0
    %2079 = vmatprep.subr.mxu0 0.0
    %2080 = vmatpush1.xpose.msra.mxu0 0.0
    %2081 = vmatprep.subr.mxu0 0.0
    %2082 = vmatpush1.xpose.msra.mxu0 0.0
    %2083 = vmatprep.subr.mxu0 0.0
    %2084 = vmatpush1.xpose.msra.mxu0 0.0
    %2085 = vmatprep.subr.mxu0 0.0
    %2086 = vmatpush1.xpose.msra.mxu0 0.0
    %2087 = vmatprep.subr.mxu0 0.0
    %2088 = vmatpush1.xpose.msra.mxu0 0.0
    %2089 = vmatprep.subr.mxu0 0.0
    %2090 = vmatpush1.xpose.msra.mxu0 %v2059
    %2091 = vmatprep.subr.mxu0 0.0
    %2092 = vmatpush1.xpose.msra.mxu0 %v2057
    %2093 = vmatprep.subr.mxu0 0.0
    %2094 = vmatpush2.xpose.msra.mxu0 0.0
    %2095 = vmatprep.subr.mxu0 0.0
    %2096 = vmatpush2.xpose.msra.mxu0 0.0
    %2097 = vmatprep.subr.mxu0 0.0
    %2098 = vmatpush2.xpose.msra.mxu0 0.0
    %2099 = vmatprep.subr.mxu0 0.0
    %2100 = vmatpush2.xpose.msra.mxu0 0.0
    %2101 = vmatprep.subr.mxu0 0.0
    %2102 = vmatpush2.xpose.msra.mxu0 0.0
    %2103 = vmatprep.subr.mxu0 0.0
    %2104 = vmatpush2.xpose.msra.mxu0 0.0
    %2105 = vmatprep.subr.mxu0 0.0
    %2106 = vmatpush2.xpose.msra.mxu0 0.0
    %2107 = vmatprep.subr.mxu0 0.0
    %2108 = vmatpush2.xpose.msra.mxu0 0.0
    %2109 = vmatprep.subr.mxu0 0.0
    %2110 = vmatpush2.xpose.msra.mxu0 0.0
    %2111 = vmatprep.subr.mxu0 0.0
    %2112 = vmatpush2.xpose.msra.mxu0 0.0
    %2113 = vmatprep.subr.mxu0 0.0
    %2114 = vmatpush2.xpose.msra.mxu0 0.0
    %2115 = vmatprep.subr.mxu0 0.0
    %2116 = vmatpush2.xpose.msra.mxu0 0.0
    %2117 = vmatprep.subr.mxu0 0.0
    %2118 = vmatpush2.xpose.msra.mxu0 0.0
    %2119 = vmatprep.subr.mxu0 0.0
    %2120 = vmatpush2.xpose.msra.mxu0 0.0
    %2121 = vmatprep.subr.mxu0 0.0
    %2122 = vmatpush2.xpose.msra.mxu0 0.0
    %2123 = vmatprep.subr.mxu0 0.0
    %2124 = vmatpush2.xpose.msra.mxu0 0.0
    %2125 = vmatprep.mubr.f32.mxu0 0.0
    %2126 = vmatmul.mubr.f32.gmra.mxu0 %v2053
    %v2127 = vpop.f32.mrf.mxu0
    %v2128 = vadd.f32 0.0, %v2127
    %v2129 = vpop.f32.mrf.mxu0
    %2130 = vmatprep.mubr.f32.mxu0 0.0
    %2131 = vmatmul.mubr.f32.gmra.mxu0 %v2055
    %v2132 = vpop.f32.mrf.mxu0
    %v2133 = vadd.f32 0.0, %v2132
    %v2134 = vpop.f32.mrf.mxu0
    %2135 = vdwg.mxu0
    %v2136 = vmul.f32 %v2128, 0.35355338
    %v2137 = vmul.f32 %v2133, 0.35355338
    %v2138 = vsel %vm743, %v2136, -inf
    %2139 = vmax.xlane.f32.xlu0 %v2138
    %v2140 = vpop.xlane.xlu0 %2139
    %v2141 = vsel %vm743, %v2137, -inf
    %2142 = vmax.xlane.f32.xlu0 %v2141
    %v2143 = vpop.xlane.xlu0 %2142
    %v2144 = vsub.f32 %v2136, %v2140
    %v2145 = vsub.f32 %v2137, %v2143
    %v2146 = vmul.f32 %v2144, 1.442695
    %v2147 = vpow.pop %v2146
    %v2148 = vmul.f32 %v2145, 1.442695
    %v2149 = vpow.pop %v2148
    %v2150 = vsel %vm743, %v2147, 0.0
    %2151 = vadd.xlane.f32.xlu0 %v2150
    %v2152 = vpop.xlane.xlu0 %2151
    %v2153 = vsel %vm743, %v2149, 0.0
    %2154 = vadd.xlane.f32.xlu0 %v2153
    %v2155 = vpop.xlane.xlu0 %2154
    %v2156 = vrcp.pop %v2152
    %v2157 = vrcp.pop %v2155
    %v2158 = vmul.f32 %v2147, %v2156
    %v2159 = vmul.f32 %v2149, %v2157
    %2160 = vrot.lane.b32.xlu0 %v639, 56
    %v2161 = vpop.permute.xlu0 %2160
    %2162 = vrot.lane.b32.xlu0 %v644, 56
    %v2163 = vpop.permute.xlu0 %2162
    %v2167 = vsel %vm743, %v2158, 0
    %v2170 = vsel %vm743, %v2159, 0
    %2172 = vmatprep.subr.mxu0 0.0
    %2173 = vmatpush1.msra.mxu0 0.0
    %2174 = vmatprep.subr.mxu0 0.0
    %2175 = vmatpush1.msra.mxu0 0.0
    %2176 = vmatprep.subr.mxu0 0.0
    %2177 = vmatpush1.msra.mxu0 0.0
    %2178 = vmatprep.subr.mxu0 0.0
    %2179 = vmatpush1.msra.mxu0 0.0
    %2180 = vmatprep.subr.mxu0 0.0
    %2181 = vmatpush1.msra.mxu0 0.0
    %2182 = vmatprep.subr.mxu0 0.0
    %2183 = vmatpush1.msra.mxu0 0.0
    %2184 = vmatprep.subr.mxu0 0.0
    %2185 = vmatpush1.msra.mxu0 0.0
    %2186 = vmatprep.subr.mxu0 0.0
    %2187 = vmatpush1.msra.mxu0 0.0
    %2188 = vmatprep.subr.mxu0 0.0
    %2189 = vmatpush1.msra.mxu0 0.0
    %2190 = vmatprep.subr.mxu0 0.0
    %2191 = vmatpush1.msra.mxu0 0.0
    %2192 = vmatprep.subr.mxu0 0.0
    %2193 = vmatpush1.msra.mxu0 0.0
    %2194 = vmatprep.subr.mxu0 0.0
    %2195 = vmatpush1.msra.mxu0 0.0
    %2196 = vmatprep.subr.mxu0 0.0
    %2197 = vmatpush1.msra.mxu0 0.0
    %2198 = vmatprep.subr.mxu0 0.0
    %2199 = vmatpush1.msra.mxu0 0.0
    %2200 = vmatprep.subr.mxu0 0.0
    %2201 = vmatpush1.msra.mxu0 %v2163
    %2202 = vmatprep.subr.mxu0 0.0
    %2203 = vmatpush1.msra.mxu0 %v2161
    %2204 = vmatprep.subr.mxu0 0.0
    %2205 = vmatpush2.msra.mxu0 0.0
    %2206 = vmatprep.subr.mxu0 0.0
    %2207 = vmatpush2.msra.mxu0 0.0
    %2208 = vmatprep.subr.mxu0 0.0
    %2209 = vmatpush2.msra.mxu0 0.0
    %2210 = vmatprep.subr.mxu0 0.0
    %2211 = vmatpush2.msra.mxu0 0.0
    %2212 = vmatprep.subr.mxu0 0.0
    %2213 = vmatpush2.msra.mxu0 0.0
    %2214 = vmatprep.subr.mxu0 0.0
    %2215 = vmatpush2.msra.mxu0 0.0
    %2216 = vmatprep.subr.mxu0 0.0
    %2217 = vmatpush2.msra.mxu0 0.0
    %2218 = vmatprep.subr.mxu0 0.0
    %2219 = vmatpush2.msra.mxu0 0.0
    %2220 = vmatprep.subr.mxu0 0.0
    %2221 = vmatpush2.msra.mxu0 0.0
    %2222 = vmatprep.subr.mxu0 0.0
    %2223 = vmatpush2.msra.mxu0 0.0
    %2224 = vmatprep.subr.mxu0 0.0
    %2225 = vmatpush2.msra.mxu0 0.0
    %2226 = vmatprep.subr.mxu0 0.0
    %2227 = vmatpush2.msra.mxu0 0.0
    %2228 = vmatprep.subr.mxu0 0.0
    %2229 = vmatpush2.msra.mxu0 0.0
    %2230 = vmatprep.subr.mxu0 0.0
    %2231 = vmatpush2.msra.mxu0 0.0
    %2232 = vmatprep.subr.mxu0 0.0
    %2233 = vmatpush2.msra.mxu0 0.0
    %2234 = vmatprep.subr.mxu0 0.0
    %2235 = vmatpush2.msra.mxu0 0.0
    %2236 = vmatprep.mubr.f32.mxu0 0.0
    %2237 = vmatmul.mubr.f32.gmra.mxu0 %v2167
    %v2238 = vpop.f32.mrf.mxu0
    %v2239 = vadd.f32 0.0, %v2238
    %v2240 = vpop.f32.mrf.mxu0
    %2241 = vmatprep.mubr.f32.mxu0 0.0
    %2242 = vmatmul.mubr.f32.gmra.mxu0 %v2170
    %v2243 = vpop.f32.mrf.mxu0
    %v2244 = vadd.f32 0.0, %v2243
    %v2245 = vpop.f32.mrf.mxu0
    %2246 = vdwg.mxu0
    %v2248 = vsel %vm657, %v2239, 0
    %v2251 = vsel %vm657, %v2244, 0
    %2253 = vmatprep.subr.mxu0 0.0
    %2254 = vmatpush1.msra.mxu0 0.0
    %2255 = vmatprep.subr.mxu0 0.0
    %2256 = vmatpush1.msra.mxu0 0.0
    %2257 = vmatprep.subr.mxu0 0.0
    %2258 = vmatpush1.msra.mxu0 0.0
    %2259 = vmatprep.subr.mxu0 0.0
    %2260 = vmatpush1.msra.mxu0 0.0
    %2261 = vmatprep.subr.mxu0 0.0
    %2262 = vmatpush1.msra.mxu0 0.0
    %2263 = vmatprep.subr.mxu0 0.0
    %2264 = vmatpush1.msra.mxu0 0.0
    %2265 = vmatprep.subr.mxu0 0.0
    %2266 = vmatpush1.msra.mxu0 0.0
    %2267 = vmatprep.subr.mxu0 0.0
    %2268 = vmatpush1.msra.mxu0 0.0
    %2269 = vmatprep.subr.mxu0 0.0
    %2270 = vmatpush1.msra.mxu0 0.0
    %2271 = vmatprep.subr.mxu0 0.0
    %2272 = vmatpush1.msra.mxu0 0.0
    %2273 = vmatprep.subr.mxu0 0.0
    %2274 = vmatpush1.msra.mxu0 0.0
    %2275 = vmatprep.subr.mxu0 0.0
    %2276 = vmatpush1.msra.mxu0 0.0
    %2277 = vmatprep.subr.mxu0 0.0
    %2278 = vmatpush1.msra.mxu0 0.0
    %2279 = vmatprep.subr.mxu0 0.0
    %2280 = vmatpush1.msra.mxu0 0.0
    %2281 = vmatprep.subr.mxu0 0.0
    %2282 = vmatpush1.msra.mxu0 0.0
    %2283 = vmatprep.subr.mxu0 0.0
    %2284 = vmatpush1.msra.mxu0 %v648
    %2285 = vmatprep.subr.mxu0 0.0
    %2286 = vmatpush2.msra.mxu0 0.0
    %2287 = vmatprep.subr.mxu0 0.0
    %2288 = vmatpush2.msra.mxu0 0.0
    %2289 = vmatprep.subr.mxu0 0.0
    %2290 = vmatpush2.msra.mxu0 0.0
    %2291 = vmatprep.subr.mxu0 0.0
    %2292 = vmatpush2.msra.mxu0 0.0
    %2293 = vmatprep.subr.mxu0 0.0
    %2294 = vmatpush2.msra.mxu0 0.0
    %2295 = vmatprep.subr.mxu0 0.0
    %2296 = vmatpush2.msra.mxu0 0.0
    %2297 = vmatprep.subr.mxu0 0.0
    %2298 = vmatpush2.msra.mxu0 0.0
    %2299 = vmatprep.subr.mxu0 0.0
    %2300 = vmatpush2.msra.mxu0 0.0
    %2301 = vmatprep.subr.mxu0 0.0
    %2302 = vmatpush2.msra.mxu0 0.0
    %2303 = vmatprep.subr.mxu0 0.0
    %2304 = vmatpush2.msra.mxu0 0.0
    %2305 = vmatprep.subr.mxu0 0.0
    %2306 = vmatpush2.msra.mxu0 0.0
    %2307 = vmatprep.subr.mxu0 0.0
    %2308 = vmatpush2.msra.mxu0 0.0
    %2309 = vmatprep.subr.mxu0 0.0
    %2310 = vmatpush2.msra.mxu0 0.0
    %2311 = vmatprep.subr.mxu0 0.0
    %2312 = vmatpush2.msra.mxu0 0.0
    %2313 = vmatprep.subr.mxu0 0.0
    %2314 = vmatpush2.msra.mxu0 0.0
    %2315 = vmatprep.subr.mxu0 0.0
    %2316 = vmatpush2.msra.mxu0 0.0
    %2317 = vmatprep.mubr.f32.mxu0 0.0
    %2318 = vmatmul.mubr.f32.gmra.mxu0 %v2248
    %v2319 = vpop.f32.mrf.mxu0
    %v2320 = vadd.f32 0.0, %v2319
    %v2321 = vpop.f32.mrf.mxu0
    %2322 = vmatprep.mubr.f32.mxu0 0.0
    %2323 = vmatmul.mubr.f32.gmra.mxu0 %v2251
    %v2324 = vpop.f32.mrf.mxu0
    %v2325 = vadd.f32 0.0, %v2324
    %v2326 = vpop.f32.mrf.mxu0
    %2327 = vdwg.mxu0
    %v2329 = vsel %vm657, %v2037, 0
    %v2332 = vsel %vm657, %v2042, 0
    %2334 = vmatprep.subr.mxu0 0.0
    %2335 = vmatpush1.msra.mxu0 0.0
    %2336 = vmatprep.subr.mxu0 0.0
    %2337 = vmatpush1.msra.mxu0 0.0
    %2338 = vmatprep.subr.mxu0 0.0
    %2339 = vmatpush1.msra.mxu0 0.0
    %2340 = vmatprep.subr.mxu0 0.0
    %2341 = vmatpush1.msra.mxu0 0.0
    %2342 = vmatprep.subr.mxu0 0.0
    %2343 = vmatpush1.msra.mxu0 0.0
    %2344 = vmatprep.subr.mxu0 0.0
    %2345 = vmatpush1.msra.mxu0 0.0
    %2346 = vmatprep.subr.mxu0 0.0
    %2347 = vmatpush1.msra.mxu0 0.0
    %2348 = vmatprep.subr.mxu0 0.0
    %2349 = vmatpush1.msra.mxu0 0.0
    %2350 = vmatprep.subr.mxu0 0.0
    %2351 = vmatpush1.msra.mxu0 0.0
    %2352 = vmatprep.subr.mxu0 0.0
    %2353 = vmatpush1.msra.mxu0 0.0
    %2354 = vmatprep.subr.mxu0 0.0
    %2355 = vmatpush1.msra.mxu0 0.0
    %2356 = vmatprep.subr.mxu0 0.0
    %2357 = vmatpush1.msra.mxu0 0.0
    %2358 = vmatprep.subr.mxu0 0.0
    %2359 = vmatpush1.msra.mxu0 0.0
    %2360 = vmatprep.subr.mxu0 0.0
    %2361 = vmatpush1.msra.mxu0 0.0
    %2362 = vmatprep.subr.mxu0 0.0
    %2363 = vmatpush1.msra.mxu0 0.0
    %2364 = vmatprep.subr.mxu0 0.0
    %2365 = vmatpush1.msra.mxu0 %v647
    %2366 = vmatprep.subr.mxu0 0.0
    %2367 = vmatpush2.msra.mxu0 0.0
    %2368 = vmatprep.subr.mxu0 0.0
    %2369 = vmatpush2.msra.mxu0 0.0
    %2370 = vmatprep.subr.mxu0 0.0
    %2371 = vmatpush2.msra.mxu0 0.0
    %2372 = vmatprep.subr.mxu0 0.0
    %2373 = vmatpush2.msra.mxu0 0.0
    %2374 = vmatprep.subr.mxu0 0.0
    %2375 = vmatpush2.msra.mxu0 0.0
    %2376 = vmatprep.subr.mxu0 0.0
    %2377 = vmatpush2.msra.mxu0 0.0
    %2378 = vmatprep.subr.mxu0 0.0
    %2379 = vmatpush2.msra.mxu0 0.0
    %2380 = vmatprep.subr.mxu0 0.0
    %2381 = vmatpush2.msra.mxu0 0.0
    %2382 = vmatprep.subr.mxu0 0.0
    %2383 = vmatpush2.msra.mxu0 0.0
    %2384 = vmatprep.subr.mxu0 0.0
    %2385 = vmatpush2.msra.mxu0 0.0
    %2386 = vmatprep.subr.mxu0 0.0
    %2387 = vmatpush2.msra.mxu0 0.0
    %2388 = vmatprep.subr.mxu0 0.0
    %2389 = vmatpush2.msra.mxu0 0.0
    %2390 = vmatprep.subr.mxu0 0.0
    %2391 = vmatpush2.msra.mxu0 0.0
    %2392 = vmatprep.subr.mxu0 0.0
    %2393 = vmatpush2.msra.mxu0 0.0
    %2394 = vmatprep.subr.mxu0 0.0
    %2395 = vmatpush2.msra.mxu0 0.0
    %2396 = vmatprep.subr.mxu0 0.0
    %2397 = vmatpush2.msra.mxu0 0.0
    %2398 = vmatprep.mubr.f32.mxu0 0.0
    %2399 = vmatmul.mubr.f32.gmra.mxu0 %v2329
    %v2400 = vpop.f32.mrf.mxu0
    %v2401 = vadd.f32 %v2320, %v2400
    %v2402 = vpop.f32.mrf.mxu0
    %2403 = vmatprep.mubr.f32.mxu0 0.0
    %2404 = vmatmul.mubr.f32.gmra.mxu0 %v2332
    %v2405 = vpop.f32.mrf.mxu0
    %v2406 = vadd.f32 %v2325, %v2405
    %v2407 = vpop.f32.mrf.mxu0
    %2408 = vdwg.mxu0
    %2409 = vrot.lane.b32.xlu0 %v639, 112
    %v2410 = vpop.permute.xlu0 %2409
    %2411 = vrot.lane.b32.xlu0 %v644, 112
    %v2412 = vpop.permute.xlu0 %2411
    %2413 = vrot.lane.b32.xlu0 %v639, 80
    %v2414 = vpop.permute.xlu0 %2413
    %2415 = vrot.lane.b32.xlu0 %v644, 80
    %v2416 = vpop.permute.xlu0 %2415
    %v2417 = vsel %vm657, %v2410, 0
    %v2419 = vsel %vm657, %v2412, 0
    %v2421 = vsel %vm657, %v2414, 0
    %v2423 = vsel %vm657, %v2416, 0
    %2425 = vmatprep.subr.mxu0 0.0
    %2426 = vmatpush1.xpose.msra.mxu0 0.0
    %2427 = vmatprep.subr.mxu0 0.0
    %2428 = vmatpush1.xpose.msra.mxu0 0.0
    %2429 = vmatprep.subr.mxu0 0.0
    %2430 = vmatpush1.xpose.msra.mxu0 0.0
    %2431 = vmatprep.subr.mxu0 0.0
    %2432 = vmatpush1.xpose.msra.mxu0 0.0
    %2433 = vmatprep.subr.mxu0 0.0
    %2434 = vmatpush1.xpose.msra.mxu0 0.0
    %2435 = vmatprep.subr.mxu0 0.0
    %2436 = vmatpush1.xpose.msra.mxu0 0.0
    %2437 = vmatprep.subr.mxu0 0.0
    %2438 = vmatpush1.xpose.msra.mxu0 0.0
    %2439 = vmatprep.subr.mxu0 0.0
    %2440 = vmatpush1.xpose.msra.mxu0 0.0
    %2441 = vmatprep.subr.mxu0 0.0
    %2442 = vmatpush1.xpose.msra.mxu0 0.0
    %2443 = vmatprep.subr.mxu0 0.0
    %2444 = vmatpush1.xpose.msra.mxu0 0.0
    %2445 = vmatprep.subr.mxu0 0.0
    %2446 = vmatpush1.xpose.msra.mxu0 0.0
    %2447 = vmatprep.subr.mxu0 0.0
    %2448 = vmatpush1.xpose.msra.mxu0 0.0
    %2449 = vmatprep.subr.mxu0 0.0
    %2450 = vmatpush1.xpose.msra.mxu0 0.0
    %2451 = vmatprep.subr.mxu0 0.0
    %2452 = vmatpush1.xpose.msra.mxu0 0.0
    %2453 = vmatprep.subr.mxu0 0.0
    %2454 = vmatpush1.xpose.msra.mxu0 %v2423
    %2455 = vmatprep.subr.mxu0 0.0
    %2456 = vmatpush1.xpose.msra.mxu0 %v2421
    %2457 = vmatprep.subr.mxu0 0.0
    %2458 = vmatpush2.xpose.msra.mxu0 0.0
    %2459 = vmatprep.subr.mxu0 0.0
    %2460 = vmatpush2.xpose.msra.mxu0 0.0
    %2461 = vmatprep.subr.mxu0 0.0
    %2462 = vmatpush2.xpose.msra.mxu0 0.0
    %2463 = vmatprep.subr.mxu0 0.0
    %2464 = vmatpush2.xpose.msra.mxu0 0.0
    %2465 = vmatprep.subr.mxu0 0.0
    %2466 = vmatpush2.xpose.msra.mxu0 0.0
    %2467 = vmatprep.subr.mxu0 0.0
    %2468 = vmatpush2.xpose.msra.mxu0 0.0
    %2469 = vmatprep.subr.mxu0 0.0
    %2470 = vmatpush2.xpose.msra.mxu0 0.0
    %2471 = vmatprep.subr.mxu0 0.0
    %2472 = vmatpush2.xpose.msra.mxu0 0.0
    %2473 = vmatprep.subr.mxu0 0.0
    %2474 = vmatpush2.xpose.msra.mxu0 0.0
    %2475 = vmatprep.subr.mxu0 0.0
    %2476 = vmatpush2.xpose.msra.mxu0 0.0
    %2477 = vmatprep.subr.mxu0 0.0
    %2478 = vmatpush2.xpose.msra.mxu0 0.0
    %2479 = vmatprep.subr.mxu0 0.0
    %2480 = vmatpush2.xpose.msra.mxu0 0.0
    %2481 = vmatprep.subr.mxu0 0.0
    %2482 = vmatpush2.xpose.msra.mxu0 0.0
    %2483 = vmatprep.subr.mxu0 0.0
    %2484 = vmatpush2.xpose.msra.mxu0 0.0
    %2485 = vmatprep.subr.mxu0 0.0
    %2486 = vmatpush2.xpose.msra.mxu0 0.0
    %2487 = vmatprep.subr.mxu0 0.0
    %2488 = vmatpush2.xpose.msra.mxu0 0.0
    %2489 = vmatprep.mubr.f32.mxu0 0.0
    %2490 = vmatmul.mubr.f32.gmra.mxu0 %v2417
    %v2491 = vpop.f32.mrf.mxu0
    %v2492 = vadd.f32 0.0, %v2491
    %v2493 = vpop.f32.mrf.mxu0
    %2494 = vmatprep.mubr.f32.mxu0 0.0
    %2495 = vmatmul.mubr.f32.gmra.mxu0 %v2419
    %v2496 = vpop.f32.mrf.mxu0
    %v2497 = vadd.f32 0.0, %v2496
    %v2498 = vpop.f32.mrf.mxu0
    %2499 = vdwg.mxu0
    %v2500 = vmul.f32 %v2492, 0.35355338
    %v2501 = vmul.f32 %v2497, 0.35355338
    %v2502 = vsel %vm743, %v2500, -inf
    %2503 = vmax.xlane.f32.xlu0 %v2502
    %v2504 = vpop.xlane.xlu0 %2503
    %v2505 = vsel %vm743, %v2501, -inf
    %2506 = vmax.xlane.f32.xlu0 %v2505
    %v2507 = vpop.xlane.xlu0 %2506
    %v2508 = vsub.f32 %v2500, %v2504
    %v2509 = vsub.f32 %v2501, %v2507
    %v2510 = vmul.f32 %v2508, 1.442695
    %v2511 = vpow.pop %v2510
    %v2512 = vmul.f32 %v2509, 1.442695
    %v2513 = vpow.pop %v2512
    %v2514 = vsel %vm743, %v2511, 0.0
    %2515 = vadd.xlane.f32.xlu0 %v2514
    %v2516 = vpop.xlane.xlu0 %2515
    %v2517 = vsel %vm743, %v2513, 0.0
    %2518 = vadd.xlane.f32.xlu0 %v2517
    %v2519 = vpop.xlane.xlu0 %2518
    %v2520 = vrcp.pop %v2516
    %v2521 = vrcp.pop %v2519
    %v2522 = vmul.f32 %v2511, %v2520
    %v2523 = vmul.f32 %v2513, %v2521
    %2524 = vrot.lane.b32.xlu0 %v639, 48
    %v2525 = vpop.permute.xlu0 %2524
    %2526 = vrot.lane.b32.xlu0 %v644, 48
    %v2527 = vpop.permute.xlu0 %2526
    %v2531 = vsel %vm743, %v2522, 0
    %v2534 = vsel %vm743, %v2523, 0
    %2536 = vmatprep.subr.mxu0 0.0
    %2537 = vmatpush1.msra.mxu0 0.0
    %2538 = vmatprep.subr.mxu0 0.0
    %2539 = vmatpush1.msra.mxu0 0.0
    %2540 = vmatprep.subr.mxu0 0.0
    %2541 = vmatpush1.msra.mxu0 0.0
    %2542 = vmatprep.subr.mxu0 0.0
    %2543 = vmatpush1.msra.mxu0 0.0
    %2544 = vmatprep.subr.mxu0 0.0
    %2545 = vmatpush1.msra.mxu0 0.0
    %2546 = vmatprep.subr.mxu0 0.0
    %2547 = vmatpush1.msra.mxu0 0.0
    %2548 = vmatprep.subr.mxu0 0.0
    %2549 = vmatpush1.msra.mxu0 0.0
    %2550 = vmatprep.subr.mxu0 0.0
    %2551 = vmatpush1.msra.mxu0 0.0
    %2552 = vmatprep.subr.mxu0 0.0
    %2553 = vmatpush1.msra.mxu0 0.0
    %2554 = vmatprep.subr.mxu0 0.0
    %2555 = vmatpush1.msra.mxu0 0.0
    %2556 = vmatprep.subr.mxu0 0.0
    %2557 = vmatpush1.msra.mxu0 0.0
    %2558 = vmatprep.subr.mxu0 0.0
    %2559 = vmatpush1.msra.mxu0 0.0
    %2560 = vmatprep.subr.mxu0 0.0
    %2561 = vmatpush1.msra.mxu0 0.0
    %2562 = vmatprep.subr.mxu0 0.0
    %2563 = vmatpush1.msra.mxu0 0.0
    %2564 = vmatprep.subr.mxu0 0.0
    %2565 = vmatpush1.msra.mxu0 %v2527
    %2566 = vmatprep.subr.mxu0 0.0
    %2567 = vmatpush1.msra.mxu0 %v2525
    %2568 = vmatprep.subr.mxu0 0.0
    %2569 = vmatpush2.msra.mxu0 0.0
    %2570 = vmatprep.subr.mxu0 0.0
    %2571 = vmatpush2.msra.mxu0 0.0
    %2572 = vmatprep.subr.mxu0 0.0
    %2573 = vmatpush2.msra.mxu0 0.0
    %2574 = vmatprep.subr.mxu0 0.0
    %2575 = vmatpush2.msra.mxu0 0.0
    %2576 = vmatprep.subr.mxu0 0.0
    %2577 = vmatpush2.msra.mxu0 0.0
    %2578 = vmatprep.subr.mxu0 0.0
    %2579 = vmatpush2.msra.mxu0 0.0
    %2580 = vmatprep.subr.mxu0 0.0
    %2581 = vmatpush2.msra.mxu0 0.0
    %2582 = vmatprep.subr.mxu0 0.0
    %2583 = vmatpush2.msra.mxu0 0.0
    %2584 = vmatprep.subr.mxu0 0.0
    %2585 = vmatpush2.msra.mxu0 0.0
    %2586 = vmatprep.subr.mxu0 0.0
    %2587 = vmatpush2.msra.mxu0 0.0
    %2588 = vmatprep.subr.mxu0 0.0
    %2589 = vmatpush2.msra.mxu0 0.0
    %2590 = vmatprep.subr.mxu0 0.0
    %2591 = vmatpush2.msra.mxu0 0.0
    %2592 = vmatprep.subr.mxu0 0.0
    %2593 = vmatpush2.msra.mxu0 0.0
    %2594 = vmatprep.subr.mxu0 0.0
    %2595 = vmatpush2.msra.mxu0 0.0
    %2596 = vmatprep.subr.mxu0 0.0
    %2597 = vmatpush2.msra.mxu0 0.0
    %2598 = vmatprep.subr.mxu0 0.0
    %2599 = vmatpush2.msra.mxu0 0.0
    %2600 = vmatprep.mubr.f32.mxu0 0.0
    %2601 = vmatmul.mubr.f32.gmra.mxu0 %v2531
    %v2602 = vpop.f32.mrf.mxu0
    %v2603 = vadd.f32 0.0, %v2602
    %v2604 = vpop.f32.mrf.mxu0
    %2605 = vmatprep.mubr.f32.mxu0 0.0
    %2606 = vmatmul.mubr.f32.gmra.mxu0 %v2534
    %v2607 = vpop.f32.mrf.mxu0
    %v2608 = vadd.f32 0.0, %v2607
    %v2609 = vpop.f32.mrf.mxu0
    %2610 = vdwg.mxu0
    %v2612 = vsel %vm657, %v2603, 0
    %v2615 = vsel %vm657, %v2608, 0
    %2617 = vmatprep.subr.mxu0 0.0
    %2618 = vmatpush1.msra.mxu0 0.0
    %2619 = vmatprep.subr.mxu0 0.0
    %2620 = vmatpush1.msra.mxu0 0.0
    %2621 = vmatprep.subr.mxu0 0.0
    %2622 = vmatpush1.msra.mxu0 0.0
    %2623 = vmatprep.subr.mxu0 0.0
    %2624 = vmatpush1.msra.mxu0 0.0
    %2625 = vmatprep.subr.mxu0 0.0
    %2626 = vmatpush1.msra.mxu0 0.0
    %2627 = vmatprep.subr.mxu0 0.0
    %2628 = vmatpush1.msra.mxu0 0.0
    %2629 = vmatprep.subr.mxu0 0.0
    %2630 = vmatpush1.msra.mxu0 0.0
    %2631 = vmatprep.subr.mxu0 0.0
    %2632 = vmatpush1.msra.mxu0 0.0
    %2633 = vmatprep.subr.mxu0 0.0
    %2634 = vmatpush1.msra.mxu0 0.0
    %2635 = vmatprep.subr.mxu0 0.0
    %2636 = vmatpush1.msra.mxu0 0.0
    %2637 = vmatprep.subr.mxu0 0.0
    %2638 = vmatpush1.msra.mxu0 0.0
    %2639 = vmatprep.subr.mxu0 0.0
    %2640 = vmatpush1.msra.mxu0 0.0
    %2641 = vmatprep.subr.mxu0 0.0
    %2642 = vmatpush1.msra.mxu0 0.0
    %2643 = vmatprep.subr.mxu0 0.0
    %2644 = vmatpush1.msra.mxu0 0.0
    %2645 = vmatprep.subr.mxu0 0.0
    %2646 = vmatpush1.msra.mxu0 0.0
    %2647 = vmatprep.subr.mxu0 0.0
    %2648 = vmatpush1.msra.mxu0 %v649
    %2649 = vmatprep.subr.mxu0 0.0
    %2650 = vmatpush2.msra.mxu0 0.0
    %2651 = vmatprep.subr.mxu0 0.0
    %2652 = vmatpush2.msra.mxu0 0.0
    %2653 = vmatprep.subr.mxu0 0.0
    %2654 = vmatpush2.msra.mxu0 0.0
    %2655 = vmatprep.subr.mxu0 0.0
    %2656 = vmatpush2.msra.mxu0 0.0
    %2657 = vmatprep.subr.mxu0 0.0
    %2658 = vmatpush2.msra.mxu0 0.0
    %2659 = vmatprep.subr.mxu0 0.0
    %2660 = vmatpush2.msra.mxu0 0.0
    %2661 = vmatprep.subr.mxu0 0.0
    %2662 = vmatpush2.msra.mxu0 0.0
    %2663 = vmatprep.subr.mxu0 0.0
    %2664 = vmatpush2.msra.mxu0 0.0
    %2665 = vmatprep.subr.mxu0 0.0
    %2666 = vmatpush2.msra.mxu0 0.0
    %2667 = vmatprep.subr.mxu0 0.0
    %2668 = vmatpush2.msra.mxu0 0.0
    %2669 = vmatprep.subr.mxu0 0.0
    %2670 = vmatpush2.msra.mxu0 0.0
    %2671 = vmatprep.subr.mxu0 0.0
    %2672 = vmatpush2.msra.mxu0 0.0
    %2673 = vmatprep.subr.mxu0 0.0
    %2674 = vmatpush2.msra.mxu0 0.0
    %2675 = vmatprep.subr.mxu0 0.0
    %2676 = vmatpush2.msra.mxu0 0.0
    %2677 = vmatprep.subr.mxu0 0.0
    %2678 = vmatpush2.msra.mxu0 0.0
    %2679 = vmatprep.subr.mxu0 0.0
    %2680 = vmatpush2.msra.mxu0 0.0
    %2681 = vmatprep.mubr.f32.mxu0 0.0
    %2682 = vmatmul.mubr.f32.gmra.mxu0 %v2612
    %v2683 = vpop.f32.mrf.mxu0
    %v2684 = vadd.f32 0.0, %v2683
    %v2685 = vpop.f32.mrf.mxu0
    %2686 = vmatprep.mubr.f32.mxu0 0.0
    %2687 = vmatmul.mubr.f32.gmra.mxu0 %v2615
    %v2688 = vpop.f32.mrf.mxu0
    %v2689 = vadd.f32 0.0, %v2688
    %v2690 = vpop.f32.mrf.mxu0
    %2691 = vdwg.mxu0
    %v2692 = vadd.f32 %v2401, %v2684
    %v2693 = vadd.f32 %v2406, %v2689
    %2694 = vrot.lane.b32.xlu0 %v639, 104
    %v2695 = vpop.permute.xlu0 %2694
    %2696 = vrot.lane.b32.xlu0 %v644, 104
    %v2697 = vpop.permute.xlu0 %2696
    %2698 = vrot.lane.b32.xlu0 %v639, 72
    %v2699 = vpop.permute.xlu0 %2698
    %2700 = vrot.lane.b32.xlu0 %v644, 72
    %v2701 = vpop.permute.xlu0 %2700
    %v2702 = vsel %vm657, %v2695, 0
    %v2704 = vsel %vm657, %v2697, 0
    %v2706 = vsel %vm657, %v2699, 0
    %v2708 = vsel %vm657, %v2701, 0
    %2710 = vmatprep.subr.mxu0 0.0
    %2711 = vmatpush1.xpose.msra.mxu0 0.0
    %2712 = vmatprep.subr.mxu0 0.0
    %2713 = vmatpush1.xpose.msra.mxu0 0.0
    %2714 = vmatprep.subr.mxu0 0.0
    %2715 = vmatpush1.xpose.msra.mxu0 0.0
    %2716 = vmatprep.subr.mxu0 0.0
    %2717 = vmatpush1.xpose.msra.mxu0 0.0
    %2718 = vmatprep.subr.mxu0 0.0
    %2719 = vmatpush1.xpose.msra.mxu0 0.0
    %2720 = vmatprep.subr.mxu0 0.0
    %2721 = vmatpush1.xpose.msra.mxu0 0.0
    %2722 = vmatprep.subr.mxu0 0.0
    %2723 = vmatpush1.xpose.msra.mxu0 0.0
    %2724 = vmatprep.subr.mxu0 0.0
    %2725 = vmatpush1.xpose.msra.mxu0 0.0
    %2726 = vmatprep.subr.mxu0 0.0
    %2727 = vmatpush1.xpose.msra.mxu0 0.0
    %2728 = vmatprep.subr.mxu0 0.0
    %2729 = vmatpush1.xpose.msra.mxu0 0.0
    %2730 = vmatprep.subr.mxu0 0.0
    %2731 = vmatpush1.xpose.msra.mxu0 0.0
    %2732 = vmatprep.subr.mxu0 0.0
    %2733 = vmatpush1.xpose.msra.mxu0 0.0
    %2734 = vmatprep.subr.mxu0 0.0
    %2735 = vmatpush1.xpose.msra.mxu0 0.0
    %2736 = vmatprep.subr.mxu0 0.0
    %2737 = vmatpush1.xpose.msra.mxu0 0.0
    %2738 = vmatprep.subr.mxu0 0.0
    %2739 = vmatpush1.xpose.msra.mxu0 %v2708
    %2740 = vmatprep.subr.mxu0 0.0
    %2741 = vmatpush1.xpose.msra.mxu0 %v2706
    %2742 = vmatprep.subr.mxu0 0.0
    %2743 = vmatpush2.xpose.msra.mxu0 0.0
    %2744 = vmatprep.subr.mxu0 0.0
    %2745 = vmatpush2.xpose.msra.mxu0 0.0
    %2746 = vmatprep.subr.mxu0 0.0
    %2747 = vmatpush2.xpose.msra.mxu0 0.0
    %2748 = vmatprep.subr.mxu0 0.0
    %2749 = vmatpush2.xpose.msra.mxu0 0.0
    %2750 = vmatprep.subr.mxu0 0.0
    %2751 = vmatpush2.xpose.msra.mxu0 0.0
    %2752 = vmatprep.subr.mxu0 0.0
    %2753 = vmatpush2.xpose.msra.mxu0 0.0
    %2754 = vmatprep.subr.mxu0 0.0
    %2755 = vmatpush2.xpose.msra.mxu0 0.0
    %2756 = vmatprep.subr.mxu0 0.0
    %2757 = vmatpush2.xpose.msra.mxu0 0.0
    %2758 = vmatprep.subr.mxu0 0.0
    %2759 = vmatpush2.xpose.msra.mxu0 0.0
    %2760 = vmatprep.subr.mxu0 0.0
    %2761 = vmatpush2.xpose.msra.mxu0 0.0
    %2762 = vmatprep.subr.mxu0 0.0
    %2763 = vmatpush2.xpose.msra.mxu0 0.0
    %2764 = vmatprep.subr.mxu0 0.0
    %2765 = vmatpush2.xpose.msra.mxu0 0.0
    %2766 = vmatprep.subr.mxu0 0.0
    %2767 = vmatpush2.xpose.msra.mxu0 0.0
    %2768 = vmatprep.subr.mxu0 0.0
    %2769 = vmatpush2.xpose.msra.mxu0 0.0
    %2770 = vmatprep.subr.mxu0 0.0
    %2771 = vmatpush2.xpose.msra.mxu0 0.0
    %2772 = vmatprep.subr.mxu0 0.0
    %2773 = vmatpush2.xpose.msra.mxu0 0.0
    %2774 = vmatprep.mubr.f32.mxu0 0.0
    %2775 = vmatmul.mubr.f32.gmra.mxu0 %v2702
    %v2776 = vpop.f32.mrf.mxu0
    %v2777 = vadd.f32 0.0, %v2776
    %v2778 = vpop.f32.mrf.mxu0
    %2779 = vmatprep.mubr.f32.mxu0 0.0
    %2780 = vmatmul.mubr.f32.gmra.mxu0 %v2704
    %v2781 = vpop.f32.mrf.mxu0
    %v2782 = vadd.f32 0.0, %v2781
    %v2783 = vpop.f32.mrf.mxu0
    %2784 = vdwg.mxu0
    %v2785 = vmul.f32 %v2777, 0.35355338
    %v2786 = vmul.f32 %v2782, 0.35355338
    %v2787 = vsel %vm743, %v2785, -inf
    %2788 = vmax.xlane.f32.xlu0 %v2787
    %v2789 = vpop.xlane.xlu0 %2788
    %v2790 = vsel %vm743, %v2786, -inf
    %2791 = vmax.xlane.f32.xlu0 %v2790
    %v2792 = vpop.xlane.xlu0 %2791
    %v2793 = vsub.f32 %v2785, %v2789
    %v2794 = vsub.f32 %v2786, %v2792
    %v2795 = vmul.f32 %v2793, 1.442695
    %v2796 = vpow.pop %v2795
    %v2797 = vmul.f32 %v2794, 1.442695
    %v2798 = vpow.pop %v2797
    %v2799 = vsel %vm743, %v2796, 0.0
    %2800 = vadd.xlane.f32.xlu0 %v2799
    %v2801 = vpop.xlane.xlu0 %2800
    %v2802 = vsel %vm743, %v2798, 0.0
    %2803 = vadd.xlane.f32.xlu0 %v2802
    %v2804 = vpop.xlane.xlu0 %2803
    %v2805 = vrcp.pop %v2801
    %v2806 = vrcp.pop %v2804
    %v2807 = vmul.f32 %v2796, %v2805
    %v2808 = vmul.f32 %v2798, %v2806
    %2809 = vrot.lane.b32.xlu0 %v639, 40
    %v2810 = vpop.permute.xlu0 %2809
    %2811 = vrot.lane.b32.xlu0 %v644, 40
    %v2812 = vpop.permute.xlu0 %2811
    %v2816 = vsel %vm743, %v2807, 0
    %v2819 = vsel %vm743, %v2808, 0
    %2821 = vmatprep.subr.mxu0 0.0
    %2822 = vmatpush1.msra.mxu0 0.0
    %2823 = vmatprep.subr.mxu0 0.0
    %2824 = vmatpush1.msra.mxu0 0.0
    %2825 = vmatprep.subr.mxu0 0.0
    %2826 = vmatpush1.msra.mxu0 0.0
    %2827 = vmatprep.subr.mxu0 0.0
    %2828 = vmatpush1.msra.mxu0 0.0
    %2829 = vmatprep.subr.mxu0 0.0
    %2830 = vmatpush1.msra.mxu0 0.0
    %2831 = vmatprep.subr.mxu0 0.0
    %2832 = vmatpush1.msra.mxu0 0.0
    %2833 = vmatprep.subr.mxu0 0.0
    %2834 = vmatpush1.msra.mxu0 0.0
    %2835 = vmatprep.subr.mxu0 0.0
    %2836 = vmatpush1.msra.mxu0 0.0
    %2837 = vmatprep.subr.mxu0 0.0
    %2838 = vmatpush1.msra.mxu0 0.0
    %2839 = vmatprep.subr.mxu0 0.0
    %2840 = vmatpush1.msra.mxu0 0.0
    %2841 = vmatprep.subr.mxu0 0.0
    %2842 = vmatpush1.msra.mxu0 0.0
    %2843 = vmatprep.subr.mxu0 0.0
    %2844 = vmatpush1.msra.mxu0 0.0
    %2845 = vmatprep.subr.mxu0 0.0
    %2846 = vmatpush1.msra.mxu0 0.0
    %2847 = vmatprep.subr.mxu0 0.0
    %2848 = vmatpush1.msra.mxu0 0.0
    %2849 = vmatprep.subr.mxu0 0.0
    %2850 = vmatpush1.msra.mxu0 %v2812
    %2851 = vmatprep.subr.mxu0 0.0
    %2852 = vmatpush1.msra.mxu0 %v2810
    %2853 = vmatprep.subr.mxu0 0.0
    %2854 = vmatpush2.msra.mxu0 0.0
    %2855 = vmatprep.subr.mxu0 0.0
    %2856 = vmatpush2.msra.mxu0 0.0
    %2857 = vmatprep.subr.mxu0 0.0
    %2858 = vmatpush2.msra.mxu0 0.0
    %2859 = vmatprep.subr.mxu0 0.0
    %2860 = vmatpush2.msra.mxu0 0.0
    %2861 = vmatprep.subr.mxu0 0.0
    %2862 = vmatpush2.msra.mxu0 0.0
    %2863 = vmatprep.subr.mxu0 0.0
    %2864 = vmatpush2.msra.mxu0 0.0
    %2865 = vmatprep.subr.mxu0 0.0
    %2866 = vmatpush2.msra.mxu0 0.0
    %2867 = vmatprep.subr.mxu0 0.0
    %2868 = vmatpush2.msra.mxu0 0.0
    %2869 = vmatprep.subr.mxu0 0.0
    %2870 = vmatpush2.msra.mxu0 0.0
    %2871 = vmatprep.subr.mxu0 0.0
    %2872 = vmatpush2.msra.mxu0 0.0
    %2873 = vmatprep.subr.mxu0 0.0
    %2874 = vmatpush2.msra.mxu0 0.0
    %2875 = vmatprep.subr.mxu0 0.0
    %2876 = vmatpush2.msra.mxu0 0.0
    %2877 = vmatprep.subr.mxu0 0.0
    %2878 = vmatpush2.msra.mxu0 0.0
    %2879 = vmatprep.subr.mxu0 0.0
    %2880 = vmatpush2.msra.mxu0 0.0
    %2881 = vmatprep.subr.mxu0 0.0
    %2882 = vmatpush2.msra.mxu0 0.0
    %2883 = vmatprep.subr.mxu0 0.0
    %2884 = vmatpush2.msra.mxu0 0.0
    %2885 = vmatprep.mubr.f32.mxu0 0.0
    %2886 = vmatmul.mubr.f32.gmra.mxu0 %v2816
    %v2887 = vpop.f32.mrf.mxu0
    %v2888 = vadd.f32 0.0, %v2887
    %v2889 = vpop.f32.mrf.mxu0
    %2890 = vmatprep.mubr.f32.mxu0 0.0
    %2891 = vmatmul.mubr.f32.gmra.mxu0 %v2819
    %v2892 = vpop.f32.mrf.mxu0
    %v2893 = vadd.f32 0.0, %v2892
    %v2894 = vpop.f32.mrf.mxu0
    %2895 = vdwg.mxu0
    %v2897 = vsel %vm657, %v2888, 0
    %v2900 = vsel %vm657, %v2893, 0
    %2902 = vmatprep.subr.mxu0 0.0
    %2903 = vmatpush1.msra.mxu0 0.0
    %2904 = vmatprep.subr.mxu0 0.0
    %2905 = vmatpush1.msra.mxu0 0.0
    %2906 = vmatprep.subr.mxu0 0.0
    %2907 = vmatpush1.msra.mxu0 0.0
    %2908 = vmatprep.subr.mxu0 0.0
    %2909 = vmatpush1.msra.mxu0 0.0
    %2910 = vmatprep.subr.mxu0 0.0
    %2911 = vmatpush1.msra.mxu0 0.0
    %2912 = vmatprep.subr.mxu0 0.0
    %2913 = vmatpush1.msra.mxu0 0.0
    %2914 = vmatprep.subr.mxu0 0.0
    %2915 = vmatpush1.msra.mxu0 0.0
    %2916 = vmatprep.subr.mxu0 0.0
    %2917 = vmatpush1.msra.mxu0 0.0
    %2918 = vmatprep.subr.mxu0 0.0
    %2919 = vmatpush1.msra.mxu0 0.0
    %2920 = vmatprep.subr.mxu0 0.0
    %2921 = vmatpush1.msra.mxu0 0.0
    %2922 = vmatprep.subr.mxu0 0.0
    %2923 = vmatpush1.msra.mxu0 0.0
    %2924 = vmatprep.subr.mxu0 0.0
    %2925 = vmatpush1.msra.mxu0 0.0
    %2926 = vmatprep.subr.mxu0 0.0
    %2927 = vmatpush1.msra.mxu0 0.0
    %2928 = vmatprep.subr.mxu0 0.0
    %2929 = vmatpush1.msra.mxu0 0.0
    %2930 = vmatprep.subr.mxu0 0.0
    %2931 = vmatpush1.msra.mxu0 0.0
    %2932 = vmatprep.subr.mxu0 0.0
    %2933 = vmatpush1.msra.mxu0 %v650
    %2934 = vmatprep.subr.mxu0 0.0
    %2935 = vmatpush2.msra.mxu0 0.0
    %2936 = vmatprep.subr.mxu0 0.0
    %2937 = vmatpush2.msra.mxu0 0.0
    %2938 = vmatprep.subr.mxu0 0.0
    %2939 = vmatpush2.msra.mxu0 0.0
    %2940 = vmatprep.subr.mxu0 0.0
    %2941 = vmatpush2.msra.mxu0 0.0
    %2942 = vmatprep.subr.mxu0 0.0
    %2943 = vmatpush2.msra.mxu0 0.0
    %2944 = vmatprep.subr.mxu0 0.0
    %2945 = vmatpush2.msra.mxu0 0.0
    %2946 = vmatprep.subr.mxu0 0.0
    %2947 = vmatpush2.msra.mxu0 0.0
    %2948 = vmatprep.subr.mxu0 0.0
    %2949 = vmatpush2.msra.mxu0 0.0
    %2950 = vmatprep.subr.mxu0 0.0
    %2951 = vmatpush2.msra.mxu0 0.0
    %2952 = vmatprep.subr.mxu0 0.0
    %2953 = vmatpush2.msra.mxu0 0.0
    %2954 = vmatprep.subr.mxu0 0.0
    %2955 = vmatpush2.msra.mxu0 0.0
    %2956 = vmatprep.subr.mxu0 0.0
    %2957 = vmatpush2.msra.mxu0 0.0
    %2958 = vmatprep.subr.mxu0 0.0
    %2959 = vmatpush2.msra.mxu0 0.0
    %2960 = vmatprep.subr.mxu0 0.0
    %2961 = vmatpush2.msra.mxu0 0.0
    %2962 = vmatprep.subr.mxu0 0.0
    %2963 = vmatpush2.msra.mxu0 0.0
    %2964 = vmatprep.subr.mxu0 0.0
    %2965 = vmatpush2.msra.mxu0 0.0
    %2966 = vmatprep.mubr.f32.mxu0 0.0
    %2967 = vmatmul.mubr.f32.gmra.mxu0 %v2897
    %v2968 = vpop.f32.mrf.mxu0
    %v2969 = vadd.f32 0.0, %v2968
    %v2970 = vpop.f32.mrf.mxu0
    %2971 = vmatprep.mubr.f32.mxu0 0.0
    %2972 = vmatmul.mubr.f32.gmra.mxu0 %v2900
    %v2973 = vpop.f32.mrf.mxu0
    %v2974 = vadd.f32 0.0, %v2973
    %v2975 = vpop.f32.mrf.mxu0
    %2976 = vdwg.mxu0
    %v2977 = vadd.f32 %v2692, %v2969
    %v2978 = vadd.f32 %v2693, %v2974
    %v2979 = vadd.f32 %v537, %v2977
    %v2980 = vadd.f32 %v538, %v2978
    %v2981 = vld [vmem:[%s19] sm:$0x1]
    %v2983 = vlaneseq
    %v2984 = vshrl.u32 %v2983, 7
    %v2985 = vsub.s32 0, %v2984
    %v2986 = vrot.slane %v2981, %v2985
    %v2988 = vadd.f32 %v2979, %v2986
    %v2989 = vadd.f32 %v2980, %v2986
    %v2990 = vld [vmem:[%s21] sm:$0x1]
    %v2991 = vld [vmem:[%s23] sm:$0x1]
    %v2992 = vsel %vm289, %v2988, 0.0
    %2993 = vadd.xlane.f32.xlu0 %v2992
    %v2994 = vpop.xlane.xlu0 %2993
    %v2995 = vsel %vm289, %v2989, 0.0
    %2996 = vadd.xlane.f32.xlu0 %v2995
    %v2997 = vpop.xlane.xlu0 %2996
    %v2998 = vmul.f32 %v2994, %v1806
    %v2999 = vmul.f32 %v2997, %v1806
    %v3000 = vsub.f32 %v2988, %v2998
    %v3001 = vsub.f32 %v2989, %v2999
    %v3002 = vmul.f32 %v3000, %v3000
    %v3003 = vmul.f32 %v3001, %v3001
    %v3004 = vsel %vm289, %v3002, 0.0
    %3005 = vadd.xlane.f32.xlu0 %v3004
    %v3006 = vpop.xlane.xlu0 %3005
    %v3007 = vsel %vm289, %v3003, 0.0
    %3008 = vadd.xlane.f32.xlu0 %v3007
    %v3009 = vpop.xlane.xlu0 %3008
    %v3010 = vmul.f32 %v3006, %v1806
    %v3011 = vmul.f32 %v3009, %v1806
    %v3012 = vadd.f32 %v3010, 1e-05
    %v3013 = vadd.f32 %v3011, 1e-05
    %v3014 = vrsqrt.pop %v3012
    %v3015 = vrsqrt.pop %v3013
    %v3016 = vmul.f32 %v3000, %v3014
    %v3017 = vmul.f32 %v3001, %v3015
    %v3019 = vlaneseq
    %v3020 = vshrl.u32 %v3019, 7
    %v3021 = vsub.s32 0, %v3020
    %v3022 = vrot.slane %v2990, %v3021
    %v3024 = vmul.f32 %v3016, %v3022
    %v3025 = vmul.f32 %v3017, %v3022
    %v3027 = vlaneseq
    %v3028 = vshrl.u32 %v3027, 7
    %v3029 = vsub.s32 0, %v3028
    %v3030 = vrot.slane %v2991, %v3029
    %v3032 = vadd.f32 %v3024, %v3030
    %v3033 = vadd.f32 %v3025, %v3030
    %3034 = vst.msk [vmem:[#allocation2 + $0x10] sm:$0xff] %vm289, %v3032
    %3035 = vst.msk [vmem:[#allocation2 + $0x18] sm:$0xff] %vm289, %v3033
    %v3036 = vld [vmem:[#allocation2] sm:$0xff]
    %v3037 = vld [vmem:[#allocation2 + $0x8] sm:$0xff]
    %v3038 = vld [vmem:[#allocation2 + $0x10] sm:$0xff]
    %v3039 = vld [vmem:[#allocation2 + $0x18] sm:$0xff]
    %v3040 = vld [vmem:[#allocation3] sm:$0xff]
    %v3041 = vld [vmem:[#allocation3 + $0x8] sm:$0xff]
    %v3042 = vld [vmem:[#allocation3 + $0x10] sm:$0xff]
    %v3043 = vld [vmem:[#allocation3 + $0x18] sm:$0xff]
    %v3044 = vld [vmem:[%s27] sm:$0x1]
    %v3046 = vlaneseq
    %v3047 = vshrl.u32 %v3046, 7
    %v3048 = vsub.s32 0, %v3047
    %v3049 = vrot.slane %v3044, %v3048
    %v3052 = vsel %vm289, %v3036, 0
    %v3055 = vsel %vm289, %v3037, 0
    %v3058 = vsel %vm289, %v3038, 0
    %v3061 = vsel %vm289, %v3039, 0
    %3063 = vmatprep.subr.mxu0 0.0
    %3064 = vmatpush1.msra.mxu0 0.0
    %3065 = vmatprep.subr.mxu0 0.0
    %3066 = vmatpush1.msra.mxu0 0.0
    %3067 = vmatprep.subr.mxu0 0.0
    %3068 = vmatpush1.msra.mxu0 0.0
    %3069 = vmatprep.subr.mxu0 0.0
    %3070 = vmatpush1.msra.mxu0 0.0
    %3071 = vmatprep.subr.mxu0 0.0
    %3072 = vmatpush1.msra.mxu0 0.0
    %3073 = vmatprep.subr.mxu0 0.0
    %3074 = vmatpush1.msra.mxu0 0.0
    %3075 = vmatprep.subr.mxu0 0.0
    %3076 = vmatpush1.msra.mxu0 0.0
    %3077 = vmatprep.subr.mxu0 0.0
    %3078 = vmatpush1.msra.mxu0 0.0
    %3079 = vmatprep.subr.mxu0 0.0
    %3080 = vmatpush1.msra.mxu0 0.0
    %3081 = vmatprep.subr.mxu0 0.0
    %3082 = vmatpush1.msra.mxu0 0.0
    %3083 = vmatprep.subr.mxu0 0.0
    %3084 = vmatpush1.msra.mxu0 0.0
    %3085 = vmatprep.subr.mxu0 0.0
    %3086 = vmatpush1.msra.mxu0 0.0
    %3087 = vmatprep.subr.mxu0 0.0
    %3088 = vmatpush1.msra.mxu0 %v3043
    %3089 = vmatprep.subr.mxu0 0.0
    %3090 = vmatpush1.msra.mxu0 %v3042
    %3091 = vmatprep.subr.mxu0 0.0
    %3092 = vmatpush1.msra.mxu0 %v3041
    %3093 = vmatprep.subr.mxu0 0.0
    %3094 = vmatpush1.msra.mxu0 %v3040
    %3095 = vmatprep.subr.mxu0 0.0
    %3096 = vmatpush2.msra.mxu0 0.0
    %3097 = vmatprep.subr.mxu0 0.0
    %3098 = vmatpush2.msra.mxu0 0.0
    %3099 = vmatprep.subr.mxu0 0.0
    %3100 = vmatpush2.msra.mxu0 0.0
    %3101 = vmatprep.subr.mxu0 0.0
    %3102 = vmatpush2.msra.mxu0 0.0
    %3103 = vmatprep.subr.mxu0 0.0
    %3104 = vmatpush2.msra.mxu0 0.0
    %3105 = vmatprep.subr.mxu0 0.0
    %3106 = vmatpush2.msra.mxu0 0.0
    %3107 = vmatprep.subr.mxu0 0.0
    %3108 = vmatpush2.msra.mxu0 0.0
    %3109 = vmatprep.subr.mxu0 0.0
    %3110 = vmatpush2.msra.mxu0 0.0
    %3111 = vmatprep.subr.mxu0 0.0
    %3112 = vmatpush2.msra.mxu0 0.0
    %3113 = vmatprep.subr.mxu0 0.0
    %3114 = vmatpush2.msra.mxu0 0.0
    %3115 = vmatprep.subr.mxu0 0.0
    %3116 = vmatpush2.msra.mxu0 0.0
    %3117 = vmatprep.subr.mxu0 0.0
    %3118 = vmatpush2.msra.mxu0 0.0
    %3119 = vmatprep.subr.mxu0 0.0
    %3120 = vmatpush2.msra.mxu0 0.0
    %3121 = vmatprep.subr.mxu0 0.0
    %3122 = vmatpush2.msra.mxu0 0.0
    %3123 = vmatprep.subr.mxu0 0.0
    %3124 = vmatpush2.msra.mxu0 0.0
    %3125 = vmatprep.subr.mxu0 0.0
    %3126 = vmatpush2.msra.mxu0 0.0
    %3127 = vmatprep.mubr.f32.mxu0 0.0
    %3128 = vmatmul.mubr.f32.gmra.mxu0 %v3052
    %v3129 = vpop.f32.mrf.mxu0
    %v3130 = vadd.f32 %v3049, %v3129
    %v3131 = vpop.f32.mrf.mxu0
    %3132 = vmatprep.mubr.f32.mxu0 0.0
    %3133 = vmatmul.mubr.f32.gmra.mxu0 %v3055
    %v3134 = vpop.f32.mrf.mxu0
    %v3135 = vadd.f32 %v3049, %v3134
    %v3136 = vpop.f32.mrf.mxu0
    %3137 = vmatprep.mubr.f32.mxu0 0.0
    %3138 = vmatmul.mubr.f32.gmra.mxu0 %v3058
    %v3139 = vpop.f32.mrf.mxu0
    %v3140 = vadd.f32 %v3049, %v3139
    %v3141 = vpop.f32.mrf.mxu0
    %3142 = vmatprep.mubr.f32.mxu0 0.0
    %3143 = vmatmul.mubr.f32.gmra.mxu0 %v3061
    %v3144 = vpop.f32.mrf.mxu0
    %v3145 = vadd.f32 %v3049, %v3144
    %v3146 = vpop.f32.mrf.mxu0
    %3147 = vdwg.mxu0
    %v3148 = vmul.f32 %v3130, 0.5
    %v3149 = vmul.f32 %v3135, 0.5
    %v3150 = vmul.f32 %v3140, 0.5
    %v3151 = vmul.f32 %v3145, 0.5
    %v3152 = vmul.f32 %v3130, 0.70710677
    %v3153 = vmul.f32 %v3135, 0.70710677
    %v3154 = vmul.f32 %v3140, 0.70710677
    %v3155 = vmul.f32 %v3145, 0.70710677
    %v3156 = verf.f32.pop %v3152
    %v3157 = verf.f32.pop %v3153
    %v3158 = verf.f32.pop %v3154
    %v3159 = verf.f32.pop %v3155
    %v3160 = vadd.f32 %v3156, 1.0
    %v3161 = vadd.f32 %v3157, 1.0
    %v3162 = vadd.f32 %v3158, 1.0
    %v3163 = vadd.f32 %v3159, 1.0
    %v3164 = vmul.f32 %v3148, %v3160
    %v3165 = vmul.f32 %v3149, %v3161
    %v3166 = vmul.f32 %v3150, %v3162
    %v3167 = vmul.f32 %v3151, %v3163
    %v3168 = vld [vmem:[%s29] sm:$0xff]
    %v3169 = vld [vmem:[%s29 + $0x8] sm:$0xff]
    %v3170 = vld [vmem:[%s29 + $0x10] sm:$0xff]
    %v3171 = vld [vmem:[%s29 + $0x18] sm:$0xff]
    %v3172 = vld [vmem:[%s29 + $0x20] sm:$0xff]
    %v3173 = vld [vmem:[%s29 + $0x28] sm:$0xff]
    %v3174 = vld [vmem:[%s29 + $0x30] sm:$0xff]
    %v3175 = vld [vmem:[%s29 + $0x38] sm:$0xff]
    %v3176 = vld [vmem:[%s31] sm:$0x1]
    %v3178 = vlaneseq
    %v3179 = vshrl.u32 %v3178, 7
    %v3180 = vsub.s32 0, %v3179
    %v3181 = vrot.slane %v3176, %v3180
    %vm3183 = vcmask 523264
    %v3185 = vsel %vm3183, %v3164, 0
    %v3188 = vsel %vm3183, %v3165, 0
    %v3191 = vsel %vm3183, %v3166, 0
    %v3194 = vsel %vm3183, %v3167, 0
    %3196 = vmatprep.subr.mxu0 0.0
    %3197 = vmatpush1.msra.mxu0 0.0
    %3198 = vmatprep.subr.mxu0 0.0
    %3199 = vmatpush1.msra.mxu0 0.0
    %3200 = vmatprep.subr.mxu0 0.0
    %3201 = vmatpush1.msra.mxu0 0.0
    %3202 = vmatprep.subr.mxu0 0.0
    %3203 = vmatpush1.msra.mxu0 0.0
    %3204 = vmatprep.subr.mxu0 0.0
    %3205 = vmatpush1.msra.mxu0 0.0
    %3206 = vmatprep.subr.mxu0 0.0
    %3207 = vmatpush1.msra.mxu0 0.0
    %3208 = vmatprep.subr.mxu0 0.0
    %3209 = vmatpush1.msra.mxu0 0.0
    %3210 = vmatprep.subr.mxu0 0.0
    %3211 = vmatpush1.msra.mxu0 0.0
    %3212 = vmatprep.subr.mxu0 0.0
    %3213 = vmatpush1.msra.mxu0 %v3175
    %3214 = vmatprep.subr.mxu0 0.0
    %3215 = vmatpush1.msra.mxu0 %v3174
    %3216 = vmatprep.subr.mxu0 0.0
    %3217 = vmatpush1.msra.mxu0 %v3173
    %3218 = vmatprep.subr.mxu0 0.0
    %3219 = vmatpush1.msra.mxu0 %v3172
    %3220 = vmatprep.subr.mxu0 0.0
    %3221 = vmatpush1.msra.mxu0 %v3171
    %3222 = vmatprep.subr.mxu0 0.0
    %3223 = vmatpush1.msra.mxu0 %v3170
    %3224 = vmatprep.subr.mxu0 0.0
    %3225 = vmatpush1.msra.mxu0 %v3169
    %3226 = vmatprep.subr.mxu0 0.0
    %3227 = vmatpush1.msra.mxu0 %v3168
    %3228 = vmatprep.subr.mxu0 0.0
    %3229 = vmatpush2.msra.mxu0 0.0
    %3230 = vmatprep.subr.mxu0 0.0
    %3231 = vmatpush2.msra.mxu0 0.0
    %3232 = vmatprep.subr.mxu0 0.0
    %3233 = vmatpush2.msra.mxu0 0.0
    %3234 = vmatprep.subr.mxu0 0.0
    %3235 = vmatpush2.msra.mxu0 0.0
    %3236 = vmatprep.subr.mxu0 0.0
    %3237 = vmatpush2.msra.mxu0 0.0
    %3238 = vmatprep.subr.mxu0 0.0
    %3239 = vmatpush2.msra.mxu0 0.0
    %3240 = vmatprep.subr.mxu0 0.0
    %3241 = vmatpush2.msra.mxu0 0.0
    %3242 = vmatprep.subr.mxu0 0.0
    %3243 = vmatpush2.msra.mxu0 0.0
    %3244 = vmatprep.subr.mxu0 0.0
    %3245 = vmatpush2.msra.mxu0 0.0
    %3246 = vmatprep.subr.mxu0 0.0
    %3247 = vmatpush2.msra.mxu0 0.0
    %3248 = vmatprep.subr.mxu0 0.0
    %3249 = vmatpush2.msra.mxu0 0.0
    %3250 = vmatprep.subr.mxu0 0.0
    %3251 = vmatpush2.msra.mxu0 0.0
    %3252 = vmatprep.subr.mxu0 0.0
    %3253 = vmatpush2.msra.mxu0 0.0
    %3254 = vmatprep.subr.mxu0 0.0
    %3255 = vmatpush2.msra.mxu0 0.0
    %3256 = vmatprep.subr.mxu0 0.0
    %3257 = vmatpush2.msra.mxu0 0.0
    %3258 = vmatprep.subr.mxu0 0.0
    %3259 = vmatpush2.msra.mxu0 0.0
    %3260 = vmatprep.mubr.f32.mxu0 0.0
    %3261 = vmatmul.mubr.f32.gmra.mxu0 %v3185
    %v3262 = vpop.f32.mrf.mxu0
    %v3263 = vadd.f32 %v3181, %v3262
    %v3264 = vpop.f32.mrf.mxu0
    %3265 = vmatprep.mubr.f32.mxu0 0.0
    %3266 = vmatmul.mubr.f32.gmra.mxu0 %v3188
    %v3267 = vpop.f32.mrf.mxu0
    %v3268 = vadd.f32 %v3181, %v3267
    %v3269 = vpop.f32.mrf.mxu0
    %3270 = vmatprep.mubr.f32.mxu0 0.0
    %3271 = vmatmul.mubr.f32.gmra.mxu0 %v3191
    %v3272 = vpop.f32.mrf.mxu0
    %v3273 = vadd.f32 %v3181, %v3272
    %v3274 = vpop.f32.mrf.mxu0
    %3275 = vmatprep.mubr.f32.mxu0 0.0
    %3276 = vmatmul.mubr.f32.gmra.mxu0 %v3194
    %v3277 = vpop.f32.mrf.mxu0
    %v3278 = vadd.f32 %v3181, %v3277
    %v3279 = vpop.f32.mrf.mxu0
    %3280 = vdwg.mxu0
    %v3281 = vadd.f32 %v3036, %v3263
    %v3282 = vadd.f32 %v3037, %v3268
    %v3283 = vadd.f32 %v3038, %v3273
    %v3284 = vadd.f32 %v3039, %v3278
    %v3285 = vld [vmem:[%s33] sm:$0x1]
    %v3286 = vld [vmem:[%s35] sm:$0x1]
    %v3287 = vsel %vm289, %v3281, 0.0
    %3288 = vadd.xlane.f32.xlu0 %v3287
    %v3289 = vpop.xlane.xlu0 %3288
    %v3290 = vsel %vm289, %v3282, 0.0
    %3291 = vadd.xlane.f32.xlu0 %v3290
    %v3292 = vpop.xlane.xlu0 %3291
    %v3293 = vsel %vm289, %v3283, 0.0
    %3294 = vadd.xlane.f32.xlu0 %v3293
    %v3295 = vpop.xlane.xlu0 %3294
    %v3296 = vsel %vm289, %v3284, 0.0
    %3297 = vadd.xlane.f32.xlu0 %v3296
    %v3298 = vpop.xlane.xlu0 %3297
    %v3299 = vmul.f32 %v3289, %v1806
    %v3300 = vmul.f32 %v3292, %v1806
    %v3301 = vmul.f32 %v3295, %v1806
    %v3302 = vmul.f32 %v3298, %v1806
    %v3303 = vsub.f32 %v3281, %v3299
    %v3304 = vsub.f32 %v3282, %v3300
    %v3305 = vsub.f32 %v3283, %v3301
    %v3306 = vsub.f32 %v3284, %v3302
    %v3307 = vmul.f32 %v3303, %v3303
    %v3308 = vmul.f32 %v3304, %v3304
    %v3309 = vmul.f32 %v3305, %v3305
    %v3310 = vmul.f32 %v3306, %v3306
    %v3311 = vsel %vm289, %v3307, 0.0
    %3312 = vadd.xlane.f32.xlu0 %v3311
    %v3313 = vpop.xlane.xlu0 %3312
    %v3314 = vsel %vm289, %v3308, 0.0
    %3315 = vadd.xlane.f32.xlu0 %v3314
    %v3316 = vpop.xlane.xlu0 %3315
    %v3317 = vsel %vm289, %v3309, 0.0
    %3318 = vadd.xlane.f32.xlu0 %v3317
    %v3319 = vpop.xlane.xlu0 %3318
    %v3320 = vsel %vm289, %v3310, 0.0
    %3321 = vadd.xlane.f32.xlu0 %v3320
    %v3322 = vpop.xlane.xlu0 %3321
    %v3323 = vmul.f32 %v3313, %v1806
    %v3324 = vmul.f32 %v3316, %v1806
    %v3325 = vmul.f32 %v3319, %v1806
    %v3326 = vmul.f32 %v3322, %v1806
    %v3327 = vadd.f32 %v3323, 1e-05
    %v3328 = vadd.f32 %v3324, 1e-05
    %v3329 = vadd.f32 %v3325, 1e-05
    %v3330 = vadd.f32 %v3326, 1e-05
    %v3331 = vrsqrt.pop %v3327
    %v3332 = vrsqrt.pop %v3328
    %v3333 = vrsqrt.pop %v3329
    %v3334 = vrsqrt.pop %v3330
    %v3335 = vmul.f32 %v3303, %v3331
    %v3336 = vmul.f32 %v3304, %v3332
    %v3337 = vmul.f32 %v3305, %v3333
    %v3338 = vmul.f32 %v3306, %v3334
    %v3340 = vlaneseq
    %v3341 = vshrl.u32 %v3340, 7
    %v3342 = vsub.s32 0, %v3341
    %v3343 = vrot.slane %v3285, %v3342
    %v3345 = vmul.f32 %v3335, %v3343
    %v3346 = vmul.f32 %v3336, %v3343
    %v3347 = vmul.f32 %v3337, %v3343
    %v3348 = vmul.f32 %v3338, %v3343
    %v3350 = vlaneseq
    %v3351 = vshrl.u32 %v3350, 7
    %v3352 = vsub.s32 0, %v3351
    %v3353 = vrot.slane %v3286, %v3352
    %v3355 = vadd.f32 %v3345, %v3353
    %v3356 = vadd.f32 %v3346, %v3353
    %v3357 = vadd.f32 %v3347, %v3353
    %v3358 = vadd.f32 %v3348, %v3353
    %3359 = vst.msk [vmem:[#allocation2] sm:$0xff] %vm289, %v3355
    %3360 = vst.msk [vmem:[#allocation2 + $0x8] sm:$0xff] %vm289, %v3356
    %3361 = vst.msk [vmem:[#allocation2 + $0x10] sm:$0xff] %vm289, %v3357
    %3362 = vst.msk [vmem:[#allocation2 + $0x18] sm:$0xff] %vm289, %v3358
    %v3363 = vld [vmem:[#allocation2] sm:$0xff]
    %v3364 = vld [vmem:[#allocation2 + $0x8] sm:$0xff]
    %v3365 = vld [vmem:[#allocation2 + $0x10] sm:$0xff]
    %v3366 = vld [vmem:[#allocation2 + $0x18] sm:$0xff]
    %v3367 = vld [vmem:[#allocation5] sm:$0xff]
    %v3368 = vld [vmem:[#allocation5 + $0x8] sm:$0xff]
    %v3369 = vld [vmem:[#allocation5 + $0x10] sm:$0xff]
    %v3370 = vld [vmem:[#allocation5 + $0x18] sm:$0xff]
    %v3371 = vld [vmem:[%s39] sm:$0x1]
    %v3373 = vlaneseq
    %v3374 = vshrl.u32 %v3373, 7
    %v3375 = vsub.s32 0, %v3374
    %v3376 = vrot.slane %v3371, %v3375
    %v3379 = vsel %vm289, %v3363, 0
    %v3382 = vsel %vm289, %v3364, 0
    %v3385 = vsel %vm289, %v3365, 0
    %v3388 = vsel %vm289, %v3366, 0
    %3390 = vmatprep.subr.mxu0 0.0
    %3391 = vmatpush1.msra.mxu0 0.0
    %3392 = vmatprep.subr.mxu0 0.0
    %3393 = vmatpush1.msra.mxu0 0.0
    %3394 = vmatprep.subr.mxu0 0.0
    %3395 = vmatpush1.msra.mxu0 0.0
    %3396 = vmatprep.subr.mxu0 0.0
    %3397 = vmatpush1.msra.mxu0 0.0
    %3398 = vmatprep.subr.mxu0 0.0
    %3399 = vmatpush1.msra.mxu0 0.0
    %3400 = vmatprep.subr.mxu0 0.0
    %3401 = vmatpush1.msra.mxu0 0.0
    %3402 = vmatprep.subr.mxu0 0.0
    %3403 = vmatpush1.msra.mxu0 0.0
    %3404 = vmatprep.subr.mxu0 0.0
    %3405 = vmatpush1.msra.mxu0 0.0
    %3406 = vmatprep.subr.mxu0 0.0
    %3407 = vmatpush1.msra.mxu0 0.0
    %3408 = vmatprep.subr.mxu0 0.0
    %3409 = vmatpush1.msra.mxu0 0.0
    %3410 = vmatprep.subr.mxu0 0.0
    %3411 = vmatpush1.msra.mxu0 0.0
    %3412 = vmatprep.subr.mxu0 0.0
    %3413 = vmatpush1.msra.mxu0 0.0
    %3414 = vmatprep.subr.mxu0 0.0
    %3415 = vmatpush1.msra.mxu0 %v3370
    %3416 = vmatprep.subr.mxu0 0.0
    %3417 = vmatpush1.msra.mxu0 %v3369
    %3418 = vmatprep.subr.mxu0 0.0
    %3419 = vmatpush1.msra.mxu0 %v3368
    %3420 = vmatprep.subr.mxu0 0.0
    %3421 = vmatpush1.msra.mxu0 %v3367
    %3422 = vmatprep.subr.mxu0 0.0
    %3423 = vmatpush2.msra.mxu0 0.0
    %3424 = vmatprep.subr.mxu0 0.0
    %3425 = vmatpush2.msra.mxu0 0.0
    %3426 = vmatprep.subr.mxu0 0.0
    %3427 = vmatpush2.msra.mxu0 0.0
    %3428 = vmatprep.subr.mxu0 0.0
    %3429 = vmatpush2.msra.mxu0 0.0
    %3430 = vmatprep.subr.mxu0 0.0
    %3431 = vmatpush2.msra.mxu0 0.0
    %3432 = vmatprep.subr.mxu0 0.0
    %3433 = vmatpush2.msra.mxu0 0.0
    %3434 = vmatprep.subr.mxu0 0.0
    %3435 = vmatpush2.msra.mxu0 0.0
    %3436 = vmatprep.subr.mxu0 0.0
    %3437 = vmatpush2.msra.mxu0 0.0
    %3438 = vmatprep.subr.mxu0 0.0
    %3439 = vmatpush2.msra.mxu0 0.0
    %3440 = vmatprep.subr.mxu0 0.0
    %3441 = vmatpush2.msra.mxu0 0.0
    %3442 = vmatprep.subr.mxu0 0.0
    %3443 = vmatpush2.msra.mxu0 0.0
    %3444 = vmatprep.subr.mxu0 0.0
    %3445 = vmatpush2.msra.mxu0 0.0
    %3446 = vmatprep.subr.mxu0 0.0
    %3447 = vmatpush2.msra.mxu0 0.0
    %3448 = vmatprep.subr.mxu0 0.0
    %3449 = vmatpush2.msra.mxu0 0.0
    %3450 = vmatprep.subr.mxu0 0.0
    %3451 = vmatpush2.msra.mxu0 0.0
    %3452 = vmatprep.subr.mxu0 0.0
    %3453 = vmatpush2.msra.mxu0 0.0
    %3454 = vmatprep.mubr.f32.mxu0 0.0
    %3455 = vmatmul.mubr.f32.gmra.mxu0 %v3379
    %v3456 = vpop.f32.mrf.mxu0
    %v3457 = vadd.f32 %v3376, %v3456
    %v3458 = vpop.f32.mrf.mxu0
    %3459 = vmatprep.mubr.f32.mxu0 0.0
    %3460 = vmatmul.mubr.f32.gmra.mxu0 %v3382
    %v3461 = vpop.f32.mrf.mxu0
    %v3462 = vadd.f32 %v3376, %v3461
    %v3463 = vpop.f32.mrf.mxu0
    %3464 = vmatprep.mubr.f32.mxu0 0.0
    %3465 = vmatmul.mubr.f32.gmra.mxu0 %v3385
    %v3466 = vpop.f32.mrf.mxu0
    %v3467 = vadd.f32 %v3376, %v3466
    %v3468 = vpop.f32.mrf.mxu0
    %3469 = vmatprep.mubr.f32.mxu0 0.0
    %3470 = vmatmul.mubr.f32.gmra.mxu0 %v3388
    %v3471 = vpop.f32.mrf.mxu0
    %v3472 = vadd.f32 %v3376, %v3471
    %v3473 = vpop.f32.mrf.mxu0
    %3474 = vdwg.mxu0
    %v3475 = vld [vmem:[#allocation7] sm:$0xff]
    %v3476 = vld [vmem:[#allocation7 + $0x8] sm:$0xff]
    %v3477 = vld [vmem:[#allocation7 + $0x10] sm:$0xff]
    %v3478 = vld [vmem:[#allocation7 + $0x18] sm:$0xff]
    %3481 = vrot.lane.b32.xlu0 %v3457, 96
    %v3482 = vpop.permute.xlu0 %3481
    %3483 = vrot.lane.b32.xlu0 %v3462, 96
    %v3484 = vpop.permute.xlu0 %3483
    %v3485 = vsel %vm657, %v3457, 0
    %v3487 = vsel %vm657, %v3462, 0
    %v3489 = vsel %vm657, %v3482, 0
    %v3491 = vsel %vm657, %v3484, 0
    %3493 = vmatprep.subr.mxu0 0.0
    %3494 = vmatpush1.xpose.msra.mxu0 0.0
    %3495 = vmatprep.subr.mxu0 0.0
    %3496 = vmatpush1.xpose.msra.mxu0 0.0
    %3497 = vmatprep.subr.mxu0 0.0
    %3498 = vmatpush1.xpose.msra.mxu0 0.0
    %3499 = vmatprep.subr.mxu0 0.0
    %3500 = vmatpush1.xpose.msra.mxu0 0.0
    %3501 = vmatprep.subr.mxu0 0.0
    %3502 = vmatpush1.xpose.msra.mxu0 0.0
    %3503 = vmatprep.subr.mxu0 0.0
    %3504 = vmatpush1.xpose.msra.mxu0 0.0
    %3505 = vmatprep.subr.mxu0 0.0
    %3506 = vmatpush1.xpose.msra.mxu0 0.0
    %3507 = vmatprep.subr.mxu0 0.0
    %3508 = vmatpush1.xpose.msra.mxu0 0.0
    %3509 = vmatprep.subr.mxu0 0.0
    %3510 = vmatpush1.xpose.msra.mxu0 0.0
    %3511 = vmatprep.subr.mxu0 0.0
    %3512 = vmatpush1.xpose.msra.mxu0 0.0
    %3513 = vmatprep.subr.mxu0 0.0
    %3514 = vmatpush1.xpose.msra.mxu0 0.0
    %3515 = vmatprep.subr.mxu0 0.0
    %3516 = vmatpush1.xpose.msra.mxu0 0.0
    %3517 = vmatprep.subr.mxu0 0.0
    %3518 = vmatpush1.xpose.msra.mxu0 0.0
    %3519 = vmatprep.subr.mxu0 0.0
    %3520 = vmatpush1.xpose.msra.mxu0 0.0
    %3521 = vmatprep.subr.mxu0 0.0
    %3522 = vmatpush1.xpose.msra.mxu0 %v3491
    %3523 = vmatprep.subr.mxu0 0.0
    %3524 = vmatpush1.xpose.msra.mxu0 %v3489
    %3525 = vmatprep.subr.mxu0 0.0
    %3526 = vmatpush2.xpose.msra.mxu0 0.0
    %3527 = vmatprep.subr.mxu0 0.0
    %3528 = vmatpush2.xpose.msra.mxu0 0.0
    %3529 = vmatprep.subr.mxu0 0.0
    %3530 = vmatpush2.xpose.msra.mxu0 0.0
    %3531 = vmatprep.subr.mxu0 0.0
    %3532 = vmatpush2.xpose.msra.mxu0 0.0
    %3533 = vmatprep.subr.mxu0 0.0
    %3534 = vmatpush2.xpose.msra.mxu0 0.0
    %3535 = vmatprep.subr.mxu0 0.0
    %3536 = vmatpush2.xpose.msra.mxu0 0.0
    %3537 = vmatprep.subr.mxu0 0.0
    %3538 = vmatpush2.xpose.msra.mxu0 0.0
    %3539 = vmatprep.subr.mxu0 0.0
    %3540 = vmatpush2.xpose.msra.mxu0 0.0
    %3541 = vmatprep.subr.mxu0 0.0
    %3542 = vmatpush2.xpose.msra.mxu0 0.0
    %3543 = vmatprep.subr.mxu0 0.0
    %3544 = vmatpush2.xpose.msra.mxu0 0.0
    %3545 = vmatprep.subr.mxu0 0.0
    %3546 = vmatpush2.xpose.msra.mxu0 0.0
    %3547 = vmatprep.subr.mxu0 0.0
    %3548 = vmatpush2.xpose.msra.mxu0 0.0
    %3549 = vmatprep.subr.mxu0 0.0
    %3550 = vmatpush2.xpose.msra.mxu0 0.0
    %3551 = vmatprep.subr.mxu0 0.0
    %3552 = vmatpush2.xpose.msra.mxu0 0.0
    %3553 = vmatprep.subr.mxu0 0.0
    %3554 = vmatpush2.xpose.msra.mxu0 0.0
    %3555 = vmatprep.subr.mxu0 0.0
    %3556 = vmatpush2.xpose.msra.mxu0 0.0
    %3557 = vmatprep.mubr.f32.mxu0 0.0
    %3558 = vmatmul.mubr.f32.gmra.mxu0 %v3485
    %v3559 = vpop.f32.mrf.mxu0
    %v3560 = vadd.f32 0.0, %v3559
    %v3561 = vpop.f32.mrf.mxu0
    %3562 = vmatprep.mubr.f32.mxu0 0.0
    %3563 = vmatmul.mubr.f32.gmra.mxu0 %v3487
    %v3564 = vpop.f32.mrf.mxu0
    %v3565 = vadd.f32 0.0, %v3564
    %v3566 = vpop.f32.mrf.mxu0
    %3567 = vdwg.mxu0
    %v3568 = vmul.f32 %v3560, 0.35355338
    %v3569 = vmul.f32 %v3565, 0.35355338
    %v3570 = vsel %vm743, %v3568, -inf
    %3571 = vmax.xlane.f32.xlu0 %v3570
    %v3572 = vpop.xlane.xlu0 %3571
    %v3573 = vsel %vm743, %v3569, -inf
    %3574 = vmax.xlane.f32.xlu0 %v3573
    %v3575 = vpop.xlane.xlu0 %3574
    %v3576 = vsub.f32 %v3568, %v3572
    %v3577 = vsub.f32 %v3569, %v3575
    %v3578 = vmul.f32 %v3576, 1.442695
    %v3579 = vpow.pop %v3578
    %v3580 = vmul.f32 %v3577, 1.442695
    %v3581 = vpow.pop %v3580
    %v3582 = vsel %vm743, %v3579, 0.0
    %3583 = vadd.xlane.f32.xlu0 %v3582
    %v3584 = vpop.xlane.xlu0 %3583
    %v3585 = vsel %vm743, %v3581, 0.0
    %3586 = vadd.xlane.f32.xlu0 %v3585
    %v3587 = vpop.xlane.xlu0 %3586
    %v3588 = vrcp.pop %v3584
    %v3589 = vrcp.pop %v3587
    %v3590 = vmul.f32 %v3579, %v3588
    %v3591 = vmul.f32 %v3581, %v3589
    %3592 = vrot.lane.b32.xlu0 %v3457, 64
    %v3593 = vpop.permute.xlu0 %3592
    %3594 = vrot.lane.b32.xlu0 %v3462, 64
    %v3595 = vpop.permute.xlu0 %3594
    %v3599 = vsel %vm743, %v3590, 0
    %v3602 = vsel %vm743, %v3591, 0
    %3604 = vmatprep.subr.mxu0 0.0
    %3605 = vmatpush1.msra.mxu0 0.0
    %3606 = vmatprep.subr.mxu0 0.0
    %3607 = vmatpush1.msra.mxu0 0.0
    %3608 = vmatprep.subr.mxu0 0.0
    %3609 = vmatpush1.msra.mxu0 0.0
    %3610 = vmatprep.subr.mxu0 0.0
    %3611 = vmatpush1.msra.mxu0 0.0
    %3612 = vmatprep.subr.mxu0 0.0
    %3613 = vmatpush1.msra.mxu0 0.0
    %3614 = vmatprep.subr.mxu0 0.0
    %3615 = vmatpush1.msra.mxu0 0.0
    %3616 = vmatprep.subr.mxu0 0.0
    %3617 = vmatpush1.msra.mxu0 0.0
    %3618 = vmatprep.subr.mxu0 0.0
    %3619 = vmatpush1.msra.mxu0 0.0
    %3620 = vmatprep.subr.mxu0 0.0
    %3621 = vmatpush1.msra.mxu0 0.0
    %3622 = vmatprep.subr.mxu0 0.0
    %3623 = vmatpush1.msra.mxu0 0.0
    %3624 = vmatprep.subr.mxu0 0.0
    %3625 = vmatpush1.msra.mxu0 0.0
    %3626 = vmatprep.subr.mxu0 0.0
    %3627 = vmatpush1.msra.mxu0 0.0
    %3628 = vmatprep.subr.mxu0 0.0
    %3629 = vmatpush1.msra.mxu0 0.0
    %3630 = vmatprep.subr.mxu0 0.0
    %3631 = vmatpush1.msra.mxu0 0.0
    %3632 = vmatprep.subr.mxu0 0.0
    %3633 = vmatpush1.msra.mxu0 %v3595
    %3634 = vmatprep.subr.mxu0 0.0
    %3635 = vmatpush1.msra.mxu0 %v3593
    %3636 = vmatprep.subr.mxu0 0.0
    %3637 = vmatpush2.msra.mxu0 0.0
    %3638 = vmatprep.subr.mxu0 0.0
    %3639 = vmatpush2.msra.mxu0 0.0
    %3640 = vmatprep.subr.mxu0 0.0
    %3641 = vmatpush2.msra.mxu0 0.0
    %3642 = vmatprep.subr.mxu0 0.0
    %3643 = vmatpush2.msra.mxu0 0.0
    %3644 = vmatprep.subr.mxu0 0.0
    %3645 = vmatpush2.msra.mxu0 0.0
    %3646 = vmatprep.subr.mxu0 0.0
    %3647 = vmatpush2.msra.mxu0 0.0
    %3648 = vmatprep.subr.mxu0 0.0
    %3649 = vmatpush2.msra.mxu0 0.0
    %3650 = vmatprep.subr.mxu0 0.0
    %3651 = vmatpush2.msra.mxu0 0.0
    %3652 = vmatprep.subr.mxu0 0.0
    %3653 = vmatpush2.msra.mxu0 0.0
    %3654 = vmatprep.subr.mxu0 0.0
    %3655 = vmatpush2.msra.mxu0 0.0
    %3656 = vmatprep.subr.mxu0 0.0
    %3657 = vmatpush2.msra.mxu0 0.0
    %3658 = vmatprep.subr.mxu0 0.0
    %3659 = vmatpush2.msra.mxu0 0.0
    %3660 = vmatprep.subr.mxu0 0.0
    %3661 = vmatpush2.msra.mxu0 0.0
    %3662 = vmatprep.subr.mxu0 0.0
    %3663 = vmatpush2.msra.mxu0 0.0
    %3664 = vmatprep.subr.mxu0 0.0
    %3665 = vmatpush2.msra.mxu0 0.0
    %3666 = vmatprep.subr.mxu0 0.0
    %3667 = vmatpush2.msra.mxu0 0.0
    %3668 = vmatprep.mubr.f32.mxu0 0.0
    %3669 = vmatmul.mubr.f32.gmra.mxu0 %v3599
    %v3670 = vpop.f32.mrf.mxu0
    %v3671 = vadd.f32 0.0, %v3670
    %v3672 = vpop.f32.mrf.mxu0
    %3673 = vmatprep.mubr.f32.mxu0 0.0
    %3674 = vmatmul.mubr.f32.gmra.mxu0 %v3602
    %v3675 = vpop.f32.mrf.mxu0
    %v3676 = vadd.f32 0.0, %v3675
    %v3677 = vpop.f32.mrf.mxu0
    %3678 = vdwg.mxu0
    %3679 = vrot.lane.b32.xlu0 %v3457, 120
    %v3680 = vpop.permute.xlu0 %3679
    %3681 = vrot.lane.b32.xlu0 %v3462, 120
    %v3682 = vpop.permute.xlu0 %3681
    %3683 = vrot.lane.b32.xlu0 %v3457, 88
    %v3684 = vpop.permute.xlu0 %3683
    %3685 = vrot.lane.b32.xlu0 %v3462, 88
    %v3686 = vpop.permute.xlu0 %3685
    %v3687 = vsel %vm657, %v3680, 0
    %v3689 = vsel %vm657, %v3682, 0
    %v3691 = vsel %vm657, %v3684, 0
    %v3693 = vsel %vm657, %v3686, 0
    %3695 = vmatprep.subr.mxu0 0.0
    %3696 = vmatpush1.xpose.msra.mxu0 0.0
    %3697 = vmatprep.subr.mxu0 0.0
    %3698 = vmatpush1.xpose.msra.mxu0 0.0
    %3699 = vmatprep.subr.mxu0 0.0
    %3700 = vmatpush1.xpose.msra.mxu0 0.0
    %3701 = vmatprep.subr.mxu0 0.0
    %3702 = vmatpush1.xpose.msra.mxu0 0.0
    %3703 = vmatprep.subr.mxu0 0.0
    %3704 = vmatpush1.xpose.msra.mxu0 0.0
    %3705 = vmatprep.subr.mxu0 0.0
    %3706 = vmatpush1.xpose.msra.mxu0 0.0
    %3707 = vmatprep.subr.mxu0 0.0
    %3708 = vmatpush1.xpose.msra.mxu0 0.0
    %3709 = vmatprep.subr.mxu0 0.0
    %3710 = vmatpush1.xpose.msra.mxu0 0.0
    %3711 = vmatprep.subr.mxu0 0.0
    %3712 = vmatpush1.xpose.msra.mxu0 0.0
    %3713 = vmatprep.subr.mxu0 0.0
    %3714 = vmatpush1.xpose.msra.mxu0 0.0
    %3715 = vmatprep.subr.mxu0 0.0
    %3716 = vmatpush1.xpose.msra.mxu0 0.0
    %3717 = vmatprep.subr.mxu0 0.0
    %3718 = vmatpush1.xpose.msra.mxu0 0.0
    %3719 = vmatprep.subr.mxu0 0.0
    %3720 = vmatpush1.xpose.msra.mxu0 0.0
    %3721 = vmatprep.subr.mxu0 0.0
    %3722 = vmatpush1.xpose.msra.mxu0 0.0
    %3723 = vmatprep.subr.mxu0 0.0
    %3724 = vmatpush1.xpose.msra.mxu0 %v3693
    %3725 = vmatprep.subr.mxu0 0.0
    %3726 = vmatpush1.xpose.msra.mxu0 %v3691
    %3727 = vmatprep.subr.mxu0 0.0
    %3728 = vmatpush2.xpose.msra.mxu0 0.0
    %3729 = vmatprep.subr.mxu0 0.0
    %3730 = vmatpush2.xpose.msra.mxu0 0.0
    %3731 = vmatprep.subr.mxu0 0.0
    %3732 = vmatpush2.xpose.msra.mxu0 0.0
    %3733 = vmatprep.subr.mxu0 0.0
    %3734 = vmatpush2.xpose.msra.mxu0 0.0
    %3735 = vmatprep.subr.mxu0 0.0
    %3736 = vmatpush2.xpose.msra.mxu0 0.0
    %3737 = vmatprep.subr.mxu0 0.0
    %3738 = vmatpush2.xpose.msra.mxu0 0.0
    %3739 = vmatprep.subr.mxu0 0.0
    %3740 = vmatpush2.xpose.msra.mxu0 0.0
    %3741 = vmatprep.subr.mxu0 0.0
    %3742 = vmatpush2.xpose.msra.mxu0 0.0
    %3743 = vmatprep.subr.mxu0 0.0
    %3744 = vmatpush2.xpose.msra.mxu0 0.0
    %3745 = vmatprep.subr.mxu0 0.0
    %3746 = vmatpush2.xpose.msra.mxu0 0.0
    %3747 = vmatprep.subr.mxu0 0.0
    %3748 = vmatpush2.xpose.msra.mxu0 0.0
    %3749 = vmatprep.subr.mxu0 0.0
    %3750 = vmatpush2.xpose.msra.mxu0 0.0
    %3751 = vmatprep.subr.mxu0 0.0
    %3752 = vmatpush2.xpose.msra.mxu0 0.0
    %3753 = vmatprep.subr.mxu0 0.0
    %3754 = vmatpush2.xpose.msra.mxu0 0.0
    %3755 = vmatprep.subr.mxu0 0.0
    %3756 = vmatpush2.xpose.msra.mxu0 0.0
    %3757 = vmatprep.subr.mxu0 0.0
    %3758 = vmatpush2.xpose.msra.mxu0 0.0
    %3759 = vmatprep.mubr.f32.mxu0 0.0
    %3760 = vmatmul.mubr.f32.gmra.mxu0 %v3687
    %v3761 = vpop.f32.mrf.mxu0
    %v3762 = vadd.f32 0.0, %v3761
    %v3763 = vpop.f32.mrf.mxu0
    %3764 = vmatprep.mubr.f32.mxu0 0.0
    %3765 = vmatmul.mubr.f32.gmra.mxu0 %v3689
    %v3766 = vpop.f32.mrf.mxu0
    %v3767 = vadd.f32 0.0, %v3766
    %v3768 = vpop.f32.mrf.mxu0
    %3769 = vdwg.mxu0
    %v3770 = vmul.f32 %v3762, 0.35355338
    %v3771 = vmul.f32 %v3767, 0.35355338
    %v3772 = vsel %vm743, %v3770, -inf
    %3773 = vmax.xlane.f32.xlu0 %v3772
    %v3774 = vpop.xlane.xlu0 %3773
    %v3775 = vsel %vm743, %v3771, -inf
    %3776 = vmax.xlane.f32.xlu0 %v3775
    %v3777 = vpop.xlane.xlu0 %3776
    %v3778 = vsub.f32 %v3770, %v3774
    %v3779 = vsub.f32 %v3771, %v3777
    %v3780 = vmul.f32 %v3778, 1.442695
    %v3781 = vpow.pop %v3780
    %v3782 = vmul.f32 %v3779, 1.442695
    %v3783 = vpow.pop %v3782
    %v3784 = vsel %vm743, %v3781, 0.0
    %3785 = vadd.xlane.f32.xlu0 %v3784
    %v3786 = vpop.xlane.xlu0 %3785
    %v3787 = vsel %vm743, %v3783, 0.0
    %3788 = vadd.xlane.f32.xlu0 %v3787
    %v3789 = vpop.xlane.xlu0 %3788
    %v3790 = vrcp.pop %v3786
    %v3791 = vrcp.pop %v3789
    %v3792 = vmul.f32 %v3781, %v3790
    %v3793 = vmul.f32 %v3783, %v3791
    %3794 = vrot.lane.b32.xlu0 %v3457, 56
    %v3795 = vpop.permute.xlu0 %3794
    %3796 = vrot.lane.b32.xlu0 %v3462, 56
    %v3797 = vpop.permute.xlu0 %3796
    %v3801 = vsel %vm743, %v3792, 0
    %v3804 = vsel %vm743, %v3793, 0
    %3806 = vmatprep.subr.mxu0 0.0
    %3807 = vmatpush1.msra.mxu0 0.0
    %3808 = vmatprep.subr.mxu0 0.0
    %3809 = vmatpush1.msra.mxu0 0.0
    %3810 = vmatprep.subr.mxu0 0.0
    %3811 = vmatpush1.msra.mxu0 0.0
    %3812 = vmatprep.subr.mxu0 0.0
    %3813 = vmatpush1.msra.mxu0 0.0
    %3814 = vmatprep.subr.mxu0 0.0
    %3815 = vmatpush1.msra.mxu0 0.0
    %3816 = vmatprep.subr.mxu0 0.0
    %3817 = vmatpush1.msra.mxu0 0.0
    %3818 = vmatprep.subr.mxu0 0.0
    %3819 = vmatpush1.msra.mxu0 0.0
    %3820 = vmatprep.subr.mxu0 0.0
    %3821 = vmatpush1.msra.mxu0 0.0
    %3822 = vmatprep.subr.mxu0 0.0
    %3823 = vmatpush1.msra.mxu0 0.0
    %3824 = vmatprep.subr.mxu0 0.0
    %3825 = vmatpush1.msra.mxu0 0.0
    %3826 = vmatprep.subr.mxu0 0.0
    %3827 = vmatpush1.msra.mxu0 0.0
    %3828 = vmatprep.subr.mxu0 0.0
    %3829 = vmatpush1.msra.mxu0 0.0
    %3830 = vmatprep.subr.mxu0 0.0
    %3831 = vmatpush1.msra.mxu0 0.0
    %3832 = vmatprep.subr.mxu0 0.0
    %3833 = vmatpush1.msra.mxu0 0.0
    %3834 = vmatprep.subr.mxu0 0.0
    %3835 = vmatpush1.msra.mxu0 %v3797
    %3836 = vmatprep.subr.mxu0 0.0
    %3837 = vmatpush1.msra.mxu0 %v3795
    %3838 = vmatprep.subr.mxu0 0.0
    %3839 = vmatpush2.msra.mxu0 0.0
    %3840 = vmatprep.subr.mxu0 0.0
    %3841 = vmatpush2.msra.mxu0 0.0
    %3842 = vmatprep.subr.mxu0 0.0
    %3843 = vmatpush2.msra.mxu0 0.0
    %3844 = vmatprep.subr.mxu0 0.0
    %3845 = vmatpush2.msra.mxu0 0.0
    %3846 = vmatprep.subr.mxu0 0.0
    %3847 = vmatpush2.msra.mxu0 0.0
    %3848 = vmatprep.subr.mxu0 0.0
    %3849 = vmatpush2.msra.mxu0 0.0
    %3850 = vmatprep.subr.mxu0 0.0
    %3851 = vmatpush2.msra.mxu0 0.0
    %3852 = vmatprep.subr.mxu0 0.0
    %3853 = vmatpush2.msra.mxu0 0.0
    %3854 = vmatprep.subr.mxu0 0.0
    %3855 = vmatpush2.msra.mxu0 0.0
    %3856 = vmatprep.subr.mxu0 0.0
    %3857 = vmatpush2.msra.mxu0 0.0
    %3858 = vmatprep.subr.mxu0 0.0
    %3859 = vmatpush2.msra.mxu0 0.0
    %3860 = vmatprep.subr.mxu0 0.0
    %3861 = vmatpush2.msra.mxu0 0.0
    %3862 = vmatprep.subr.mxu0 0.0
    %3863 = vmatpush2.msra.mxu0 0.0
    %3864 = vmatprep.subr.mxu0 0.0
    %3865 = vmatpush2.msra.mxu0 0.0
    %3866 = vmatprep.subr.mxu0 0.0
    %3867 = vmatpush2.msra.mxu0 0.0
    %3868 = vmatprep.subr.mxu0 0.0
    %3869 = vmatpush2.msra.mxu0 0.0
    %3870 = vmatprep.mubr.f32.mxu0 0.0
    %3871 = vmatmul.mubr.f32.gmra.mxu0 %v3801
    %v3872 = vpop.f32.mrf.mxu0
    %v3873 = vadd.f32 0.0, %v3872
    %v3874 = vpop.f32.mrf.mxu0
    %3875 = vmatprep.mubr.f32.mxu0 0.0
    %3876 = vmatmul.mubr.f32.gmra.mxu0 %v3804
    %v3877 = vpop.f32.mrf.mxu0
    %v3878 = vadd.f32 0.0, %v3877
    %v3879 = vpop.f32.mrf.mxu0
    %3880 = vdwg.mxu0
    %v3882 = vsel %vm657, %v3873, 0
    %v3885 = vsel %vm657, %v3878, 0
    %3887 = vmatprep.subr.mxu0 0.0
    %3888 = vmatpush1.msra.mxu0 0.0
    %3889 = vmatprep.subr.mxu0 0.0
    %3890 = vmatpush1.msra.mxu0 0.0
    %3891 = vmatprep.subr.mxu0 0.0
    %3892 = vmatpush1.msra.mxu0 0.0
    %3893 = vmatprep.subr.mxu0 0.0
    %3894 = vmatpush1.msra.mxu0 0.0
    %3895 = vmatprep.subr.mxu0 0.0
    %3896 = vmatpush1.msra.mxu0 0.0
    %3897 = vmatprep.subr.mxu0 0.0
    %3898 = vmatpush1.msra.mxu0 0.0
    %3899 = vmatprep.subr.mxu0 0.0
    %3900 = vmatpush1.msra.mxu0 0.0
    %3901 = vmatprep.subr.mxu0 0.0
    %3902 = vmatpush1.msra.mxu0 0.0
    %3903 = vmatprep.subr.mxu0 0.0
    %3904 = vmatpush1.msra.mxu0 0.0
    %3905 = vmatprep.subr.mxu0 0.0
    %3906 = vmatpush1.msra.mxu0 0.0
    %3907 = vmatprep.subr.mxu0 0.0
    %3908 = vmatpush1.msra.mxu0 0.0
    %3909 = vmatprep.subr.mxu0 0.0
    %3910 = vmatpush1.msra.mxu0 0.0
    %3911 = vmatprep.subr.mxu0 0.0
    %3912 = vmatpush1.msra.mxu0 0.0
    %3913 = vmatprep.subr.mxu0 0.0
    %3914 = vmatpush1.msra.mxu0 0.0
    %3915 = vmatprep.subr.mxu0 0.0
    %3916 = vmatpush1.msra.mxu0 0.0
    %3917 = vmatprep.subr.mxu0 0.0
    %3918 = vmatpush1.msra.mxu0 %v3476
    %3919 = vmatprep.subr.mxu0 0.0
    %3920 = vmatpush2.msra.mxu0 0.0
    %3921 = vmatprep.subr.mxu0 0.0
    %3922 = vmatpush2.msra.mxu0 0.0
    %3923 = vmatprep.subr.mxu0 0.0
    %3924 = vmatpush2.msra.mxu0 0.0
    %3925 = vmatprep.subr.mxu0 0.0
    %3926 = vmatpush2.msra.mxu0 0.0
    %3927 = vmatprep.subr.mxu0 0.0
    %3928 = vmatpush2.msra.mxu0 0.0
    %3929 = vmatprep.subr.mxu0 0.0
    %3930 = vmatpush2.msra.mxu0 0.0
    %3931 = vmatprep.subr.mxu0 0.0
    %3932 = vmatpush2.msra.mxu0 0.0
    %3933 = vmatprep.subr.mxu0 0.0
    %3934 = vmatpush2.msra.mxu0 0.0
    %3935 = vmatprep.subr.mxu0 0.0
    %3936 = vmatpush2.msra.mxu0 0.0
    %3937 = vmatprep.subr.mxu0 0.0
    %3938 = vmatpush2.msra.mxu0 0.0
    %3939 = vmatprep.subr.mxu0 0.0
    %3940 = vmatpush2.msra.mxu0 0.0
    %3941 = vmatprep.subr.mxu0 0.0
    %3942 = vmatpush2.msra.mxu0 0.0
    %3943 = vmatprep.subr.mxu0 0.0
    %3944 = vmatpush2.msra.mxu0 0.0
    %3945 = vmatprep.subr.mxu0 0.0
    %3946 = vmatpush2.msra.mxu0 0.0
    %3947 = vmatprep.subr.mxu0 0.0
    %3948 = vmatpush2.msra.mxu0 0.0
    %3949 = vmatprep.subr.mxu0 0.0
    %3950 = vmatpush2.msra.mxu0 0.0
    %3951 = vmatprep.mubr.f32.mxu0 0.0
    %3952 = vmatmul.mubr.f32.gmra.mxu0 %v3882
    %v3953 = vpop.f32.mrf.mxu0
    %v3954 = vadd.f32 0.0, %v3953
    %v3955 = vpop.f32.mrf.mxu0
    %3956 = vmatprep.mubr.f32.mxu0 0.0
    %3957 = vmatmul.mubr.f32.gmra.mxu0 %v3885
    %v3958 = vpop.f32.mrf.mxu0
    %v3959 = vadd.f32 0.0, %v3958
    %v3960 = vpop.f32.mrf.mxu0
    %3961 = vdwg.mxu0
    %v3963 = vsel %vm657, %v3671, 0
    %v3966 = vsel %vm657, %v3676, 0
    %3968 = vmatprep.subr.mxu0 0.0
    %3969 = vmatpush1.msra.mxu0 0.0
    %3970 = vmatprep.subr.mxu0 0.0
    %3971 = vmatpush1.msra.mxu0 0.0
    %3972 = vmatprep.subr.mxu0 0.0
    %3973 = vmatpush1.msra.mxu0 0.0
    %3974 = vmatprep.subr.mxu0 0.0
    %3975 = vmatpush1.msra.mxu0 0.0
    %3976 = vmatprep.subr.mxu0 0.0
    %3977 = vmatpush1.msra.mxu0 0.0
    %3978 = vmatprep.subr.mxu0 0.0
    %3979 = vmatpush1.msra.mxu0 0.0
    %3980 = vmatprep.subr.mxu0 0.0
    %3981 = vmatpush1.msra.mxu0 0.0
    %3982 = vmatprep.subr.mxu0 0.0
    %3983 = vmatpush1.msra.mxu0 0.0
    %3984 = vmatprep.subr.mxu0 0.0
    %3985 = vmatpush1.msra.mxu0 0.0
    %3986 = vmatprep.subr.mxu0 0.0
    %3987 = vmatpush1.msra.mxu0 0.0
    %3988 = vmatprep.subr.mxu0 0.0
    %3989 = vmatpush1.msra.mxu0 0.0
    %3990 = vmatprep.subr.mxu0 0.0
    %3991 = vmatpush1.msra.mxu0 0.0
    %3992 = vmatprep.subr.mxu0 0.0
    %3993 = vmatpush1.msra.mxu0 0.0
    %3994 = vmatprep.subr.mxu0 0.0
    %3995 = vmatpush1.msra.mxu0 0.0
    %3996 = vmatprep.subr.mxu0 0.0
    %3997 = vmatpush1.msra.mxu0 0.0
    %3998 = vmatprep.subr.mxu0 0.0
    %3999 = vmatpush1.msra.mxu0 %v3475
    %4000 = vmatprep.subr.mxu0 0.0
    %4001 = vmatpush2.msra.mxu0 0.0
    %4002 = vmatprep.subr.mxu0 0.0
    %4003 = vmatpush2.msra.mxu0 0.0
    %4004 = vmatprep.subr.mxu0 0.0
    %4005 = vmatpush2.msra.mxu0 0.0
    %4006 = vmatprep.subr.mxu0 0.0
    %4007 = vmatpush2.msra.mxu0 0.0
    %4008 = vmatprep.subr.mxu0 0.0
    %4009 = vmatpush2.msra.mxu0 0.0
    %4010 = vmatprep.subr.mxu0 0.0
    %4011 = vmatpush2.msra.mxu0 0.0
    %4012 = vmatprep.subr.mxu0 0.0
    %4013 = vmatpush2.msra.mxu0 0.0
    %4014 = vmatprep.subr.mxu0 0.0
    %4015 = vmatpush2.msra.mxu0 0.0
    %4016 = vmatprep.subr.mxu0 0.0
    %4017 = vmatpush2.msra.mxu0 0.0
    %4018 = vmatprep.subr.mxu0 0.0
    %4019 = vmatpush2.msra.mxu0 0.0
    %4020 = vmatprep.subr.mxu0 0.0
    %4021 = vmatpush2.msra.mxu0 0.0
    %4022 = vmatprep.subr.mxu0 0.0
    %4023 = vmatpush2.msra.mxu0 0.0
    %4024 = vmatprep.subr.mxu0 0.0
    %4025 = vmatpush2.msra.mxu0 0.0
    %4026 = vmatprep.subr.mxu0 0.0
    %4027 = vmatpush2.msra.mxu0 0.0
    %4028 = vmatprep.subr.mxu0 0.0
    %4029 = vmatpush2.msra.mxu0 0.0
    %4030 = vmatprep.subr.mxu0 0.0
    %4031 = vmatpush2.msra.mxu0 0.0
    %4032 = vmatprep.mubr.f32.mxu0 0.0
    %4033 = vmatmul.mubr.f32.gmra.mxu0 %v3963
    %v4034 = vpop.f32.mrf.mxu0
    %v4035 = vadd.f32 %v3954, %v4034
    %v4036 = vpop.f32.mrf.mxu0
    %4037 = vmatprep.mubr.f32.mxu0 0.0
    %4038 = vmatmul.mubr.f32.gmra.mxu0 %v3966
    %v4039 = vpop.f32.mrf.mxu0
    %v4040 = vadd.f32 %v3959, %v4039
    %v4041 = vpop.f32.mrf.mxu0
    %4042 = vdwg.mxu0
    %4043 = vrot.lane.b32.xlu0 %v3457, 112
    %v4044 = vpop.permute.xlu0 %4043
    %4045 = vrot.lane.b32.xlu0 %v3462, 112
    %v4046 = vpop.permute.xlu0 %4045
    %4047 = vrot.lane.b32.xlu0 %v3457, 80
    %v4048 = vpop.permute.xlu0 %4047
    %4049 = vrot.lane.b32.xlu0 %v3462, 80
    %v4050 = vpop.permute.xlu0 %4049
    %v4051 = vsel %vm657, %v4044, 0
    %v4053 = vsel %vm657, %v4046, 0
    %v4055 = vsel %vm657, %v4048, 0
    %v4057 = vsel %vm657, %v4050, 0
    %4059 = vmatprep.subr.mxu0 0.0
    %4060 = vmatpush1.xpose.msra.mxu0 0.0
    %4061 = vmatprep.subr.mxu0 0.0
    %4062 = vmatpush1.xpose.msra.mxu0 0.0
    %4063 = vmatprep.subr.mxu0 0.0
    %4064 = vmatpush1.xpose.msra.mxu0 0.0
    %4065 = vmatprep.subr.mxu0 0.0
    %4066 = vmatpush1.xpose.msra.mxu0 0.0
    %4067 = vmatprep.subr.mxu0 0.0
    %4068 = vmatpush1.xpose.msra.mxu0 0.0
    %4069 = vmatprep.subr.mxu0 0.0
    %4070 = vmatpush1.xpose.msra.mxu0 0.0
    %4071 = vmatprep.subr.mxu0 0.0
    %4072 = vmatpush1.xpose.msra.mxu0 0.0
    %4073 = vmatprep.subr.mxu0 0.0
    %4074 = vmatpush1.xpose.msra.mxu0 0.0
    %4075 = vmatprep.subr.mxu0 0.0
    %4076 = vmatpush1.xpose.msra.mxu0 0.0
    %4077 = vmatprep.subr.mxu0 0.0
    %4078 = vmatpush1.xpose.msra.mxu0 0.0
    %4079 = vmatprep.subr.mxu0 0.0
    %4080 = vmatpush1.xpose.msra.mxu0 0.0
    %4081 = vmatprep.subr.mxu0 0.0
    %4082 = vmatpush1.xpose.msra.mxu0 0.0
    %4083 = vmatprep.subr.mxu0 0.0
    %4084 = vmatpush1.xpose.msra.mxu0 0.0
    %4085 = vmatprep.subr.mxu0 0.0
    %4086 = vmatpush1.xpose.msra.mxu0 0.0
    %4087 = vmatprep.subr.mxu0 0.0
    %4088 = vmatpush1.xpose.msra.mxu0 %v4057
    %4089 = vmatprep.subr.mxu0 0.0
    %4090 = vmatpush1.xpose.msra.mxu0 %v4055
    %4091 = vmatprep.subr.mxu0 0.0
    %4092 = vmatpush2.xpose.msra.mxu0 0.0
    %4093 = vmatprep.subr.mxu0 0.0
    %4094 = vmatpush2.xpose.msra.mxu0 0.0
    %4095 = vmatprep.subr.mxu0 0.0
    %4096 = vmatpush2.xpose.msra.mxu0 0.0
    %4097 = vmatprep.subr.mxu0 0.0
    %4098 = vmatpush2.xpose.msra.mxu0 0.0
    %4099 = vmatprep.subr.mxu0 0.0
    %4100 = vmatpush2.xpose.msra.mxu0 0.0
    %4101 = vmatprep.subr.mxu0 0.0
    %4102 = vmatpush2.xpose.msra.mxu0 0.0
    %4103 = vmatprep.subr.mxu0 0.0
    %4104 = vmatpush2.xpose.msra.mxu0 0.0
    %4105 = vmatprep.subr.mxu0 0.0
    %4106 = vmatpush2.xpose.msra.mxu0 0.0
    %4107 = vmatprep.subr.mxu0 0.0
    %4108 = vmatpush2.xpose.msra.mxu0 0.0
    %4109 = vmatprep.subr.mxu0 0.0
    %4110 = vmatpush2.xpose.msra.mxu0 0.0
    %4111 = vmatprep.subr.mxu0 0.0
    %4112 = vmatpush2.xpose.msra.mxu0 0.0
    %4113 = vmatprep.subr.mxu0 0.0
    %4114 = vmatpush2.xpose.msra.mxu0 0.0
    %4115 = vmatprep.subr.mxu0 0.0
    %4116 = vmatpush2.xpose.msra.mxu0 0.0
    %4117 = vmatprep.subr.mxu0 0.0
    %4118 = vmatpush2.xpose.msra.mxu0 0.0
    %4119 = vmatprep.subr.mxu0 0.0
    %4120 = vmatpush2.xpose.msra.mxu0 0.0
    %4121 = vmatprep.subr.mxu0 0.0
    %4122 = vmatpush2.xpose.msra.mxu0 0.0
    %4123 = vmatprep.mubr.f32.mxu0 0.0
    %4124 = vmatmul.mubr.f32.gmra.mxu0 %v4051
    %v4125 = vpop.f32.mrf.mxu0
    %v4126 = vadd.f32 0.0, %v4125
    %v4127 = vpop.f32.mrf.mxu0
    %4128 = vmatprep.mubr.f32.mxu0 0.0
    %4129 = vmatmul.mubr.f32.gmra.mxu0 %v4053
    %v4130 = vpop.f32.mrf.mxu0
    %v4131 = vadd.f32 0.0, %v4130
    %v4132 = vpop.f32.mrf.mxu0
    %4133 = vdwg.mxu0
    %v4134 = vmul.f32 %v4126, 0.35355338
    %v4135 = vmul.f32 %v4131, 0.35355338
    %v4136 = vsel %vm743, %v4134, -inf
    %4137 = vmax.xlane.f32.xlu0 %v4136
    %v4138 = vpop.xlane.xlu0 %4137
    %v4139 = vsel %vm743, %v4135, -inf
    %4140 = vmax.xlane.f32.xlu0 %v4139
    %v4141 = vpop.xlane.xlu0 %4140
    %v4142 = vsub.f32 %v4134, %v4138
    %v4143 = vsub.f32 %v4135, %v4141
    %v4144 = vmul.f32 %v4142, 1.442695
    %v4145 = vpow.pop %v4144
    %v4146 = vmul.f32 %v4143, 1.442695
    %v4147 = vpow.pop %v4146
    %v4148 = vsel %vm743, %v4145, 0.0
    %4149 = vadd.xlane.f32.xlu0 %v4148
    %v4150 = vpop.xlane.xlu0 %4149
    %v4151 = vsel %vm743, %v4147, 0.0
    %4152 = vadd.xlane.f32.xlu0 %v4151
    %v4153 = vpop.xlane.xlu0 %4152
    %v4154 = vrcp.pop %v4150
    %v4155 = vrcp.pop %v4153
    %v4156 = vmul.f32 %v4145, %v4154
    %v4157 = vmul.f32 %v4147, %v4155
    %4158 = vrot.lane.b32.xlu0 %v3457, 48
    %v4159 = vpop.permute.xlu0 %4158
    %4160 = vrot.lane.b32.xlu0 %v3462, 48
    %v4161 = vpop.permute.xlu0 %4160
    %v4165 = vsel %vm743, %v4156, 0
    %v4168 = vsel %vm743, %v4157, 0
    %4170 = vmatprep.subr.mxu0 0.0
    %4171 = vmatpush1.msra.mxu0 0.0
    %4172 = vmatprep.subr.mxu0 0.0
    %4173 = vmatpush1.msra.mxu0 0.0
    %4174 = vmatprep.subr.mxu0 0.0
    %4175 = vmatpush1.msra.mxu0 0.0
    %4176 = vmatprep.subr.mxu0 0.0
    %4177 = vmatpush1.msra.mxu0 0.0
    %4178 = vmatprep.subr.mxu0 0.0
    %4179 = vmatpush1.msra.mxu0 0.0
    %4180 = vmatprep.subr.mxu0 0.0
    %4181 = vmatpush1.msra.mxu0 0.0
    %4182 = vmatprep.subr.mxu0 0.0
    %4183 = vmatpush1.msra.mxu0 0.0
    %4184 = vmatprep.subr.mxu0 0.0
    %4185 = vmatpush1.msra.mxu0 0.0
    %4186 = vmatprep.subr.mxu0 0.0
    %4187 = vmatpush1.msra.mxu0 0.0
    %4188 = vmatprep.subr.mxu0 0.0
    %4189 = vmatpush1.msra.mxu0 0.0
    %4190 = vmatprep.subr.mxu0 0.0
    %4191 = vmatpush1.msra.mxu0 0.0
    %4192 = vmatprep.subr.mxu0 0.0
    %4193 = vmatpush1.msra.mxu0 0.0
    %4194 = vmatprep.subr.mxu0 0.0
    %4195 = vmatpush1.msra.mxu0 0.0
    %4196 = vmatprep.subr.mxu0 0.0
    %4197 = vmatpush1.msra.mxu0 0.0
    %4198 = vmatprep.subr.mxu0 0.0
    %4199 = vmatpush1.msra.mxu0 %v4161
    %4200 = vmatprep.subr.mxu0 0.0
    %4201 = vmatpush1.msra.mxu0 %v4159
    %4202 = vmatprep.subr.mxu0 0.0
    %4203 = vmatpush2.msra.mxu0 0.0
    %4204 = vmatprep.subr.mxu0 0.0
    %4205 = vmatpush2.msra.mxu0 0.0
    %4206 = vmatprep.subr.mxu0 0.0
    %4207 = vmatpush2.msra.mxu0 0.0
    %4208 = vmatprep.subr.mxu0 0.0
    %4209 = vmatpush2.msra.mxu0 0.0
    %4210 = vmatprep.subr.mxu0 0.0
    %4211 = vmatpush2.msra.mxu0 0.0
    %4212 = vmatprep.subr.mxu0 0.0
    %4213 = vmatpush2.msra.mxu0 0.0
    %4214 = vmatprep.subr.mxu0 0.0
    %4215 = vmatpush2.msra.mxu0 0.0
    %4216 = vmatprep.subr.mxu0 0.0
    %4217 = vmatpush2.msra.mxu0 0.0
    %4218 = vmatprep.subr.mxu0 0.0
    %4219 = vmatpush2.msra.mxu0 0.0
    %4220 = vmatprep.subr.mxu0 0.0
    %4221 = vmatpush2.msra.mxu0 0.0
    %4222 = vmatprep.subr.mxu0 0.0
    %4223 = vmatpush2.msra.mxu0 0.0
    %4224 = vmatprep.subr.mxu0 0.0
    %4225 = vmatpush2.msra.mxu0 0.0
    %4226 = vmatprep.subr.mxu0 0.0
    %4227 = vmatpush2.msra.mxu0 0.0
    %4228 = vmatprep.subr.mxu0 0.0
    %4229 = vmatpush2.msra.mxu0 0.0
    %4230 = vmatprep.subr.mxu0 0.0
    %4231 = vmatpush2.msra.mxu0 0.0
    %4232 = vmatprep.subr.mxu0 0.0
    %4233 = vmatpush2.msra.mxu0 0.0
    %4234 = vmatprep.mubr.f32.mxu0 0.0
    %4235 = vmatmul.mubr.f32.gmra.mxu0 %v4165
    %v4236 = vpop.f32.mrf.mxu0
    %v4237 = vadd.f32 0.0, %v4236
    %v4238 = vpop.f32.mrf.mxu0
    %4239 = vmatprep.mubr.f32.mxu0 0.0
    %4240 = vmatmul.mubr.f32.gmra.mxu0 %v4168
    %v4241 = vpop.f32.mrf.mxu0
    %v4242 = vadd.f32 0.0, %v4241
    %v4243 = vpop.f32.mrf.mxu0
    %4244 = vdwg.mxu0
    %v4246 = vsel %vm657, %v4237, 0
    %v4249 = vsel %vm657, %v4242, 0
    %4251 = vmatprep.subr.mxu0 0.0
    %4252 = vmatpush1.msra.mxu0 0.0
    %4253 = vmatprep.subr.mxu0 0.0
    %4254 = vmatpush1.msra.mxu0 0.0
    %4255 = vmatprep.subr.mxu0 0.0
    %4256 = vmatpush1.msra.mxu0 0.0
    %4257 = vmatprep.subr.mxu0 0.0
    %4258 = vmatpush1.msra.mxu0 0.0
    %4259 = vmatprep.subr.mxu0 0.0
    %4260 = vmatpush1.msra.mxu0 0.0
    %4261 = vmatprep.subr.mxu0 0.0
    %4262 = vmatpush1.msra.mxu0 0.0
    %4263 = vmatprep.subr.mxu0 0.0
    %4264 = vmatpush1.msra.mxu0 0.0
    %4265 = vmatprep.subr.mxu0 0.0
    %4266 = vmatpush1.msra.mxu0 0.0
    %4267 = vmatprep.subr.mxu0 0.0
    %4268 = vmatpush1.msra.mxu0 0.0
    %4269 = vmatprep.subr.mxu0 0.0
    %4270 = vmatpush1.msra.mxu0 0.0
    %4271 = vmatprep.subr.mxu0 0.0
    %4272 = vmatpush1.msra.mxu0 0.0
    %4273 = vmatprep.subr.mxu0 0.0
    %4274 = vmatpush1.msra.mxu0 0.0
    %4275 = vmatprep.subr.mxu0 0.0
    %4276 = vmatpush1.msra.mxu0 0.0
    %4277 = vmatprep.subr.mxu0 0.0
    %4278 = vmatpush1.msra.mxu0 0.0
    %4279 = vmatprep.subr.mxu0 0.0
    %4280 = vmatpush1.msra.mxu0 0.0
    %4281 = vmatprep.subr.mxu0 0.0
    %4282 = vmatpush1.msra.mxu0 %v3477
    %4283 = vmatprep.subr.mxu0 0.0
    %4284 = vmatpush2.msra.mxu0 0.0
    %4285 = vmatprep.subr.mxu0 0.0
    %4286 = vmatpush2.msra.mxu0 0.0
    %4287 = vmatprep.subr.mxu0 0.0
    %4288 = vmatpush2.msra.mxu0 0.0
    %4289 = vmatprep.subr.mxu0 0.0
    %4290 = vmatpush2.msra.mxu0 0.0
    %4291 = vmatprep.subr.mxu0 0.0
    %4292 = vmatpush2.msra.mxu0 0.0
    %4293 = vmatprep.subr.mxu0 0.0
    %4294 = vmatpush2.msra.mxu0 0.0
    %4295 = vmatprep.subr.mxu0 0.0
    %4296 = vmatpush2.msra.mxu0 0.0
    %4297 = vmatprep.subr.mxu0 0.0
    %4298 = vmatpush2.msra.mxu0 0.0
    %4299 = vmatprep.subr.mxu0 0.0
    %4300 = vmatpush2.msra.mxu0 0.0
    %4301 = vmatprep.subr.mxu0 0.0
    %4302 = vmatpush2.msra.mxu0 0.0
    %4303 = vmatprep.subr.mxu0 0.0
    %4304 = vmatpush2.msra.mxu0 0.0
    %4305 = vmatprep.subr.mxu0 0.0
    %4306 = vmatpush2.msra.mxu0 0.0
    %4307 = vmatprep.subr.mxu0 0.0
    %4308 = vmatpush2.msra.mxu0 0.0
    %4309 = vmatprep.subr.mxu0 0.0
    %4310 = vmatpush2.msra.mxu0 0.0
    %4311 = vmatprep.subr.mxu0 0.0
    %4312 = vmatpush2.msra.mxu0 0.0
    %4313 = vmatprep.subr.mxu0 0.0
    %4314 = vmatpush2.msra.mxu0 0.0
    %4315 = vmatprep.mubr.f32.mxu0 0.0
    %4316 = vmatmul.mubr.f32.gmra.mxu0 %v4246
    %v4317 = vpop.f32.mrf.mxu0
    %v4318 = vadd.f32 0.0, %v4317
    %v4319 = vpop.f32.mrf.mxu0
    %4320 = vmatprep.mubr.f32.mxu0 0.0
    %4321 = vmatmul.mubr.f32.gmra.mxu0 %v4249
    %v4322 = vpop.f32.mrf.mxu0
    %v4323 = vadd.f32 0.0, %v4322
    %v4324 = vpop.f32.mrf.mxu0
    %4325 = vdwg.mxu0
    %v4326 = vadd.f32 %v4035, %v4318
    %v4327 = vadd.f32 %v4040, %v4323
    %4328 = vrot.lane.b32.xlu0 %v3457, 104
    %v4329 = vpop.permute.xlu0 %4328
    %4330 = vrot.lane.b32.xlu0 %v3462, 104
    %v4331 = vpop.permute.xlu0 %4330
    %4332 = vrot.lane.b32.xlu0 %v3457, 72
    %v4333 = vpop.permute.xlu0 %4332
    %4334 = vrot.lane.b32.xlu0 %v3462, 72
    %v4335 = vpop.permute.xlu0 %4334
    %v4336 = vsel %vm657, %v4329, 0
    %v4338 = vsel %vm657, %v4331, 0
    %v4340 = vsel %vm657, %v4333, 0
    %v4342 = vsel %vm657, %v4335, 0
    %4344 = vmatprep.subr.mxu0 0.0
    %4345 = vmatpush1.xpose.msra.mxu0 0.0
    %4346 = vmatprep.subr.mxu0 0.0
    %4347 = vmatpush1.xpose.msra.mxu0 0.0
    %4348 = vmatprep.subr.mxu0 0.0
    %4349 = vmatpush1.xpose.msra.mxu0 0.0
    %4350 = vmatprep.subr.mxu0 0.0
    %4351 = vmatpush1.xpose.msra.mxu0 0.0
    %4352 = vmatprep.subr.mxu0 0.0
    %4353 = vmatpush1.xpose.msra.mxu0 0.0
    %4354 = vmatprep.subr.mxu0 0.0
    %4355 = vmatpush1.xpose.msra.mxu0 0.0
    %4356 = vmatprep.subr.mxu0 0.0
    %4357 = vmatpush1.xpose.msra.mxu0 0.0
    %4358 = vmatprep.subr.mxu0 0.0
    %4359 = vmatpush1.xpose.msra.mxu0 0.0
    %4360 = vmatprep.subr.mxu0 0.0
    %4361 = vmatpush1.xpose.msra.mxu0 0.0
    %4362 = vmatprep.subr.mxu0 0.0
    %4363 = vmatpush1.xpose.msra.mxu0 0.0
    %4364 = vmatprep.subr.mxu0 0.0
    %4365 = vmatpush1.xpose.msra.mxu0 0.0
    %4366 = vmatprep.subr.mxu0 0.0
    %4367 = vmatpush1.xpose.msra.mxu0 0.0
    %4368 = vmatprep.subr.mxu0 0.0
    %4369 = vmatpush1.xpose.msra.mxu0 0.0
    %4370 = vmatprep.subr.mxu0 0.0
    %4371 = vmatpush1.xpose.msra.mxu0 0.0
    %4372 = vmatprep.subr.mxu0 0.0
    %4373 = vmatpush1.xpose.msra.mxu0 %v4342
    %4374 = vmatprep.subr.mxu0 0.0
    %4375 = vmatpush1.xpose.msra.mxu0 %v4340
    %4376 = vmatprep.subr.mxu0 0.0
    %4377 = vmatpush2.xpose.msra.mxu0 0.0
    %4378 = vmatprep.subr.mxu0 0.0
    %4379 = vmatpush2.xpose.msra.mxu0 0.0
    %4380 = vmatprep.subr.mxu0 0.0
    %4381 = vmatpush2.xpose.msra.mxu0 0.0
    %4382 = vmatprep.subr.mxu0 0.0
    %4383 = vmatpush2.xpose.msra.mxu0 0.0
    %4384 = vmatprep.subr.mxu0 0.0
    %4385 = vmatpush2.xpose.msra.mxu0 0.0
    %4386 = vmatprep.subr.mxu0 0.0
    %4387 = vmatpush2.xpose.msra.mxu0 0.0
    %4388 = vmatprep.subr.mxu0 0.0
    %4389 = vmatpush2.xpose.msra.mxu0 0.0
    %4390 = vmatprep.subr.mxu0 0.0
    %4391 = vmatpush2.xpose.msra.mxu0 0.0
    %4392 = vmatprep.subr.mxu0 0.0
    %4393 = vmatpush2.xpose.msra.mxu0 0.0
    %4394 = vmatprep.subr.mxu0 0.0
    %4395 = vmatpush2.xpose.msra.mxu0 0.0
    %4396 = vmatprep.subr.mxu0 0.0
    %4397 = vmatpush2.xpose.msra.mxu0 0.0
    %4398 = vmatprep.subr.mxu0 0.0
    %4399 = vmatpush2.xpose.msra.mxu0 0.0
    %4400 = vmatprep.subr.mxu0 0.0
    %4401 = vmatpush2.xpose.msra.mxu0 0.0
    %4402 = vmatprep.subr.mxu0 0.0
    %4403 = vmatpush2.xpose.msra.mxu0 0.0
    %4404 = vmatprep.subr.mxu0 0.0
    %4405 = vmatpush2.xpose.msra.mxu0 0.0
    %4406 = vmatprep.subr.mxu0 0.0
    %4407 = vmatpush2.xpose.msra.mxu0 0.0
    %4408 = vmatprep.mubr.f32.mxu0 0.0
    %4409 = vmatmul.mubr.f32.gmra.mxu0 %v4336
    %v4410 = vpop.f32.mrf.mxu0
    %v4411 = vadd.f32 0.0, %v4410
    %v4412 = vpop.f32.mrf.mxu0
    %4413 = vmatprep.mubr.f32.mxu0 0.0
    %4414 = vmatmul.mubr.f32.gmra.mxu0 %v4338
    %v4415 = vpop.f32.mrf.mxu0
    %v4416 = vadd.f32 0.0, %v4415
    %v4417 = vpop.f32.mrf.mxu0
    %4418 = vdwg.mxu0
    %v4419 = vmul.f32 %v4411, 0.35355338
    %v4420 = vmul.f32 %v4416, 0.35355338
    %v4421 = vsel %vm743, %v4419, -inf
    %4422 = vmax.xlane.f32.xlu0 %v4421
    %v4423 = vpop.xlane.xlu0 %4422
    %v4424 = vsel %vm743, %v4420, -inf
    %4425 = vmax.xlane.f32.xlu0 %v4424
    %v4426 = vpop.xlane.xlu0 %4425
    %v4427 = vsub.f32 %v4419, %v4423
    %v4428 = vsub.f32 %v4420, %v4426
    %v4429 = vmul.f32 %v4427, 1.442695
    %v4430 = vpow.pop %v4429
    %v4431 = vmul.f32 %v4428, 1.442695
    %v4432 = vpow.pop %v4431
    %v4433 = vsel %vm743, %v4430, 0.0
    %4434 = vadd.xlane.f32.xlu0 %v4433
    %v4435 = vpop.xlane.xlu0 %4434
    %v4436 = vsel %vm743, %v4432, 0.0
    %4437 = vadd.xlane.f32.xlu0 %v4436
    %v4438 = vpop.xlane.xlu0 %4437
    %v4439 = vrcp.pop %v4435
    %v4440 = vrcp.pop %v4438
    %v4441 = vmul.f32 %v4430, %v4439
    %v4442 = vmul.f32 %v4432, %v4440
    %4443 = vrot.lane.b32.xlu0 %v3457, 40
    %v4444 = vpop.permute.xlu0 %4443
    %4445 = vrot.lane.b32.xlu0 %v3462, 40
    %v4446 = vpop.permute.xlu0 %4445
    %v4450 = vsel %vm743, %v4441, 0
    %v4453 = vsel %vm743, %v4442, 0
    %4455 = vmatprep.subr.mxu0 0.0
    %4456 = vmatpush1.msra.mxu0 0.0
    %4457 = vmatprep.subr.mxu0 0.0
    %4458 = vmatpush1.msra.mxu0 0.0
    %4459 = vmatprep.subr.mxu0 0.0
    %4460 = vmatpush1.msra.mxu0 0.0
    %4461 = vmatprep.subr.mxu0 0.0
    %4462 = vmatpush1.msra.mxu0 0.0
    %4463 = vmatprep.subr.mxu0 0.0
    %4464 = vmatpush1.msra.mxu0 0.0
    %4465 = vmatprep.subr.mxu0 0.0
    %4466 = vmatpush1.msra.mxu0 0.0
    %4467 = vmatprep.subr.mxu0 0.0
    %4468 = vmatpush1.msra.mxu0 0.0
    %4469 = vmatprep.subr.mxu0 0.0
    %4470 = vmatpush1.msra.mxu0 0.0
    %4471 = vmatprep.subr.mxu0 0.0
    %4472 = vmatpush1.msra.mxu0 0.0
    %4473 = vmatprep.subr.mxu0 0.0
    %4474 = vmatpush1.msra.mxu0 0.0
    %4475 = vmatprep.subr.mxu0 0.0
    %4476 = vmatpush1.msra.mxu0 0.0
    %4477 = vmatprep.subr.mxu0 0.0
    %4478 = vmatpush1.msra.mxu0 0.0
    %4479 = vmatprep.subr.mxu0 0.0
    %4480 = vmatpush1.msra.mxu0 0.0
    %4481 = vmatprep.subr.mxu0 0.0
    %4482 = vmatpush1.msra.mxu0 0.0
    %4483 = vmatprep.subr.mxu0 0.0
    %4484 = vmatpush1.msra.mxu0 %v4446
    %4485 = vmatprep.subr.mxu0 0.0
    %4486 = vmatpush1.msra.mxu0 %v4444
    %4487 = vmatprep.subr.mxu0 0.0
    %4488 = vmatpush2.msra.mxu0 0.0
    %4489 = vmatprep.subr.mxu0 0.0
    %4490 = vmatpush2.msra.mxu0 0.0
    %4491 = vmatprep.subr.mxu0 0.0
    %4492 = vmatpush2.msra.mxu0 0.0
    %4493 = vmatprep.subr.mxu0 0.0
    %4494 = vmatpush2.msra.mxu0 0.0
    %4495 = vmatprep.subr.mxu0 0.0
    %4496 = vmatpush2.msra.mxu0 0.0
    %4497 = vmatprep.subr.mxu0 0.0
    %4498 = vmatpush2.msra.mxu0 0.0
    %4499 = vmatprep.subr.mxu0 0.0
    %4500 = vmatpush2.msra.mxu0 0.0
    %4501 = vmatprep.subr.mxu0 0.0
    %4502 = vmatpush2.msra.mxu0 0.0
    %4503 = vmatprep.subr.mxu0 0.0
    %4504 = vmatpush2.msra.mxu0 0.0
    %4505 = vmatprep.subr.mxu0 0.0
    %4506 = vmatpush2.msra.mxu0 0.0
    %4507 = vmatprep.subr.mxu0 0.0
    %4508 = vmatpush2.msra.mxu0 0.0
    %4509 = vmatprep.subr.mxu0 0.0
    %4510 = vmatpush2.msra.mxu0 0.0
    %4511 = vmatprep.subr.mxu0 0.0
    %4512 = vmatpush2.msra.mxu0 0.0
    %4513 = vmatprep.subr.mxu0 0.0
    %4514 = vmatpush2.msra.mxu0 0.0
    %4515 = vmatprep.subr.mxu0 0.0
    %4516 = vmatpush2.msra.mxu0 0.0
    %4517 = vmatprep.subr.mxu0 0.0
    %4518 = vmatpush2.msra.mxu0 0.0
    %4519 = vmatprep.mubr.f32.mxu0 0.0
    %4520 = vmatmul.mubr.f32.gmra.mxu0 %v4450
    %v4521 = vpop.f32.mrf.mxu0
    %v4522 = vadd.f32 0.0, %v4521
    %v4523 = vpop.f32.mrf.mxu0
    %4524 = vmatprep.mubr.f32.mxu0 0.0
    %4525 = vmatmul.mubr.f32.gmra.mxu0 %v4453
    %v4526 = vpop.f32.mrf.mxu0
    %v4527 = vadd.f32 0.0, %v4526
    %v4528 = vpop.f32.mrf.mxu0
    %4529 = vdwg.mxu0
    %v4531 = vsel %vm657, %v4522, 0
    %v4534 = vsel %vm657, %v4527, 0
    %4536 = vmatprep.subr.mxu0 0.0
    %4537 = vmatpush1.msra.mxu0 0.0
    %4538 = vmatprep.subr.mxu0 0.0
    %4539 = vmatpush1.msra.mxu0 0.0
    %4540 = vmatprep.subr.mxu0 0.0
    %4541 = vmatpush1.msra.mxu0 0.0
    %4542 = vmatprep.subr.mxu0 0.0
    %4543 = vmatpush1.msra.mxu0 0.0
    %4544 = vmatprep.subr.mxu0 0.0
    %4545 = vmatpush1.msra.mxu0 0.0
    %4546 = vmatprep.subr.mxu0 0.0
    %4547 = vmatpush1.msra.mxu0 0.0
    %4548 = vmatprep.subr.mxu0 0.0
    %4549 = vmatpush1.msra.mxu0 0.0
    %4550 = vmatprep.subr.mxu0 0.0
    %4551 = vmatpush1.msra.mxu0 0.0
    %4552 = vmatprep.subr.mxu0 0.0
    %4553 = vmatpush1.msra.mxu0 0.0
    %4554 = vmatprep.subr.mxu0 0.0
    %4555 = vmatpush1.msra.mxu0 0.0
    %4556 = vmatprep.subr.mxu0 0.0
    %4557 = vmatpush1.msra.mxu0 0.0
    %4558 = vmatprep.subr.mxu0 0.0
    %4559 = vmatpush1.msra.mxu0 0.0
    %4560 = vmatprep.subr.mxu0 0.0
    %4561 = vmatpush1.msra.mxu0 0.0
    %4562 = vmatprep.subr.mxu0 0.0
    %4563 = vmatpush1.msra.mxu0 0.0
    %4564 = vmatprep.subr.mxu0 0.0
    %4565 = vmatpush1.msra.mxu0 0.0
    %4566 = vmatprep.subr.mxu0 0.0
    %4567 = vmatpush1.msra.mxu0 %v3478
    %4568 = vmatprep.subr.mxu0 0.0
    %4569 = vmatpush2.msra.mxu0 0.0
    %4570 = vmatprep.subr.mxu0 0.0
    %4571 = vmatpush2.msra.mxu0 0.0
    %4572 = vmatprep.subr.mxu0 0.0
    %4573 = vmatpush2.msra.mxu0 0.0
    %4574 = vmatprep.subr.mxu0 0.0
    %4575 = vmatpush2.msra.mxu0 0.0
    %4576 = vmatprep.subr.mxu0 0.0
    %4577 = vmatpush2.msra.mxu0 0.0
    %4578 = vmatprep.subr.mxu0 0.0
    %4579 = vmatpush2.msra.mxu0 0.0
    %4580 = vmatprep.subr.mxu0 0.0
    %4581 = vmatpush2.msra.mxu0 0.0
    %4582 = vmatprep.subr.mxu0 0.0
    %4583 = vmatpush2.msra.mxu0 0.0
    %4584 = vmatprep.subr.mxu0 0.0
    %4585 = vmatpush2.msra.mxu0 0.0
    %4586 = vmatprep.subr.mxu0 0.0
    %4587 = vmatpush2.msra.mxu0 0.0
    %4588 = vmatprep.subr.mxu0 0.0
    %4589 = vmatpush2.msra.mxu0 0.0
    %4590 = vmatprep.subr.mxu0 0.0
    %4591 = vmatpush2.msra.mxu0 0.0
    %4592 = vmatprep.subr.mxu0 0.0
    %4593 = vmatpush2.msra.mxu0 0.0
    %4594 = vmatprep.subr.mxu0 0.0
    %4595 = vmatpush2.msra.mxu0 0.0
    %4596 = vmatprep.subr.mxu0 0.0
    %4597 = vmatpush2.msra.mxu0 0.0
    %4598 = vmatprep.subr.mxu0 0.0
    %4599 = vmatpush2.msra.mxu0 0.0
    %4600 = vmatprep.mubr.f32.mxu0 0.0
    %4601 = vmatmul.mubr.f32.gmra.mxu0 %v4531
    %v4602 = vpop.f32.mrf.mxu0
    %v4603 = vadd.f32 0.0, %v4602
    %v4604 = vpop.f32.mrf.mxu0
    %4605 = vmatprep.mubr.f32.mxu0 0.0
    %4606 = vmatmul.mubr.f32.gmra.mxu0 %v4534
    %v4607 = vpop.f32.mrf.mxu0
    %v4608 = vadd.f32 0.0, %v4607
    %v4609 = vpop.f32.mrf.mxu0
    %4610 = vdwg.mxu0
    %v4611 = vadd.f32 %v4326, %v4603
    %v4612 = vadd.f32 %v4327, %v4608
    %v4613 = vadd.f32 %v3363, %v4611
    %v4614 = vadd.f32 %v3364, %v4612
    %v4615 = vld [vmem:[%s43] sm:$0x1]
    %v4617 = vlaneseq
    %v4618 = vshrl.u32 %v4617, 7
    %v4619 = vsub.s32 0, %v4618
    %v4620 = vrot.slane %v4615, %v4619
    %v4622 = vadd.f32 %v4613, %v4620
    %v4623 = vadd.f32 %v4614, %v4620
    %v4624 = vld [vmem:[#allocation8] sm:$0x1]
    %v4625 = vld [vmem:[#allocation10] sm:$0x1]
    %v4626 = vsel %vm289, %v4622, 0.0
    %4627 = vadd.xlane.f32.xlu0 %v4626
    %v4628 = vpop.xlane.xlu0 %4627
    %v4629 = vsel %vm289, %v4623, 0.0
    %4630 = vadd.xlane.f32.xlu0 %v4629
    %v4631 = vpop.xlane.xlu0 %4630
    %v4632 = vmul.f32 %v4628, %v1806
    %v4633 = vmul.f32 %v4631, %v1806
    %v4634 = vsub.f32 %v4622, %v4632
    %v4635 = vsub.f32 %v4623, %v4633
    %v4636 = vmul.f32 %v4634, %v4634
    %v4637 = vmul.f32 %v4635, %v4635
    %v4638 = vsel %vm289, %v4636, 0.0
    %4639 = vadd.xlane.f32.xlu0 %v4638
    %v4640 = vpop.xlane.xlu0 %4639
    %v4641 = vsel %vm289, %v4637, 0.0
    %4642 = vadd.xlane.f32.xlu0 %v4641
    %v4643 = vpop.xlane.xlu0 %4642
    %v4644 = vmul.f32 %v4640, %v1806
    %v4645 = vmul.f32 %v4643, %v1806
    %v4646 = vadd.f32 %v4644, 1e-05
    %v4647 = vadd.f32 %v4645, 1e-05
    %v4648 = vrsqrt.pop %v4646
    %v4649 = vrsqrt.pop %v4647
    %v4650 = vmul.f32 %v4634, %v4648
    %v4651 = vmul.f32 %v4635, %v4649
    %v4653 = vlaneseq
    %v4654 = vshrl.u32 %v4653, 7
    %v4655 = vsub.s32 0, %v4654
    %v4656 = vrot.slane %v4624, %v4655
    %v4658 = vmul.f32 %v4650, %v4656
    %v4659 = vmul.f32 %v4651, %v4656
    %v4661 = vlaneseq
    %v4662 = vshrl.u32 %v4661, 7
    %v4663 = vsub.s32 0, %v4662
    %v4664 = vrot.slane %v4625, %v4663
    %v4666 = vadd.f32 %v4658, %v4664
    %v4667 = vadd.f32 %v4659, %v4664
    %4668 = vst.msk [vmem:[#allocation2] sm:$0xff] %vm289, %v4666
    %4669 = vst.msk [vmem:[#allocation2 + $0x8] sm:$0xff] %vm289, %v4667
    %4672 = vrot.lane.b32.xlu0 %v3467, 96
    %v4673 = vpop.permute.xlu0 %4672
    %4674 = vrot.lane.b32.xlu0 %v3472, 96
    %v4675 = vpop.permute.xlu0 %4674
    %v4676 = vsel %vm657, %v3467, 0
    %v4678 = vsel %vm657, %v3472, 0
    %v4680 = vsel %vm657, %v4673, 0
    %v4682 = vsel %vm657, %v4675, 0
    %4684 = vmatprep.subr.mxu0 0.0
    %4685 = vmatpush1.xpose.msra.mxu0 0.0
    %4686 = vmatprep.subr.mxu0 0.0
    %4687 = vmatpush1.xpose.msra.mxu0 0.0
    %4688 = vmatprep.subr.mxu0 0.0
    %4689 = vmatpush1.xpose.msra.mxu0 0.0
    %4690 = vmatprep.subr.mxu0 0.0
    %4691 = vmatpush1.xpose.msra.mxu0 0.0
    %4692 = vmatprep.subr.mxu0 0.0
    %4693 = vmatpush1.xpose.msra.mxu0 0.0
    %4694 = vmatprep.subr.mxu0 0.0
    %4695 = vmatpush1.xpose.msra.mxu0 0.0
    %4696 = vmatprep.subr.mxu0 0.0
    %4697 = vmatpush1.xpose.msra.mxu0 0.0
    %4698 = vmatprep.subr.mxu0 0.0
    %4699 = vmatpush1.xpose.msra.mxu0 0.0
    %4700 = vmatprep.subr.mxu0 0.0
    %4701 = vmatpush1.xpose.msra.mxu0 0.0
    %4702 = vmatprep.subr.mxu0 0.0
    %4703 = vmatpush1.xpose.msra.mxu0 0.0
    %4704 = vmatprep.subr.mxu0 0.0
    %4705 = vmatpush1.xpose.msra.mxu0 0.0
    %4706 = vmatprep.subr.mxu0 0.0
    %4707 = vmatpush1.xpose.msra.mxu0 0.0
    %4708 = vmatprep.subr.mxu0 0.0
    %4709 = vmatpush1.xpose.msra.mxu0 0.0
    %4710 = vmatprep.subr.mxu0 0.0
    %4711 = vmatpush1.xpose.msra.mxu0 0.0
    %4712 = vmatprep.subr.mxu0 0.0
    %4713 = vmatpush1.xpose.msra.mxu0 %v4682
    %4714 = vmatprep.subr.mxu0 0.0
    %4715 = vmatpush1.xpose.msra.mxu0 %v4680
    %4716 = vmatprep.subr.mxu0 0.0
    %4717 = vmatpush2.xpose.msra.mxu0 0.0
    %4718 = vmatprep.subr.mxu0 0.0
    %4719 = vmatpush2.xpose.msra.mxu0 0.0
    %4720 = vmatprep.subr.mxu0 0.0
    %4721 = vmatpush2.xpose.msra.mxu0 0.0
    %4722 = vmatprep.subr.mxu0 0.0
    %4723 = vmatpush2.xpose.msra.mxu0 0.0
    %4724 = vmatprep.subr.mxu0 0.0
    %4725 = vmatpush2.xpose.msra.mxu0 0.0
    %4726 = vmatprep.subr.mxu0 0.0
    %4727 = vmatpush2.xpose.msra.mxu0 0.0
    %4728 = vmatprep.subr.mxu0 0.0
    %4729 = vmatpush2.xpose.msra.mxu0 0.0
    %4730 = vmatprep.subr.mxu0 0.0
    %4731 = vmatpush2.xpose.msra.mxu0 0.0
    %4732 = vmatprep.subr.mxu0 0.0
    %4733 = vmatpush2.xpose.msra.mxu0 0.0
    %4734 = vmatprep.subr.mxu0 0.0
    %4735 = vmatpush2.xpose.msra.mxu0 0.0
    %4736 = vmatprep.subr.mxu0 0.0
    %4737 = vmatpush2.xpose.msra.mxu0 0.0
    %4738 = vmatprep.subr.mxu0 0.0
    %4739 = vmatpush2.xpose.msra.mxu0 0.0
    %4740 = vmatprep.subr.mxu0 0.0
    %4741 = vmatpush2.xpose.msra.mxu0 0.0
    %4742 = vmatprep.subr.mxu0 0.0
    %4743 = vmatpush2.xpose.msra.mxu0 0.0
    %4744 = vmatprep.subr.mxu0 0.0
    %4745 = vmatpush2.xpose.msra.mxu0 0.0
    %4746 = vmatprep.subr.mxu0 0.0
    %4747 = vmatpush2.xpose.msra.mxu0 0.0
    %4748 = vmatprep.mubr.f32.mxu0 0.0
    %4749 = vmatmul.mubr.f32.gmra.mxu0 %v4676
    %v4750 = vpop.f32.mrf.mxu0
    %v4751 = vadd.f32 0.0, %v4750
    %v4752 = vpop.f32.mrf.mxu0
    %4753 = vmatprep.mubr.f32.mxu0 0.0
    %4754 = vmatmul.mubr.f32.gmra.mxu0 %v4678
    %v4755 = vpop.f32.mrf.mxu0
    %v4756 = vadd.f32 0.0, %v4755
    %v4757 = vpop.f32.mrf.mxu0
    %4758 = vdwg.mxu0
    %v4759 = vmul.f32 %v4751, 0.35355338
    %v4760 = vmul.f32 %v4756, 0.35355338
    %v4761 = vsel %vm743, %v4759, -inf
    %4762 = vmax.xlane.f32.xlu0 %v4761
    %v4763 = vpop.xlane.xlu0 %4762
    %v4764 = vsel %vm743, %v4760, -inf
    %4765 = vmax.xlane.f32.xlu0 %v4764
    %v4766 = vpop.xlane.xlu0 %4765
    %v4767 = vsub.f32 %v4759, %v4763
    %v4768 = vsub.f32 %v4760, %v4766
    %v4769 = vmul.f32 %v4767, 1.442695
    %v4770 = vpow.pop %v4769
    %v4771 = vmul.f32 %v4768, 1.442695
    %v4772 = vpow.pop %v4771
    %v4773 = vsel %vm743, %v4770, 0.0
    %4774 = vadd.xlane.f32.xlu0 %v4773
    %v4775 = vpop.xlane.xlu0 %4774
    %v4776 = vsel %vm743, %v4772, 0.0
    %4777 = vadd.xlane.f32.xlu0 %v4776
    %v4778 = vpop.xlane.xlu0 %4777
    %v4779 = vrcp.pop %v4775
    %v4780 = vrcp.pop %v4778
    %v4781 = vmul.f32 %v4770, %v4779
    %v4782 = vmul.f32 %v4772, %v4780
    %4783 = vrot.lane.b32.xlu0 %v3467, 64
    %v4784 = vpop.permute.xlu0 %4783
    %4785 = vrot.lane.b32.xlu0 %v3472, 64
    %v4786 = vpop.permute.xlu0 %4785
    %v4790 = vsel %vm743, %v4781, 0
    %v4793 = vsel %vm743, %v4782, 0
    %4795 = vmatprep.subr.mxu0 0.0
    %4796 = vmatpush1.msra.mxu0 0.0
    %4797 = vmatprep.subr.mxu0 0.0
    %4798 = vmatpush1.msra.mxu0 0.0
    %4799 = vmatprep.subr.mxu0 0.0
    %4800 = vmatpush1.msra.mxu0 0.0
    %4801 = vmatprep.subr.mxu0 0.0
    %4802 = vmatpush1.msra.mxu0 0.0
    %4803 = vmatprep.subr.mxu0 0.0
    %4804 = vmatpush1.msra.mxu0 0.0
    %4805 = vmatprep.subr.mxu0 0.0
    %4806 = vmatpush1.msra.mxu0 0.0
    %4807 = vmatprep.subr.mxu0 0.0
    %4808 = vmatpush1.msra.mxu0 0.0
    %4809 = vmatprep.subr.mxu0 0.0
    %4810 = vmatpush1.msra.mxu0 0.0
    %4811 = vmatprep.subr.mxu0 0.0
    %4812 = vmatpush1.msra.mxu0 0.0
    %4813 = vmatprep.subr.mxu0 0.0
    %4814 = vmatpush1.msra.mxu0 0.0
    %4815 = vmatprep.subr.mxu0 0.0
    %4816 = vmatpush1.msra.mxu0 0.0
    %4817 = vmatprep.subr.mxu0 0.0
    %4818 = vmatpush1.msra.mxu0 0.0
    %4819 = vmatprep.subr.mxu0 0.0
    %4820 = vmatpush1.msra.mxu0 0.0
    %4821 = vmatprep.subr.mxu0 0.0
    %4822 = vmatpush1.msra.mxu0 0.0
    %4823 = vmatprep.subr.mxu0 0.0
    %4824 = vmatpush1.msra.mxu0 %v4786
    %4825 = vmatprep.subr.mxu0 0.0
    %4826 = vmatpush1.msra.mxu0 %v4784
    %4827 = vmatprep.subr.mxu0 0.0
    %4828 = vmatpush2.msra.mxu0 0.0
    %4829 = vmatprep.subr.mxu0 0.0
    %4830 = vmatpush2.msra.mxu0 0.0
    %4831 = vmatprep.subr.mxu0 0.0
    %4832 = vmatpush2.msra.mxu0 0.0
    %4833 = vmatprep.subr.mxu0 0.0
    %4834 = vmatpush2.msra.mxu0 0.0
    %4835 = vmatprep.subr.mxu0 0.0
    %4836 = vmatpush2.msra.mxu0 0.0
    %4837 = vmatprep.subr.mxu0 0.0
    %4838 = vmatpush2.msra.mxu0 0.0
    %4839 = vmatprep.subr.mxu0 0.0
    %4840 = vmatpush2.msra.mxu0 0.0
    %4841 = vmatprep.subr.mxu0 0.0
    %4842 = vmatpush2.msra.mxu0 0.0
    %4843 = vmatprep.subr.mxu0 0.0
    %4844 = vmatpush2.msra.mxu0 0.0
    %4845 = vmatprep.subr.mxu0 0.0
    %4846 = vmatpush2.msra.mxu0 0.0
    %4847 = vmatprep.subr.mxu0 0.0
    %4848 = vmatpush2.msra.mxu0 0.0
    %4849 = vmatprep.subr.mxu0 0.0
    %4850 = vmatpush2.msra.mxu0 0.0
    %4851 = vmatprep.subr.mxu0 0.0
    %4852 = vmatpush2.msra.mxu0 0.0
    %4853 = vmatprep.subr.mxu0 0.0
    %4854 = vmatpush2.msra.mxu0 0.0
    %4855 = vmatprep.subr.mxu0 0.0
    %4856 = vmatpush2.msra.mxu0 0.0
    %4857 = vmatprep.subr.mxu0 0.0
    %4858 = vmatpush2.msra.mxu0 0.0
    %4859 = vmatprep.mubr.f32.mxu0 0.0
    %4860 = vmatmul.mubr.f32.gmra.mxu0 %v4790
    %v4861 = vpop.f32.mrf.mxu0
    %v4862 = vadd.f32 0.0, %v4861
    %v4863 = vpop.f32.mrf.mxu0
    %4864 = vmatprep.mubr.f32.mxu0 0.0
    %4865 = vmatmul.mubr.f32.gmra.mxu0 %v4793
    %v4866 = vpop.f32.mrf.mxu0
    %v4867 = vadd.f32 0.0, %v4866
    %v4868 = vpop.f32.mrf.mxu0
    %4869 = vdwg.mxu0
    %4870 = vrot.lane.b32.xlu0 %v3467, 120
    %v4871 = vpop.permute.xlu0 %4870
    %4872 = vrot.lane.b32.xlu0 %v3472, 120
    %v4873 = vpop.permute.xlu0 %4872
    %4874 = vrot.lane.b32.xlu0 %v3467, 88
    %v4875 = vpop.permute.xlu0 %4874
    %4876 = vrot.lane.b32.xlu0 %v3472, 88
    %v4877 = vpop.permute.xlu0 %4876
    %v4878 = vsel %vm657, %v4871, 0
    %v4880 = vsel %vm657, %v4873, 0
    %v4882 = vsel %vm657, %v4875, 0
    %v4884 = vsel %vm657, %v4877, 0
    %4886 = vmatprep.subr.mxu0 0.0
    %4887 = vmatpush1.xpose.msra.mxu0 0.0
    %4888 = vmatprep.subr.mxu0 0.0
    %4889 = vmatpush1.xpose.msra.mxu0 0.0
    %4890 = vmatprep.subr.mxu0 0.0
    %4891 = vmatpush1.xpose.msra.mxu0 0.0
    %4892 = vmatprep.subr.mxu0 0.0
    %4893 = vmatpush1.xpose.msra.mxu0 0.0
    %4894 = vmatprep.subr.mxu0 0.0
    %4895 = vmatpush1.xpose.msra.mxu0 0.0
    %4896 = vmatprep.subr.mxu0 0.0
    %4897 = vmatpush1.xpose.msra.mxu0 0.0
    %4898 = vmatprep.subr.mxu0 0.0
    %4899 = vmatpush1.xpose.msra.mxu0 0.0
    %4900 = vmatprep.subr.mxu0 0.0
    %4901 = vmatpush1.xpose.msra.mxu0 0.0
    %4902 = vmatprep.subr.mxu0 0.0
    %4903 = vmatpush1.xpose.msra.mxu0 0.0
    %4904 = vmatprep.subr.mxu0 0.0
    %4905 = vmatpush1.xpose.msra.mxu0 0.0
    %4906 = vmatprep.subr.mxu0 0.0
    %4907 = vmatpush1.xpose.msra.mxu0 0.0
    %4908 = vmatprep.subr.mxu0 0.0
    %4909 = vmatpush1.xpose.msra.mxu0 0.0
    %4910 = vmatprep.subr.mxu0 0.0
    %4911 = vmatpush1.xpose.msra.mxu0 0.0
    %4912 = vmatprep.subr.mxu0 0.0
    %4913 = vmatpush1.xpose.msra.mxu0 0.0
    %4914 = vmatprep.subr.mxu0 0.0
    %4915 = vmatpush1.xpose.msra.mxu0 %v4884
    %4916 = vmatprep.subr.mxu0 0.0
    %4917 = vmatpush1.xpose.msra.mxu0 %v4882
    %4918 = vmatprep.subr.mxu0 0.0
    %4919 = vmatpush2.xpose.msra.mxu0 0.0
    %4920 = vmatprep.subr.mxu0 0.0
    %4921 = vmatpush2.xpose.msra.mxu0 0.0
    %4922 = vmatprep.subr.mxu0 0.0
    %4923 = vmatpush2.xpose.msra.mxu0 0.0
    %4924 = vmatprep.subr.mxu0 0.0
    %4925 = vmatpush2.xpose.msra.mxu0 0.0
    %4926 = vmatprep.subr.mxu0 0.0
    %4927 = vmatpush2.xpose.msra.mxu0 0.0
    %4928 = vmatprep.subr.mxu0 0.0
    %4929 = vmatpush2.xpose.msra.mxu0 0.0
    %4930 = vmatprep.subr.mxu0 0.0
    %4931 = vmatpush2.xpose.msra.mxu0 0.0
    %4932 = vmatprep.subr.mxu0 0.0
    %4933 = vmatpush2.xpose.msra.mxu0 0.0
    %4934 = vmatprep.subr.mxu0 0.0
    %4935 = vmatpush2.xpose.msra.mxu0 0.0
    %4936 = vmatprep.subr.mxu0 0.0
    %4937 = vmatpush2.xpose.msra.mxu0 0.0
    %4938 = vmatprep.subr.mxu0 0.0
    %4939 = vmatpush2.xpose.msra.mxu0 0.0
    %4940 = vmatprep.subr.mxu0 0.0
    %4941 = vmatpush2.xpose.msra.mxu0 0.0
    %4942 = vmatprep.subr.mxu0 0.0
    %4943 = vmatpush2.xpose.msra.mxu0 0.0
    %4944 = vmatprep.subr.mxu0 0.0
    %4945 = vmatpush2.xpose.msra.mxu0 0.0
    %4946 = vmatprep.subr.mxu0 0.0
    %4947 = vmatpush2.xpose.msra.mxu0 0.0
    %4948 = vmatprep.subr.mxu0 0.0
    %4949 = vmatpush2.xpose.msra.mxu0 0.0
    %4950 = vmatprep.mubr.f32.mxu0 0.0
    %4951 = vmatmul.mubr.f32.gmra.mxu0 %v4878
    %v4952 = vpop.f32.mrf.mxu0
    %v4953 = vadd.f32 0.0, %v4952
    %v4954 = vpop.f32.mrf.mxu0
    %4955 = vmatprep.mubr.f32.mxu0 0.0
    %4956 = vmatmul.mubr.f32.gmra.mxu0 %v4880
    %v4957 = vpop.f32.mrf.mxu0
    %v4958 = vadd.f32 0.0, %v4957
    %v4959 = vpop.f32.mrf.mxu0
    %4960 = vdwg.mxu0
    %v4961 = vmul.f32 %v4953, 0.35355338
    %v4962 = vmul.f32 %v4958, 0.35355338
    %v4963 = vsel %vm743, %v4961, -inf
    %4964 = vmax.xlane.f32.xlu0 %v4963
    %v4965 = vpop.xlane.xlu0 %4964
    %v4966 = vsel %vm743, %v4962, -inf
    %4967 = vmax.xlane.f32.xlu0 %v4966
    %v4968 = vpop.xlane.xlu0 %4967
    %v4969 = vsub.f32 %v4961, %v4965
    %v4970 = vsub.f32 %v4962, %v4968
    %v4971 = vmul.f32 %v4969, 1.442695
    %v4972 = vpow.pop %v4971
    %v4973 = vmul.f32 %v4970, 1.442695
    %v4974 = vpow.pop %v4973
    %v4975 = vsel %vm743, %v4972, 0.0
    %4976 = vadd.xlane.f32.xlu0 %v4975
    %v4977 = vpop.xlane.xlu0 %4976
    %v4978 = vsel %vm743, %v4974, 0.0
    %4979 = vadd.xlane.f32.xlu0 %v4978
    %v4980 = vpop.xlane.xlu0 %4979
    %v4981 = vrcp.pop %v4977
    %v4982 = vrcp.pop %v4980
    %v4983 = vmul.f32 %v4972, %v4981
    %v4984 = vmul.f32 %v4974, %v4982
    %4985 = vrot.lane.b32.xlu0 %v3467, 56
    %v4986 = vpop.permute.xlu0 %4985
    %4987 = vrot.lane.b32.xlu0 %v3472, 56
    %v4988 = vpop.permute.xlu0 %4987
    %v4992 = vsel %vm743, %v4983, 0
    %v4995 = vsel %vm743, %v4984, 0
    %4997 = vmatprep.subr.mxu0 0.0
    %4998 = vmatpush1.msra.mxu0 0.0
    %4999 = vmatprep.subr.mxu0 0.0
    %5000 = vmatpush1.msra.mxu0 0.0
    %5001 = vmatprep.subr.mxu0 0.0
    %5002 = vmatpush1.msra.mxu0 0.0
    %5003 = vmatprep.subr.mxu0 0.0
    %5004 = vmatpush1.msra.mxu0 0.0
    %5005 = vmatprep.subr.mxu0 0.0
    %5006 = vmatpush1.msra.mxu0 0.0
    %5007 = vmatprep.subr.mxu0 0.0
    %5008 = vmatpush1.msra.mxu0 0.0
    %5009 = vmatprep.subr.mxu0 0.0
    %5010 = vmatpush1.msra.mxu0 0.0
    %5011 = vmatprep.subr.mxu0 0.0
    %5012 = vmatpush1.msra.mxu0 0.0
    %5013 = vmatprep.subr.mxu0 0.0
    %5014 = vmatpush1.msra.mxu0 0.0
    %5015 = vmatprep.subr.mxu0 0.0
    %5016 = vmatpush1.msra.mxu0 0.0
    %5017 = vmatprep.subr.mxu0 0.0
    %5018 = vmatpush1.msra.mxu0 0.0
    %5019 = vmatprep.subr.mxu0 0.0
    %5020 = vmatpush1.msra.mxu0 0.0
    %5021 = vmatprep.subr.mxu0 0.0
    %5022 = vmatpush1.msra.mxu0 0.0
    %5023 = vmatprep.subr.mxu0 0.0
    %5024 = vmatpush1.msra.mxu0 0.0
    %5025 = vmatprep.subr.mxu0 0.0
    %5026 = vmatpush1.msra.mxu0 %v4988
    %5027 = vmatprep.subr.mxu0 0.0
    %5028 = vmatpush1.msra.mxu0 %v4986
    %5029 = vmatprep.subr.mxu0 0.0
    %5030 = vmatpush2.msra.mxu0 0.0
    %5031 = vmatprep.subr.mxu0 0.0
    %5032 = vmatpush2.msra.mxu0 0.0
    %5033 = vmatprep.subr.mxu0 0.0
    %5034 = vmatpush2.msra.mxu0 0.0
    %5035 = vmatprep.subr.mxu0 0.0
    %5036 = vmatpush2.msra.mxu0 0.0
    %5037 = vmatprep.subr.mxu0 0.0
    %5038 = vmatpush2.msra.mxu0 0.0
    %5039 = vmatprep.subr.mxu0 0.0
    %5040 = vmatpush2.msra.mxu0 0.0
    %5041 = vmatprep.subr.mxu0 0.0
    %5042 = vmatpush2.msra.mxu0 0.0
    %5043 = vmatprep.subr.mxu0 0.0
    %5044 = vmatpush2.msra.mxu0 0.0
    %5045 = vmatprep.subr.mxu0 0.0
    %5046 = vmatpush2.msra.mxu0 0.0
    %5047 = vmatprep.subr.mxu0 0.0
    %5048 = vmatpush2.msra.mxu0 0.0
    %5049 = vmatprep.subr.mxu0 0.0
    %5050 = vmatpush2.msra.mxu0 0.0
    %5051 = vmatprep.subr.mxu0 0.0
    %5052 = vmatpush2.msra.mxu0 0.0
    %5053 = vmatprep.subr.mxu0 0.0
    %5054 = vmatpush2.msra.mxu0 0.0
    %5055 = vmatprep.subr.mxu0 0.0
    %5056 = vmatpush2.msra.mxu0 0.0
    %5057 = vmatprep.subr.mxu0 0.0
    %5058 = vmatpush2.msra.mxu0 0.0
    %5059 = vmatprep.subr.mxu0 0.0
    %5060 = vmatpush2.msra.mxu0 0.0
    %5061 = vmatprep.mubr.f32.mxu0 0.0
    %5062 = vmatmul.mubr.f32.gmra.mxu0 %v4992
    %v5063 = vpop.f32.mrf.mxu0
    %v5064 = vadd.f32 0.0, %v5063
    %v5065 = vpop.f32.mrf.mxu0
    %5066 = vmatprep.mubr.f32.mxu0 0.0
    %5067 = vmatmul.mubr.f32.gmra.mxu0 %v4995
    %v5068 = vpop.f32.mrf.mxu0
    %v5069 = vadd.f32 0.0, %v5068
    %v5070 = vpop.f32.mrf.mxu0
    %5071 = vdwg.mxu0
    %v5073 = vsel %vm657, %v5064, 0
    %v5076 = vsel %vm657, %v5069, 0
    %5078 = vmatprep.subr.mxu0 0.0
    %5079 = vmatpush1.msra.mxu0 0.0
    %5080 = vmatprep.subr.mxu0 0.0
    %5081 = vmatpush1.msra.mxu0 0.0
    %5082 = vmatprep.subr.mxu0 0.0
    %5083 = vmatpush1.msra.mxu0 0.0
    %5084 = vmatprep.subr.mxu0 0.0
    %5085 = vmatpush1.msra.mxu0 0.0
    %5086 = vmatprep.subr.mxu0 0.0
    %5087 = vmatpush1.msra.mxu0 0.0
    %5088 = vmatprep.subr.mxu0 0.0
    %5089 = vmatpush1.msra.mxu0 0.0
    %5090 = vmatprep.subr.mxu0 0.0
    %5091 = vmatpush1.msra.mxu0 0.0
    %5092 = vmatprep.subr.mxu0 0.0
    %5093 = vmatpush1.msra.mxu0 0.0
    %5094 = vmatprep.subr.mxu0 0.0
    %5095 = vmatpush1.msra.mxu0 0.0
    %5096 = vmatprep.subr.mxu0 0.0
    %5097 = vmatpush1.msra.mxu0 0.0
    %5098 = vmatprep.subr.mxu0 0.0
    %5099 = vmatpush1.msra.mxu0 0.0
    %5100 = vmatprep.subr.mxu0 0.0
    %5101 = vmatpush1.msra.mxu0 0.0
    %5102 = vmatprep.subr.mxu0 0.0
    %5103 = vmatpush1.msra.mxu0 0.0
    %5104 = vmatprep.subr.mxu0 0.0
    %5105 = vmatpush1.msra.mxu0 0.0
    %5106 = vmatprep.subr.mxu0 0.0
    %5107 = vmatpush1.msra.mxu0 0.0
    %5108 = vmatprep.subr.mxu0 0.0
    %5109 = vmatpush1.msra.mxu0 %v3476
    %5110 = vmatprep.subr.mxu0 0.0
    %5111 = vmatpush2.msra.mxu0 0.0
    %5112 = vmatprep.subr.mxu0 0.0
    %5113 = vmatpush2.msra.mxu0 0.0
    %5114 = vmatprep.subr.mxu0 0.0
    %5115 = vmatpush2.msra.mxu0 0.0
    %5116 = vmatprep.subr.mxu0 0.0
    %5117 = vmatpush2.msra.mxu0 0.0
    %5118 = vmatprep.subr.mxu0 0.0
    %5119 = vmatpush2.msra.mxu0 0.0
    %5120 = vmatprep.subr.mxu0 0.0
    %5121 = vmatpush2.msra.mxu0 0.0
    %5122 = vmatprep.subr.mxu0 0.0
    %5123 = vmatpush2.msra.mxu0 0.0
    %5124 = vmatprep.subr.mxu0 0.0
    %5125 = vmatpush2.msra.mxu0 0.0
    %5126 = vmatprep.subr.mxu0 0.0
    %5127 = vmatpush2.msra.mxu0 0.0
    %5128 = vmatprep.subr.mxu0 0.0
    %5129 = vmatpush2.msra.mxu0 0.0
    %5130 = vmatprep.subr.mxu0 0.0
    %5131 = vmatpush2.msra.mxu0 0.0
    %5132 = vmatprep.subr.mxu0 0.0
    %5133 = vmatpush2.msra.mxu0 0.0
    %5134 = vmatprep.subr.mxu0 0.0
    %5135 = vmatpush2.msra.mxu0 0.0
    %5136 = vmatprep.subr.mxu0 0.0
    %5137 = vmatpush2.msra.mxu0 0.0
    %5138 = vmatprep.subr.mxu0 0.0
    %5139 = vmatpush2.msra.mxu0 0.0
    %5140 = vmatprep.subr.mxu0 0.0
    %5141 = vmatpush2.msra.mxu0 0.0
    %5142 = vmatprep.mubr.f32.mxu0 0.0
    %5143 = vmatmul.mubr.f32.gmra.mxu0 %v5073
    %v5144 = vpop.f32.mrf.mxu0
    %v5145 = vadd.f32 0.0, %v5144
    %v5146 = vpop.f32.mrf.mxu0
    %5147 = vmatprep.mubr.f32.mxu0 0.0
    %5148 = vmatmul.mubr.f32.gmra.mxu0 %v5076
    %v5149 = vpop.f32.mrf.mxu0
    %v5150 = vadd.f32 0.0, %v5149
    %v5151 = vpop.f32.mrf.mxu0
    %5152 = vdwg.mxu0
    %v5154 = vsel %vm657, %v4862, 0
    %v5157 = vsel %vm657, %v4867, 0
    %5159 = vmatprep.subr.mxu0 0.0
    %5160 = vmatpush1.msra.mxu0 0.0
    %5161 = vmatprep.subr.mxu0 0.0
    %5162 = vmatpush1.msra.mxu0 0.0
    %5163 = vmatprep.subr.mxu0 0.0
    %5164 = vmatpush1.msra.mxu0 0.0
    %5165 = vmatprep.subr.mxu0 0.0
    %5166 = vmatpush1.msra.mxu0 0.0
    %5167 = vmatprep.subr.mxu0 0.0
    %5168 = vmatpush1.msra.mxu0 0.0
    %5169 = vmatprep.subr.mxu0 0.0
    %5170 = vmatpush1.msra.mxu0 0.0
    %5171 = vmatprep.subr.mxu0 0.0
    %5172 = vmatpush1.msra.mxu0 0.0
    %5173 = vmatprep.subr.mxu0 0.0
    %5174 = vmatpush1.msra.mxu0 0.0
    %5175 = vmatprep.subr.mxu0 0.0
    %5176 = vmatpush1.msra.mxu0 0.0
    %5177 = vmatprep.subr.mxu0 0.0
    %5178 = vmatpush1.msra.mxu0 0.0
    %5179 = vmatprep.subr.mxu0 0.0
    %5180 = vmatpush1.msra.mxu0 0.0
    %5181 = vmatprep.subr.mxu0 0.0
    %5182 = vmatpush1.msra.mxu0 0.0
    %5183 = vmatprep.subr.mxu0 0.0
    %5184 = vmatpush1.msra.mxu0 0.0
    %5185 = vmatprep.subr.mxu0 0.0
    %5186 = vmatpush1.msra.mxu0 0.0
    %5187 = vmatprep.subr.mxu0 0.0
    %5188 = vmatpush1.msra.mxu0 0.0
    %5189 = vmatprep.subr.mxu0 0.0
    %5190 = vmatpush1.msra.mxu0 %v3475
    %5191 = vmatprep.subr.mxu0 0.0
    %5192 = vmatpush2.msra.mxu0 0.0
    %5193 = vmatprep.subr.mxu0 0.0
    %5194 = vmatpush2.msra.mxu0 0.0
    %5195 = vmatprep.subr.mxu0 0.0
    %5196 = vmatpush2.msra.mxu0 0.0
    %5197 = vmatprep.subr.mxu0 0.0
    %5198 = vmatpush2.msra.mxu0 0.0
    %5199 = vmatprep.subr.mxu0 0.0
    %5200 = vmatpush2.msra.mxu0 0.0
    %5201 = vmatprep.subr.mxu0 0.0
    %5202 = vmatpush2.msra.mxu0 0.0
    %5203 = vmatprep.subr.mxu0 0.0
    %5204 = vmatpush2.msra.mxu0 0.0
    %5205 = vmatprep.subr.mxu0 0.0
    %5206 = vmatpush2.msra.mxu0 0.0
    %5207 = vmatprep.subr.mxu0 0.0
    %5208 = vmatpush2.msra.mxu0 0.0
    %5209 = vmatprep.subr.mxu0 0.0
    %5210 = vmatpush2.msra.mxu0 0.0
    %5211 = vmatprep.subr.mxu0 0.0
    %5212 = vmatpush2.msra.mxu0 0.0
    %5213 = vmatprep.subr.mxu0 0.0
    %5214 = vmatpush2.msra.mxu0 0.0
    %5215 = vmatprep.subr.mxu0 0.0
    %5216 = vmatpush2.msra.mxu0 0.0
    %5217 = vmatprep.subr.mxu0 0.0
    %5218 = vmatpush2.msra.mxu0 0.0
    %5219 = vmatprep.subr.mxu0 0.0
    %5220 = vmatpush2.msra.mxu0 0.0
    %5221 = vmatprep.subr.mxu0 0.0
    %5222 = vmatpush2.msra.mxu0 0.0
    %5223 = vmatprep.mubr.f32.mxu0 0.0
    %5224 = vmatmul.mubr.f32.gmra.mxu0 %v5154
    %v5225 = vpop.f32.mrf.mxu0
    %v5226 = vadd.f32 %v5145, %v5225
    %v5227 = vpop.f32.mrf.mxu0
    %5228 = vmatprep.mubr.f32.mxu0 0.0
    %5229 = vmatmul.mubr.f32.gmra.mxu0 %v5157
    %v5230 = vpop.f32.mrf.mxu0
    %v5231 = vadd.f32 %v5150, %v5230
    %v5232 = vpop.f32.mrf.mxu0
    %5233 = vdwg.mxu0
    %5234 = vrot.lane.b32.xlu0 %v3467, 112
    %v5235 = vpop.permute.xlu0 %5234
    %5236 = vrot.lane.b32.xlu0 %v3472, 112
    %v5237 = vpop.permute.xlu0 %5236
    %5238 = vrot.lane.b32.xlu0 %v3467, 80
    %v5239 = vpop.permute.xlu0 %5238
    %5240 = vrot.lane.b32.xlu0 %v3472, 80
    %v5241 = vpop.permute.xlu0 %5240
    %v5242 = vsel %vm657, %v5235, 0
    %v5244 = vsel %vm657, %v5237, 0
    %v5246 = vsel %vm657, %v5239, 0
    %v5248 = vsel %vm657, %v5241, 0
    %5250 = vmatprep.subr.mxu0 0.0
    %5251 = vmatpush1.xpose.msra.mxu0 0.0
    %5252 = vmatprep.subr.mxu0 0.0
    %5253 = vmatpush1.xpose.msra.mxu0 0.0
    %5254 = vmatprep.subr.mxu0 0.0
    %5255 = vmatpush1.xpose.msra.mxu0 0.0
    %5256 = vmatprep.subr.mxu0 0.0
    %5257 = vmatpush1.xpose.msra.mxu0 0.0
    %5258 = vmatprep.subr.mxu0 0.0
    %5259 = vmatpush1.xpose.msra.mxu0 0.0
    %5260 = vmatprep.subr.mxu0 0.0
    %5261 = vmatpush1.xpose.msra.mxu0 0.0
    %5262 = vmatprep.subr.mxu0 0.0
    %5263 = vmatpush1.xpose.msra.mxu0 0.0
    %5264 = vmatprep.subr.mxu0 0.0
    %5265 = vmatpush1.xpose.msra.mxu0 0.0
    %5266 = vmatprep.subr.mxu0 0.0
    %5267 = vmatpush1.xpose.msra.mxu0 0.0
    %5268 = vmatprep.subr.mxu0 0.0
    %5269 = vmatpush1.xpose.msra.mxu0 0.0
    %5270 = vmatprep.subr.mxu0 0.0
    %5271 = vmatpush1.xpose.msra.mxu0 0.0
    %5272 = vmatprep.subr.mxu0 0.0
    %5273 = vmatpush1.xpose.msra.mxu0 0.0
    %5274 = vmatprep.subr.mxu0 0.0
    %5275 = vmatpush1.xpose.msra.mxu0 0.0
    %5276 = vmatprep.subr.mxu0 0.0
    %5277 = vmatpush1.xpose.msra.mxu0 0.0
    %5278 = vmatprep.subr.mxu0 0.0
    %5279 = vmatpush1.xpose.msra.mxu0 %v5248
    %5280 = vmatprep.subr.mxu0 0.0
    %5281 = vmatpush1.xpose.msra.mxu0 %v5246
    %5282 = vmatprep.subr.mxu0 0.0
    %5283 = vmatpush2.xpose.msra.mxu0 0.0
    %5284 = vmatprep.subr.mxu0 0.0
    %5285 = vmatpush2.xpose.msra.mxu0 0.0
    %5286 = vmatprep.subr.mxu0 0.0
    %5287 = vmatpush2.xpose.msra.mxu0 0.0
    %5288 = vmatprep.subr.mxu0 0.0
    %5289 = vmatpush2.xpose.msra.mxu0 0.0
    %5290 = vmatprep.subr.mxu0 0.0
    %5291 = vmatpush2.xpose.msra.mxu0 0.0
    %5292 = vmatprep.subr.mxu0 0.0
    %5293 = vmatpush2.xpose.msra.mxu0 0.0
    %5294 = vmatprep.subr.mxu0 0.0
    %5295 = vmatpush2.xpose.msra.mxu0 0.0
    %5296 = vmatprep.subr.mxu0 0.0
    %5297 = vmatpush2.xpose.msra.mxu0 0.0
    %5298 = vmatprep.subr.mxu0 0.0
    %5299 = vmatpush2.xpose.msra.mxu0 0.0
    %5300 = vmatprep.subr.mxu0 0.0
    %5301 = vmatpush2.xpose.msra.mxu0 0.0
    %5302 = vmatprep.subr.mxu0 0.0
    %5303 = vmatpush2.xpose.msra.mxu0 0.0
    %5304 = vmatprep.subr.mxu0 0.0
    %5305 = vmatpush2.xpose.msra.mxu0 0.0
    %5306 = vmatprep.subr.mxu0 0.0
    %5307 = vmatpush2.xpose.msra.mxu0 0.0
    %5308 = vmatprep.subr.mxu0 0.0
    %5309 = vmatpush2.xpose.msra.mxu0 0.0
    %5310 = vmatprep.subr.mxu0 0.0
    %5311 = vmatpush2.xpose.msra.mxu0 0.0
    %5312 = vmatprep.subr.mxu0 0.0
    %5313 = vmatpush2.xpose.msra.mxu0 0.0
    %5314 = vmatprep.mubr.f32.mxu0 0.0
    %5315 = vmatmul.mubr.f32.gmra.mxu0 %v5242
    %v5316 = vpop.f32.mrf.mxu0
    %v5317 = vadd.f32 0.0, %v5316
    %v5318 = vpop.f32.mrf.mxu0
    %5319 = vmatprep.mubr.f32.mxu0 0.0
    %5320 = vmatmul.mubr.f32.gmra.mxu0 %v5244
    %v5321 = vpop.f32.mrf.mxu0
    %v5322 = vadd.f32 0.0, %v5321
    %v5323 = vpop.f32.mrf.mxu0
    %5324 = vdwg.mxu0
    %v5325 = vmul.f32 %v5317, 0.35355338
    %v5326 = vmul.f32 %v5322, 0.35355338
    %v5327 = vsel %vm743, %v5325, -inf
    %5328 = vmax.xlane.f32.xlu0 %v5327
    %v5329 = vpop.xlane.xlu0 %5328
    %v5330 = vsel %vm743, %v5326, -inf
    %5331 = vmax.xlane.f32.xlu0 %v5330
    %v5332 = vpop.xlane.xlu0 %5331
    %v5333 = vsub.f32 %v5325, %v5329
    %v5334 = vsub.f32 %v5326, %v5332
    %v5335 = vmul.f32 %v5333, 1.442695
    %v5336 = vpow.pop %v5335
    %v5337 = vmul.f32 %v5334, 1.442695
    %v5338 = vpow.pop %v5337
    %v5339 = vsel %vm743, %v5336, 0.0
    %5340 = vadd.xlane.f32.xlu0 %v5339
    %v5341 = vpop.xlane.xlu0 %5340
    %v5342 = vsel %vm743, %v5338, 0.0
    %5343 = vadd.xlane.f32.xlu0 %v5342
    %v5344 = vpop.xlane.xlu0 %5343
    %v5345 = vrcp.pop %v5341
    %v5346 = vrcp.pop %v5344
    %v5347 = vmul.f32 %v5336, %v5345
    %v5348 = vmul.f32 %v5338, %v5346
    %5349 = vrot.lane.b32.xlu0 %v3467, 48
    %v5350 = vpop.permute.xlu0 %5349
    %5351 = vrot.lane.b32.xlu0 %v3472, 48
    %v5352 = vpop.permute.xlu0 %5351
    %v5356 = vsel %vm743, %v5347, 0
    %v5359 = vsel %vm743, %v5348, 0
    %5361 = vmatprep.subr.mxu0 0.0
    %5362 = vmatpush1.msra.mxu0 0.0
    %5363 = vmatprep.subr.mxu0 0.0
    %5364 = vmatpush1.msra.mxu0 0.0
    %5365 = vmatprep.subr.mxu0 0.0
    %5366 = vmatpush1.msra.mxu0 0.0
    %5367 = vmatprep.subr.mxu0 0.0
    %5368 = vmatpush1.msra.mxu0 0.0
    %5369 = vmatprep.subr.mxu0 0.0
    %5370 = vmatpush1.msra.mxu0 0.0
    %5371 = vmatprep.subr.mxu0 0.0
    %5372 = vmatpush1.msra.mxu0 0.0
    %5373 = vmatprep.subr.mxu0 0.0
    %5374 = vmatpush1.msra.mxu0 0.0
    %5375 = vmatprep.subr.mxu0 0.0
    %5376 = vmatpush1.msra.mxu0 0.0
    %5377 = vmatprep.subr.mxu0 0.0
    %5378 = vmatpush1.msra.mxu0 0.0
    %5379 = vmatprep.subr.mxu0 0.0
    %5380 = vmatpush1.msra.mxu0 0.0
    %5381 = vmatprep.subr.mxu0 0.0
    %5382 = vmatpush1.msra.mxu0 0.0
    %5383 = vmatprep.subr.mxu0 0.0
    %5384 = vmatpush1.msra.mxu0 0.0
    %5385 = vmatprep.subr.mxu0 0.0
    %5386 = vmatpush1.msra.mxu0 0.0
    %5387 = vmatprep.subr.mxu0 0.0
    %5388 = vmatpush1.msra.mxu0 0.0
    %5389 = vmatprep.subr.mxu0 0.0
    %5390 = vmatpush1.msra.mxu0 %v5352
    %5391 = vmatprep.subr.mxu0 0.0
    %5392 = vmatpush1.msra.mxu0 %v5350
    %5393 = vmatprep.subr.mxu0 0.0
    %5394 = vmatpush2.msra.mxu0 0.0
    %5395 = vmatprep.subr.mxu0 0.0
    %5396 = vmatpush2.msra.mxu0 0.0
    %5397 = vmatprep.subr.mxu0 0.0
    %5398 = vmatpush2.msra.mxu0 0.0
    %5399 = vmatprep.subr.mxu0 0.0
    %5400 = vmatpush2.msra.mxu0 0.0
    %5401 = vmatprep.subr.mxu0 0.0
    %5402 = vmatpush2.msra.mxu0 0.0
    %5403 = vmatprep.subr.mxu0 0.0
    %5404 = vmatpush2.msra.mxu0 0.0
    %5405 = vmatprep.subr.mxu0 0.0
    %5406 = vmatpush2.msra.mxu0 0.0
    %5407 = vmatprep.subr.mxu0 0.0
    %5408 = vmatpush2.msra.mxu0 0.0
    %5409 = vmatprep.subr.mxu0 0.0
    %5410 = vmatpush2.msra.mxu0 0.0
    %5411 = vmatprep.subr.mxu0 0.0
    %5412 = vmatpush2.msra.mxu0 0.0
    %5413 = vmatprep.subr.mxu0 0.0
    %5414 = vmatpush2.msra.mxu0 0.0
    %5415 = vmatprep.subr.mxu0 0.0
    %5416 = vmatpush2.msra.mxu0 0.0
    %5417 = vmatprep.subr.mxu0 0.0
    %5418 = vmatpush2.msra.mxu0 0.0
    %5419 = vmatprep.subr.mxu0 0.0
    %5420 = vmatpush2.msra.mxu0 0.0
    %5421 = vmatprep.subr.mxu0 0.0
    %5422 = vmatpush2.msra.mxu0 0.0
    %5423 = vmatprep.subr.mxu0 0.0
    %5424 = vmatpush2.msra.mxu0 0.0
    %5425 = vmatprep.mubr.f32.mxu0 0.0
    %5426 = vmatmul.mubr.f32.gmra.mxu0 %v5356
    %v5427 = vpop.f32.mrf.mxu0
    %v5428 = vadd.f32 0.0, %v5427
    %v5429 = vpop.f32.mrf.mxu0
    %5430 = vmatprep.mubr.f32.mxu0 0.0
    %5431 = vmatmul.mubr.f32.gmra.mxu0 %v5359
    %v5432 = vpop.f32.mrf.mxu0
    %v5433 = vadd.f32 0.0, %v5432
    %v5434 = vpop.f32.mrf.mxu0
    %5435 = vdwg.mxu0
    %v5437 = vsel %vm657, %v5428, 0
    %v5440 = vsel %vm657, %v5433, 0
    %5442 = vmatprep.subr.mxu0 0.0
    %5443 = vmatpush1.msra.mxu0 0.0
    %5444 = vmatprep.subr.mxu0 0.0
    %5445 = vmatpush1.msra.mxu0 0.0
    %5446 = vmatprep.subr.mxu0 0.0
    %5447 = vmatpush1.msra.mxu0 0.0
    %5448 = vmatprep.subr.mxu0 0.0
    %5449 = vmatpush1.msra.mxu0 0.0
    %5450 = vmatprep.subr.mxu0 0.0
    %5451 = vmatpush1.msra.mxu0 0.0
    %5452 = vmatprep.subr.mxu0 0.0
    %5453 = vmatpush1.msra.mxu0 0.0
    %5454 = vmatprep.subr.mxu0 0.0
    %5455 = vmatpush1.msra.mxu0 0.0
    %5456 = vmatprep.subr.mxu0 0.0
    %5457 = vmatpush1.msra.mxu0 0.0
    %5458 = vmatprep.subr.mxu0 0.0
    %5459 = vmatpush1.msra.mxu0 0.0
    %5460 = vmatprep.subr.mxu0 0.0
    %5461 = vmatpush1.msra.mxu0 0.0
    %5462 = vmatprep.subr.mxu0 0.0
    %5463 = vmatpush1.msra.mxu0 0.0
    %5464 = vmatprep.subr.mxu0 0.0
    %5465 = vmatpush1.msra.mxu0 0.0
    %5466 = vmatprep.subr.mxu0 0.0
    %5467 = vmatpush1.msra.mxu0 0.0
    %5468 = vmatprep.subr.mxu0 0.0
    %5469 = vmatpush1.msra.mxu0 0.0
    %5470 = vmatprep.subr.mxu0 0.0
    %5471 = vmatpush1.msra.mxu0 0.0
    %5472 = vmatprep.subr.mxu0 0.0
    %5473 = vmatpush1.msra.mxu0 %v3477
    %5474 = vmatprep.subr.mxu0 0.0
    %5475 = vmatpush2.msra.mxu0 0.0
    %5476 = vmatprep.subr.mxu0 0.0
    %5477 = vmatpush2.msra.mxu0 0.0
    %5478 = vmatprep.subr.mxu0 0.0
    %5479 = vmatpush2.msra.mxu0 0.0
    %5480 = vmatprep.subr.mxu0 0.0
    %5481 = vmatpush2.msra.mxu0 0.0
    %5482 = vmatprep.subr.mxu0 0.0
    %5483 = vmatpush2.msra.mxu0 0.0
    %5484 = vmatprep.subr.mxu0 0.0
    %5485 = vmatpush2.msra.mxu0 0.0
    %5486 = vmatprep.subr.mxu0 0.0
    %5487 = vmatpush2.msra.mxu0 0.0
    %5488 = vmatprep.subr.mxu0 0.0
    %5489 = vmatpush2.msra.mxu0 0.0
    %5490 = vmatprep.subr.mxu0 0.0
    %5491 = vmatpush2.msra.mxu0 0.0
    %5492 = vmatprep.subr.mxu0 0.0
    %5493 = vmatpush2.msra.mxu0 0.0
    %5494 = vmatprep.subr.mxu0 0.0
    %5495 = vmatpush2.msra.mxu0 0.0
    %5496 = vmatprep.subr.mxu0 0.0
    %5497 = vmatpush2.msra.mxu0 0.0
    %5498 = vmatprep.subr.mxu0 0.0
    %5499 = vmatpush2.msra.mxu0 0.0
    %5500 = vmatprep.subr.mxu0 0.0
    %5501 = vmatpush2.msra.mxu0 0.0
    %5502 = vmatprep.subr.mxu0 0.0
    %5503 = vmatpush2.msra.mxu0 0.0
    %5504 = vmatprep.subr.mxu0 0.0
    %5505 = vmatpush2.msra.mxu0 0.0
    %5506 = vmatprep.mubr.f32.mxu0 0.0
    %5507 = vmatmul.mubr.f32.gmra.mxu0 %v5437
    %v5508 = vpop.f32.mrf.mxu0
    %v5509 = vadd.f32 0.0, %v5508
    %v5510 = vpop.f32.mrf.mxu0
    %5511 = vmatprep.mubr.f32.mxu0 0.0
    %5512 = vmatmul.mubr.f32.gmra.mxu0 %v5440
    %v5513 = vpop.f32.mrf.mxu0
    %v5514 = vadd.f32 0.0, %v5513
    %v5515 = vpop.f32.mrf.mxu0
    %5516 = vdwg.mxu0
    %v5517 = vadd.f32 %v5226, %v5509
    %v5518 = vadd.f32 %v5231, %v5514
    %5519 = vrot.lane.b32.xlu0 %v3467, 104
    %v5520 = vpop.permute.xlu0 %5519
    %5521 = vrot.lane.b32.xlu0 %v3472, 104
    %v5522 = vpop.permute.xlu0 %5521
    %5523 = vrot.lane.b32.xlu0 %v3467, 72
    %v5524 = vpop.permute.xlu0 %5523
    %5525 = vrot.lane.b32.xlu0 %v3472, 72
    %v5526 = vpop.permute.xlu0 %5525
    %v5527 = vsel %vm657, %v5520, 0
    %v5529 = vsel %vm657, %v5522, 0
    %v5531 = vsel %vm657, %v5524, 0
    %v5533 = vsel %vm657, %v5526, 0
    %5535 = vmatprep.subr.mxu0 0.0
    %5536 = vmatpush1.xpose.msra.mxu0 0.0
    %5537 = vmatprep.subr.mxu0 0.0
    %5538 = vmatpush1.xpose.msra.mxu0 0.0
    %5539 = vmatprep.subr.mxu0 0.0
    %5540 = vmatpush1.xpose.msra.mxu0 0.0
    %5541 = vmatprep.subr.mxu0 0.0
    %5542 = vmatpush1.xpose.msra.mxu0 0.0
    %5543 = vmatprep.subr.mxu0 0.0
    %5544 = vmatpush1.xpose.msra.mxu0 0.0
    %5545 = vmatprep.subr.mxu0 0.0
    %5546 = vmatpush1.xpose.msra.mxu0 0.0
    %5547 = vmatprep.subr.mxu0 0.0
    %5548 = vmatpush1.xpose.msra.mxu0 0.0
    %5549 = vmatprep.subr.mxu0 0.0
    %5550 = vmatpush1.xpose.msra.mxu0 0.0
    %5551 = vmatprep.subr.mxu0 0.0
    %5552 = vmatpush1.xpose.msra.mxu0 0.0
    %5553 = vmatprep.subr.mxu0 0.0
    %5554 = vmatpush1.xpose.msra.mxu0 0.0
    %5555 = vmatprep.subr.mxu0 0.0
    %5556 = vmatpush1.xpose.msra.mxu0 0.0
    %5557 = vmatprep.subr.mxu0 0.0
    %5558 = vmatpush1.xpose.msra.mxu0 0.0
    %5559 = vmatprep.subr.mxu0 0.0
    %5560 = vmatpush1.xpose.msra.mxu0 0.0
    %5561 = vmatprep.subr.mxu0 0.0
    %5562 = vmatpush1.xpose.msra.mxu0 0.0
    %5563 = vmatprep.subr.mxu0 0.0
    %5564 = vmatpush1.xpose.msra.mxu0 %v5533
    %5565 = vmatprep.subr.mxu0 0.0
    %5566 = vmatpush1.xpose.msra.mxu0 %v5531
    %5567 = vmatprep.subr.mxu0 0.0
    %5568 = vmatpush2.xpose.msra.mxu0 0.0
    %5569 = vmatprep.subr.mxu0 0.0
    %5570 = vmatpush2.xpose.msra.mxu0 0.0
    %5571 = vmatprep.subr.mxu0 0.0
    %5572 = vmatpush2.xpose.msra.mxu0 0.0
    %5573 = vmatprep.subr.mxu0 0.0
    %5574 = vmatpush2.xpose.msra.mxu0 0.0
    %5575 = vmatprep.subr.mxu0 0.0
    %5576 = vmatpush2.xpose.msra.mxu0 0.0
    %5577 = vmatprep.subr.mxu0 0.0
    %5578 = vmatpush2.xpose.msra.mxu0 0.0
    %5579 = vmatprep.subr.mxu0 0.0
    %5580 = vmatpush2.xpose.msra.mxu0 0.0
    %5581 = vmatprep.subr.mxu0 0.0
    %5582 = vmatpush2.xpose.msra.mxu0 0.0
    %5583 = vmatprep.subr.mxu0 0.0
    %5584 = vmatpush2.xpose.msra.mxu0 0.0
    %5585 = vmatprep.subr.mxu0 0.0
    %5586 = vmatpush2.xpose.msra.mxu0 0.0
    %5587 = vmatprep.subr.mxu0 0.0
    %5588 = vmatpush2.xpose.msra.mxu0 0.0
    %5589 = vmatprep.subr.mxu0 0.0
    %5590 = vmatpush2.xpose.msra.mxu0 0.0
    %5591 = vmatprep.subr.mxu0 0.0
    %5592 = vmatpush2.xpose.msra.mxu0 0.0
    %5593 = vmatprep.subr.mxu0 0.0
    %5594 = vmatpush2.xpose.msra.mxu0 0.0
    %5595 = vmatprep.subr.mxu0 0.0
    %5596 = vmatpush2.xpose.msra.mxu0 0.0
    %5597 = vmatprep.subr.mxu0 0.0
    %5598 = vmatpush2.xpose.msra.mxu0 0.0
    %5599 = vmatprep.mubr.f32.mxu0 0.0
    %5600 = vmatmul.mubr.f32.gmra.mxu0 %v5527
    %v5601 = vpop.f32.mrf.mxu0
    %v5602 = vadd.f32 0.0, %v5601
    %v5603 = vpop.f32.mrf.mxu0
    %5604 = vmatprep.mubr.f32.mxu0 0.0
    %5605 = vmatmul.mubr.f32.gmra.mxu0 %v5529
    %v5606 = vpop.f32.mrf.mxu0
    %v5607 = vadd.f32 0.0, %v5606
    %v5608 = vpop.f32.mrf.mxu0
    %5609 = vdwg.mxu0
    %v5610 = vmul.f32 %v5602, 0.35355338
    %v5611 = vmul.f32 %v5607, 0.35355338
    %v5612 = vsel %vm743, %v5610, -inf
    %5613 = vmax.xlane.f32.xlu0 %v5612
    %v5614 = vpop.xlane.xlu0 %5613
    %v5615 = vsel %vm743, %v5611, -inf
    %5616 = vmax.xlane.f32.xlu0 %v5615
    %v5617 = vpop.xlane.xlu0 %5616
    %v5618 = vsub.f32 %v5610, %v5614
    %v5619 = vsub.f32 %v5611, %v5617
    %v5620 = vmul.f32 %v5618, 1.442695
    %v5621 = vpow.pop %v5620
    %v5622 = vmul.f32 %v5619, 1.442695
    %v5623 = vpow.pop %v5622
    %v5624 = vsel %vm743, %v5621, 0.0
    %5625 = vadd.xlane.f32.xlu0 %v5624
    %v5626 = vpop.xlane.xlu0 %5625
    %v5627 = vsel %vm743, %v5623, 0.0
    %5628 = vadd.xlane.f32.xlu0 %v5627
    %v5629 = vpop.xlane.xlu0 %5628
    %v5630 = vrcp.pop %v5626
    %v5631 = vrcp.pop %v5629
    %v5632 = vmul.f32 %v5621, %v5630
    %v5633 = vmul.f32 %v5623, %v5631
    %5634 = vrot.lane.b32.xlu0 %v3467, 40
    %v5635 = vpop.permute.xlu0 %5634
    %5636 = vrot.lane.b32.xlu0 %v3472, 40
    %v5637 = vpop.permute.xlu0 %5636
    %v5641 = vsel %vm743, %v5632, 0
    %v5644 = vsel %vm743, %v5633, 0
    %5646 = vmatprep.subr.mxu0 0.0
    %5647 = vmatpush1.msra.mxu0 0.0
    %5648 = vmatprep.subr.mxu0 0.0
    %5649 = vmatpush1.msra.mxu0 0.0
    %5650 = vmatprep.subr.mxu0 0.0
    %5651 = vmatpush1.msra.mxu0 0.0
    %5652 = vmatprep.subr.mxu0 0.0
    %5653 = vmatpush1.msra.mxu0 0.0
    %5654 = vmatprep.subr.mxu0 0.0
    %5655 = vmatpush1.msra.mxu0 0.0
    %5656 = vmatprep.subr.mxu0 0.0
    %5657 = vmatpush1.msra.mxu0 0.0
    %5658 = vmatprep.subr.mxu0 0.0
    %5659 = vmatpush1.msra.mxu0 0.0
    %5660 = vmatprep.subr.mxu0 0.0
    %5661 = vmatpush1.msra.mxu0 0.0
    %5662 = vmatprep.subr.mxu0 0.0
    %5663 = vmatpush1.msra.mxu0 0.0
    %5664 = vmatprep.subr.mxu0 0.0
    %5665 = vmatpush1.msra.mxu0 0.0
    %5666 = vmatprep.subr.mxu0 0.0
    %5667 = vmatpush1.msra.mxu0 0.0
    %5668 = vmatprep.subr.mxu0 0.0
    %5669 = vmatpush1.msra.mxu0 0.0
    %5670 = vmatprep.subr.mxu0 0.0
    %5671 = vmatpush1.msra.mxu0 0.0
    %5672 = vmatprep.subr.mxu0 0.0
    %5673 = vmatpush1.msra.mxu0 0.0
    %5674 = vmatprep.subr.mxu0 0.0
    %5675 = vmatpush1.msra.mxu0 %v5637
    %5676 = vmatprep.subr.mxu0 0.0
    %5677 = vmatpush1.msra.mxu0 %v5635
    %5678 = vmatprep.subr.mxu0 0.0
    %5679 = vmatpush2.msra.mxu0 0.0
    %5680 = vmatprep.subr.mxu0 0.0
    %5681 = vmatpush2.msra.mxu0 0.0
    %5682 = vmatprep.subr.mxu0 0.0
    %5683 = vmatpush2.msra.mxu0 0.0
    %5684 = vmatprep.subr.mxu0 0.0
    %5685 = vmatpush2.msra.mxu0 0.0
    %5686 = vmatprep.subr.mxu0 0.0
    %5687 = vmatpush2.msra.mxu0 0.0
    %5688 = vmatprep.subr.mxu0 0.0
    %5689 = vmatpush2.msra.mxu0 0.0
    %5690 = vmatprep.subr.mxu0 0.0
    %5691 = vmatpush2.msra.mxu0 0.0
    %5692 = vmatprep.subr.mxu0 0.0
    %5693 = vmatpush2.msra.mxu0 0.0
    %5694 = vmatprep.subr.mxu0 0.0
    %5695 = vmatpush2.msra.mxu0 0.0
    %5696 = vmatprep.subr.mxu0 0.0
    %5697 = vmatpush2.msra.mxu0 0.0
    %5698 = vmatprep.subr.mxu0 0.0
    %5699 = vmatpush2.msra.mxu0 0.0
    %5700 = vmatprep.subr.mxu0 0.0
    %5701 = vmatpush2.msra.mxu0 0.0
    %5702 = vmatprep.subr.mxu0 0.0
    %5703 = vmatpush2.msra.mxu0 0.0
    %5704 = vmatprep.subr.mxu0 0.0
    %5705 = vmatpush2.msra.mxu0 0.0
    %5706 = vmatprep.subr.mxu0 0.0
    %5707 = vmatpush2.msra.mxu0 0.0
    %5708 = vmatprep.subr.mxu0 0.0
    %5709 = vmatpush2.msra.mxu0 0.0
    %5710 = vmatprep.mubr.f32.mxu0 0.0
    %5711 = vmatmul.mubr.f32.gmra.mxu0 %v5641
    %v5712 = vpop.f32.mrf.mxu0
    %v5713 = vadd.f32 0.0, %v5712
    %v5714 = vpop.f32.mrf.mxu0
    %5715 = vmatprep.mubr.f32.mxu0 0.0
    %5716 = vmatmul.mubr.f32.gmra.mxu0 %v5644
    %v5717 = vpop.f32.mrf.mxu0
    %v5718 = vadd.f32 0.0, %v5717
    %v5719 = vpop.f32.mrf.mxu0
    %5720 = vdwg.mxu0
    %v5722 = vsel %vm657, %v5713, 0
    %v5725 = vsel %vm657, %v5718, 0
    %5727 = vmatprep.subr.mxu0 0.0
    %5728 = vmatpush1.msra.mxu0 0.0
    %5729 = vmatprep.subr.mxu0 0.0
    %5730 = vmatpush1.msra.mxu0 0.0
    %5731 = vmatprep.subr.mxu0 0.0
    %5732 = vmatpush1.msra.mxu0 0.0
    %5733 = vmatprep.subr.mxu0 0.0
    %5734 = vmatpush1.msra.mxu0 0.0
    %5735 = vmatprep.subr.mxu0 0.0
    %5736 = vmatpush1.msra.mxu0 0.0
    %5737 = vmatprep.subr.mxu0 0.0
    %5738 = vmatpush1.msra.mxu0 0.0
    %5739 = vmatprep.subr.mxu0 0.0
    %5740 = vmatpush1.msra.mxu0 0.0
    %5741 = vmatprep.subr.mxu0 0.0
    %5742 = vmatpush1.msra.mxu0 0.0
    %5743 = vmatprep.subr.mxu0 0.0
    %5744 = vmatpush1.msra.mxu0 0.0
    %5745 = vmatprep.subr.mxu0 0.0
    %5746 = vmatpush1.msra.mxu0 0.0
    %5747 = vmatprep.subr.mxu0 0.0
    %5748 = vmatpush1.msra.mxu0 0.0
    %5749 = vmatprep.subr.mxu0 0.0
    %5750 = vmatpush1.msra.mxu0 0.0
    %5751 = vmatprep.subr.mxu0 0.0
    %5752 = vmatpush1.msra.mxu0 0.0
    %5753 = vmatprep.subr.mxu0 0.0
    %5754 = vmatpush1.msra.mxu0 0.0
    %5755 = vmatprep.subr.mxu0 0.0
    %5756 = vmatpush1.msra.mxu0 0.0
    %5757 = vmatprep.subr.mxu0 0.0
    %5758 = vmatpush1.msra.mxu0 %v3478
    %5759 = vmatprep.subr.mxu0 0.0
    %5760 = vmatpush2.msra.mxu0 0.0
    %5761 = vmatprep.subr.mxu0 0.0
    %5762 = vmatpush2.msra.mxu0 0.0
    %5763 = vmatprep.subr.mxu0 0.0
    %5764 = vmatpush2.msra.mxu0 0.0
    %5765 = vmatprep.subr.mxu0 0.0
    %5766 = vmatpush2.msra.mxu0 0.0
    %5767 = vmatprep.subr.mxu0 0.0
    %5768 = vmatpush2.msra.mxu0 0.0
    %5769 = vmatprep.subr.mxu0 0.0
    %5770 = vmatpush2.msra.mxu0 0.0
    %5771 = vmatprep.subr.mxu0 0.0
    %5772 = vmatpush2.msra.mxu0 0.0
    %5773 = vmatprep.subr.mxu0 0.0
    %5774 = vmatpush2.msra.mxu0 0.0
    %5775 = vmatprep.subr.mxu0 0.0
    %5776 = vmatpush2.msra.mxu0 0.0
    %5777 = vmatprep.subr.mxu0 0.0
    %5778 = vmatpush2.msra.mxu0 0.0
    %5779 = vmatprep.subr.mxu0 0.0
    %5780 = vmatpush2.msra.mxu0 0.0
    %5781 = vmatprep.subr.mxu0 0.0
    %5782 = vmatpush2.msra.mxu0 0.0
    %5783 = vmatprep.subr.mxu0 0.0
    %5784 = vmatpush2.msra.mxu0 0.0
    %5785 = vmatprep.subr.mxu0 0.0
    %5786 = vmatpush2.msra.mxu0 0.0
    %5787 = vmatprep.subr.mxu0 0.0
    %5788 = vmatpush2.msra.mxu0 0.0
    %5789 = vmatprep.subr.mxu0 0.0
    %5790 = vmatpush2.msra.mxu0 0.0
    %5791 = vmatprep.mubr.f32.mxu0 0.0
    %5792 = vmatmul.mubr.f32.gmra.mxu0 %v5722
    %v5793 = vpop.f32.mrf.mxu0
    %v5794 = vadd.f32 0.0, %v5793
    %v5795 = vpop.f32.mrf.mxu0
    %5796 = vmatprep.mubr.f32.mxu0 0.0
    %5797 = vmatmul.mubr.f32.gmra.mxu0 %v5725
    %v5798 = vpop.f32.mrf.mxu0
    %v5799 = vadd.f32 0.0, %v5798
    %v5800 = vpop.f32.mrf.mxu0
    %5801 = vdwg.mxu0
    %v5802 = vadd.f32 %v5517, %v5794
    %v5803 = vadd.f32 %v5518, %v5799
    %v5804 = vadd.f32 %v3365, %v5802
    %v5805 = vadd.f32 %v3366, %v5803
    %v5806 = vld [vmem:[%s43] sm:$0x1]
    %v5808 = vlaneseq
    %v5809 = vshrl.u32 %v5808, 7
    %v5810 = vsub.s32 0, %v5809
    %v5811 = vrot.slane %v5806, %v5810
    %v5813 = vadd.f32 %v5804, %v5811
    %v5814 = vadd.f32 %v5805, %v5811
    %v5815 = vld [vmem:[#allocation8] sm:$0x1]
    %v5816 = vld [vmem:[#allocation10] sm:$0x1]
    %v5817 = vsel %vm289, %v5813, 0.0
    %5818 = vadd.xlane.f32.xlu0 %v5817
    %v5819 = vpop.xlane.xlu0 %5818
    %v5820 = vsel %vm289, %v5814, 0.0
    %5821 = vadd.xlane.f32.xlu0 %v5820
    %v5822 = vpop.xlane.xlu0 %5821
    %v5823 = vmul.f32 %v5819, %v1806
    %v5824 = vmul.f32 %v5822, %v1806
    %v5825 = vsub.f32 %v5813, %v5823
    %v5826 = vsub.f32 %v5814, %v5824
    %v5827 = vmul.f32 %v5825, %v5825
    %v5828 = vmul.f32 %v5826, %v5826
    %v5829 = vsel %vm289, %v5827, 0.0
    %5830 = vadd.xlane.f32.xlu0 %v5829
    %v5831 = vpop.xlane.xlu0 %5830
    %v5832 = vsel %vm289, %v5828, 0.0
    %5833 = vadd.xlane.f32.xlu0 %v5832
    %v5834 = vpop.xlane.xlu0 %5833
    %v5835 = vmul.f32 %v5831, %v1806
    %v5836 = vmul.f32 %v5834, %v1806
    %v5837 = vadd.f32 %v5835, 1e-05
    %v5838 = vadd.f32 %v5836, 1e-05
    %v5839 = vrsqrt.pop %v5837
    %v5840 = vrsqrt.pop %v5838
    %v5841 = vmul.f32 %v5825, %v5839
    %v5842 = vmul.f32 %v5826, %v5840
    %v5844 = vlaneseq
    %v5845 = vshrl.u32 %v5844, 7
    %v5846 = vsub.s32 0, %v5845
    %v5847 = vrot.slane %v5815, %v5846
    %v5849 = vmul.f32 %v5841, %v5847
    %v5850 = vmul.f32 %v5842, %v5847
    %v5852 = vlaneseq
    %v5853 = vshrl.u32 %v5852, 7
    %v5854 = vsub.s32 0, %v5853
    %v5855 = vrot.slane %v5816, %v5854
    %v5857 = vadd.f32 %v5849, %v5855
    %v5858 = vadd.f32 %v5850, %v5855
    %5859 = vst.msk [vmem:[#allocation2 + $0x10] sm:$0xff] %vm289, %v5857
    %5860 = vst.msk [vmem:[#allocation2 + $0x18] sm:$0xff] %vm289, %v5858
    %v5861 = vld [vmem:[#allocation2] sm:$0xff]
    %v5862 = vld [vmem:[#allocation2 + $0x8] sm:$0xff]
    %v5863 = vld [vmem:[#allocation2 + $0x10] sm:$0xff]
    %v5864 = vld [vmem:[#allocation2 + $0x18] sm:$0xff]
    %v5865 = vld [vmem:[#allocation11] sm:$0xff]
    %v5866 = vld [vmem:[#allocation11 + $0x8] sm:$0xff]
    %v5867 = vld [vmem:[#allocation11 + $0x10] sm:$0xff]
    %v5868 = vld [vmem:[#allocation11 + $0x18] sm:$0xff]
    %v5869 = vld [vmem:[#allocation13] sm:$0x1]
    %v5871 = vlaneseq
    %v5872 = vshrl.u32 %v5871, 7
    %v5873 = vsub.s32 0, %v5872
    %v5874 = vrot.slane %v5869, %v5873
    %v5877 = vsel %vm289, %v5861, 0
    %v5880 = vsel %vm289, %v5862, 0
    %v5883 = vsel %vm289, %v5863, 0
    %v5886 = vsel %vm289, %v5864, 0
    %5888 = vmatprep.subr.mxu0 0.0
    %5889 = vmatpush1.msra.mxu0 0.0
    %5890 = vmatprep.subr.mxu0 0.0
    %5891 = vmatpush1.msra.mxu0 0.0
    %5892 = vmatprep.subr.mxu0 0.0
    %5893 = vmatpush1.msra.mxu0 0.0
    %5894 = vmatprep.subr.mxu0 0.0
    %5895 = vmatpush1.msra.mxu0 0.0
    %5896 = vmatprep.subr.mxu0 0.0
    %5897 = vmatpush1.msra.mxu0 0.0
    %5898 = vmatprep.subr.mxu0 0.0
    %5899 = vmatpush1.msra.mxu0 0.0
    %5900 = vmatprep.subr.mxu0 0.0
    %5901 = vmatpush1.msra.mxu0 0.0
    %5902 = vmatprep.subr.mxu0 0.0
    %5903 = vmatpush1.msra.mxu0 0.0
    %5904 = vmatprep.subr.mxu0 0.0
    %5905 = vmatpush1.msra.mxu0 0.0
    %5906 = vmatprep.subr.mxu0 0.0
    %5907 = vmatpush1.msra.mxu0 0.0
    %5908 = vmatprep.subr.mxu0 0.0
    %5909 = vmatpush1.msra.mxu0 0.0
    %5910 = vmatprep.subr.mxu0 0.0
    %5911 = vmatpush1.msra.mxu0 0.0
    %5912 = vmatprep.subr.mxu0 0.0
    %5913 = vmatpush1.msra.mxu0 %v5868
    %5914 = vmatprep.subr.mxu0 0.0
    %5915 = vmatpush1.msra.mxu0 %v5867
    %5916 = vmatprep.subr.mxu0 0.0
    %5917 = vmatpush1.msra.mxu0 %v5866
    %5918 = vmatprep.subr.mxu0 0.0
    %5919 = vmatpush1.msra.mxu0 %v5865
    %5920 = vmatprep.subr.mxu0 0.0
    %5921 = vmatpush2.msra.mxu0 0.0
    %5922 = vmatprep.subr.mxu0 0.0
    %5923 = vmatpush2.msra.mxu0 0.0
    %5924 = vmatprep.subr.mxu0 0.0
    %5925 = vmatpush2.msra.mxu0 0.0
    %5926 = vmatprep.subr.mxu0 0.0
    %5927 = vmatpush2.msra.mxu0 0.0
    %5928 = vmatprep.subr.mxu0 0.0
    %5929 = vmatpush2.msra.mxu0 0.0
    %5930 = vmatprep.subr.mxu0 0.0
    %5931 = vmatpush2.msra.mxu0 0.0
    %5932 = vmatprep.subr.mxu0 0.0
    %5933 = vmatpush2.msra.mxu0 0.0
    %5934 = vmatprep.subr.mxu0 0.0
    %5935 = vmatpush2.msra.mxu0 0.0
    %5936 = vmatprep.subr.mxu0 0.0
    %5937 = vmatpush2.msra.mxu0 0.0
    %5938 = vmatprep.subr.mxu0 0.0
    %5939 = vmatpush2.msra.mxu0 0.0
    %5940 = vmatprep.subr.mxu0 0.0
    %5941 = vmatpush2.msra.mxu0 0.0
    %5942 = vmatprep.subr.mxu0 0.0
    %5943 = vmatpush2.msra.mxu0 0.0
    %5944 = vmatprep.subr.mxu0 0.0
    %5945 = vmatpush2.msra.mxu0 0.0
    %5946 = vmatprep.subr.mxu0 0.0
    %5947 = vmatpush2.msra.mxu0 0.0
    %5948 = vmatprep.subr.mxu0 0.0
    %5949 = vmatpush2.msra.mxu0 0.0
    %5950 = vmatprep.subr.mxu0 0.0
    %5951 = vmatpush2.msra.mxu0 0.0
    %5952 = vmatprep.mubr.f32.mxu0 0.0
    %5953 = vmatmul.mubr.f32.gmra.mxu0 %v5877
    %v5954 = vpop.f32.mrf.mxu0
    %v5955 = vadd.f32 %v5874, %v5954
    %v5956 = vpop.f32.mrf.mxu0
    %5957 = vmatprep.mubr.f32.mxu0 0.0
    %5958 = vmatmul.mubr.f32.gmra.mxu0 %v5880
    %v5959 = vpop.f32.mrf.mxu0
    %v5960 = vadd.f32 %v5874, %v5959
    %v5961 = vpop.f32.mrf.mxu0
    %5962 = vmatprep.mubr.f32.mxu0 0.0
    %5963 = vmatmul.mubr.f32.gmra.mxu0 %v5883
    %v5964 = vpop.f32.mrf.mxu0
    %v5965 = vadd.f32 %v5874, %v5964
    %v5966 = vpop.f32.mrf.mxu0
    %5967 = vmatprep.mubr.f32.mxu0 0.0
    %5968 = vmatmul.mubr.f32.gmra.mxu0 %v5886
    %v5969 = vpop.f32.mrf.mxu0
    %v5970 = vadd.f32 %v5874, %v5969
    %v5971 = vpop.f32.mrf.mxu0
    %5972 = vdwg.mxu0
    %v5973 = vmul.f32 %v5955, 0.5
    %v5974 = vmul.f32 %v5960, 0.5
    %v5975 = vmul.f32 %v5965, 0.5
    %v5976 = vmul.f32 %v5970, 0.5
    %v5977 = vmul.f32 %v5955, 0.70710677
    %v5978 = vmul.f32 %v5960, 0.70710677
    %v5979 = vmul.f32 %v5965, 0.70710677
    %v5980 = vmul.f32 %v5970, 0.70710677
    %v5981 = verf.f32.pop %v5977
    %v5982 = verf.f32.pop %v5978
    %v5983 = verf.f32.pop %v5979
    %v5984 = verf.f32.pop %v5980
    %v5985 = vadd.f32 %v5981, 1.0
    %v5986 = vadd.f32 %v5982, 1.0
    %v5987 = vadd.f32 %v5983, 1.0
    %v5988 = vadd.f32 %v5984, 1.0
    %v5989 = vmul.f32 %v5973, %v5985
    %v5990 = vmul.f32 %v5974, %v5986
    %v5991 = vmul.f32 %v5975, %v5987
    %v5992 = vmul.f32 %v5976, %v5988
    %v5993 = vld [vmem:[%s53] sm:$0xff]
    %v5994 = vld [vmem:[%s53 + $0x8] sm:$0xff]
    %v5995 = vld [vmem:[%s53 + $0x10] sm:$0xff]
    %v5996 = vld [vmem:[%s53 + $0x18] sm:$0xff]
    %v5997 = vld [vmem:[%s53 + $0x20] sm:$0xff]
    %v5998 = vld [vmem:[%s53 + $0x28] sm:$0xff]
    %v5999 = vld [vmem:[%s53 + $0x30] sm:$0xff]
    %v6000 = vld [vmem:[%s53 + $0x38] sm:$0xff]
    %v6001 = vld [vmem:[#allocation14] sm:$0x1]
    %v6003 = vlaneseq
    %v6004 = vshrl.u32 %v6003, 7
    %v6005 = vsub.s32 0, %v6004
    %v6006 = vrot.slane %v6001, %v6005
    %v6009 = vsel %vm3183, %v5989, 0
    %v6012 = vsel %vm3183, %v5990, 0
    %v6015 = vsel %vm3183, %v5991, 0
    %v6018 = vsel %vm3183, %v5992, 0
    %6020 = vmatprep.subr.mxu0 0.0
    %6021 = vmatpush1.msra.mxu0 0.0
    %6022 = vmatprep.subr.mxu0 0.0
    %6023 = vmatpush1.msra.mxu0 0.0
    %6024 = vmatprep.subr.mxu0 0.0
    %6025 = vmatpush1.msra.mxu0 0.0
    %6026 = vmatprep.subr.mxu0 0.0
    %6027 = vmatpush1.msra.mxu0 0.0
    %6028 = vmatprep.subr.mxu0 0.0
    %6029 = vmatpush1.msra.mxu0 0.0
    %6030 = vmatprep.subr.mxu0 0.0
    %6031 = vmatpush1.msra.mxu0 0.0
    %6032 = vmatprep.subr.mxu0 0.0
    %6033 = vmatpush1.msra.mxu0 0.0
    %6034 = vmatprep.subr.mxu0 0.0
    %6035 = vmatpush1.msra.mxu0 0.0
    %6036 = vmatprep.subr.mxu0 0.0
    %6037 = vmatpush1.msra.mxu0 %v6000
    %6038 = vmatprep.subr.mxu0 0.0
    %6039 = vmatpush1.msra.mxu0 %v5999
    %6040 = vmatprep.subr.mxu0 0.0
    %6041 = vmatpush1.msra.mxu0 %v5998
    %6042 = vmatprep.subr.mxu0 0.0
    %6043 = vmatpush1.msra.mxu0 %v5997
    %6044 = vmatprep.subr.mxu0 0.0
    %6045 = vmatpush1.msra.mxu0 %v5996
    %6046 = vmatprep.subr.mxu0 0.0
    %6047 = vmatpush1.msra.mxu0 %v5995
    %6048 = vmatprep.subr.mxu0 0.0
    %6049 = vmatpush1.msra.mxu0 %v5994
    %6050 = vmatprep.subr.mxu0 0.0
    %6051 = vmatpush1.msra.mxu0 %v5993
    %6052 = vmatprep.subr.mxu0 0.0
    %6053 = vmatpush2.msra.mxu0 0.0
    %6054 = vmatprep.subr.mxu0 0.0
    %6055 = vmatpush2.msra.mxu0 0.0
    %6056 = vmatprep.subr.mxu0 0.0
    %6057 = vmatpush2.msra.mxu0 0.0
    %6058 = vmatprep.subr.mxu0 0.0
    %6059 = vmatpush2.msra.mxu0 0.0
    %6060 = vmatprep.subr.mxu0 0.0
    %6061 = vmatpush2.msra.mxu0 0.0
    %6062 = vmatprep.subr.mxu0 0.0
    %6063 = vmatpush2.msra.mxu0 0.0
    %6064 = vmatprep.subr.mxu0 0.0
    %6065 = vmatpush2.msra.mxu0 0.0
    %6066 = vmatprep.subr.mxu0 0.0
    %6067 = vmatpush2.msra.mxu0 0.0
    %6068 = vmatprep.subr.mxu0 0.0
    %6069 = vmatpush2.msra.mxu0 0.0
    %6070 = vmatprep.subr.mxu0 0.0
    %6071 = vmatpush2.msra.mxu0 0.0
    %6072 = vmatprep.subr.mxu0 0.0
    %6073 = vmatpush2.msra.mxu0 0.0
    %6074 = vmatprep.subr.mxu0 0.0
    %6075 = vmatpush2.msra.mxu0 0.0
    %6076 = vmatprep.subr.mxu0 0.0
    %6077 = vmatpush2.msra.mxu0 0.0
    %6078 = vmatprep.subr.mxu0 0.0
    %6079 = vmatpush2.msra.mxu0 0.0
    %6080 = vmatprep.subr.mxu0 0.0
    %6081 = vmatpush2.msra.mxu0 0.0
    %6082 = vmatprep.subr.mxu0 0.0
    %6083 = vmatpush2.msra.mxu0 0.0
    %6084 = vmatprep.mubr.f32.mxu0 0.0
    %6085 = vmatmul.mubr.f32.gmra.mxu0 %v6009
    %v6086 = vpop.f32.mrf.mxu0
    %v6087 = vadd.f32 %v6006, %v6086
    %v6088 = vpop.f32.mrf.mxu0
    %6089 = vmatprep.mubr.f32.mxu0 0.0
    %6090 = vmatmul.mubr.f32.gmra.mxu0 %v6012
    %v6091 = vpop.f32.mrf.mxu0
    %v6092 = vadd.f32 %v6006, %v6091
    %v6093 = vpop.f32.mrf.mxu0
    %6094 = vmatprep.mubr.f32.mxu0 0.0
    %6095 = vmatmul.mubr.f32.gmra.mxu0 %v6015
    %v6096 = vpop.f32.mrf.mxu0
    %v6097 = vadd.f32 %v6006, %v6096
    %v6098 = vpop.f32.mrf.mxu0
    %6099 = vmatprep.mubr.f32.mxu0 0.0
    %6100 = vmatmul.mubr.f32.gmra.mxu0 %v6018
    %v6101 = vpop.f32.mrf.mxu0
    %v6102 = vadd.f32 %v6006, %v6101
    %v6103 = vpop.f32.mrf.mxu0
    %6104 = vdwg.mxu0
    %v6105 = vadd.f32 %v5861, %v6087
    %v6106 = vadd.f32 %v5862, %v6092
    %v6107 = vadd.f32 %v5863, %v6097
    %v6108 = vadd.f32 %v5864, %v6102
    %v6109 = vld [vmem:[#allocation16] sm:$0x1]
    %v6110 = vld [vmem:[#allocation17] sm:$0x1]
    %v6111 = vsel %vm289, %v6105, 0.0
    %6112 = vadd.xlane.f32.xlu0 %v6111
    %v6113 = vpop.xlane.xlu0 %6112
    %v6114 = vsel %vm289, %v6106, 0.0
    %6115 = vadd.xlane.f32.xlu0 %v6114
    %v6116 = vpop.xlane.xlu0 %6115
    %v6117 = vsel %vm289, %v6107, 0.0
    %6118 = vadd.xlane.f32.xlu0 %v6117
    %v6119 = vpop.xlane.xlu0 %6118
    %v6120 = vsel %vm289, %v6108, 0.0
    %6121 = vadd.xlane.f32.xlu0 %v6120
    %v6122 = vpop.xlane.xlu0 %6121
    %v6123 = vmul.f32 %v6113, %v1806
    %v6124 = vmul.f32 %v6116, %v1806
    %v6125 = vmul.f32 %v6119, %v1806
    %v6126 = vmul.f32 %v6122, %v1806
    %v6127 = vsub.f32 %v6105, %v6123
    %v6128 = vsub.f32 %v6106, %v6124
    %v6129 = vsub.f32 %v6107, %v6125
    %v6130 = vsub.f32 %v6108, %v6126
    %v6131 = vmul.f32 %v6127, %v6127
    %v6132 = vmul.f32 %v6128, %v6128
    %v6133 = vmul.f32 %v6129, %v6129
    %v6134 = vmul.f32 %v6130, %v6130
    %v6135 = vsel %vm289, %v6131, 0.0
    %6136 = vadd.xlane.f32.xlu0 %v6135
    %v6137 = vpop.xlane.xlu0 %6136
    %v6138 = vsel %vm289, %v6132, 0.0
    %6139 = vadd.xlane.f32.xlu0 %v6138
    %v6140 = vpop.xlane.xlu0 %6139
    %v6141 = vsel %vm289, %v6133, 0.0
    %6142 = vadd.xlane.f32.xlu0 %v6141
    %v6143 = vpop.xlane.xlu0 %6142
    %v6144 = vsel %vm289, %v6134, 0.0
    %6145 = vadd.xlane.f32.xlu0 %v6144
    %v6146 = vpop.xlane.xlu0 %6145
    %v6147 = vmul.f32 %v6137, %v1806
    %v6148 = vmul.f32 %v6140, %v1806
    %v6149 = vmul.f32 %v6143, %v1806
    %v6150 = vmul.f32 %v6146, %v1806
    %v6151 = vadd.f32 %v6147, 1e-05
    %v6152 = vadd.f32 %v6148, 1e-05
    %v6153 = vadd.f32 %v6149, 1e-05
    %v6154 = vadd.f32 %v6150, 1e-05
    %v6155 = vrsqrt.pop %v6151
    %v6156 = vrsqrt.pop %v6152
    %v6157 = vrsqrt.pop %v6153
    %v6158 = vrsqrt.pop %v6154
    %v6159 = vmul.f32 %v6127, %v6155
    %v6160 = vmul.f32 %v6128, %v6156
    %v6161 = vmul.f32 %v6129, %v6157
    %v6162 = vmul.f32 %v6130, %v6158
    %v6164 = vlaneseq
    %v6165 = vshrl.u32 %v6164, 7
    %v6166 = vsub.s32 0, %v6165
    %v6167 = vrot.slane %v6109, %v6166
    %v6169 = vmul.f32 %v6159, %v6167
    %v6170 = vmul.f32 %v6160, %v6167
    %v6171 = vmul.f32 %v6161, %v6167
    %v6172 = vmul.f32 %v6162, %v6167
    %v6174 = vlaneseq
    %v6175 = vshrl.u32 %v6174, 7
    %v6176 = vsub.s32 0, %v6175
    %v6177 = vrot.slane %v6110, %v6176
    %v6179 = vadd.f32 %v6169, %v6177
    %v6180 = vadd.f32 %v6170, %v6177
    %v6181 = vadd.f32 %v6171, %v6177
    %v6182 = vadd.f32 %v6172, %v6177
    %6183 = vst.msk [vmem:[#allocation2] sm:$0xff] %vm289, %v6179
    %6184 = vst.msk [vmem:[#allocation2 + $0x8] sm:$0xff] %vm289, %v6180
    %6185 = vst.msk [vmem:[#allocation2 + $0x10] sm:$0xff] %vm289, %v6181
    %6186 = vst.msk [vmem:[#allocation2 + $0x18] sm:$0xff] %vm289, %v6182
    %v6187 = vld [vmem:[#allocation2] sm:$0xff]
    %v6188 = vld [vmem:[#allocation2 + $0x8] sm:$0xff]
    %v6189 = vld [vmem:[#allocation2 + $0x10] sm:$0xff]
    %v6190 = vld [vmem:[#allocation2 + $0x18] sm:$0xff]
    %v6191 = vld [vmem:[%s9] sm:$0xff]
    %v6192 = vld [vmem:[%s9 + $0x8] sm:$0xff]
    %v6193 = vld [vmem:[%s9 + $0x10] sm:$0xff]
    %v6194 = vld [vmem:[%s9 + $0x18] sm:$0xff]
    %v6195 = vld [vmem:[%s11] sm:$0x1]
    %v6197 = vlaneseq
    %v6198 = vshrl.u32 %v6197, 7
    %v6199 = vsub.s32 0, %v6198
    %v6200 = vrot.slane %v6195, %v6199
    %v6203 = vsel %vm289, %v6187, 0
    %v6206 = vsel %vm289, %v6188, 0
    %v6209 = vsel %vm289, %v6189, 0
    %v6212 = vsel %vm289, %v6190, 0
    %6214 = vmatprep.subr.mxu0 0.0
    %6215 = vmatpush1.msra.mxu0 0.0
    %6216 = vmatprep.subr.mxu0 0.0
    %6217 = vmatpush1.msra.mxu0 0.0
    %6218 = vmatprep.subr.mxu0 0.0
    %6219 = vmatpush1.msra.mxu0 0.0
    %6220 = vmatprep.subr.mxu0 0.0
    %6221 = vmatpush1.msra.mxu0 0.0
    %6222 = vmatprep.subr.mxu0 0.0
    %6223 = vmatpush1.msra.mxu0 0.0
    %6224 = vmatprep.subr.mxu0 0.0
    %6225 = vmatpush1.msra.mxu0 0.0
    %6226 = vmatprep.subr.mxu0 0.0
    %6227 = vmatpush1.msra.mxu0 0.0
    %6228 = vmatprep.subr.mxu0 0.0
    %6229 = vmatpush1.msra.mxu0 0.0
    %6230 = vmatprep.subr.mxu0 0.0
    %6231 = vmatpush1.msra.mxu0 0.0
    %6232 = vmatprep.subr.mxu0 0.0
    %6233 = vmatpush1.msra.mxu0 0.0
    %6234 = vmatprep.subr.mxu0 0.0
    %6235 = vmatpush1.msra.mxu0 0.0
    %6236 = vmatprep.subr.mxu0 0.0
    %6237 = vmatpush1.msra.mxu0 0.0
    %6238 = vmatprep.subr.mxu0 0.0
    %6239 = vmatpush1.msra.mxu0 %v6194
    %6240 = vmatprep.subr.mxu0 0.0
    %6241 = vmatpush1.msra.mxu0 %v6193
    %6242 = vmatprep.subr.mxu0 0.0
    %6243 = vmatpush1.msra.mxu0 %v6192
    %6244 = vmatprep.subr.mxu0 0.0
    %6245 = vmatpush1.msra.mxu0 %v6191
    %6246 = vmatprep.subr.mxu0 0.0
    %6247 = vmatpush2.msra.mxu0 0.0
    %6248 = vmatprep.subr.mxu0 0.0
    %6249 = vmatpush2.msra.mxu0 0.0
    %6250 = vmatprep.subr.mxu0 0.0
    %6251 = vmatpush2.msra.mxu0 0.0
    %6252 = vmatprep.subr.mxu0 0.0
    %6253 = vmatpush2.msra.mxu0 0.0
    %6254 = vmatprep.subr.mxu0 0.0
    %6255 = vmatpush2.msra.mxu0 0.0
    %6256 = vmatprep.subr.mxu0 0.0
    %6257 = vmatpush2.msra.mxu0 0.0
    %6258 = vmatprep.subr.mxu0 0.0
    %6259 = vmatpush2.msra.mxu0 0.0
    %6260 = vmatprep.subr.mxu0 0.0
    %6261 = vmatpush2.msra.mxu0 0.0
    %6262 = vmatprep.subr.mxu0 0.0
    %6263 = vmatpush2.msra.mxu0 0.0
    %6264 = vmatprep.subr.mxu0 0.0
    %6265 = vmatpush2.msra.mxu0 0.0
    %6266 = vmatprep.subr.mxu0 0.0
    %6267 = vmatpush2.msra.mxu0 0.0
    %6268 = vmatprep.subr.mxu0 0.0
    %6269 = vmatpush2.msra.mxu0 0.0
    %6270 = vmatprep.subr.mxu0 0.0
    %6271 = vmatpush2.msra.mxu0 0.0
    %6272 = vmatprep.subr.mxu0 0.0
    %6273 = vmatpush2.msra.mxu0 0.0
    %6274 = vmatprep.subr.mxu0 0.0
    %6275 = vmatpush2.msra.mxu0 0.0
    %6276 = vmatprep.subr.mxu0 0.0
    %6277 = vmatpush2.msra.mxu0 0.0
    %6278 = vmatprep.mubr.f32.mxu0 0.0
    %6279 = vmatmul.mubr.f32.gmra.mxu0 %v6203
    %v6280 = vpop.f32.mrf.mxu0
    %v6281 = vadd.f32 %v6200, %v6280
    %v6282 = vpop.f32.mrf.mxu0
    %6283 = vmatprep.mubr.f32.mxu0 0.0
    %6284 = vmatmul.mubr.f32.gmra.mxu0 %v6206
    %v6285 = vpop.f32.mrf.mxu0
    %v6286 = vadd.f32 %v6200, %v6285
    %v6287 = vpop.f32.mrf.mxu0
    %6288 = vmatprep.mubr.f32.mxu0 0.0
    %6289 = vmatmul.mubr.f32.gmra.mxu0 %v6209
    %v6290 = vpop.f32.mrf.mxu0
    %v6291 = vadd.f32 %v6200, %v6290
    %v6292 = vpop.f32.mrf.mxu0
    %6293 = vmatprep.mubr.f32.mxu0 0.0
    %6294 = vmatmul.mubr.f32.gmra.mxu0 %v6212
    %v6295 = vpop.f32.mrf.mxu0
    %v6296 = vadd.f32 %v6200, %v6295
    %v6297 = vpop.f32.mrf.mxu0
    %6298 = vdwg.mxu0
    %v6299 = vsub.f32 0.0, %v6281
    %v6300 = vsub.f32 0.0, %v6286
    %v6301 = vsub.f32 0.0, %v6291
    %v6302 = vsub.f32 0.0, %v6296
    %v6303 = vmul.f32 %v6299, 1.442695
    %v6304 = vpow.pop %v6303
    %v6305 = vmul.f32 %v6300, 1.442695
    %v6306 = vpow.pop %v6305
    %v6307 = vmul.f32 %v6301, 1.442695
    %v6308 = vpow.pop %v6307
    %v6309 = vmul.f32 %v6302, 1.442695
    %v6310 = vpow.pop %v6309
    %v6311 = vadd.f32 %v6304, 1.0
    %v6312 = vadd.f32 %v6306, 1.0
    %v6313 = vadd.f32 %v6308, 1.0
    %v6314 = vadd.f32 %v6310, 1.0
    %v6315 = vrcp.pop %v6311
    %v6316 = vmul.f32 1.0, %v6315
    %v6317 = vrcp.pop %v6312
    %v6318 = vmul.f32 1.0, %v6317
    %v6319 = vrcp.pop %v6313
    %v6320 = vmul.f32 1.0, %v6319
    %v6321 = vrcp.pop %v6314
    %v6322 = vmul.f32 1.0, %v6321
    %vm6323 = vcmask 400384
    %6324 = vst.msk [vmem:[%s61] sm:$0xff] %vm6323, %v6316
    %6325 = vst.msk [vmem:[%s61 + $0x8] sm:$0xff] %vm6323, %v6318
    %6326 = vst.msk [vmem:[%s61 + $0x10] sm:$0xff] %vm6323, %v6320
    %6327 = vst.msk [vmem:[%s61 + $0x18] sm:$0xff] %vm6323, %v6322
    // Predicated region
    $region162: #{vit_decoder_forward.1} parent=1 // pred_check
      _
    $region163: #{vit_decoder_forward.1} parent=1 // pred_check_branch
      %6329 = sbr.rel (0) target = $region165
    $region164: #{vit_decoder_forward.1} parent=1 // pred_region
      _
    $region165: #{vit_decoder_forward.1} parent=1 // pred_fallthru
      _
    // Predicated region
    $region166: #{vit_decoder_forward.1} parent=1 // pred_check
      _
    $region167: #{vit_decoder_forward.1} parent=1 // pred_check_branch
      %6331 = sbr.rel (0) target = $region169
    $region168: #{vit_decoder_forward.1} parent=1 // pred_region
      _
    $region169: #{vit_decoder_forward.1} parent=1 // pred_fallthru
      _
    %6332 = vsyncpa [#allocation4], 1
    %6333 = vsyncpa [#allocation6], 1
    %6334 = vsyncpa [#allocation9], 1
    %6335 = vsyncpa [#allocation12], 1
    %6336 = vsyncpa [#allocation15], 1
    %6337 = vsyncpa [#allocation18], 1

</llo_original>
